<compile_context>
chip_gen: v5e
topology: v5e:2x2
jax: 0.10.0
libtpu: 0.0.40
codegen_flags: <defaults>
</compile_context>

<pallas_src>
import functools

import jax
import jax.numpy as jnp
from jax.experimental import pallas as pl
from jax.experimental.pallas import tpu as pltpu

ENC_IN, ENC_H = 5, 128      # nn.GRU(5, 128)
DEC_IN, DEC_H = 129, 256    # nn.GRU(129, 256)  (input = concat(contex[128], y[i][1]))
OUT_DIM = 4                 # nn.Linear(256, 4)
OUT_PAD = 128               # lane-dense head width; wrapper slices back to OUT_DIM
DEC_STEPS = 10              # `size = 10` in the module


def seq2seq_kernel(x_ref, y_ref,
                   enc_wih_ref, enc_whh_ref, enc_bi_ref, enc_bhn_ref,
                   dec_wih_ctx_ref, dec_wih_y_ref, dec_whh_ref,
                   dec_bi_ref, dec_bhn_ref,
                   lin_w_ref, lin_b_ref,
                   res_ref,
                   gi_enc_ref, hsteps_ref,
                   *, seq, bp):
    f32 = jnp.float32
    bf16 = jnp.bfloat16
    HE, HD = ENC_H, DEC_H

    # ------------------------------------------------------------------ encoder ---------
    # Hoisted bf16 input projection for ALL timesteps, staged in VMEM scratch so the
    # unrolled recurrence reads one aligned (bp, 384) slice per step (no vreg spills).
    gi_enc_ref[...] = (jnp.dot(x_ref[...].astype(bf16), enc_wih_ref[...],
                               preferred_element_type=f32)
                       + enc_bi_ref[...])                               # (seq*bp, 3*128)
    enc_bhn = enc_bhn_ref[...]                                          # (1, 128)
    whh = enc_whh_ref[...]                                              # (128, 384) bf16, loaded ONCE

    h = jnp.zeros((bp, HE), f32)
    for t in range(seq):                                                # static unroll
        gi = gi_enc_ref[t * bp:(t + 1) * bp, :]                         # aligned VMEM load
        gh = jnp.dot(h.astype(bf16), whh, preferred_element_type=f32)   # (bp, 3*128) f32
        rz = jax.nn.sigmoid(gi[:, :2 * HE] + gh[:, :2 * HE])            # fused r/z sigmoid
        r, z = rz[:, :HE], rz[:, HE:]
        n = jnp.tanh(gi[:, 2 * HE:] + r * (gh[:, 2 * HE:] + enc_bhn))
        h = n + z * (h - n)                                             # == (1-z)*n + z*h
    ctx = h                                                             # (bp, 128)

    # ------------------------------------------------------------------ decoder ---------
    # `_, shape = self.decoder(contex_)` is used only for its shape; the decoder hidden
    # state is then initialized to ones_like(shape).
    # Encoder-context part of the decoder input is constant across steps -> hoisted once;
    # the y contribution is a rank-1 VPU FMA computed per step (hides under matmul latency).
    gctx = (jnp.dot(ctx.astype(bf16), dec_wih_ctx_ref[...],
                    preferred_element_type=f32) + dec_bi_ref[...])      # (bp, 3*256)
    w_y_b = jnp.broadcast_to(dec_wih_y_ref[...], (bp, 3 * HD))          # broadcast ONCE
    dec_bhn = dec_bhn_ref[...]                                          # (1, 256)
    dhh = dec_whh_ref[...]                                              # (256, 768) bf16, loaded ONCE

    hd = jnp.ones((bp, HD), f32)
    for i in range(DEC_STEPS):                                          # static unroll
        gi = gctx + y_ref[i * bp:(i + 1) * bp, :] * w_y_b               # (bp, 3*256)
        gh = jnp.dot(hd.astype(bf16), dhh, preferred_element_type=f32)  # (bp, 3*256) f32
        rz = jax.nn.sigmoid(gi[:, :2 * HD] + gh[:, :2 * HD])
        r, z = rz[:, :HD], rz[:, HD:]
        n = jnp.tanh(gi[:, 2 * HD:] + r * (gh[:, 2 * HD:] + dec_bhn))
        hd = n + z * (hd - n)
        hsteps_ref[i * bp:(i + 1) * bp, :] = hd                         # stage in VMEM scratch

    # ---------------------------------------------------------------- linear head -------
    # One matmul over all decoder steps, lane-dense (128-wide) output, one unmasked store.
    head = (jnp.dot(hsteps_ref[...].astype(bf16), lin_w_ref[...],
                    preferred_element_type=f32) + lin_b_ref[...])       # (10*bp, 128)
    res_ref[0:DEC_STEPS * bp, :] = head.astype(res_ref.dtype)

    # res = torch.ones(seq, batch, 4): rows >= DEC_STEPS keep the 1.0 fill (written once).
    if seq > DEC_STEPS:
        res_ref[DEC_STEPS * bp:seq * bp, :] = jnp.full(
            ((seq - DEC_STEPS) * bp, OUT_PAD), 1.0, dtype=res_ref.dtype)


def seq2seq_fuelcell_forward(x, y, params):
    """x: (batch, seq, 5), y: (batch, seq_y, 1); returns (batch, seq, 4)."""
    batch, seq, _ = x.shape
    # Guard: the module writes res[0..9] and reads y[0..9].
    assert seq >= DEC_STEPS, "seq2seq_fuelcell requires seq >= 10"
    assert y.shape[0] == batch and y.shape[1] >= DEC_STEPS

    bp = ((batch + 15) // 16) * 16                   # bf16-LHS sublane multiple (16)

    xt = jnp.transpose(x, (1, 0, 2)).astype(jnp.float32)          # (seq, batch, 5)
    yt = jnp.transpose(y, (1, 0, 2)).astype(jnp.float32)          # (seq_y, batch, 1)
    xt = jnp.pad(xt, ((0, 0), (0, bp - batch), (0, 0)))
    yt = jnp.pad(yt[:DEC_STEPS], ((0, 0), (0, bp - batch), (0, 0)))
    x2d = xt.reshape(seq * bp, ENC_IN)                            # (seq*bp, 5)
    y2d = yt.reshape(DEC_STEPS * bp, 1)                           # (10*bp, 1)

    inputs = (x2d, y2d,
              params['enc_wih_t'], params['enc_whh_t'],
              params['enc_bi'], params['enc_bhn'],
              params['dec_wih_ctx_t'], params['dec_wih_y_t'], params['dec_whh_t'],
              params['dec_bi'], params['dec_bhn'],
              params['lin_w_t'], params['lin_b'])

    vspec = pl.BlockSpec(memory_space=pltpu.MemorySpace.VMEM)
    res2d = pl.pallas_call(
        functools.partial(seq2seq_kernel, seq=seq, bp=bp),
        out_shape=jax.ShapeDtypeStruct((seq * bp, OUT_PAD), jnp.float32),
        in_specs=[vspec] * len(inputs),
        out_specs=vspec,
        scratch_shapes=[
            pltpu.VMEM((seq * bp, 3 * ENC_H), jnp.float32),       # staged encoder gi
            pltpu.VMEM((DEC_STEPS * bp, DEC_H), jnp.float32),     # staged decoder hiddens
        ],
    )(*inputs)

    res = res2d.reshape(seq, bp, OUT_PAD)[:, :batch, :OUT_DIM]
    return jnp.transpose(res, (1, 0, 2))                          # (batch, seq, 4)


def init_raw_params(key):
    ks = jax.random.split(key, 10)

    def u(k, shape, bound):
        return jax.random.uniform(k, shape, jnp.float32, -bound, bound)

    be = 1.0 / float(jnp.sqrt(jnp.float32(ENC_H)))
    bd = 1.0 / float(jnp.sqrt(jnp.float32(DEC_H)))
    bl = 1.0 / float(jnp.sqrt(jnp.float32(DEC_H)))
    return dict(
        enc_wih=u(ks[0], (3 * ENC_H, ENC_IN), be),
        enc_whh=u(ks[1], (3 * ENC_H, ENC_H), be),
        enc_bih=u(ks[2], (3 * ENC_H,), be),
        enc_bhh=u(ks[3], (3 * ENC_H,), be),
        dec_wih=u(ks[4], (3 * DEC_H, DEC_IN), bd),
        dec_whh=u(ks[5], (3 * DEC_H, DEC_H), bd),
        dec_bih=u(ks[6], (3 * DEC_H,), bd),
        dec_bhh=u(ks[7], (3 * DEC_H,), bd),
        lin_w=u(ks[8], (OUT_DIM, DEC_H), bl),
        lin_b=u(ks[9], (OUT_DIM,), bl),
    )


def _fold_bias(bih, bhh, H):
    # r/z thirds: b_ih + b_hh pre-folded; n third keeps only b_ih (b_hh_n is applied
    # inside r * (gh_n + b_hh_n) to match the PyTorch GRU formula).
    bi = jnp.concatenate([bih[:2 * H] + bhh[:2 * H], bih[2 * H:]])[None, :]
    bhn = bhh[2 * H:][None, :]
    return bi, bhn


def pack_params(raw):
    bf16 = jnp.bfloat16
    enc_bi, enc_bhn = _fold_bias(raw['enc_bih'], raw['enc_bhh'], ENC_H)
    dec_bi, dec_bhn = _fold_bias(raw['dec_bih'], raw['dec_bhh'], DEC_H)
    # Lane-dense head: zero-pad Linear(256,4) -> (256,128) so the kernel output stores
    # are full 128-lane vst (wrapper slices [:, :4] back).
    lin_w_pad = jnp.zeros((DEC_H, OUT_PAD), jnp.float32).at[:, :OUT_DIM].set(raw['lin_w'].T)
    lin_b_pad = jnp.zeros((1, OUT_PAD), jnp.float32).at[0, :OUT_DIM].set(raw['lin_b'])
    return dict(
        # all MXU operands bf16 (single-pass); gate math / accumulation stay f32
        enc_wih_t=raw['enc_wih'].T.astype(bf16),              # (5, 384)   bf16
        dec_wih_ctx_t=raw['dec_wih'][:, :ENC_H].T.astype(bf16),  # (128, 768) bf16
        lin_w_t=lin_w_pad.astype(bf16),                       # (256, 128) bf16
        enc_whh_t=raw['enc_whh'].T.astype(bf16),              # (128, 384) bf16
        dec_whh_t=raw['dec_whh'].T.astype(bf16),              # (256, 768) bf16
        # VPU-only operands / biases stay f32
        dec_wih_y_t=raw['dec_wih'][:, ENC_H:].T,              # (1, 768)   f32
        enc_bi=enc_bi, enc_bhn=enc_bhn,                       # (1,384), (1,128)
        dec_bi=dec_bi, dec_bhn=dec_bhn,                       # (1,768), (1,256)
        lin_b=lin_b_pad,                                      # (1, 128)
    )


def reference_forward(x, y, raw):
    """Pure-JAX (f32) replica of the PyTorch forward, for correctness checking."""
    xt = jnp.transpose(x, (1, 0, 2)).astype(jnp.float32)
    yt = jnp.transpose(y, (1, 0, 2)).astype(jnp.float32)
    seq, batch, _ = xt.shape

    def cell(xv, h, wih, whh, bih, bhh, H):
        gi = xv @ wih.T + bih
        gh = h @ whh.T + bhh
        r = jax.nn.sigmoid(gi[:, :H] + gh[:, :H])
        z = jax.nn.sigmoid(gi[:, H:2 * H] + gh[:, H:2 * H])
        n = jnp.tanh(gi[:, 2 * H:] + r * gh[:, 2 * H:])
        return (1.0 - z) * n + z * h

    h = jnp.zeros((batch, ENC_H), jnp.float32)
    for t in range(seq):
        h = cell(xt[t], h, raw['enc_wih'], raw['enc_whh'],
                 raw['enc_bih'], raw['enc_bhh'], ENC_H)
    ctx = h
    hd = jnp.ones((batch, DEC_H), jnp.float32)
    res = jnp.ones((seq, batch, OUT_DIM), jnp.float32)
    for i in range(DEC_STEPS):
        inp = jnp.concatenate([ctx, yt[i]], axis=1)
        hd = cell(inp, hd, raw['dec_wih'], raw['dec_whh'],
                  raw['dec_bih'], raw['dec_bhh'], DEC_H)
        res = res.at[i].set(hd @ raw['lin_w'].T + raw['lin_b'])
    return jnp.transpose(res, (1, 0, 2))


if __name__ == "__main__":
    key = jax.random.PRNGKey(0)
    kp, kx, ky = jax.random.split(key, 3)

    batch, seq = 2, 12                       # seq must be >= 10 (module writes res[0..9])
    x = jax.random.normal(kx, (batch, seq, ENC_IN), jnp.float32)
    y = jax.random.normal(ky, (batch, seq, 1), jnp.float32)

    raw = init_raw_params(kp)
    params = pack_params(raw)

    out = seq2seq_fuelcell_forward(x, y, params)
    out = jax.block_until_ready(out)

    ref = jax.block_until_ready(reference_forward(x, y, raw))
    assert out.shape == (batch, seq, OUT_DIM)
    # bf16 MXU operands on every matmul (per perf review); gate math stays f32, so the
    # rounding stays within a few e-3 for these magnitudes — 3e-2 tolerance has margin.
    assert jnp.allclose(out, ref, atol=3e-2, rtol=3e-2), float(jnp.max(jnp.abs(out - ref)))

    print("KERNEL_OK")
</pallas_src>

<mosaic_0001>
module attributes {stable_mosaic.version = 11 : i64} {
  func.func @seq2seq_kernel(%arg0: memref<192x5xf32, #tpu.memory_space<vmem>>, %arg1: memref<160x1xf32, #tpu.memory_space<vmem>>, %arg2: memref<5x384xbf16, #tpu.memory_space<vmem>>, %arg3: memref<128x384xbf16, #tpu.memory_space<vmem>>, %arg4: memref<1x384xf32, #tpu.memory_space<vmem>>, %arg5: memref<1x128xf32, #tpu.memory_space<vmem>>, %arg6: memref<128x768xbf16, #tpu.memory_space<vmem>>, %arg7: memref<1x768xf32, #tpu.memory_space<vmem>>, %arg8: memref<256x768xbf16, #tpu.memory_space<vmem>>, %arg9: memref<1x768xf32, #tpu.memory_space<vmem>>, %arg10: memref<1x256xf32, #tpu.memory_space<vmem>>, %arg11: memref<256x128xbf16, #tpu.memory_space<vmem>>, %arg12: memref<1x128xf32, #tpu.memory_space<vmem>>, %arg13: memref<192x128xf32, #tpu.memory_space<vmem>>, %arg14: memref<192x384xf32, #tpu.memory_space<vmem>>, %arg15: memref<160x256xf32, #tpu.memory_space<vmem>>) attributes {dimension_semantics = [], scalar_prefetch = 0 : i64, scratch_operands = 2 : i64, tpu.core_type = #tpu.core_type<tc>} {
    %c0 = arith.constant 0 : index
    %c0_0 = arith.constant 0 : index
    %0 = vector.load %arg0[%c0, %c0_0] : memref<192x5xf32, #tpu.memory_space<vmem>>, vector<192x5xf32>
    %1 = arith.truncf %0 : vector<192x5xf32> to vector<192x5xbf16>
    %c0_1 = arith.constant 0 : index
    %c0_2 = arith.constant 0 : index
    %2 = vector.load %arg2[%c0_1, %c0_2] : memref<5x384xbf16, #tpu.memory_space<vmem>>, vector<5x384xbf16>
    %cst = arith.constant dense<0.000000e+00> : vector<192x384xf32>
    %3 = tpu.matmul %1, %2, %cst {dimension_numbers = #tpu.dot_dimension_numbers<[1], [0], [0], [1], [0, 0, 1, 1], [], []>} : vector<192x5xbf16>, vector<5x384xbf16>, vector<192x384xf32> -> vector<192x384xf32>
    %c0_3 = arith.constant 0 : index
    %c0_4 = arith.constant 0 : index
    %4 = vector.load %arg4[%c0_3, %c0_4] : memref<1x384xf32, #tpu.memory_space<vmem>>, vector<1x384xf32>
    %5 = vector.broadcast %4 : vector<1x384xf32> to vector<192x384xf32>
    %6 = arith.addf %3, %5 : vector<192x384xf32>
    %c0_5 = arith.constant 0 : index
    %c0_6 = arith.constant 0 : index
    %7 = vector.load %arg14[%c0_5, %c0_6] : memref<192x384xf32, #tpu.memory_space<vmem>>, vector<192x384xf32>
    tpu.vector_store %arg14[%c0_5, %c0_6], %6 {strides = array<i32>} : memref<192x384xf32, #tpu.memory_space<vmem>>, vector<192x384xf32>,
    %c0_7 = arith.constant 0 : index
    %c0_8 = arith.constant 0 : index
    %8 = vector.load %arg5[%c0_7, %c0_8] : memref<1x128xf32, #tpu.memory_space<vmem>>, vector<1x128xf32>
    %c0_9 = arith.constant 0 : index
    %c0_10 = arith.constant 0 : index
    %9 = vector.load %arg3[%c0_9, %c0_10] : memref<128x384xbf16, #tpu.memory_space<vmem>>, vector<128x384xbf16>
    %cst_11 = arith.constant 0.000000e+00 : f32
    %10 = vector.broadcast %cst_11 : f32 to vector<16x128xf32>
    %c0_12 = arith.constant 0 : index
    %c0_13 = arith.constant 0 : index
    %11 = vector.load %arg14[%c0_12, %c0_13] : memref<192x384xf32, #tpu.memory_space<vmem>>, vector<16x384xf32>
    %12 = arith.truncf %10 : vector<16x128xf32> to vector<16x128xbf16>
    %cst_14 = arith.constant dense<0.000000e+00> : vector<16x384xf32>
    %13 = tpu.matmul %12, %9, %cst_14 {dimension_numbers = #tpu.dot_dimension_numbers<[1], [0], [0], [1], [0, 0, 1, 1], [], []>} : vector<16x128xbf16>, vector<128x384xbf16>, vector<16x384xf32> -> vector<16x384xf32>
    %14 = vector.extract_strided_slice %11 {offsets = [0, 0], sizes = [16, 256], strides = [1, 1]} : vector<16x384xf32> to vector<16x256xf32>
    %15 = vector.extract_strided_slice %13 {offsets = [0, 0], sizes = [16, 256], strides = [1, 1]} : vector<16x384xf32> to vector<16x256xf32>
    %16 = arith.addf %14, %15 : vector<16x256xf32>
    %17 = arith.negf %16 : vector<16x256xf32>
    %18 = math.exp %17 : vector<16x256xf32>
    %cst_15 = arith.constant 1.000000e+00 : f32
    %19 = vector.broadcast %cst_15 : f32 to vector<16x256xf32>
    %20 = arith.addf %19, %18 : vector<16x256xf32>
    %21 = arith.divf %19, %20 : vector<16x256xf32>
    %22 = vector.extract_strided_slice %21 {offsets = [0, 0], sizes = [16, 128], strides = [1, 1]} : vector<16x256xf32> to vector<16x128xf32>
    %23 = vector.extract_strided_slice %21 {offsets = [0, 128], sizes = [16, 128], strides = [1, 1]} : vector<16x256xf32> to vector<16x128xf32>
    %24 = vector.extract_strided_slice %11 {offsets = [0, 256], sizes = [16, 128], strides = [1, 1]} : vector<16x384xf32> to vector<16x128xf32>
    %25 = vector.extract_strided_slice %13 {offsets = [0, 256], sizes = [16, 128], strides = [1, 1]} : vector<16x384xf32> to vector<16x128xf32>
    %26 = vector.broadcast %8 : vector<1x128xf32> to vector<16x128xf32>
    %27 = arith.addf %25, %26 : vector<16x128xf32>
    %28 = arith.mulf %22, %27 : vector<16x128xf32>
    %29 = arith.addf %24, %28 : vector<16x128xf32>
    %30 = math.tanh %29 : vector<16x128xf32>
    %31 = arith.subf %10, %30 : vector<16x128xf32>
    %32 = arith.mulf %23, %31 : vector<16x128xf32>
    %33 = arith.addf %30, %32 : vector<16x128xf32>
    %c16 = arith.constant 16 : index
    %c0_16 = arith.constant 0 : index
    %34 = vector.load %arg14[%c16, %c0_16] : memref<192x384xf32, #tpu.memory_space<vmem>>, vector<16x384xf32>
    %35 = arith.truncf %33 : vector<16x128xf32> to vector<16x128xbf16>
    %cst_17 = arith.constant dense<0.000000e+00> : vector<16x384xf32>
    %36 = tpu.matmul %35, %9, %cst_17 {dimension_numbers = #tpu.dot_dimension_numbers<[1], [0], [0], [1], [0, 0, 1, 1], [], []>} : vector<16x128xbf16>, vector<128x384xbf16>, vector<16x384xf32> -> vector<16x384xf32>
    %37 = vector.extract_strided_slice %34 {offsets = [0, 0], sizes = [16, 256], strides = [1, 1]} : vector<16x384xf32> to vector<16x256xf32>
    %38 = vector.extract_strided_slice %36 {offsets = [0, 0], sizes = [16, 256], strides = [1, 1]} : vector<16x384xf32> to vector<16x256xf32>
    %39 = arith.addf %37, %38 : vector<16x256xf32>
    %40 = arith.negf %39 : vector<16x256xf32>
    %41 = math.exp %40 : vector<16x256xf32>
    %cst_18 = arith.constant 1.000000e+00 : f32
    %42 = vector.broadcast %cst_18 : f32 to vector<16x256xf32>
    %43 = arith.addf %42, %41 : vector<16x256xf32>
    %44 = arith.divf %42, %43 : vector<16x256xf32>
    %45 = vector.extract_strided_slice %44 {offsets = [0, 0], sizes = [16, 128], strides = [1, 1]} : vector<16x256xf32> to vector<16x128xf32>
    %46 = vector.extract_strided_slice %44 {offsets = [0, 128], sizes = [16, 128], strides = [1, 1]} : vector<16x256xf32> to vector<16x128xf32>
    %47 = vector.extract_strided_slice %34 {offsets = [0, 256], sizes = [16, 128], strides = [1, 1]} : vector<16x384xf32> to vector<16x128xf32>
    %48 = vector.extract_strided_slice %36 {offsets = [0, 256], sizes = [16, 128], strides = [1, 1]} : vector<16x384xf32> to vector<16x128xf32>
    %49 = vector.broadcast %8 : vector<1x128xf32> to vector<16x128xf32>
    %50 = arith.addf %48, %49 : vector<16x128xf32>
    %51 = arith.mulf %45, %50 : vector<16x128xf32>
    %52 = arith.addf %47, %51 : vector<16x128xf32>
    %53 = math.tanh %52 : vector<16x128xf32>
    %54 = arith.subf %33, %53 : vector<16x128xf32>
    %55 = arith.mulf %46, %54 : vector<16x128xf32>
    %56 = arith.addf %53, %55 : vector<16x128xf32>
    %c32 = arith.constant 32 : index
    %c0_19 = arith.constant 0 : index
    %57 = vector.load %arg14[%c32, %c0_19] : memref<192x384xf32, #tpu.memory_space<vmem>>, vector<16x384xf32>
    %58 = arith.truncf %56 : vector<16x128xf32> to vector<16x128xbf16>
    %cst_20 = arith.constant dense<0.000000e+00> : vector<16x384xf32>
    %59 = tpu.matmul %58, %9, %cst_20 {dimension_numbers = #tpu.dot_dimension_numbers<[1], [0], [0], [1], [0, 0, 1, 1], [], []>} : vector<16x128xbf16>, vector<128x384xbf16>, vector<16x384xf32> -> vector<16x384xf32>
    %60 = vector.extract_strided_slice %57 {offsets = [0, 0], sizes = [16, 256], strides = [1, 1]} : vector<16x384xf32> to vector<16x256xf32>
    %61 = vector.extract_strided_slice %59 {offsets = [0, 0], sizes = [16, 256], strides = [1, 1]} : vector<16x384xf32> to vector<16x256xf32>
    %62 = arith.addf %60, %61 : vector<16x256xf32>
    %63 = arith.negf %62 : vector<16x256xf32>
    %64 = math.exp %63 : vector<16x256xf32>
    %cst_21 = arith.constant 1.000000e+00 : f32
    %65 = vector.broadcast %cst_21 : f32 to vector<16x256xf32>
    %66 = arith.addf %65, %64 : vector<16x256xf32>
    %67 = arith.divf %65, %66 : vector<16x256xf32>
    %68 = vector.extract_strided_slice %67 {offsets = [0, 0], sizes = [16, 128], strides = [1, 1]} : vector<16x256xf32> to vector<16x128xf32>
    %69 = vector.extract_strided_slice %67 {offsets = [0, 128], sizes = [16, 128], strides = [1, 1]} : vector<16x256xf32> to vector<16x128xf32>
    %70 = vector.extract_strided_slice %57 {offsets = [0, 256], sizes = [16, 128], strides = [1, 1]} : vector<16x384xf32> to vector<16x128xf32>
    %71 = vector.extract_strided_slice %59 {offsets = [0, 256], sizes = [16, 128], strides = [1, 1]} : vector<16x384xf32> to vector<16x128xf32>
    %72 = vector.broadcast %8 : vector<1x128xf32> to vector<16x128xf32>
    %73 = arith.addf %71, %72 : vector<16x128xf32>
    %74 = arith.mulf %68, %73 : vector<16x128xf32>
    %75 = arith.addf %70, %74 : vector<16x128xf32>
    %76 = math.tanh %75 : vector<16x128xf32>
    %77 = arith.subf %56, %76 : vector<16x128xf32>
    %78 = arith.mulf %69, %77 : vector<16x128xf32>
    %79 = arith.addf %76, %78 : vector<16x128xf32>
    %c48 = arith.constant 48 : index
    %c0_22 = arith.constant 0 : index
    %80 = vector.load %arg14[%c48, %c0_22] : memref<192x384xf32, #tpu.memory_space<vmem>>, vector<16x384xf32>
    %81 = arith.truncf %79 : vector<16x128xf32> to vector<16x128xbf16>
    %cst_23 = arith.constant dense<0.000000e+00> : vector<16x384xf32>
    %82 = tpu.matmul %81, %9, %cst_23 {dimension_numbers = #tpu.dot_dimension_numbers<[1], [0], [0], [1], [0, 0, 1, 1], [], []>} : vector<16x128xbf16>, vector<128x384xbf16>, vector<16x384xf32> -> vector<16x384xf32>
    %83 = vector.extract_strided_slice %80 {offsets = [0, 0], sizes = [16, 256], strides = [1, 1]} : vector<16x384xf32> to vector<16x256xf32>
    %84 = vector.extract_strided_slice %82 {offsets = [0, 0], sizes = [16, 256], strides = [1, 1]} : vector<16x384xf32> to vector<16x256xf32>
    %85 = arith.addf %83, %84 : vector<16x256xf32>
    %86 = arith.negf %85 : vector<16x256xf32>
    %87 = math.exp %86 : vector<16x256xf32>
    %cst_24 = arith.constant 1.000000e+00 : f32
    %88 = vector.broadcast %cst_24 : f32 to vector<16x256xf32>
    %89 = arith.addf %88, %87 : vector<16x256xf32>
    %90 = arith.divf %88, %89 : vector<16x256xf32>
    %91 = vector.extract_strided_slice %90 {offsets = [0, 0], sizes = [16, 128], strides = [1, 1]} : vector<16x256xf32> to vector<16x128xf32>
    %92 = vector.extract_strided_slice %90 {offsets = [0, 128], sizes = [16, 128], strides = [1, 1]} : vector<16x256xf32> to vector<16x128xf32>
    %93 = vector.extract_strided_slice %80 {offsets = [0, 256], sizes = [16, 128], strides = [1, 1]} : vector<16x384xf32> to vector<16x128xf32>
    %94 = vector.extract_strided_slice %82 {offsets = [0, 256], sizes = [16, 128], strides = [1, 1]} : vector<16x384xf32> to vector<16x128xf32>
    %95 = vector.broadcast %8 : vector<1x128xf32> to vector<16x128xf32>
    %96 = arith.addf %94, %95 : vector<16x128xf32>
    %97 = arith.mulf %91, %96 : vector<16x128xf32>
    %98 = arith.addf %93, %97 : vector<16x128xf32>
    %99 = math.tanh %98 : vector<16x128xf32>
    %100 = arith.subf %79, %99 : vector<16x128xf32>
    %101 = arith.mulf %92, %100 : vector<16x128xf32>
    %102 = arith.addf %99, %101 : vector<16x128xf32>
    %c64 = arith.constant 64 : index
    %c0_25 = arith.constant 0 : index
    %103 = vector.load %arg14[%c64, %c0_25] : memref<192x384xf32, #tpu.memory_space<vmem>>, vector<16x384xf32>
    %104 = arith.truncf %102 : vector<16x128xf32> to vector<16x128xbf16>
    %cst_26 = arith.constant dense<0.000000e+00> : vector<16x384xf32>
    %105 = tpu.matmul %104, %9, %cst_26 {dimension_numbers = #tpu.dot_dimension_numbers<[1], [0], [0], [1], [0, 0, 1, 1], [], []>} : vector<16x128xbf16>, vector<128x384xbf16>, vector<16x384xf32> -> vector<16x384xf32>
    %106 = vector.extract_strided_slice %103 {offsets = [0, 0], sizes = [16, 256], strides = [1, 1]} : vector<16x384xf32> to vector<16x256xf32>
    %107 = vector.extract_strided_slice %105 {offsets = [0, 0], sizes = [16, 256], strides = [1, 1]} : vector<16x384xf32> to vector<16x256xf32>
    %108 = arith.addf %106, %107 : vector<16x256xf32>
    %109 = arith.negf %108 : vector<16x256xf32>
    %110 = math.exp %109 : vector<16x256xf32>
    %cst_27 = arith.constant 1.000000e+00 : f32
    %111 = vector.broadcast %cst_27 : f32 to vector<16x256xf32>
    %112 = arith.addf %111, %110 : vector<16x256xf32>
    %113 = arith.divf %111, %112 : vector<16x256xf32>
    %114 = vector.extract_strided_slice %113 {offsets = [0, 0], sizes = [16, 128], strides = [1, 1]} : vector<16x256xf32> to vector<16x128xf32>
    %115 = vector.extract_strided_slice %113 {offsets = [0, 128], sizes = [16, 128], strides = [1, 1]} : vector<16x256xf32> to vector<16x128xf32>
    %116 = vector.extract_strided_slice %103 {offsets = [0, 256], sizes = [16, 128], strides = [1, 1]} : vector<16x384xf32> to vector<16x128xf32>
    %117 = vector.extract_strided_slice %105 {offsets = [0, 256], sizes = [16, 128], strides = [1, 1]} : vector<16x384xf32> to vector<16x128xf32>
    %118 = vector.broadcast %8 : vector<1x128xf32> to vector<16x128xf32>
    %119 = arith.addf %117, %118 : vector<16x128xf32>
    %120 = arith.mulf %114, %119 : vector<16x128xf32>
    %121 = arith.addf %116, %120 : vector<16x128xf32>
    %122 = math.tanh %121 : vector<16x128xf32>
    %123 = arith.subf %102, %122 : vector<16x128xf32>
    %124 = arith.mulf %115, %123 : vector<16x128xf32>
    %125 = arith.addf %122, %124 : vector<16x128xf32>
    %c80 = arith.constant 80 : index
    %c0_28 = arith.constant 0 : index
    %126 = vector.load %arg14[%c80, %c0_28] : memref<192x384xf32, #tpu.memory_space<vmem>>, vector<16x384xf32>
    %127 = arith.truncf %125 : vector<16x128xf32> to vector<16x128xbf16>
    %cst_29 = arith.constant dense<0.000000e+00> : vector<16x384xf32>
    %128 = tpu.matmul %127, %9, %cst_29 {dimension_numbers = #tpu.dot_dimension_numbers<[1], [0], [0], [1], [0, 0, 1, 1], [], []>} : vector<16x128xbf16>, vector<128x384xbf16>, vector<16x384xf32> -> vector<16x384xf32>
    %129 = vector.extract_strided_slice %126 {offsets = [0, 0], sizes = [16, 256], strides = [1, 1]} : vector<16x384xf32> to vector<16x256xf32>
    %130 = vector.extract_strided_slice %128 {offsets = [0, 0], sizes = [16, 256], strides = [1, 1]} : vector<16x384xf32> to vector<16x256xf32>
    %131 = arith.addf %129, %130 : vector<16x256xf32>
    %132 = arith.negf %131 : vector<16x256xf32>
    %133 = math.exp %132 : vector<16x256xf32>
    %cst_30 = arith.constant 1.000000e+00 : f32
    %134 = vector.broadcast %cst_30 : f32 to vector<16x256xf32>
    %135 = arith.addf %134, %133 : vector<16x256xf32>
    %136 = arith.divf %134, %135 : vector<16x256xf32>
    %137 = vector.extract_strided_slice %136 {offsets = [0, 0], sizes = [16, 128], strides = [1, 1]} : vector<16x256xf32> to vector<16x128xf32>
    %138 = vector.extract_strided_slice %136 {offsets = [0, 128], sizes = [16, 128], strides = [1, 1]} : vector<16x256xf32> to vector<16x128xf32>
    %139 = vector.extract_strided_slice %126 {offsets = [0, 256], sizes = [16, 128], strides = [1, 1]} : vector<16x384xf32> to vector<16x128xf32>
    %140 = vector.extract_strided_slice %128 {offsets = [0, 256], sizes = [16, 128], strides = [1, 1]} : vector<16x384xf32> to vector<16x128xf32>
    %141 = vector.broadcast %8 : vector<1x128xf32> to vector<16x128xf32>
    %142 = arith.addf %140, %141 : vector<16x128xf32>
    %143 = arith.mulf %137, %142 : vector<16x128xf32>
    %144 = arith.addf %139, %143 : vector<16x128xf32>
    %145 = math.tanh %144 : vector<16x128xf32>
    %146 = arith.subf %125, %145 : vector<16x128xf32>
    %147 = arith.mulf %138, %146 : vector<16x128xf32>
    %148 = arith.addf %145, %147 : vector<16x128xf32>
    %c96 = arith.constant 96 : index
    %c0_31 = arith.constant 0 : index
    %149 = vector.load %arg14[%c96, %c0_31] : memref<192x384xf32, #tpu.memory_space<vmem>>, vector<16x384xf32>
    %150 = arith.truncf %148 : vector<16x128xf32> to vector<16x128xbf16>
    %cst_32 = arith.constant dense<0.000000e+00> : vector<16x384xf32>
    %151 = tpu.matmul %150, %9, %cst_32 {dimension_numbers = #tpu.dot_dimension_numbers<[1], [0], [0], [1], [0, 0, 1, 1], [], []>} : vector<16x128xbf16>, vector<128x384xbf16>, vector<16x384xf32> -> vector<16x384xf32>
    %152 = vector.extract_strided_slice %149 {offsets = [0, 0], sizes = [16, 256], strides = [1, 1]} : vector<16x384xf32> to vector<16x256xf32>
    %153 = vector.extract_strided_slice %151 {offsets = [0, 0], sizes = [16, 256], strides = [1, 1]} : vector<16x384xf32> to vector<16x256xf32>
    %154 = arith.addf %152, %153 : vector<16x256xf32>
    %155 = arith.negf %154 : vector<16x256xf32>
    %156 = math.exp %155 : vector<16x256xf32>
    %cst_33 = arith.constant 1.000000e+00 : f32
    %157 = vector.broadcast %cst_33 : f32 to vector<16x256xf32>
    %158 = arith.addf %157, %156 : vector<16x256xf32>
    %159 = arith.divf %157, %158 : vector<16x256xf32>
    %160 = vector.extract_strided_slice %159 {offsets = [0, 0], sizes = [16, 128], strides = [1, 1]} : vector<16x256xf32> to vector<16x128xf32>
    %161 = vector.extract_strided_slice %159 {offsets = [0, 128], sizes = [16, 128], strides = [1, 1]} : vector<16x256xf32> to vector<16x128xf32>
    %162 = vector.extract_strided_slice %149 {offsets = [0, 256], sizes = [16, 128], strides = [1, 1]} : vector<16x384xf32> to vector<16x128xf32>
    %163 = vector.extract_strided_slice %151 {offsets = [0, 256], sizes = [16, 128], strides = [1, 1]} : vector<16x384xf32> to vector<16x128xf32>
    %164 = vector.broadcast %8 : vector<1x128xf32> to vector<16x128xf32>
    %165 = arith.addf %163, %164 : vector<16x128xf32>
    %166 = arith.mulf %160, %165 : vector<16x128xf32>
    %167 = arith.addf %162, %166 : vector<16x128xf32>
    %168 = math.tanh %167 : vector<16x128xf32>
    %169 = arith.subf %148, %168 : vector<16x128xf32>
    %170 = arith.mulf %161, %169 : vector<16x128xf32>
    %171 = arith.addf %168, %170 : vector<16x128xf32>
    %c112 = arith.constant 112 : index
    %c0_34 = arith.constant 0 : index
    %172 = vector.load %arg14[%c112, %c0_34] : memref<192x384xf32, #tpu.memory_space<vmem>>, vector<16x384xf32>
    %173 = arith.truncf %171 : vector<16x128xf32> to vector<16x128xbf16>
    %cst_35 = arith.constant dense<0.000000e+00> : vector<16x384xf32>
    %174 = tpu.matmul %173, %9, %cst_35 {dimension_numbers = #tpu.dot_dimension_numbers<[1], [0], [0], [1], [0, 0, 1, 1], [], []>} : vector<16x128xbf16>, vector<128x384xbf16>, vector<16x384xf32> -> vector<16x384xf32>
    %175 = vector.extract_strided_slice %172 {offsets = [0, 0], sizes = [16, 256], strides = [1, 1]} : vector<16x384xf32> to vector<16x256xf32>
    %176 = vector.extract_strided_slice %174 {offsets = [0, 0], sizes = [16, 256], strides = [1, 1]} : vector<16x384xf32> to vector<16x256xf32>
    %177 = arith.addf %175, %176 : vector<16x256xf32>
    %178 = arith.negf %177 : vector<16x256xf32>
    %179 = math.exp %178 : vector<16x256xf32>
    %cst_36 = arith.constant 1.000000e+00 : f32
    %180 = vector.broadcast %cst_36 : f32 to vector<16x256xf32>
    %181 = arith.addf %180, %179 : vector<16x256xf32>
    %182 = arith.divf %180, %181 : vector<16x256xf32>
    %183 = vector.extract_strided_slice %182 {offsets = [0, 0], sizes = [16, 128], strides = [1, 1]} : vector<16x256xf32> to vector<16x128xf32>
    %184 = vector.extract_strided_slice %182 {offsets = [0, 128], sizes = [16, 128], strides = [1, 1]} : vector<16x256xf32> to vector<16x128xf32>
    %185 = vector.extract_strided_slice %172 {offsets = [0, 256], sizes = [16, 128], strides = [1, 1]} : vector<16x384xf32> to vector<16x128xf32>
    %186 = vector.extract_strided_slice %174 {offsets = [0, 256], sizes = [16, 128], strides = [1, 1]} : vector<16x384xf32> to vector<16x128xf32>
    %187 = vector.broadcast %8 : vector<1x128xf32> to vector<16x128xf32>
    %188 = arith.addf %186, %187 : vector<16x128xf32>
    %189 = arith.mulf %183, %188 : vector<16x128xf32>
    %190 = arith.addf %185, %189 : vector<16x128xf32>
    %191 = math.tanh %190 : vector<16x128xf32>
    %192 = arith.subf %171, %191 : vector<16x128xf32>
    %193 = arith.mulf %184, %192 : vector<16x128xf32>
    %194 = arith.addf %191, %193 : vector<16x128xf32>
    %c128 = arith.constant 128 : index
    %c0_37 = arith.constant 0 : index
    %195 = vector.load %arg14[%c128, %c0_37] : memref<192x384xf32, #tpu.memory_space<vmem>>, vector<16x384xf32>
    %196 = arith.truncf %194 : vector<16x128xf32> to vector<16x128xbf16>
    %cst_38 = arith.constant dense<0.000000e+00> : vector<16x384xf32>
    %197 = tpu.matmul %196, %9, %cst_38 {dimension_numbers = #tpu.dot_dimension_numbers<[1], [0], [0], [1], [0, 0, 1, 1], [], []>} : vector<16x128xbf16>, vector<128x384xbf16>, vector<16x384xf32> -> vector<16x384xf32>
    %198 = vector.extract_strided_slice %195 {offsets = [0, 0], sizes = [16, 256], strides = [1, 1]} : vector<16x384xf32> to vector<16x256xf32>
    %199 = vector.extract_strided_slice %197 {offsets = [0, 0], sizes = [16, 256], strides = [1, 1]} : vector<16x384xf32> to vector<16x256xf32>
    %200 = arith.addf %198, %199 : vector<16x256xf32>
    %201 = arith.negf %200 : vector<16x256xf32>
    %202 = math.exp %201 : vector<16x256xf32>
    %cst_39 = arith.constant 1.000000e+00 : f32
    %203 = vector.broadcast %cst_39 : f32 to vector<16x256xf32>
    %204 = arith.addf %203, %202 : vector<16x256xf32>
    %205 = arith.divf %203, %204 : vector<16x256xf32>
    %206 = vector.extract_strided_slice %205 {offsets = [0, 0], sizes = [16, 128], strides = [1, 1]} : vector<16x256xf32> to vector<16x128xf32>
    %207 = vector.extract_strided_slice %205 {offsets = [0, 128], sizes = [16, 128], strides = [1, 1]} : vector<16x256xf32> to vector<16x128xf32>
    %208 = vector.extract_strided_slice %195 {offsets = [0, 256], sizes = [16, 128], strides = [1, 1]} : vector<16x384xf32> to vector<16x128xf32>
    %209 = vector.extract_strided_slice %197 {offsets = [0, 256], sizes = [16, 128], strides = [1, 1]} : vector<16x384xf32> to vector<16x128xf32>
    %210 = vector.broadcast %8 : vector<1x128xf32> to vector<16x128xf32>
    %211 = arith.addf %209, %210 : vector<16x128xf32>
    %212 = arith.mulf %206, %211 : vector<16x128xf32>
    %213 = arith.addf %208, %212 : vector<16x128xf32>
    %214 = math.tanh %213 : vector<16x128xf32>
    %215 = arith.subf %194, %214 : vector<16x128xf32>
    %216 = arith.mulf %207, %215 : vector<16x128xf32>
    %217 = arith.addf %214, %216 : vector<16x128xf32>
    %c144 = arith.constant 144 : index
    %c0_40 = arith.constant 0 : index
    %218 = vector.load %arg14[%c144, %c0_40] : memref<192x384xf32, #tpu.memory_space<vmem>>, vector<16x384xf32>
    %219 = arith.truncf %217 : vector<16x128xf32> to vector<16x128xbf16>
    %cst_41 = arith.constant dense<0.000000e+00> : vector<16x384xf32>
    %220 = tpu.matmul %219, %9, %cst_41 {dimension_numbers = #tpu.dot_dimension_numbers<[1], [0], [0], [1], [0, 0, 1, 1], [], []>} : vector<16x128xbf16>, vector<128x384xbf16>, vector<16x384xf32> -> vector<16x384xf32>
    %221 = vector.extract_strided_slice %218 {offsets = [0, 0], sizes = [16, 256], strides = [1, 1]} : vector<16x384xf32> to vector<16x256xf32>
    %222 = vector.extract_strided_slice %220 {offsets = [0, 0], sizes = [16, 256], strides = [1, 1]} : vector<16x384xf32> to vector<16x256xf32>
    %223 = arith.addf %221, %222 : vector<16x256xf32>
    %224 = arith.negf %223 : vector<16x256xf32>
    %225 = math.exp %224 : vector<16x256xf32>
    %cst_42 = arith.constant 1.000000e+00 : f32
    %226 = vector.broadcast %cst_42 : f32 to vector<16x256xf32>
    %227 = arith.addf %226, %225 : vector<16x256xf32>
    %228 = arith.divf %226, %227 : vector<16x256xf32>
    %229 = vector.extract_strided_slice %228 {offsets = [0, 0], sizes = [16, 128], strides = [1, 1]} : vector<16x256xf32> to vector<16x128xf32>
    %230 = vector.extract_strided_slice %228 {offsets = [0, 128], sizes = [16, 128], strides = [1, 1]} : vector<16x256xf32> to vector<16x128xf32>
    %231 = vector.extract_strided_slice %218 {offsets = [0, 256], sizes = [16, 128], strides = [1, 1]} : vector<16x384xf32> to vector<16x128xf32>
    %232 = vector.extract_strided_slice %220 {offsets = [0, 256], sizes = [16, 128], strides = [1, 1]} : vector<16x384xf32> to vector<16x128xf32>
    %233 = vector.broadcast %8 : vector<1x128xf32> to vector<16x128xf32>
    %234 = arith.addf %232, %233 : vector<16x128xf32>
    %235 = arith.mulf %229, %234 : vector<16x128xf32>
    %236 = arith.addf %231, %235 : vector<16x128xf32>
    %237 = math.tanh %236 : vector<16x128xf32>
    %238 = arith.subf %217, %237 : vector<16x128xf32>
    %239 = arith.mulf %230, %238 : vector<16x128xf32>
    %240 = arith.addf %237, %239 : vector<16x128xf32>
    %c160 = arith.constant 160 : index
    %c0_43 = arith.constant 0 : index
    %241 = vector.load %arg14[%c160, %c0_43] : memref<192x384xf32, #tpu.memory_space<vmem>>, vector<16x384xf32>
    %242 = arith.truncf %240 : vector<16x128xf32> to vector<16x128xbf16>
    %cst_44 = arith.constant dense<0.000000e+00> : vector<16x384xf32>
    %243 = tpu.matmul %242, %9, %cst_44 {dimension_numbers = #tpu.dot_dimension_numbers<[1], [0], [0], [1], [0, 0, 1, 1], [], []>} : vector<16x128xbf16>, vector<128x384xbf16>, vector<16x384xf32> -> vector<16x384xf32>
    %244 = vector.extract_strided_slice %241 {offsets = [0, 0], sizes = [16, 256], strides = [1, 1]} : vector<16x384xf32> to vector<16x256xf32>
    %245 = vector.extract_strided_slice %243 {offsets = [0, 0], sizes = [16, 256], strides = [1, 1]} : vector<16x384xf32> to vector<16x256xf32>
    %246 = arith.addf %244, %245 : vector<16x256xf32>
    %247 = arith.negf %246 : vector<16x256xf32>
    %248 = math.exp %247 : vector<16x256xf32>
    %cst_45 = arith.constant 1.000000e+00 : f32
    %249 = vector.broadcast %cst_45 : f32 to vector<16x256xf32>
    %250 = arith.addf %249, %248 : vector<16x256xf32>
    %251 = arith.divf %249, %250 : vector<16x256xf32>
    %252 = vector.extract_strided_slice %251 {offsets = [0, 0], sizes = [16, 128], strides = [1, 1]} : vector<16x256xf32> to vector<16x128xf32>
    %253 = vector.extract_strided_slice %251 {offsets = [0, 128], sizes = [16, 128], strides = [1, 1]} : vector<16x256xf32> to vector<16x128xf32>
    %254 = vector.extract_strided_slice %241 {offsets = [0, 256], sizes = [16, 128], strides = [1, 1]} : vector<16x384xf32> to vector<16x128xf32>
    %255 = vector.extract_strided_slice %243 {offsets = [0, 256], sizes = [16, 128], strides = [1, 1]} : vector<16x384xf32> to vector<16x128xf32>
    %256 = vector.broadcast %8 : vector<1x128xf32> to vector<16x128xf32>
    %257 = arith.addf %255, %256 : vector<16x128xf32>
    %258 = arith.mulf %252, %257 : vector<16x128xf32>
    %259 = arith.addf %254, %258 : vector<16x128xf32>
    %260 = math.tanh %259 : vector<16x128xf32>
    %261 = arith.subf %240, %260 : vector<16x128xf32>
    %262 = arith.mulf %253, %261 : vector<16x128xf32>
    %263 = arith.addf %260, %262 : vector<16x128xf32>
    %c176 = arith.constant 176 : index
    %c0_46 = arith.constant 0 : index
    %264 = vector.load %arg14[%c176, %c0_46] : memref<192x384xf32, #tpu.memory_space<vmem>>, vector<16x384xf32>
    %265 = arith.truncf %263 : vector<16x128xf32> to vector<16x128xbf16>
    %cst_47 = arith.constant dense<0.000000e+00> : vector<16x384xf32>
    %266 = tpu.matmul %265, %9, %cst_47 {dimension_numbers = #tpu.dot_dimension_numbers<[1], [0], [0], [1], [0, 0, 1, 1], [], []>} : vector<16x128xbf16>, vector<128x384xbf16>, vector<16x384xf32> -> vector<16x384xf32>
    %267 = vector.extract_strided_slice %264 {offsets = [0, 0], sizes = [16, 256], strides = [1, 1]} : vector<16x384xf32> to vector<16x256xf32>
    %268 = vector.extract_strided_slice %266 {offsets = [0, 0], sizes = [16, 256], strides = [1, 1]} : vector<16x384xf32> to vector<16x256xf32>
    %269 = arith.addf %267, %268 : vector<16x256xf32>
    %270 = arith.negf %269 : vector<16x256xf32>
    %271 = math.exp %270 : vector<16x256xf32>
    %cst_48 = arith.constant 1.000000e+00 : f32
    %272 = vector.broadcast %cst_48 : f32 to vector<16x256xf32>
    %273 = arith.addf %272, %271 : vector<16x256xf32>
    %274 = arith.divf %272, %273 : vector<16x256xf32>
    %275 = vector.extract_strided_slice %274 {offsets = [0, 0], sizes = [16, 128], strides = [1, 1]} : vector<16x256xf32> to vector<16x128xf32>
    %276 = vector.extract_strided_slice %274 {offsets = [0, 128], sizes = [16, 128], strides = [1, 1]} : vector<16x256xf32> to vector<16x128xf32>
    %277 = vector.extract_strided_slice %264 {offsets = [0, 256], sizes = [16, 128], strides = [1, 1]} : vector<16x384xf32> to vector<16x128xf32>
    %278 = vector.extract_strided_slice %266 {offsets = [0, 256], sizes = [16, 128], strides = [1, 1]} : vector<16x384xf32> to vector<16x128xf32>
    %279 = vector.broadcast %8 : vector<1x128xf32> to vector<16x128xf32>
    %280 = arith.addf %278, %279 : vector<16x128xf32>
    %281 = arith.mulf %275, %280 : vector<16x128xf32>
    %282 = arith.addf %277, %281 : vector<16x128xf32>
    %283 = math.tanh %282 : vector<16x128xf32>
    %284 = arith.subf %263, %283 : vector<16x128xf32>
    %285 = arith.mulf %276, %284 : vector<16x128xf32>
    %286 = arith.addf %283, %285 : vector<16x128xf32>
    %287 = arith.truncf %286 : vector<16x128xf32> to vector<16x128xbf16>
    %c0_49 = arith.constant 0 : index
    %c0_50 = arith.constant 0 : index
    %288 = vector.load %arg6[%c0_49, %c0_50] : memref<128x768xbf16, #tpu.memory_space<vmem>>, vector<128x768xbf16>
    %cst_51 = arith.constant dense<0.000000e+00> : vector<16x768xf32>
    %289 = tpu.matmul %287, %288, %cst_51 {dimension_numbers = #tpu.dot_dimension_numbers<[1], [0], [0], [1], [0, 0, 1, 1], [], []>} : vector<16x128xbf16>, vector<128x768xbf16>, vector<16x768xf32> -> vector<16x768xf32>
    %c0_52 = arith.constant 0 : index
    %c0_53 = arith.constant 0 : index
    %290 = vector.load %arg9[%c0_52, %c0_53] : memref<1x768xf32, #tpu.memory_space<vmem>>, vector<1x768xf32>
    %291 = vector.broadcast %290 : vector<1x768xf32> to vector<16x768xf32>
    %292 = arith.addf %289, %291 : vector<16x768xf32>
    %c0_54 = arith.constant 0 : index
    %c0_55 = arith.constant 0 : index
    %293 = vector.load %arg7[%c0_54, %c0_55] : memref<1x768xf32, #tpu.memory_space<vmem>>, vector<1x768xf32>
    %294 = vector.shape_cast %293 : vector<1x768xf32> to vector<1x768xf32>
    %295 = vector.broadcast %294 : vector<1x768xf32> to vector<16x768xf32>
    %c0_56 = arith.constant 0 : index
    %c0_57 = arith.constant 0 : index
    %296 = vector.load %arg10[%c0_56, %c0_57] : memref<1x256xf32, #tpu.memory_space<vmem>>, vector<1x256xf32>
    %c0_58 = arith.constant 0 : index
    %c0_59 = arith.constant 0 : index
    %297 = vector.load %arg8[%c0_58, %c0_59] : memref<256x768xbf16, #tpu.memory_space<vmem>>, vector<256x768xbf16>
    %cst_60 = arith.constant 1.000000e+00 : f32
    %298 = vector.broadcast %cst_60 : f32 to vector<16x256xf32>
    %c0_61 = arith.constant 0 : index
    %c0_62 = arith.constant 0 : index
    %299 = vector.load %arg1[%c0_61, %c0_62] : memref<160x1xf32, #tpu.memory_space<vmem>>, vector<16x1xf32>
    %300 = vector.broadcast %299 : vector<16x1xf32> to vector<16x768xf32>
    %301 = arith.mulf %300, %295 : vector<16x768xf32>
    %302 = arith.addf %292, %301 : vector<16x768xf32>
    %303 = arith.truncf %298 : vector<16x256xf32> to vector<16x256xbf16>
    %cst_63 = arith.constant dense<0.000000e+00> : vector<16x768xf32>
    %304 = tpu.matmul %303, %297, %cst_63 {dimension_numbers = #tpu.dot_dimension_numbers<[1], [0], [0], [1], [0, 0, 1, 1], [], []>} : vector<16x256xbf16>, vector<256x768xbf16>, vector<16x768xf32> -> vector<16x768xf32>
    %305 = vector.extract_strided_slice %302 {offsets = [0, 0], sizes = [16, 512], strides = [1, 1]} : vector<16x768xf32> to vector<16x512xf32>
    %306 = vector.extract_strided_slice %304 {offsets = [0, 0], sizes = [16, 512], strides = [1, 1]} : vector<16x768xf32> to vector<16x512xf32>
    %307 = arith.addf %305, %306 : vector<16x512xf32>
    %308 = arith.negf %307 : vector<16x512xf32>
    %309 = math.exp %308 : vector<16x512xf32>
    %cst_64 = arith.constant 1.000000e+00 : f32
    %310 = vector.broadcast %cst_64 : f32 to vector<16x512xf32>
    %311 = arith.addf %310, %309 : vector<16x512xf32>
    %312 = arith.divf %310, %311 : vector<16x512xf32>
    %313 = vector.extract_strided_slice %312 {offsets = [0, 0], sizes = [16, 256], strides = [1, 1]} : vector<16x512xf32> to vector<16x256xf32>
    %314 = vector.extract_strided_slice %312 {offsets = [0, 256], sizes = [16, 256], strides = [1, 1]} : vector<16x512xf32> to vector<16x256xf32>
    %315 = vector.extract_strided_slice %302 {offsets = [0, 512], sizes = [16, 256], strides = [1, 1]} : vector<16x768xf32> to vector<16x256xf32>
    %316 = vector.extract_strided_slice %304 {offsets = [0, 512], sizes = [16, 256], strides = [1, 1]} : vector<16x768xf32> to vector<16x256xf32>
    %317 = vector.broadcast %296 : vector<1x256xf32> to vector<16x256xf32>
    %318 = arith.addf %316, %317 : vector<16x256xf32>
    %319 = arith.mulf %313, %318 : vector<16x256xf32>
    %320 = arith.addf %315, %319 : vector<16x256xf32>
    %321 = math.tanh %320 : vector<16x256xf32>
    %322 = arith.subf %298, %321 : vector<16x256xf32>
    %323 = arith.mulf %314, %322 : vector<16x256xf32>
    %324 = arith.addf %321, %323 : vector<16x256xf32>
    %c0_65 = arith.constant 0 : index
    %c0_66 = arith.constant 0 : index
    %325 = vector.load %arg15[%c0_65, %c0_66] : memref<160x256xf32, #tpu.memory_space<vmem>>, vector<16x256xf32>
    tpu.vector_store %arg15[%c0_65, %c0_66], %324 {strides = array<i32>} : memref<160x256xf32, #tpu.memory_space<vmem>>, vector<16x256xf32>,
    %c16_67 = arith.constant 16 : index
    %c0_68 = arith.constant 0 : index
    %326 = vector.load %arg1[%c16_67, %c0_68] : memref<160x1xf32, #tpu.memory_space<vmem>>, vector<16x1xf32>
    %327 = vector.broadcast %326 : vector<16x1xf32> to vector<16x768xf32>
    %328 = arith.mulf %327, %295 : vector<16x768xf32>
    %329 = arith.addf %292, %328 : vector<16x768xf32>
    %330 = arith.truncf %324 : vector<16x256xf32> to vector<16x256xbf16>
    %cst_69 = arith.constant dense<0.000000e+00> : vector<16x768xf32>
    %331 = tpu.matmul %330, %297, %cst_69 {dimension_numbers = #tpu.dot_dimension_numbers<[1], [0], [0], [1], [0, 0, 1, 1], [], []>} : vector<16x256xbf16>, vector<256x768xbf16>, vector<16x768xf32> -> vector<16x768xf32>
    %332 = vector.extract_strided_slice %329 {offsets = [0, 0], sizes = [16, 512], strides = [1, 1]} : vector<16x768xf32> to vector<16x512xf32>
    %333 = vector.extract_strided_slice %331 {offsets = [0, 0], sizes = [16, 512], strides = [1, 1]} : vector<16x768xf32> to vector<16x512xf32>
    %334 = arith.addf %332, %333 : vector<16x512xf32>
    %335 = arith.negf %334 : vector<16x512xf32>
    %336 = math.exp %335 : vector<16x512xf32>
    %cst_70 = arith.constant 1.000000e+00 : f32
    %337 = vector.broadcast %cst_70 : f32 to vector<16x512xf32>
    %338 = arith.addf %337, %336 : vector<16x512xf32>
    %339 = arith.divf %337, %338 : vector<16x512xf32>
    %340 = vector.extract_strided_slice %339 {offsets = [0, 0], sizes = [16, 256], strides = [1, 1]} : vector<16x512xf32> to vector<16x256xf32>
    %341 = vector.extract_strided_slice %339 {offsets = [0, 256], sizes = [16, 256], strides = [1, 1]} : vector<16x512xf32> to vector<16x256xf32>
    %342 = vector.extract_strided_slice %329 {offsets = [0, 512], sizes = [16, 256], strides = [1, 1]} : vector<16x768xf32> to vector<16x256xf32>
    %343 = vector.extract_strided_slice %331 {offsets = [0, 512], sizes = [16, 256], strides = [1, 1]} : vector<16x768xf32> to vector<16x256xf32>
    %344 = vector.broadcast %296 : vector<1x256xf32> to vector<16x256xf32>
    %345 = arith.addf %343, %344 : vector<16x256xf32>
    %346 = arith.mulf %340, %345 : vector<16x256xf32>
    %347 = arith.addf %342, %346 : vector<16x256xf32>
    %348 = math.tanh %347 : vector<16x256xf32>
    %349 = arith.subf %324, %348 : vector<16x256xf32>
    %350 = arith.mulf %341, %349 : vector<16x256xf32>
    %351 = arith.addf %348, %350 : vector<16x256xf32>
    %c16_71 = arith.constant 16 : index
    %c0_72 = arith.constant 0 : index
    %352 = vector.load %arg15[%c16_71, %c0_72] : memref<160x256xf32, #tpu.memory_space<vmem>>, vector<16x256xf32>
    tpu.vector_store %arg15[%c16_71, %c0_72], %351 {strides = array<i32>} : memref<160x256xf32, #tpu.memory_space<vmem>>, vector<16x256xf32>,
    %c32_73 = arith.constant 32 : index
    %c0_74 = arith.constant 0 : index
    %353 = vector.load %arg1[%c32_73, %c0_74] : memref<160x1xf32, #tpu.memory_space<vmem>>, vector<16x1xf32>
    %354 = vector.broadcast %353 : vector<16x1xf32> to vector<16x768xf32>
    %355 = arith.mulf %354, %295 : vector<16x768xf32>
    %356 = arith.addf %292, %355 : vector<16x768xf32>
    %357 = arith.truncf %351 : vector<16x256xf32> to vector<16x256xbf16>
    %cst_75 = arith.constant dense<0.000000e+00> : vector<16x768xf32>
    %358 = tpu.matmul %357, %297, %cst_75 {dimension_numbers = #tpu.dot_dimension_numbers<[1], [0], [0], [1], [0, 0, 1, 1], [], []>} : vector<16x256xbf16>, vector<256x768xbf16>, vector<16x768xf32> -> vector<16x768xf32>
    %359 = vector.extract_strided_slice %356 {offsets = [0, 0], sizes = [16, 512], strides = [1, 1]} : vector<16x768xf32> to vector<16x512xf32>
    %360 = vector.extract_strided_slice %358 {offsets = [0, 0], sizes = [16, 512], strides = [1, 1]} : vector<16x768xf32> to vector<16x512xf32>
    %361 = arith.addf %359, %360 : vector<16x512xf32>
    %362 = arith.negf %361 : vector<16x512xf32>
    %363 = math.exp %362 : vector<16x512xf32>
    %cst_76 = arith.constant 1.000000e+00 : f32
    %364 = vector.broadcast %cst_76 : f32 to vector<16x512xf32>
    %365 = arith.addf %364, %363 : vector<16x512xf32>
    %366 = arith.divf %364, %365 : vector<16x512xf32>
    %367 = vector.extract_strided_slice %366 {offsets = [0, 0], sizes = [16, 256], strides = [1, 1]} : vector<16x512xf32> to vector<16x256xf32>
    %368 = vector.extract_strided_slice %366 {offsets = [0, 256], sizes = [16, 256], strides = [1, 1]} : vector<16x512xf32> to vector<16x256xf32>
    %369 = vector.extract_strided_slice %356 {offsets = [0, 512], sizes = [16, 256], strides = [1, 1]} : vector<16x768xf32> to vector<16x256xf32>
    %370 = vector.extract_strided_slice %358 {offsets = [0, 512], sizes = [16, 256], strides = [1, 1]} : vector<16x768xf32> to vector<16x256xf32>
    %371 = vector.broadcast %296 : vector<1x256xf32> to vector<16x256xf32>
    %372 = arith.addf %370, %371 : vector<16x256xf32>
    %373 = arith.mulf %367, %372 : vector<16x256xf32>
    %374 = arith.addf %369, %373 : vector<16x256xf32>
    %375 = math.tanh %374 : vector<16x256xf32>
    %376 = arith.subf %351, %375 : vector<16x256xf32>
    %377 = arith.mulf %368, %376 : vector<16x256xf32>
    %378 = arith.addf %375, %377 : vector<16x256xf32>
    %c32_77 = arith.constant 32 : index
    %c0_78 = arith.constant 0 : index
    %379 = vector.load %arg15[%c32_77, %c0_78] : memref<160x256xf32, #tpu.memory_space<vmem>>, vector<16x256xf32>
    tpu.vector_store %arg15[%c32_77, %c0_78], %378 {strides = array<i32>} : memref<160x256xf32, #tpu.memory_space<vmem>>, vector<16x256xf32>,
    %c48_79 = arith.constant 48 : index
    %c0_80 = arith.constant 0 : index
    %380 = vector.load %arg1[%c48_79, %c0_80] : memref<160x1xf32, #tpu.memory_space<vmem>>, vector<16x1xf32>
    %381 = vector.broadcast %380 : vector<16x1xf32> to vector<16x768xf32>
    %382 = arith.mulf %381, %295 : vector<16x768xf32>
    %383 = arith.addf %292, %382 : vector<16x768xf32>
    %384 = arith.truncf %378 : vector<16x256xf32> to vector<16x256xbf16>
    %cst_81 = arith.constant dense<0.000000e+00> : vector<16x768xf32>
    %385 = tpu.matmul %384, %297, %cst_81 {dimension_numbers = #tpu.dot_dimension_numbers<[1], [0], [0], [1], [0, 0, 1, 1], [], []>} : vector<16x256xbf16>, vector<256x768xbf16>, vector<16x768xf32> -> vector<16x768xf32>
    %386 = vector.extract_strided_slice %383 {offsets = [0, 0], sizes = [16, 512], strides = [1, 1]} : vector<16x768xf32> to vector<16x512xf32>
    %387 = vector.extract_strided_slice %385 {offsets = [0, 0], sizes = [16, 512], strides = [1, 1]} : vector<16x768xf32> to vector<16x512xf32>
    %388 = arith.addf %386, %387 : vector<16x512xf32>
    %389 = arith.negf %388 : vector<16x512xf32>
    %390 = math.exp %389 : vector<16x512xf32>
    %cst_82 = arith.constant 1.000000e+00 : f32
    %391 = vector.broadcast %cst_82 : f32 to vector<16x512xf32>
    %392 = arith.addf %391, %390 : vector<16x512xf32>
    %393 = arith.divf %391, %392 : vector<16x512xf32>
    %394 = vector.extract_strided_slice %393 {offsets = [0, 0], sizes = [16, 256], strides = [1, 1]} : vector<16x512xf32> to vector<16x256xf32>
    %395 = vector.extract_strided_slice %393 {offsets = [0, 256], sizes = [16, 256], strides = [1, 1]} : vector<16x512xf32> to vector<16x256xf32>
    %396 = vector.extract_strided_slice %383 {offsets = [0, 512], sizes = [16, 256], strides = [1, 1]} : vector<16x768xf32> to vector<16x256xf32>
    %397 = vector.extract_strided_slice %385 {offsets = [0, 512], sizes = [16, 256], strides = [1, 1]} : vector<16x768xf32> to vector<16x256xf32>
    %398 = vector.broadcast %296 : vector<1x256xf32> to vector<16x256xf32>
    %399 = arith.addf %397, %398 : vector<16x256xf32>
    %400 = arith.mulf %394, %399 : vector<16x256xf32>
    %401 = arith.addf %396, %400 : vector<16x256xf32>
    %402 = math.tanh %401 : vector<16x256xf32>
    %403 = arith.subf %378, %402 : vector<16x256xf32>
    %404 = arith.mulf %395, %403 : vector<16x256xf32>
    %405 = arith.addf %402, %404 : vector<16x256xf32>
    %c48_83 = arith.constant 48 : index
    %c0_84 = arith.constant 0 : index
    %406 = vector.load %arg15[%c48_83, %c0_84] : memref<160x256xf32, #tpu.memory_space<vmem>>, vector<16x256xf32>
    tpu.vector_store %arg15[%c48_83, %c0_84], %405 {strides = array<i32>} : memref<160x256xf32, #tpu.memory_space<vmem>>, vector<16x256xf32>,
    %c64_85 = arith.constant 64 : index
    %c0_86 = arith.constant 0 : index
    %407 = vector.load %arg1[%c64_85, %c0_86] : memref<160x1xf32, #tpu.memory_space<vmem>>, vector<16x1xf32>
    %408 = vector.broadcast %407 : vector<16x1xf32> to vector<16x768xf32>
    %409 = arith.mulf %408, %295 : vector<16x768xf32>
    %410 = arith.addf %292, %409 : vector<16x768xf32>
    %411 = arith.truncf %405 : vector<16x256xf32> to vector<16x256xbf16>
    %cst_87 = arith.constant dense<0.000000e+00> : vector<16x768xf32>
    %412 = tpu.matmul %411, %297, %cst_87 {dimension_numbers = #tpu.dot_dimension_numbers<[1], [0], [0], [1], [0, 0, 1, 1], [], []>} : vector<16x256xbf16>, vector<256x768xbf16>, vector<16x768xf32> -> vector<16x768xf32>
    %413 = vector.extract_strided_slice %410 {offsets = [0, 0], sizes = [16, 512], strides = [1, 1]} : vector<16x768xf32> to vector<16x512xf32>
    %414 = vector.extract_strided_slice %412 {offsets = [0, 0], sizes = [16, 512], strides = [1, 1]} : vector<16x768xf32> to vector<16x512xf32>
    %415 = arith.addf %413, %414 : vector<16x512xf32>
    %416 = arith.negf %415 : vector<16x512xf32>
    %417 = math.exp %416 : vector<16x512xf32>
    %cst_88 = arith.constant 1.000000e+00 : f32
    %418 = vector.broadcast %cst_88 : f32 to vector<16x512xf32>
    %419 = arith.addf %418, %417 : vector<16x512xf32>
    %420 = arith.divf %418, %419 : vector<16x512xf32>
    %421 = vector.extract_strided_slice %420 {offsets = [0, 0], sizes = [16, 256], strides = [1, 1]} : vector<16x512xf32> to vector<16x256xf32>
    %422 = vector.extract_strided_slice %420 {offsets = [0, 256], sizes = [16, 256], strides = [1, 1]} : vector<16x512xf32> to vector<16x256xf32>
    %423 = vector.extract_strided_slice %410 {offsets = [0, 512], sizes = [16, 256], strides = [1, 1]} : vector<16x768xf32> to vector<16x256xf32>
    %424 = vector.extract_strided_slice %412 {offsets = [0, 512], sizes = [16, 256], strides = [1, 1]} : vector<16x768xf32> to vector<16x256xf32>
    %425 = vector.broadcast %296 : vector<1x256xf32> to vector<16x256xf32>
    %426 = arith.addf %424, %425 : vector<16x256xf32>
    %427 = arith.mulf %421, %426 : vector<16x256xf32>
    %428 = arith.addf %423, %427 : vector<16x256xf32>
    %429 = math.tanh %428 : vector<16x256xf32>
    %430 = arith.subf %405, %429 : vector<16x256xf32>
    %431 = arith.mulf %422, %430 : vector<16x256xf32>
    %432 = arith.addf %429, %431 : vector<16x256xf32>
    %c64_89 = arith.constant 64 : index
    %c0_90 = arith.constant 0 : index
    %433 = vector.load %arg15[%c64_89, %c0_90] : memref<160x256xf32, #tpu.memory_space<vmem>>, vector<16x256xf32>
    tpu.vector_store %arg15[%c64_89, %c0_90], %432 {strides = array<i32>} : memref<160x256xf32, #tpu.memory_space<vmem>>, vector<16x256xf32>,
    %c80_91 = arith.constant 80 : index
    %c0_92 = arith.constant 0 : index
    %434 = vector.load %arg1[%c80_91, %c0_92] : memref<160x1xf32, #tpu.memory_space<vmem>>, vector<16x1xf32>
    %435 = vector.broadcast %434 : vector<16x1xf32> to vector<16x768xf32>
    %436 = arith.mulf %435, %295 : vector<16x768xf32>
    %437 = arith.addf %292, %436 : vector<16x768xf32>
    %438 = arith.truncf %432 : vector<16x256xf32> to vector<16x256xbf16>
    %cst_93 = arith.constant dense<0.000000e+00> : vector<16x768xf32>
    %439 = tpu.matmul %438, %297, %cst_93 {dimension_numbers = #tpu.dot_dimension_numbers<[1], [0], [0], [1], [0, 0, 1, 1], [], []>} : vector<16x256xbf16>, vector<256x768xbf16>, vector<16x768xf32> -> vector<16x768xf32>
    %440 = vector.extract_strided_slice %437 {offsets = [0, 0], sizes = [16, 512], strides = [1, 1]} : vector<16x768xf32> to vector<16x512xf32>
    %441 = vector.extract_strided_slice %439 {offsets = [0, 0], sizes = [16, 512], strides = [1, 1]} : vector<16x768xf32> to vector<16x512xf32>
    %442 = arith.addf %440, %441 : vector<16x512xf32>
    %443 = arith.negf %442 : vector<16x512xf32>
    %444 = math.exp %443 : vector<16x512xf32>
    %cst_94 = arith.constant 1.000000e+00 : f32
    %445 = vector.broadcast %cst_94 : f32 to vector<16x512xf32>
    %446 = arith.addf %445, %444 : vector<16x512xf32>
    %447 = arith.divf %445, %446 : vector<16x512xf32>
    %448 = vector.extract_strided_slice %447 {offsets = [0, 0], sizes = [16, 256], strides = [1, 1]} : vector<16x512xf32> to vector<16x256xf32>
    %449 = vector.extract_strided_slice %447 {offsets = [0, 256], sizes = [16, 256], strides = [1, 1]} : vector<16x512xf32> to vector<16x256xf32>
    %450 = vector.extract_strided_slice %437 {offsets = [0, 512], sizes = [16, 256], strides = [1, 1]} : vector<16x768xf32> to vector<16x256xf32>
    %451 = vector.extract_strided_slice %439 {offsets = [0, 512], sizes = [16, 256], strides = [1, 1]} : vector<16x768xf32> to vector<16x256xf32>
    %452 = vector.broadcast %296 : vector<1x256xf32> to vector<16x256xf32>
    %453 = arith.addf %451, %452 : vector<16x256xf32>
    %454 = arith.mulf %448, %453 : vector<16x256xf32>
    %455 = arith.addf %450, %454 : vector<16x256xf32>
    %456 = math.tanh %455 : vector<16x256xf32>
    %457 = arith.subf %432, %456 : vector<16x256xf32>
    %458 = arith.mulf %449, %457 : vector<16x256xf32>
    %459 = arith.addf %456, %458 : vector<16x256xf32>
    %c80_95 = arith.constant 80 : index
    %c0_96 = arith.constant 0 : index
    %460 = vector.load %arg15[%c80_95, %c0_96] : memref<160x256xf32, #tpu.memory_space<vmem>>, vector<16x256xf32>
    tpu.vector_store %arg15[%c80_95, %c0_96], %459 {strides = array<i32>} : memref<160x256xf32, #tpu.memory_space<vmem>>, vector<16x256xf32>,
    %c96_97 = arith.constant 96 : index
    %c0_98 = arith.constant 0 : index
    %461 = vector.load %arg1[%c96_97, %c0_98] : memref<160x1xf32, #tpu.memory_space<vmem>>, vector<16x1xf32>
    %462 = vector.broadcast %461 : vector<16x1xf32> to vector<16x768xf32>
    %463 = arith.mulf %462, %295 : vector<16x768xf32>
    %464 = arith.addf %292, %463 : vector<16x768xf32>
    %465 = arith.truncf %459 : vector<16x256xf32> to vector<16x256xbf16>
    %cst_99 = arith.constant dense<0.000000e+00> : vector<16x768xf32>
    %466 = tpu.matmul %465, %297, %cst_99 {dimension_numbers = #tpu.dot_dimension_numbers<[1], [0], [0], [1], [0, 0, 1, 1], [], []>} : vector<16x256xbf16>, vector<256x768xbf16>, vector<16x768xf32> -> vector<16x768xf32>
    %467 = vector.extract_strided_slice %464 {offsets = [0, 0], sizes = [16, 512], strides = [1, 1]} : vector<16x768xf32> to vector<16x512xf32>
    %468 = vector.extract_strided_slice %466 {offsets = [0, 0], sizes = [16, 512], strides = [1, 1]} : vector<16x768xf32> to vector<16x512xf32>
    %469 = arith.addf %467, %468 : vector<16x512xf32>
    %470 = arith.negf %469 : vector<16x512xf32>
    %471 = math.exp %470 : vector<16x512xf32>
    %cst_100 = arith.constant 1.000000e+00 : f32
    %472 = vector.broadcast %cst_100 : f32 to vector<16x512xf32>
    %473 = arith.addf %472, %471 : vector<16x512xf32>
    %474 = arith.divf %472, %473 : vector<16x512xf32>
    %475 = vector.extract_strided_slice %474 {offsets = [0, 0], sizes = [16, 256], strides = [1, 1]} : vector<16x512xf32> to vector<16x256xf32>
    %476 = vector.extract_strided_slice %474 {offsets = [0, 256], sizes = [16, 256], strides = [1, 1]} : vector<16x512xf32> to vector<16x256xf32>
    %477 = vector.extract_strided_slice %464 {offsets = [0, 512], sizes = [16, 256], strides = [1, 1]} : vector<16x768xf32> to vector<16x256xf32>
    %478 = vector.extract_strided_slice %466 {offsets = [0, 512], sizes = [16, 256], strides = [1, 1]} : vector<16x768xf32> to vector<16x256xf32>
    %479 = vector.broadcast %296 : vector<1x256xf32> to vector<16x256xf32>
    %480 = arith.addf %478, %479 : vector<16x256xf32>
    %481 = arith.mulf %475, %480 : vector<16x256xf32>
    %482 = arith.addf %477, %481 : vector<16x256xf32>
    %483 = math.tanh %482 : vector<16x256xf32>
    %484 = arith.subf %459, %483 : vector<16x256xf32>
    %485 = arith.mulf %476, %484 : vector<16x256xf32>
    %486 = arith.addf %483, %485 : vector<16x256xf32>
    %c96_101 = arith.constant 96 : index
    %c0_102 = arith.constant 0 : index
    %487 = vector.load %arg15[%c96_101, %c0_102] : memref<160x256xf32, #tpu.memory_space<vmem>>, vector<16x256xf32>
    tpu.vector_store %arg15[%c96_101, %c0_102], %486 {strides = array<i32>} : memref<160x256xf32, #tpu.memory_space<vmem>>, vector<16x256xf32>,
    %c112_103 = arith.constant 112 : index
    %c0_104 = arith.constant 0 : index
    %488 = vector.load %arg1[%c112_103, %c0_104] : memref<160x1xf32, #tpu.memory_space<vmem>>, vector<16x1xf32>
    %489 = vector.broadcast %488 : vector<16x1xf32> to vector<16x768xf32>
    %490 = arith.mulf %489, %295 : vector<16x768xf32>
    %491 = arith.addf %292, %490 : vector<16x768xf32>
    %492 = arith.truncf %486 : vector<16x256xf32> to vector<16x256xbf16>
    %cst_105 = arith.constant dense<0.000000e+00> : vector<16x768xf32>
    %493 = tpu.matmul %492, %297, %cst_105 {dimension_numbers = #tpu.dot_dimension_numbers<[1], [0], [0], [1], [0, 0, 1, 1], [], []>} : vector<16x256xbf16>, vector<256x768xbf16>, vector<16x768xf32> -> vector<16x768xf32>
    %494 = vector.extract_strided_slice %491 {offsets = [0, 0], sizes = [16, 512], strides = [1, 1]} : vector<16x768xf32> to vector<16x512xf32>
    %495 = vector.extract_strided_slice %493 {offsets = [0, 0], sizes = [16, 512], strides = [1, 1]} : vector<16x768xf32> to vector<16x512xf32>
    %496 = arith.addf %494, %495 : vector<16x512xf32>
    %497 = arith.negf %496 : vector<16x512xf32>
    %498 = math.exp %497 : vector<16x512xf32>
    %cst_106 = arith.constant 1.000000e+00 : f32
    %499 = vector.broadcast %cst_106 : f32 to vector<16x512xf32>
    %500 = arith.addf %499, %498 : vector<16x512xf32>
    %501 = arith.divf %499, %500 : vector<16x512xf32>
    %502 = vector.extract_strided_slice %501 {offsets = [0, 0], sizes = [16, 256], strides = [1, 1]} : vector<16x512xf32> to vector<16x256xf32>
    %503 = vector.extract_strided_slice %501 {offsets = [0, 256], sizes = [16, 256], strides = [1, 1]} : vector<16x512xf32> to vector<16x256xf32>
    %504 = vector.extract_strided_slice %491 {offsets = [0, 512], sizes = [16, 256], strides = [1, 1]} : vector<16x768xf32> to vector<16x256xf32>
    %505 = vector.extract_strided_slice %493 {offsets = [0, 512], sizes = [16, 256], strides = [1, 1]} : vector<16x768xf32> to vector<16x256xf32>
    %506 = vector.broadcast %296 : vector<1x256xf32> to vector<16x256xf32>
    %507 = arith.addf %505, %506 : vector<16x256xf32>
    %508 = arith.mulf %502, %507 : vector<16x256xf32>
    %509 = arith.addf %504, %508 : vector<16x256xf32>
    %510 = math.tanh %509 : vector<16x256xf32>
    %511 = arith.subf %486, %510 : vector<16x256xf32>
    %512 = arith.mulf %503, %511 : vector<16x256xf32>
    %513 = arith.addf %510, %512 : vector<16x256xf32>
    %c112_107 = arith.constant 112 : index
    %c0_108 = arith.constant 0 : index
    %514 = vector.load %arg15[%c112_107, %c0_108] : memref<160x256xf32, #tpu.memory_space<vmem>>, vector<16x256xf32>
    tpu.vector_store %arg15[%c112_107, %c0_108], %513 {strides = array<i32>} : memref<160x256xf32, #tpu.memory_space<vmem>>, vector<16x256xf32>,
    %c128_109 = arith.constant 128 : index
    %c0_110 = arith.constant 0 : index
    %515 = vector.load %arg1[%c128_109, %c0_110] : memref<160x1xf32, #tpu.memory_space<vmem>>, vector<16x1xf32>
    %516 = vector.broadcast %515 : vector<16x1xf32> to vector<16x768xf32>
    %517 = arith.mulf %516, %295 : vector<16x768xf32>
    %518 = arith.addf %292, %517 : vector<16x768xf32>
    %519 = arith.truncf %513 : vector<16x256xf32> to vector<16x256xbf16>
    %cst_111 = arith.constant dense<0.000000e+00> : vector<16x768xf32>
    %520 = tpu.matmul %519, %297, %cst_111 {dimension_numbers = #tpu.dot_dimension_numbers<[1], [0], [0], [1], [0, 0, 1, 1], [], []>} : vector<16x256xbf16>, vector<256x768xbf16>, vector<16x768xf32> -> vector<16x768xf32>
    %521 = vector.extract_strided_slice %518 {offsets = [0, 0], sizes = [16, 512], strides = [1, 1]} : vector<16x768xf32> to vector<16x512xf32>
    %522 = vector.extract_strided_slice %520 {offsets = [0, 0], sizes = [16, 512], strides = [1, 1]} : vector<16x768xf32> to vector<16x512xf32>
    %523 = arith.addf %521, %522 : vector<16x512xf32>
    %524 = arith.negf %523 : vector<16x512xf32>
    %525 = math.exp %524 : vector<16x512xf32>
    %cst_112 = arith.constant 1.000000e+00 : f32
    %526 = vector.broadcast %cst_112 : f32 to vector<16x512xf32>
    %527 = arith.addf %526, %525 : vector<16x512xf32>
    %528 = arith.divf %526, %527 : vector<16x512xf32>
    %529 = vector.extract_strided_slice %528 {offsets = [0, 0], sizes = [16, 256], strides = [1, 1]} : vector<16x512xf32> to vector<16x256xf32>
    %530 = vector.extract_strided_slice %528 {offsets = [0, 256], sizes = [16, 256], strides = [1, 1]} : vector<16x512xf32> to vector<16x256xf32>
    %531 = vector.extract_strided_slice %518 {offsets = [0, 512], sizes = [16, 256], strides = [1, 1]} : vector<16x768xf32> to vector<16x256xf32>
    %532 = vector.extract_strided_slice %520 {offsets = [0, 512], sizes = [16, 256], strides = [1, 1]} : vector<16x768xf32> to vector<16x256xf32>
    %533 = vector.broadcast %296 : vector<1x256xf32> to vector<16x256xf32>
    %534 = arith.addf %532, %533 : vector<16x256xf32>
    %535 = arith.mulf %529, %534 : vector<16x256xf32>
    %536 = arith.addf %531, %535 : vector<16x256xf32>
    %537 = math.tanh %536 : vector<16x256xf32>
    %538 = arith.subf %513, %537 : vector<16x256xf32>
    %539 = arith.mulf %530, %538 : vector<16x256xf32>
    %540 = arith.addf %537, %539 : vector<16x256xf32>
    %c128_113 = arith.constant 128 : index
    %c0_114 = arith.constant 0 : index
    %541 = vector.load %arg15[%c128_113, %c0_114] : memref<160x256xf32, #tpu.memory_space<vmem>>, vector<16x256xf32>
    tpu.vector_store %arg15[%c128_113, %c0_114], %540 {strides = array<i32>} : memref<160x256xf32, #tpu.memory_space<vmem>>, vector<16x256xf32>,
    %c144_115 = arith.constant 144 : index
    %c0_116 = arith.constant 0 : index
    %542 = vector.load %arg1[%c144_115, %c0_116] : memref<160x1xf32, #tpu.memory_space<vmem>>, vector<16x1xf32>
    %543 = vector.broadcast %542 : vector<16x1xf32> to vector<16x768xf32>
    %544 = arith.mulf %543, %295 : vector<16x768xf32>
    %545 = arith.addf %292, %544 : vector<16x768xf32>
    %546 = arith.truncf %540 : vector<16x256xf32> to vector<16x256xbf16>
    %cst_117 = arith.constant dense<0.000000e+00> : vector<16x768xf32>
    %547 = tpu.matmul %546, %297, %cst_117 {dimension_numbers = #tpu.dot_dimension_numbers<[1], [0], [0], [1], [0, 0, 1, 1], [], []>} : vector<16x256xbf16>, vector<256x768xbf16>, vector<16x768xf32> -> vector<16x768xf32>
    %548 = vector.extract_strided_slice %545 {offsets = [0, 0], sizes = [16, 512], strides = [1, 1]} : vector<16x768xf32> to vector<16x512xf32>
    %549 = vector.extract_strided_slice %547 {offsets = [0, 0], sizes = [16, 512], strides = [1, 1]} : vector<16x768xf32> to vector<16x512xf32>
    %550 = arith.addf %548, %549 : vector<16x512xf32>
    %551 = arith.negf %550 : vector<16x512xf32>
    %552 = math.exp %551 : vector<16x512xf32>
    %cst_118 = arith.constant 1.000000e+00 : f32
    %553 = vector.broadcast %cst_118 : f32 to vector<16x512xf32>
    %554 = arith.addf %553, %552 : vector<16x512xf32>
    %555 = arith.divf %553, %554 : vector<16x512xf32>
    %556 = vector.extract_strided_slice %555 {offsets = [0, 0], sizes = [16, 256], strides = [1, 1]} : vector<16x512xf32> to vector<16x256xf32>
    %557 = vector.extract_strided_slice %555 {offsets = [0, 256], sizes = [16, 256], strides = [1, 1]} : vector<16x512xf32> to vector<16x256xf32>
    %558 = vector.extract_strided_slice %545 {offsets = [0, 512], sizes = [16, 256], strides = [1, 1]} : vector<16x768xf32> to vector<16x256xf32>
    %559 = vector.extract_strided_slice %547 {offsets = [0, 512], sizes = [16, 256], strides = [1, 1]} : vector<16x768xf32> to vector<16x256xf32>
    %560 = vector.broadcast %296 : vector<1x256xf32> to vector<16x256xf32>
    %561 = arith.addf %559, %560 : vector<16x256xf32>
    %562 = arith.mulf %556, %561 : vector<16x256xf32>
    %563 = arith.addf %558, %562 : vector<16x256xf32>
    %564 = math.tanh %563 : vector<16x256xf32>
    %565 = arith.subf %540, %564 : vector<16x256xf32>
    %566 = arith.mulf %557, %565 : vector<16x256xf32>
    %567 = arith.addf %564, %566 : vector<16x256xf32>
    %c144_119 = arith.constant 144 : index
    %c0_120 = arith.constant 0 : index
    %568 = vector.load %arg15[%c144_119, %c0_120] : memref<160x256xf32, #tpu.memory_space<vmem>>, vector<16x256xf32>
    tpu.vector_store %arg15[%c144_119, %c0_120], %567 {strides = array<i32>} : memref<160x256xf32, #tpu.memory_space<vmem>>, vector<16x256xf32>,
    %c0_121 = arith.constant 0 : index
    %c0_122 = arith.constant 0 : index
    %569 = vector.load %arg15[%c0_121, %c0_122] : memref<160x256xf32, #tpu.memory_space<vmem>>, vector<160x256xf32>
    %570 = arith.truncf %569 : vector<160x256xf32> to vector<160x256xbf16>
    %c0_123 = arith.constant 0 : index
    %c0_124 = arith.constant 0 : index
    %571 = vector.load %arg11[%c0_123, %c0_124] : memref<256x128xbf16, #tpu.memory_space<vmem>>, vector<256x128xbf16>
    %cst_125 = arith.constant dense<0.000000e+00> : vector<160x128xf32>
    %572 = tpu.matmul %570, %571, %cst_125 {dimension_numbers = #tpu.dot_dimension_numbers<[1], [0], [0], [1], [0, 0, 1, 1], [], []>} : vector<160x256xbf16>, vector<256x128xbf16>, vector<160x128xf32> -> vector<160x128xf32>
    %c0_126 = arith.constant 0 : index
    %c0_127 = arith.constant 0 : index
    %573 = vector.load %arg12[%c0_126, %c0_127] : memref<1x128xf32, #tpu.memory_space<vmem>>, vector<1x128xf32>
    %574 = vector.broadcast %573 : vector<1x128xf32> to vector<160x128xf32>
    %575 = arith.addf %572, %574 : vector<160x128xf32>
    %c0_128 = arith.constant 0 : index
    %c0_129 = arith.constant 0 : index
    %576 = vector.load %arg13[%c0_128, %c0_129] : memref<192x128xf32, #tpu.memory_space<vmem>>, vector<160x128xf32>
    tpu.vector_store %arg13[%c0_128, %c0_129], %575 {strides = array<i32>} : memref<192x128xf32, #tpu.memory_space<vmem>>, vector<160x128xf32>,
    %cst_130 = arith.constant 1.000000e+00 : f32
    %577 = vector.broadcast %cst_130 : f32 to vector<32x128xf32>
    %c160_131 = arith.constant 160 : index
    %c0_132 = arith.constant 0 : index
    %578 = vector.load %arg13[%c160_131, %c0_132] : memref<192x128xf32, #tpu.memory_space<vmem>>, vector<32x128xf32>
    tpu.vector_store %arg13[%c160_131, %c0_132], %577 {strides = array<i32>} : memref<192x128xf32, #tpu.memory_space<vmem>>, vector<32x128xf32>,
    return
  }
}

</mosaic_0001>

<llo_original>
// kernel: tpu_custom_call.1
$region0: #{tpu_custom_call.1}
  #allocation0 [shape = 'u32[]', space=smem, size = 0x4, offset = 0x4, fixed_abs, tag = 'smem constant byte address 0x4 - core index']
  #allocation1 [shape = 'u32[72,128]{1,0:T(1,128)}', space=vmem, size = 0x9000, scoped, tag = 'internal scratch']
  #allocation2 [shape = 'f32[192,384]{1,0:T(8,128)}', space=vmem, size = 0x48000, scoped, tag = 'scratch operand']
  #allocation3 [shape = 'f32[160,256]{1,0:T(8,128)}', space=vmem, size = 0x28000, scoped, tag = 'scratch operand']
  %s0 = inlined_call_operand.vmem [shape: f32[192,5], index: 0, kind: input, shape index: {}]
  %s1 = inlined_call_operand.vmem [shape: f32[160,1], index: 1, kind: input, shape index: {}]
  %s2 = inlined_call_operand.vmem [shape: bf16[5,384], index: 2, kind: input, shape index: {}]
  %s3 = inlined_call_operand.vmem [shape: bf16[128,384], index: 3, kind: input, shape index: {}]
  %s4 = inlined_call_operand.vmem [shape: f32[1,384], index: 4, kind: input, shape index: {}]
  %s5 = inlined_call_operand.vmem [shape: f32[1,128], index: 5, kind: input, shape index: {}]
  %s6 = inlined_call_operand.hbm [shape: bf16[128,768], index: 6, kind: input, shape index: {}]
  %s7 = inlined_call_operand.vmem [shape: f32[1,768], index: 7, kind: input, shape index: {}]
  %s8 = inlined_call_operand.hbm [shape: bf16[256,768], index: 8, kind: input, shape index: {}]
  %s9 = inlined_call_operand.vmem [shape: f32[1,768], index: 9, kind: input, shape index: {}]
  %s10 = inlined_call_operand.vmem [shape: f32[1,256], index: 10, kind: input, shape index: {}]
  %s11 = inlined_call_operand.vmem [shape: bf16[256,128], index: 11, kind: input, shape index: {}]
  %s12 = inlined_call_operand.vmem [shape: f32[1,128], index: 12, kind: input, shape index: {}]
  %s13 = inlined_call_operand.hbm [shape: f32[192,128], index: 13, kind: output, shape index: {}]
  %s14 = sld [smem:[#allocation0]]
  $region70: #{tpu_custom_call.1} parent=0
    _
  %s16 = ssub.s32 1, %s14
  %s17 = scalar_select 0, %s16, %s14
  $region1: #{tpu_custom_call.1} parent=0
    #allocation4 [shape = 'u8[196608]{0}', space=vmem, size = 0x30000, scoped, tag = 'input window, operand 6, single buffered']
    #allocation5 [shape = 's32[1]{0}', space=sflag, size = 0x4, scoped, tag = 'scoped memory for tpu_custom_call.1']
    #allocation6 [shape = 's32[1]{0}', space=sflag, size = 0x4, scoped, tag = 'scoped memory for tpu_custom_call.1']
    #allocation7 [shape = 'u8[393216]{0}', space=vmem, size = 0x60000, scoped, tag = 'input window, operand 8, single buffered']
    #allocation8 [shape = 's32[1]{0}', space=sflag, size = 0x4, scoped, tag = 'scoped memory for tpu_custom_call.1']
    #allocation9 [shape = 'u8[98304]{0}', space=vmem, size = 0x18000, scoped, tag = 'output window, operand 0, single buffered']
    %18 = vsyncpa [#allocation5], 0
    %19 = vsyncpa [#allocation8], 0
    %20 = vsyncpa [#allocation6], 0
    // Predicated region
    $region2: #{tpu_custom_call.1} parent=1 // pred_check
      _
    $region3: #{tpu_custom_call.1} parent=1 // pred_check_branch
      %22 = sbr.rel (0) target = $region5
    $region4: #{tpu_custom_call.1} parent=1 // pred_region
      _
    $region5: #{tpu_custom_call.1} parent=1 // pred_fallthru
      _
    // Predicated region
    $region6: #{tpu_custom_call.1} parent=1 // pred_check
      _
    $region7: #{tpu_custom_call.1} parent=1 // pred_check_branch
      %24 = sbr.rel (0) target = $region9
    $region8: #{tpu_custom_call.1} parent=1 // pred_region
      _
    $region9: #{tpu_custom_call.1} parent=1 // pred_fallthru
      _
    // Predicated region
    $region10: #{tpu_custom_call.1} parent=1 // pred_check
      _
    $region11: #{tpu_custom_call.1} parent=1 // pred_check_branch
      %26 = sbr.rel (0) target = $region13
    $region12: #{tpu_custom_call.1} parent=1 // pred_region
      _
    $region13: #{tpu_custom_call.1} parent=1 // pred_fallthru
      _
    // Predicated region
    $region14: #{tpu_custom_call.1} parent=1 // pred_check
      _
    $region15: #{tpu_custom_call.1} parent=1 // pred_check_branch
      %28 = sbr.rel (0) target = $region17
    $region16: #{tpu_custom_call.1} parent=1 // pred_region
      _
    $region17: #{tpu_custom_call.1} parent=1 // pred_fallthru
      _
    // Predicated region
    $region18: #{tpu_custom_call.1} parent=1 // pred_check
      _
    $region19: #{tpu_custom_call.1} parent=1 // pred_check_branch
      %30 = sbr.rel (0) target = $region21
    $region20: #{tpu_custom_call.1} parent=1 // pred_region
      _
    $region21: #{tpu_custom_call.1} parent=1 // pred_fallthru
      _
    // Predicated region
    $region22: #{tpu_custom_call.1} parent=1 // pred_check
      _
    $region23: #{tpu_custom_call.1} parent=1 // pred_check_branch
      %32 = sbr.rel (0) target = $region25
    $region24: #{tpu_custom_call.1} parent=1 // pred_region
      _
    $region25: #{tpu_custom_call.1} parent=1 // pred_fallthru
      _
    // Predicated region
    $region26: #{tpu_custom_call.1} parent=1 // pred_check
      _
    $region27: #{tpu_custom_call.1} parent=1 // pred_check_branch
      %34 = sbr.rel (0) target = $region29
    $region28: #{tpu_custom_call.1} parent=1 // pred_region
      %36 = vsyncadd [#allocation5], 0
      %s37 = sshll.u32 %s6, 4
      %s38 = int_to_ptr.hbm [resolvable:$true] %s37
      %s39 = sshll.u32 [#allocation4], 4
      %s40 = int_to_ptr.vmem [resolvable:$true] %s39
      %45 = dma.hbm_to_vmem [thread:$0]  %s38, 6144, %s40, [#allocation5], 384, 384, 24
    $region29: #{tpu_custom_call.1} parent=1 // pred_fallthru
      _
    // Predicated region
    $region30: #{tpu_custom_call.1} parent=1 // pred_check
      _
    $region31: #{tpu_custom_call.1} parent=1 // pred_check_branch
      %47 = sbr.rel (0) target = $region33
    $region32: #{tpu_custom_call.1} parent=1 // pred_region
      _
    $region33: #{tpu_custom_call.1} parent=1 // pred_fallthru
      _
    // Predicated region
    $region34: #{tpu_custom_call.1} parent=1 // pred_check
      _
    $region35: #{tpu_custom_call.1} parent=1 // pred_check_branch
      %49 = sbr.rel (0) target = $region37
    $region36: #{tpu_custom_call.1} parent=1 // pred_region
      %51 = vsyncadd [#allocation8], 0
      %s52 = sshll.u32 %s8, 4
      %s53 = int_to_ptr.hbm [resolvable:$true] %s52
      %s54 = sshll.u32 [#allocation7], 4
      %s55 = int_to_ptr.vmem [resolvable:$true] %s54
      %60 = dma.hbm_to_vmem [thread:$0]  %s53, 12288, %s55, [#allocation8], 384, 384, 24
    $region37: #{tpu_custom_call.1} parent=1 // pred_fallthru
      _
    // Predicated region
    $region38: #{tpu_custom_call.1} parent=1 // pred_check
      _
    $region39: #{tpu_custom_call.1} parent=1 // pred_check_branch
      %62 = sbr.rel (0) target = $region41
    $region40: #{tpu_custom_call.1} parent=1 // pred_region
      _
    $region41: #{tpu_custom_call.1} parent=1 // pred_fallthru
      _
    // Predicated region
    $region42: #{tpu_custom_call.1} parent=1 // pred_check
      _
    $region43: #{tpu_custom_call.1} parent=1 // pred_check_branch
      %64 = sbr.rel (0) target = $region45
    $region44: #{tpu_custom_call.1} parent=1 // pred_region
      _
    $region45: #{tpu_custom_call.1} parent=1 // pred_fallthru
      _
    // Predicated region
    $region46: #{tpu_custom_call.1} parent=1 // pred_check
      _
    $region47: #{tpu_custom_call.1} parent=1 // pred_check_branch
      %66 = sbr.rel (0) target = $region49
    $region48: #{tpu_custom_call.1} parent=1 // pred_region
      _
    $region49: #{tpu_custom_call.1} parent=1 // pred_fallthru
      _
    // Predicated region
    $region50: #{tpu_custom_call.1} parent=1 // pred_check
      _
    $region51: #{tpu_custom_call.1} parent=1 // pred_check_branch
      %68 = sbr.rel (0) target = $region53
    $region52: #{tpu_custom_call.1} parent=1 // pred_region
      _
    $region53: #{tpu_custom_call.1} parent=1 // pred_fallthru
      _
    // Predicated region
    $region54: #{tpu_custom_call.1} parent=1 // pred_check
      _
    $region55: #{tpu_custom_call.1} parent=1 // pred_check_branch
      %70 = sbr.rel (0) target = $region57
    $region56: #{tpu_custom_call.1} parent=1 // pred_region
      %72 = dma.done [#allocation5], 6144
    $region57: #{tpu_custom_call.1} parent=1 // pred_fallthru
      _
    // Predicated region
    $region58: #{tpu_custom_call.1} parent=1 // pred_check
      _
    $region59: #{tpu_custom_call.1} parent=1 // pred_check_branch
      %74 = sbr.rel (0) target = $region61
    $region60: #{tpu_custom_call.1} parent=1 // pred_region
      %76 = dma.done [#allocation8], 12288
    $region61: #{tpu_custom_call.1} parent=1 // pred_fallthru
      _
    %v79 = vld [vmem:[%s0] sm:$0xff]
    %v80 = vld [vmem:[%s0 + $0x8] sm:$0xff]
    %v81 = vld [vmem:[%s0 + $0x10] sm:$0xff]
    %v82 = vld [vmem:[%s0 + $0x18] sm:$0xff]
    %v83 = vld [vmem:[%s0 + $0x20] sm:$0xff]
    %v84 = vld [vmem:[%s0 + $0x28] sm:$0xff]
    %v85 = vld [vmem:[%s0 + $0x30] sm:$0xff]
    %v86 = vld [vmem:[%s0 + $0x38] sm:$0xff]
    %v87 = vld [vmem:[%s0 + $0x40] sm:$0xff]
    %v88 = vld [vmem:[%s0 + $0x48] sm:$0xff]
    %v89 = vld [vmem:[%s0 + $0x50] sm:$0xff]
    %v90 = vld [vmem:[%s0 + $0x58] sm:$0xff]
    %v91 = vld [vmem:[%s0 + $0x60] sm:$0xff]
    %v92 = vld [vmem:[%s0 + $0x68] sm:$0xff]
    %v93 = vld [vmem:[%s0 + $0x70] sm:$0xff]
    %v94 = vld [vmem:[%s0 + $0x78] sm:$0xff]
    %v95 = vld [vmem:[%s0 + $0x80] sm:$0xff]
    %v96 = vld [vmem:[%s0 + $0x88] sm:$0xff]
    %v97 = vld [vmem:[%s0 + $0x90] sm:$0xff]
    %v98 = vld [vmem:[%s0 + $0x98] sm:$0xff]
    %v99 = vld [vmem:[%s0 + $0xa0] sm:$0xff]
    %v100 = vld [vmem:[%s0 + $0xa8] sm:$0xff]
    %v101 = vld [vmem:[%s0 + $0xb0] sm:$0xff]
    %v102 = vld [vmem:[%s0 + $0xb8] sm:$0xff]
    %v103 = vpack.c.bf16 %v80, %v79
    %v104 = vpack.c.bf16 %v82, %v81
    %v105 = vpack.c.bf16 %v84, %v83
    %v106 = vpack.c.bf16 %v86, %v85
    %v107 = vpack.c.bf16 %v88, %v87
    %v108 = vpack.c.bf16 %v90, %v89
    %v109 = vpack.c.bf16 %v92, %v91
    %v110 = vpack.c.bf16 %v94, %v93
    %v111 = vpack.c.bf16 %v96, %v95
    %v112 = vpack.c.bf16 %v98, %v97
    %v113 = vpack.c.bf16 %v100, %v99
    %v114 = vpack.c.bf16 %v102, %v101
    %v115 = vld [vmem:[%s2] sm:$0x77]
    %v116 = vld [vmem:[%s2 + $0x8] sm:$0x7]
    %v117 = vld [vmem:[%s4] sm:$0x7]
    %v119 = vperm.slane %v117, 0
    %v120 = vperm.slane %v117, 1
    %v121 = vperm.slane %v117, 2
    %v127 = vunpack.c.l.b16 %v115
    %v128 = vunpack.c.h.b16 %v115
    %v129 = vunpack.c.l.b16 %v116
    %v130 = vpack.c.b16 %v127, %v127
    %v131 = vpack.c.b16 %v128, %v128
    %v132 = vpack.c.b16 %v129, %v129
    %vm133 = vcmask 39936
    %v135 = vsel %vm133, %v103, 0
    %v138 = vsel %vm133, %v104, 0
    %v141 = vsel %vm133, %v105, 0
    %v144 = vsel %vm133, %v106, 0
    %v147 = vsel %vm133, %v107, 0
    %v150 = vsel %vm133, %v108, 0
    %v153 = vsel %vm133, %v109, 0
    %v156 = vsel %vm133, %v110, 0
    %v159 = vsel %vm133, %v111, 0
    %v162 = vsel %vm133, %v112, 0
    %v165 = vsel %vm133, %v113, 0
    %v168 = vsel %vm133, %v114, 0
    %vm170 = vcmask 1041408
    %vm171 = vcmask 1042432
    %v172 = vsel %vm170, 4294967295, 65535
    %v173 = vsel %vm171, %v172, 0
    %v175 = vand.u32 %v130, %v173
    %v178 = vand.u32 %v131, %v173
    %v181 = vand.u32 %v132, %v173
    %183 = vmatpush.bf16.msra.mxu0 0
    %184 = vmatpush.bf16.msra.mxu0 0
    %185 = vmatpush.bf16.msra.mxu0 0
    %186 = vmatpush.bf16.msra.mxu0 0
    %187 = vmatpush.bf16.msra.mxu0 0
    %188 = vmatpush.bf16.msra.mxu0 0
    %189 = vmatpush.bf16.msra.mxu0 0
    %190 = vmatpush.bf16.msra.mxu0 %v175
    %191 = vmatmul.bf16.gmra.mxu0 %v135
    %v192 = vpop.f32.mrf.mxu0
    %v193 = vadd.f32 %v119, %v192
    %v194 = vpop.f32.mrf.mxu0
    %v195 = vadd.f32 %v119, %v194
    %196 = vmatmul.bf16.gmra.mxu0 %v138
    %v197 = vpop.f32.mrf.mxu0
    %v198 = vadd.f32 %v119, %v197
    %v199 = vpop.f32.mrf.mxu0
    %v200 = vadd.f32 %v119, %v199
    %201 = vmatmul.bf16.gmra.mxu0 %v141
    %v202 = vpop.f32.mrf.mxu0
    %v203 = vadd.f32 %v119, %v202
    %v204 = vpop.f32.mrf.mxu0
    %v205 = vadd.f32 %v119, %v204
    %206 = vmatmul.bf16.gmra.mxu0 %v144
    %v207 = vpop.f32.mrf.mxu0
    %v208 = vadd.f32 %v119, %v207
    %v209 = vpop.f32.mrf.mxu0
    %v210 = vadd.f32 %v119, %v209
    %211 = vmatmul.bf16.gmra.mxu0 %v147
    %v212 = vpop.f32.mrf.mxu0
    %v213 = vadd.f32 %v119, %v212
    %v214 = vpop.f32.mrf.mxu0
    %v215 = vadd.f32 %v119, %v214
    %216 = vmatmul.bf16.gmra.mxu0 %v150
    %v217 = vpop.f32.mrf.mxu0
    %v218 = vadd.f32 %v119, %v217
    %v219 = vpop.f32.mrf.mxu0
    %v220 = vadd.f32 %v119, %v219
    %221 = vmatmul.bf16.gmra.mxu0 %v153
    %v222 = vpop.f32.mrf.mxu0
    %v223 = vadd.f32 %v119, %v222
    %v224 = vpop.f32.mrf.mxu0
    %v225 = vadd.f32 %v119, %v224
    %226 = vmatmul.bf16.gmra.mxu0 %v156
    %v227 = vpop.f32.mrf.mxu0
    %v228 = vadd.f32 %v119, %v227
    %v229 = vpop.f32.mrf.mxu0
    %v230 = vadd.f32 %v119, %v229
    %231 = vmatmul.bf16.gmra.mxu0 %v159
    %v232 = vpop.f32.mrf.mxu0
    %v233 = vadd.f32 %v119, %v232
    %v234 = vpop.f32.mrf.mxu0
    %v235 = vadd.f32 %v119, %v234
    %236 = vmatmul.bf16.gmra.mxu0 %v162
    %v237 = vpop.f32.mrf.mxu0
    %v238 = vadd.f32 %v119, %v237
    %v239 = vpop.f32.mrf.mxu0
    %v240 = vadd.f32 %v119, %v239
    %241 = vmatmul.bf16.gmra.mxu0 %v165
    %v242 = vpop.f32.mrf.mxu0
    %v243 = vadd.f32 %v119, %v242
    %v244 = vpop.f32.mrf.mxu0
    %v245 = vadd.f32 %v119, %v244
    %246 = vmatmul.bf16.gmra.mxu0 %v168
    %v247 = vpop.f32.mrf.mxu0
    %v248 = vadd.f32 %v119, %v247
    %v249 = vpop.f32.mrf.mxu0
    %v250 = vadd.f32 %v119, %v249
    %251 = vdwg.mxu0
    %252 = vmatpush.bf16.msra.mxu0 0
    %253 = vmatpush.bf16.msra.mxu0 0
    %254 = vmatpush.bf16.msra.mxu0 0
    %255 = vmatpush.bf16.msra.mxu0 0
    %256 = vmatpush.bf16.msra.mxu0 0
    %257 = vmatpush.bf16.msra.mxu0 0
    %258 = vmatpush.bf16.msra.mxu0 0
    %259 = vmatpush.bf16.msra.mxu0 %v178
    %260 = vmatmul.bf16.gmra.mxu0 %v135
    %v261 = vpop.f32.mrf.mxu0
    %v262 = vadd.f32 %v120, %v261
    %v263 = vpop.f32.mrf.mxu0
    %v264 = vadd.f32 %v120, %v263
    %265 = vmatmul.bf16.gmra.mxu0 %v138
    %v266 = vpop.f32.mrf.mxu0
    %v267 = vadd.f32 %v120, %v266
    %v268 = vpop.f32.mrf.mxu0
    %v269 = vadd.f32 %v120, %v268
    %270 = vmatmul.bf16.gmra.mxu0 %v141
    %v271 = vpop.f32.mrf.mxu0
    %v272 = vadd.f32 %v120, %v271
    %v273 = vpop.f32.mrf.mxu0
    %v274 = vadd.f32 %v120, %v273
    %275 = vmatmul.bf16.gmra.mxu0 %v144
    %v276 = vpop.f32.mrf.mxu0
    %v277 = vadd.f32 %v120, %v276
    %v278 = vpop.f32.mrf.mxu0
    %v279 = vadd.f32 %v120, %v278
    %280 = vmatmul.bf16.gmra.mxu0 %v147
    %v281 = vpop.f32.mrf.mxu0
    %v282 = vadd.f32 %v120, %v281
    %v283 = vpop.f32.mrf.mxu0
    %v284 = vadd.f32 %v120, %v283
    %285 = vmatmul.bf16.gmra.mxu0 %v150
    %v286 = vpop.f32.mrf.mxu0
    %v287 = vadd.f32 %v120, %v286
    %v288 = vpop.f32.mrf.mxu0
    %v289 = vadd.f32 %v120, %v288
    %290 = vmatmul.bf16.gmra.mxu0 %v153
    %v291 = vpop.f32.mrf.mxu0
    %v292 = vadd.f32 %v120, %v291
    %v293 = vpop.f32.mrf.mxu0
    %v294 = vadd.f32 %v120, %v293
    %295 = vmatmul.bf16.gmra.mxu0 %v156
    %v296 = vpop.f32.mrf.mxu0
    %v297 = vadd.f32 %v120, %v296
    %v298 = vpop.f32.mrf.mxu0
    %v299 = vadd.f32 %v120, %v298
    %300 = vmatmul.bf16.gmra.mxu0 %v159
    %v301 = vpop.f32.mrf.mxu0
    %v302 = vadd.f32 %v120, %v301
    %v303 = vpop.f32.mrf.mxu0
    %v304 = vadd.f32 %v120, %v303
    %305 = vmatmul.bf16.gmra.mxu0 %v162
    %v306 = vpop.f32.mrf.mxu0
    %v307 = vadd.f32 %v120, %v306
    %v308 = vpop.f32.mrf.mxu0
    %v309 = vadd.f32 %v120, %v308
    %310 = vmatmul.bf16.gmra.mxu0 %v165
    %v311 = vpop.f32.mrf.mxu0
    %v312 = vadd.f32 %v120, %v311
    %v313 = vpop.f32.mrf.mxu0
    %v314 = vadd.f32 %v120, %v313
    %315 = vmatmul.bf16.gmra.mxu0 %v168
    %v316 = vpop.f32.mrf.mxu0
    %v317 = vadd.f32 %v120, %v316
    %v318 = vpop.f32.mrf.mxu0
    %v319 = vadd.f32 %v120, %v318
    %320 = vdwg.mxu0
    %321 = vmatpush.bf16.msra.mxu0 0
    %322 = vmatpush.bf16.msra.mxu0 0
    %323 = vmatpush.bf16.msra.mxu0 0
    %324 = vmatpush.bf16.msra.mxu0 0
    %325 = vmatpush.bf16.msra.mxu0 0
    %326 = vmatpush.bf16.msra.mxu0 0
    %327 = vmatpush.bf16.msra.mxu0 0
    %328 = vmatpush.bf16.msra.mxu0 %v181
    %329 = vmatmul.bf16.gmra.mxu0 %v135
    %v330 = vpop.f32.mrf.mxu0
    %v331 = vadd.f32 %v121, %v330
    %v332 = vpop.f32.mrf.mxu0
    %v333 = vadd.f32 %v121, %v332
    %334 = vmatmul.bf16.gmra.mxu0 %v138
    %v335 = vpop.f32.mrf.mxu0
    %v336 = vadd.f32 %v121, %v335
    %v337 = vpop.f32.mrf.mxu0
    %v338 = vadd.f32 %v121, %v337
    %339 = vmatmul.bf16.gmra.mxu0 %v141
    %v340 = vpop.f32.mrf.mxu0
    %v341 = vadd.f32 %v121, %v340
    %v342 = vpop.f32.mrf.mxu0
    %v343 = vadd.f32 %v121, %v342
    %344 = vmatmul.bf16.gmra.mxu0 %v144
    %v345 = vpop.f32.mrf.mxu0
    %v346 = vadd.f32 %v121, %v345
    %v347 = vpop.f32.mrf.mxu0
    %v348 = vadd.f32 %v121, %v347
    %349 = vmatmul.bf16.gmra.mxu0 %v147
    %v350 = vpop.f32.mrf.mxu0
    %v351 = vadd.f32 %v121, %v350
    %v352 = vpop.f32.mrf.mxu0
    %v353 = vadd.f32 %v121, %v352
    %354 = vmatmul.bf16.gmra.mxu0 %v150
    %v355 = vpop.f32.mrf.mxu0
    %v356 = vadd.f32 %v121, %v355
    %v357 = vpop.f32.mrf.mxu0
    %v358 = vadd.f32 %v121, %v357
    %359 = vmatmul.bf16.gmra.mxu0 %v153
    %v360 = vpop.f32.mrf.mxu0
    %v361 = vadd.f32 %v121, %v360
    %v362 = vpop.f32.mrf.mxu0
    %v363 = vadd.f32 %v121, %v362
    %364 = vmatmul.bf16.gmra.mxu0 %v156
    %v365 = vpop.f32.mrf.mxu0
    %v366 = vadd.f32 %v121, %v365
    %v367 = vpop.f32.mrf.mxu0
    %v368 = vadd.f32 %v121, %v367
    %369 = vmatmul.bf16.gmra.mxu0 %v159
    %v370 = vpop.f32.mrf.mxu0
    %v371 = vadd.f32 %v121, %v370
    %v372 = vpop.f32.mrf.mxu0
    %v373 = vadd.f32 %v121, %v372
    %374 = vmatmul.bf16.gmra.mxu0 %v162
    %v375 = vpop.f32.mrf.mxu0
    %v376 = vadd.f32 %v121, %v375
    %v377 = vpop.f32.mrf.mxu0
    %v378 = vadd.f32 %v121, %v377
    %379 = vmatmul.bf16.gmra.mxu0 %v165
    %v380 = vpop.f32.mrf.mxu0
    %v381 = vadd.f32 %v121, %v380
    %v382 = vpop.f32.mrf.mxu0
    %v383 = vadd.f32 %v121, %v382
    %384 = vmatmul.bf16.gmra.mxu0 %v168
    %v385 = vpop.f32.mrf.mxu0
    %v386 = vadd.f32 %v121, %v385
    %v387 = vpop.f32.mrf.mxu0
    %v388 = vadd.f32 %v121, %v387
    %389 = vdwg.mxu0
    %390 = vst [vmem:[#allocation2] sm:$0xff] %v193
    %391 = vst [vmem:[#allocation2 + $0x8] sm:$0xff] %v262
    %392 = vst [vmem:[#allocation2 + $0x10] sm:$0xff] %v331
    %393 = vst [vmem:[#allocation2 + $0x18] sm:$0xff] %v195
    %394 = vst [vmem:[#allocation2 + $0x20] sm:$0xff] %v264
    %395 = vst [vmem:[#allocation2 + $0x28] sm:$0xff] %v333
    %396 = vst [vmem:[#allocation2 + $0x30] sm:$0xff] %v198
    %397 = vst [vmem:[#allocation2 + $0x38] sm:$0xff] %v267
    %398 = vst [vmem:[#allocation2 + $0x40] sm:$0xff] %v336
    %399 = vst [vmem:[#allocation2 + $0x48] sm:$0xff] %v200
    %400 = vst [vmem:[#allocation2 + $0x50] sm:$0xff] %v269
    %401 = vst [vmem:[#allocation2 + $0x58] sm:$0xff] %v338
    %402 = vst [vmem:[#allocation2 + $0x60] sm:$0xff] %v203
    %403 = vst [vmem:[#allocation2 + $0x68] sm:$0xff] %v272
    %404 = vst [vmem:[#allocation2 + $0x70] sm:$0xff] %v341
    %405 = vst [vmem:[#allocation2 + $0x78] sm:$0xff] %v205
    %406 = vst [vmem:[#allocation2 + $0x80] sm:$0xff] %v274
    %407 = vst [vmem:[#allocation2 + $0x88] sm:$0xff] %v343
    %408 = vst [vmem:[#allocation2 + $0x90] sm:$0xff] %v208
    %409 = vst [vmem:[#allocation2 + $0x98] sm:$0xff] %v277
    %410 = vst [vmem:[#allocation2 + $0xa0] sm:$0xff] %v346
    %411 = vst [vmem:[#allocation2 + $0xa8] sm:$0xff] %v210
    %412 = vst [vmem:[#allocation2 + $0xb0] sm:$0xff] %v279
    %413 = vst [vmem:[#allocation2 + $0xb8] sm:$0xff] %v348
    %414 = vst [vmem:[#allocation2 + $0xc0] sm:$0xff] %v213
    %415 = vst [vmem:[#allocation2 + $0xc8] sm:$0xff] %v282
    %416 = vst [vmem:[#allocation2 + $0xd0] sm:$0xff] %v351
    %417 = vst [vmem:[#allocation2 + $0xd8] sm:$0xff] %v215
    %418 = vst [vmem:[#allocation2 + $0xe0] sm:$0xff] %v284
    %419 = vst [vmem:[#allocation2 + $0xe8] sm:$0xff] %v353
    %420 = vst [vmem:[#allocation2 + $0xf0] sm:$0xff] %v218
    %421 = vst [vmem:[#allocation2 + $0xf8] sm:$0xff] %v287
    %422 = vst [vmem:[#allocation2 + $0x100] sm:$0xff] %v356
    %423 = vst [vmem:[#allocation2 + $0x108] sm:$0xff] %v220
    %424 = vst [vmem:[#allocation2 + $0x110] sm:$0xff] %v289
    %425 = vst [vmem:[#allocation2 + $0x118] sm:$0xff] %v358
    %426 = vst [vmem:[#allocation2 + $0x120] sm:$0xff] %v223
    %427 = vst [vmem:[#allocation2 + $0x128] sm:$0xff] %v292
    %428 = vst [vmem:[#allocation2 + $0x130] sm:$0xff] %v361
    %429 = vst [vmem:[#allocation2 + $0x138] sm:$0xff] %v225
    %430 = vst [vmem:[#allocation2 + $0x140] sm:$0xff] %v294
    %431 = vst [vmem:[#allocation2 + $0x148] sm:$0xff] %v363
    %432 = vst [vmem:[#allocation2 + $0x150] sm:$0xff] %v228
    %433 = vst [vmem:[#allocation2 + $0x158] sm:$0xff] %v297
    %434 = vst [vmem:[#allocation2 + $0x160] sm:$0xff] %v366
    %435 = vst [vmem:[#allocation2 + $0x168] sm:$0xff] %v230
    %436 = vst [vmem:[#allocation2 + $0x170] sm:$0xff] %v299
    %437 = vst [vmem:[#allocation2 + $0x178] sm:$0xff] %v368
    %438 = vst [vmem:[#allocation2 + $0x180] sm:$0xff] %v233
    %439 = vst [vmem:[#allocation2 + $0x188] sm:$0xff] %v302
    %440 = vst [vmem:[#allocation2 + $0x190] sm:$0xff] %v371
    %441 = vst [vmem:[#allocation2 + $0x198] sm:$0xff] %v235
    %442 = vst [vmem:[#allocation2 + $0x1a0] sm:$0xff] %v304
    %443 = vst [vmem:[#allocation2 + $0x1a8] sm:$0xff] %v373
    %444 = vst [vmem:[#allocation2 + $0x1b0] sm:$0xff] %v238
    %445 = vst [vmem:[#allocation2 + $0x1b8] sm:$0xff] %v307
    %446 = vst [vmem:[#allocation2 + $0x1c0] sm:$0xff] %v376
    %447 = vst [vmem:[#allocation2 + $0x1c8] sm:$0xff] %v240
    %448 = vst [vmem:[#allocation2 + $0x1d0] sm:$0xff] %v309
    %449 = vst [vmem:[#allocation2 + $0x1d8] sm:$0xff] %v378
    %450 = vst [vmem:[#allocation2 + $0x1e0] sm:$0xff] %v243
    %451 = vst [vmem:[#allocation2 + $0x1e8] sm:$0xff] %v312
    %452 = vst [vmem:[#allocation2 + $0x1f0] sm:$0xff] %v381
    %453 = vst [vmem:[#allocation2 + $0x1f8] sm:$0xff] %v245
    %454 = vst [vmem:[#allocation2 + $0x200] sm:$0xff] %v314
    %455 = vst [vmem:[#allocation2 + $0x208] sm:$0xff] %v383
    %456 = vst [vmem:[#allocation2 + $0x210] sm:$0xff] %v248
    %457 = vst [vmem:[#allocation2 + $0x218] sm:$0xff] %v317
    %458 = vst [vmem:[#allocation2 + $0x220] sm:$0xff] %v386
    %459 = vst [vmem:[#allocation2 + $0x228] sm:$0xff] %v250
    %460 = vst [vmem:[#allocation2 + $0x230] sm:$0xff] %v319
    %461 = vst [vmem:[#allocation2 + $0x238] sm:$0xff] %v388
    %v462 = vld [vmem:[%s5] sm:$0x1]
    %v463 = vld [vmem:[%s3] sm:$0xff]
    %v464 = vld [vmem:[%s3 + $0x8] sm:$0xf]
    %v465 = vld [vmem:[%s3 + $0xc] sm:$0xff]
    %v466 = vld [vmem:[%s3 + $0x14] sm:$0xf]
    %v467 = vld [vmem:[%s3 + $0x18] sm:$0xff]
    %v468 = vld [vmem:[%s3 + $0x20] sm:$0xf]
    %v469 = vld [vmem:[%s3 + $0x24] sm:$0xff]
    %v470 = vld [vmem:[%s3 + $0x2c] sm:$0xf]
    %v471 = vld [vmem:[%s3 + $0x30] sm:$0xff]
    %v472 = vld [vmem:[%s3 + $0x38] sm:$0xf]
    %v473 = vld [vmem:[%s3 + $0x3c] sm:$0xff]
    %v474 = vld [vmem:[%s3 + $0x44] sm:$0xf]
    %v475 = vld [vmem:[%s3 + $0x48] sm:$0xff]
    %v476 = vld [vmem:[%s3 + $0x50] sm:$0xf]
    %v477 = vld [vmem:[%s3 + $0x54] sm:$0xff]
    %v478 = vld [vmem:[%s3 + $0x5c] sm:$0xf]
    %v479 = vld [vmem:[%s3 + $0x60] sm:$0xff]
    %v480 = vld [vmem:[%s3 + $0x68] sm:$0xf]
    %v481 = vld [vmem:[%s3 + $0x6c] sm:$0xff]
    %v482 = vld [vmem:[%s3 + $0x74] sm:$0xf]
    %v483 = vld [vmem:[%s3 + $0x78] sm:$0xff]
    %v484 = vld [vmem:[%s3 + $0x80] sm:$0xf]
    %v485 = vld [vmem:[%s3 + $0x84] sm:$0xff]
    %v486 = vld [vmem:[%s3 + $0x8c] sm:$0xf]
    %v487 = vld [vmem:[%s3 + $0x90] sm:$0xff]
    %v488 = vld [vmem:[%s3 + $0x98] sm:$0xf]
    %v489 = vld [vmem:[%s3 + $0x9c] sm:$0xff]
    %v490 = vld [vmem:[%s3 + $0xa4] sm:$0xf]
    %v491 = vld [vmem:[%s3 + $0xa8] sm:$0xff]
    %v492 = vld [vmem:[%s3 + $0xb0] sm:$0xf]
    %v493 = vld [vmem:[%s3 + $0xb4] sm:$0xff]
    %v494 = vld [vmem:[%s3 + $0xbc] sm:$0xf]
    %v495 = vld [vmem:[#allocation2] sm:$0xff]
    %v496 = vld [vmem:[#allocation2 + $0x8] sm:$0xff]
    %v497 = vld [vmem:[#allocation2 + $0x10] sm:$0xff]
    %v498 = vld [vmem:[#allocation2 + $0x18] sm:$0xff]
    %v499 = vld [vmem:[#allocation2 + $0x20] sm:$0xff]
    %v500 = vld [vmem:[#allocation2 + $0x28] sm:$0xff]
    %v533 = vunpack.c.l.b16 %v463
    %v534 = vunpack.c.h.b16 %v463
    %v535 = vunpack.c.l.b16 %v464
    %v536 = vunpack.c.l.b16 %v465
    %v537 = vunpack.c.h.b16 %v465
    %v538 = vunpack.c.l.b16 %v466
    %v539 = vunpack.c.l.b16 %v467
    %v540 = vunpack.c.h.b16 %v467
    %v541 = vunpack.c.l.b16 %v468
    %v542 = vunpack.c.l.b16 %v469
    %v543 = vunpack.c.h.b16 %v469
    %v544 = vunpack.c.l.b16 %v470
    %v545 = vunpack.c.l.b16 %v471
    %v546 = vunpack.c.h.b16 %v471
    %v547 = vunpack.c.l.b16 %v472
    %v548 = vunpack.c.l.b16 %v473
    %v549 = vunpack.c.h.b16 %v473
    %v550 = vunpack.c.l.b16 %v474
    %v551 = vunpack.c.l.b16 %v475
    %v552 = vunpack.c.h.b16 %v475
    %v553 = vunpack.c.l.b16 %v476
    %v554 = vunpack.c.l.b16 %v477
    %v555 = vunpack.c.h.b16 %v477
    %v556 = vunpack.c.l.b16 %v478
    %v557 = vunpack.c.l.b16 %v479
    %v558 = vunpack.c.h.b16 %v479
    %v559 = vunpack.c.l.b16 %v480
    %v560 = vunpack.c.l.b16 %v481
    %v561 = vunpack.c.h.b16 %v481
    %v562 = vunpack.c.l.b16 %v482
    %v563 = vunpack.c.l.b16 %v483
    %v564 = vunpack.c.h.b16 %v483
    %v565 = vunpack.c.l.b16 %v484
    %v566 = vunpack.c.l.b16 %v485
    %v567 = vunpack.c.h.b16 %v485
    %v568 = vunpack.c.l.b16 %v486
    %v569 = vunpack.c.l.b16 %v487
    %v570 = vunpack.c.h.b16 %v487
    %v571 = vunpack.c.l.b16 %v488
    %v572 = vunpack.c.l.b16 %v489
    %v573 = vunpack.c.h.b16 %v489
    %v574 = vunpack.c.l.b16 %v490
    %v575 = vunpack.c.l.b16 %v491
    %v576 = vunpack.c.h.b16 %v491
    %v577 = vunpack.c.l.b16 %v492
    %v578 = vunpack.c.l.b16 %v493
    %v579 = vunpack.c.h.b16 %v493
    %v580 = vunpack.c.l.b16 %v494
    %v581 = vpack.c.b16 %v536, %v533
    %v582 = vpack.c.b16 %v537, %v534
    %v583 = vpack.c.b16 %v538, %v535
    %v584 = vpack.c.b16 %v542, %v539
    %v585 = vpack.c.b16 %v543, %v540
    %v586 = vpack.c.b16 %v544, %v541
    %v587 = vpack.c.b16 %v548, %v545
    %v588 = vpack.c.b16 %v549, %v546
    %v589 = vpack.c.b16 %v550, %v547
    %v590 = vpack.c.b16 %v554, %v551
    %v591 = vpack.c.b16 %v555, %v552
    %v592 = vpack.c.b16 %v556, %v553
    %v593 = vpack.c.b16 %v560, %v557
    %v594 = vpack.c.b16 %v561, %v558
    %v595 = vpack.c.b16 %v562, %v559
    %v596 = vpack.c.b16 %v566, %v563
    %v597 = vpack.c.b16 %v567, %v564
    %v598 = vpack.c.b16 %v568, %v565
    %v599 = vpack.c.b16 %v572, %v569
    %v600 = vpack.c.b16 %v573, %v570
    %v601 = vpack.c.b16 %v574, %v571
    %v602 = vpack.c.b16 %v578, %v575
    %v603 = vpack.c.b16 %v579, %v576
    %v604 = vpack.c.b16 %v580, %v577
    %629 = vmatpush.bf16.msra.mxu0 %v602
    %630 = vmatpush.bf16.msra.mxu0 %v599
    %631 = vmatpush.bf16.msra.mxu0 %v596
    %632 = vmatpush.bf16.msra.mxu0 %v593
    %633 = vmatpush.bf16.msra.mxu0 %v590
    %634 = vmatpush.bf16.msra.mxu0 %v587
    %635 = vmatpush.bf16.msra.mxu0 %v584
    %636 = vmatpush.bf16.msra.mxu0 %v581
    %637 = vmatmul.bf16.gmra.mxu0 0
    %v638 = vpop.f32.mrf.mxu0
    %v639 = vadd.f32 0.0, %v638
    %v640 = vpop.f32.mrf.mxu0
    %v641 = vadd.f32 0.0, %v640
    %642 = vdwg.mxu0
    %643 = vmatpush.bf16.msra.mxu0 %v603
    %644 = vmatpush.bf16.msra.mxu0 %v600
    %645 = vmatpush.bf16.msra.mxu0 %v597
    %646 = vmatpush.bf16.msra.mxu0 %v594
    %647 = vmatpush.bf16.msra.mxu0 %v591
    %648 = vmatpush.bf16.msra.mxu0 %v588
    %649 = vmatpush.bf16.msra.mxu0 %v585
    %650 = vmatpush.bf16.msra.mxu0 %v582
    %651 = vmatmul.bf16.gmra.mxu0 0
    %v652 = vpop.f32.mrf.mxu0
    %v653 = vadd.f32 0.0, %v652
    %v654 = vpop.f32.mrf.mxu0
    %v655 = vadd.f32 0.0, %v654
    %656 = vdwg.mxu0
    %657 = vmatpush.bf16.msra.mxu0 %v604
    %658 = vmatpush.bf16.msra.mxu0 %v601
    %659 = vmatpush.bf16.msra.mxu0 %v598
    %660 = vmatpush.bf16.msra.mxu0 %v595
    %661 = vmatpush.bf16.msra.mxu0 %v592
    %662 = vmatpush.bf16.msra.mxu0 %v589
    %663 = vmatpush.bf16.msra.mxu0 %v586
    %664 = vmatpush.bf16.msra.mxu0 %v583
    %665 = vmatmul.bf16.gmra.mxu0 0
    %v666 = vpop.f32.mrf.mxu0
    %v667 = vadd.f32 0.0, %v666
    %v668 = vpop.f32.mrf.mxu0
    %v669 = vadd.f32 0.0, %v668
    %670 = vdwg.mxu0
    %v671 = vadd.f32 %v495, %v639
    %v672 = vadd.f32 %v496, %v653
    %v673 = vadd.f32 %v498, %v641
    %v674 = vadd.f32 %v499, %v655
    %v675 = vxor.u32 %v671, 2147483648
    %v676 = vxor.u32 %v672, 2147483648
    %v677 = vxor.u32 %v673, 2147483648
    %v678 = vxor.u32 %v674, 2147483648
    %v679 = vmul.f32 %v675, 1.442695
    %v680 = vpow.pop %v679
    %v681 = vmul.f32 %v676, 1.442695
    %v682 = vpow.pop %v681
    %v683 = vmul.f32 %v677, 1.442695
    %v684 = vpow.pop %v683
    %v685 = vmul.f32 %v678, 1.442695
    %v686 = vpow.pop %v685
    %v687 = vadd.f32 %v680, 1.0
    %v688 = vadd.f32 %v682, 1.0
    %v689 = vadd.f32 %v684, 1.0
    %v690 = vadd.f32 %v686, 1.0
    %v691 = vrcp.pop %v687
    %v692 = vmul.f32 %v687, %v691
    %v693 = vsub.f32 1.0, %v692
    %v694 = vmul.f32 %v691, %v693
    %v695 = vadd.f32 %v691, %v694
    %vm696 = vweird.f32 %v687
    %vm697 = vweird.f32 %v691
    %vm698 = vmor %vm696, %vm697
    %v699 = vsel %vm698, %v691, %v695
    %v700 = vand.u32 2147483647, %v687
    %vm701 = vcmp.eq.f32.partialorder %v700, 8.507059e+37
    %v702 = vand.u32 %v687, 2147483648
    %v703 = vor.u32 1.1754944e-38, %v702
    %v704 = vsel %vm701, %v703, %v699
    %v705 = vmul.f32 1.0, %v704
    %v706 = vrcp.pop %v688
    %v707 = vmul.f32 %v688, %v706
    %v708 = vsub.f32 1.0, %v707
    %v709 = vmul.f32 %v706, %v708
    %v710 = vadd.f32 %v706, %v709
    %vm711 = vweird.f32 %v688
    %vm712 = vweird.f32 %v706
    %vm713 = vmor %vm711, %vm712
    %v714 = vsel %vm713, %v706, %v710
    %v715 = vand.u32 2147483647, %v688
    %vm716 = vcmp.eq.f32.partialorder %v715, 8.507059e+37
    %v717 = vand.u32 %v688, 2147483648
    %v718 = vor.u32 1.1754944e-38, %v717
    %v719 = vsel %vm716, %v718, %v714
    %v720 = vmul.f32 1.0, %v719
    %v721 = vrcp.pop %v689
    %v722 = vmul.f32 %v689, %v721
    %v723 = vsub.f32 1.0, %v722
    %v724 = vmul.f32 %v721, %v723
    %v725 = vadd.f32 %v721, %v724
    %vm726 = vweird.f32 %v689
    %vm727 = vweird.f32 %v721
    %vm728 = vmor %vm726, %vm727
    %v729 = vsel %vm728, %v721, %v725
    %v730 = vand.u32 2147483647, %v689
    %vm731 = vcmp.eq.f32.partialorder %v730, 8.507059e+37
    %v732 = vand.u32 %v689, 2147483648
    %v733 = vor.u32 1.1754944e-38, %v732
    %v734 = vsel %vm731, %v733, %v729
    %v735 = vmul.f32 1.0, %v734
    %v736 = vrcp.pop %v690
    %v737 = vmul.f32 %v690, %v736
    %v738 = vsub.f32 1.0, %v737
    %v739 = vmul.f32 %v736, %v738
    %v740 = vadd.f32 %v736, %v739
    %vm741 = vweird.f32 %v690
    %vm742 = vweird.f32 %v736
    %vm743 = vmor %vm741, %vm742
    %v744 = vsel %vm743, %v736, %v740
    %v745 = vand.u32 2147483647, %v690
    %vm746 = vcmp.eq.f32.partialorder %v745, 8.507059e+37
    %v747 = vand.u32 %v690, 2147483648
    %v748 = vor.u32 1.1754944e-38, %v747
    %v749 = vsel %vm746, %v748, %v744
    %v750 = vmul.f32 1.0, %v749
    %v752 = vperm.slane %v462, 0
    %v754 = vadd.f32 %v667, %v752
    %v755 = vadd.f32 %v669, %v752
    %v756 = vmul.f32 %v705, %v754
    %v757 = vmul.f32 %v735, %v755
    %v758 = vadd.f32 %v497, %v756
    %v759 = vadd.f32 %v500, %v757
    %v760 = vtanh.pop %v758
    %v761 = vtanh.pop %v759
    %v762 = vsub.f32 0.0, %v760
    %v763 = vsub.f32 0.0, %v761
    %v764 = vmul.f32 %v720, %v762
    %v765 = vmul.f32 %v750, %v763
    %v766 = vadd.f32 %v760, %v764
    %v767 = vadd.f32 %v761, %v765
    %v768 = vld [vmem:[#allocation2 + $0x30] sm:$0xff]
    %v769 = vld [vmem:[#allocation2 + $0x38] sm:$0xff]
    %v770 = vld [vmem:[#allocation2 + $0x40] sm:$0xff]
    %v771 = vld [vmem:[#allocation2 + $0x48] sm:$0xff]
    %v772 = vld [vmem:[#allocation2 + $0x50] sm:$0xff]
    %v773 = vld [vmem:[#allocation2 + $0x58] sm:$0xff]
    %v774 = vpack.c.bf16 %v767, %v766
    %775 = vmatpush.bf16.msra.mxu0 %v602
    %776 = vmatpush.bf16.msra.mxu0 %v599
    %777 = vmatpush.bf16.msra.mxu0 %v596
    %778 = vmatpush.bf16.msra.mxu0 %v593
    %779 = vmatpush.bf16.msra.mxu0 %v590
    %780 = vmatpush.bf16.msra.mxu0 %v587
    %781 = vmatpush.bf16.msra.mxu0 %v584
    %782 = vmatpush.bf16.msra.mxu0 %v581
    %783 = vmatmul.bf16.gmra.mxu0 %v774
    %v784 = vpop.f32.mrf.mxu0
    %v785 = vadd.f32 0.0, %v784
    %v786 = vpop.f32.mrf.mxu0
    %v787 = vadd.f32 0.0, %v786
    %788 = vdwg.mxu0
    %789 = vmatpush.bf16.msra.mxu0 %v603
    %790 = vmatpush.bf16.msra.mxu0 %v600
    %791 = vmatpush.bf16.msra.mxu0 %v597
    %792 = vmatpush.bf16.msra.mxu0 %v594
    %793 = vmatpush.bf16.msra.mxu0 %v591
    %794 = vmatpush.bf16.msra.mxu0 %v588
    %795 = vmatpush.bf16.msra.mxu0 %v585
    %796 = vmatpush.bf16.msra.mxu0 %v582
    %797 = vmatmul.bf16.gmra.mxu0 %v774
    %v798 = vpop.f32.mrf.mxu0
    %v799 = vadd.f32 0.0, %v798
    %v800 = vpop.f32.mrf.mxu0
    %v801 = vadd.f32 0.0, %v800
    %802 = vdwg.mxu0
    %803 = vmatpush.bf16.msra.mxu0 %v604
    %804 = vmatpush.bf16.msra.mxu0 %v601
    %805 = vmatpush.bf16.msra.mxu0 %v598
    %806 = vmatpush.bf16.msra.mxu0 %v595
    %807 = vmatpush.bf16.msra.mxu0 %v592
    %808 = vmatpush.bf16.msra.mxu0 %v589
    %809 = vmatpush.bf16.msra.mxu0 %v586
    %810 = vmatpush.bf16.msra.mxu0 %v583
    %811 = vmatmul.bf16.gmra.mxu0 %v774
    %v812 = vpop.f32.mrf.mxu0
    %v813 = vadd.f32 0.0, %v812
    %v814 = vpop.f32.mrf.mxu0
    %v815 = vadd.f32 0.0, %v814
    %816 = vdwg.mxu0
    %v817 = vadd.f32 %v768, %v785
    %v818 = vadd.f32 %v769, %v799
    %v819 = vadd.f32 %v771, %v787
    %v820 = vadd.f32 %v772, %v801
    %v821 = vxor.u32 %v817, 2147483648
    %v822 = vxor.u32 %v818, 2147483648
    %v823 = vxor.u32 %v819, 2147483648
    %v824 = vxor.u32 %v820, 2147483648
    %v825 = vmul.f32 %v821, 1.442695
    %v826 = vpow.pop %v825
    %v827 = vmul.f32 %v822, 1.442695
    %v828 = vpow.pop %v827
    %v829 = vmul.f32 %v823, 1.442695
    %v830 = vpow.pop %v829
    %v831 = vmul.f32 %v824, 1.442695
    %v832 = vpow.pop %v831
    %v833 = vadd.f32 %v826, 1.0
    %v834 = vadd.f32 %v828, 1.0
    %v835 = vadd.f32 %v830, 1.0
    %v836 = vadd.f32 %v832, 1.0
    %v837 = vrcp.pop %v833
    %v838 = vmul.f32 %v833, %v837
    %v839 = vsub.f32 1.0, %v838
    %v840 = vmul.f32 %v837, %v839
    %v841 = vadd.f32 %v837, %v840
    %vm842 = vweird.f32 %v833
    %vm843 = vweird.f32 %v837
    %vm844 = vmor %vm842, %vm843
    %v845 = vsel %vm844, %v837, %v841
    %v846 = vand.u32 2147483647, %v833
    %vm847 = vcmp.eq.f32.partialorder %v846, 8.507059e+37
    %v848 = vand.u32 %v833, 2147483648
    %v849 = vor.u32 1.1754944e-38, %v848
    %v850 = vsel %vm847, %v849, %v845
    %v851 = vmul.f32 1.0, %v850
    %v852 = vrcp.pop %v834
    %v853 = vmul.f32 %v834, %v852
    %v854 = vsub.f32 1.0, %v853
    %v855 = vmul.f32 %v852, %v854
    %v856 = vadd.f32 %v852, %v855
    %vm857 = vweird.f32 %v834
    %vm858 = vweird.f32 %v852
    %vm859 = vmor %vm857, %vm858
    %v860 = vsel %vm859, %v852, %v856
    %v861 = vand.u32 2147483647, %v834
    %vm862 = vcmp.eq.f32.partialorder %v861, 8.507059e+37
    %v863 = vand.u32 %v834, 2147483648
    %v864 = vor.u32 1.1754944e-38, %v863
    %v865 = vsel %vm862, %v864, %v860
    %v866 = vmul.f32 1.0, %v865
    %v867 = vrcp.pop %v835
    %v868 = vmul.f32 %v835, %v867
    %v869 = vsub.f32 1.0, %v868
    %v870 = vmul.f32 %v867, %v869
    %v871 = vadd.f32 %v867, %v870
    %vm872 = vweird.f32 %v835
    %vm873 = vweird.f32 %v867
    %vm874 = vmor %vm872, %vm873
    %v875 = vsel %vm874, %v867, %v871
    %v876 = vand.u32 2147483647, %v835
    %vm877 = vcmp.eq.f32.partialorder %v876, 8.507059e+37
    %v878 = vand.u32 %v835, 2147483648
    %v879 = vor.u32 1.1754944e-38, %v878
    %v880 = vsel %vm877, %v879, %v875
    %v881 = vmul.f32 1.0, %v880
    %v882 = vrcp.pop %v836
    %v883 = vmul.f32 %v836, %v882
    %v884 = vsub.f32 1.0, %v883
    %v885 = vmul.f32 %v882, %v884
    %v886 = vadd.f32 %v882, %v885
    %vm887 = vweird.f32 %v836
    %vm888 = vweird.f32 %v882
    %vm889 = vmor %vm887, %vm888
    %v890 = vsel %vm889, %v882, %v886
    %v891 = vand.u32 2147483647, %v836
    %vm892 = vcmp.eq.f32.partialorder %v891, 8.507059e+37
    %v893 = vand.u32 %v836, 2147483648
    %v894 = vor.u32 1.1754944e-38, %v893
    %v895 = vsel %vm892, %v894, %v890
    %v896 = vmul.f32 1.0, %v895
    %v897 = vadd.f32 %v813, %v752
    %v898 = vadd.f32 %v815, %v752
    %v899 = vmul.f32 %v851, %v897
    %v900 = vmul.f32 %v881, %v898
    %v901 = vadd.f32 %v770, %v899
    %v902 = vadd.f32 %v773, %v900
    %v903 = vtanh.pop %v901
    %v904 = vtanh.pop %v902
    %v905 = vsub.f32 %v766, %v903
    %v906 = vsub.f32 %v767, %v904
    %v907 = vmul.f32 %v866, %v905
    %v908 = vmul.f32 %v896, %v906
    %v909 = vadd.f32 %v903, %v907
    %v910 = vadd.f32 %v904, %v908
    %v911 = vld [vmem:[#allocation2 + $0x60] sm:$0xff]
    %v912 = vld [vmem:[#allocation2 + $0x68] sm:$0xff]
    %v913 = vld [vmem:[#allocation2 + $0x70] sm:$0xff]
    %v914 = vld [vmem:[#allocation2 + $0x78] sm:$0xff]
    %v915 = vld [vmem:[#allocation2 + $0x80] sm:$0xff]
    %v916 = vld [vmem:[#allocation2 + $0x88] sm:$0xff]
    %v917 = vpack.c.bf16 %v910, %v909
    %918 = vmatpush.bf16.msra.mxu0 %v602
    %919 = vmatpush.bf16.msra.mxu0 %v599
    %920 = vmatpush.bf16.msra.mxu0 %v596
    %921 = vmatpush.bf16.msra.mxu0 %v593
    %922 = vmatpush.bf16.msra.mxu0 %v590
    %923 = vmatpush.bf16.msra.mxu0 %v587
    %924 = vmatpush.bf16.msra.mxu0 %v584
    %925 = vmatpush.bf16.msra.mxu0 %v581
    %926 = vmatmul.bf16.gmra.mxu0 %v917
    %v927 = vpop.f32.mrf.mxu0
    %v928 = vadd.f32 0.0, %v927
    %v929 = vpop.f32.mrf.mxu0
    %v930 = vadd.f32 0.0, %v929
    %931 = vdwg.mxu0
    %932 = vmatpush.bf16.msra.mxu0 %v603
    %933 = vmatpush.bf16.msra.mxu0 %v600
    %934 = vmatpush.bf16.msra.mxu0 %v597
    %935 = vmatpush.bf16.msra.mxu0 %v594
    %936 = vmatpush.bf16.msra.mxu0 %v591
    %937 = vmatpush.bf16.msra.mxu0 %v588
    %938 = vmatpush.bf16.msra.mxu0 %v585
    %939 = vmatpush.bf16.msra.mxu0 %v582
    %940 = vmatmul.bf16.gmra.mxu0 %v917
    %v941 = vpop.f32.mrf.mxu0
    %v942 = vadd.f32 0.0, %v941
    %v943 = vpop.f32.mrf.mxu0
    %v944 = vadd.f32 0.0, %v943
    %945 = vdwg.mxu0
    %946 = vmatpush.bf16.msra.mxu0 %v604
    %947 = vmatpush.bf16.msra.mxu0 %v601
    %948 = vmatpush.bf16.msra.mxu0 %v598
    %949 = vmatpush.bf16.msra.mxu0 %v595
    %950 = vmatpush.bf16.msra.mxu0 %v592
    %951 = vmatpush.bf16.msra.mxu0 %v589
    %952 = vmatpush.bf16.msra.mxu0 %v586
    %953 = vmatpush.bf16.msra.mxu0 %v583
    %954 = vmatmul.bf16.gmra.mxu0 %v917
    %v955 = vpop.f32.mrf.mxu0
    %v956 = vadd.f32 0.0, %v955
    %v957 = vpop.f32.mrf.mxu0
    %v958 = vadd.f32 0.0, %v957
    %959 = vdwg.mxu0
    %v960 = vadd.f32 %v911, %v928
    %v961 = vadd.f32 %v912, %v942
    %v962 = vadd.f32 %v914, %v930
    %v963 = vadd.f32 %v915, %v944
    %v964 = vxor.u32 %v960, 2147483648
    %v965 = vxor.u32 %v961, 2147483648
    %v966 = vxor.u32 %v962, 2147483648
    %v967 = vxor.u32 %v963, 2147483648
    %v968 = vmul.f32 %v964, 1.442695
    %v969 = vpow.pop %v968
    %v970 = vmul.f32 %v965, 1.442695
    %v971 = vpow.pop %v970
    %v972 = vmul.f32 %v966, 1.442695
    %v973 = vpow.pop %v972
    %v974 = vmul.f32 %v967, 1.442695
    %v975 = vpow.pop %v974
    %v976 = vadd.f32 %v969, 1.0
    %v977 = vadd.f32 %v971, 1.0
    %v978 = vadd.f32 %v973, 1.0
    %v979 = vadd.f32 %v975, 1.0
    %v980 = vrcp.pop %v976
    %v981 = vmul.f32 %v976, %v980
    %v982 = vsub.f32 1.0, %v981
    %v983 = vmul.f32 %v980, %v982
    %v984 = vadd.f32 %v980, %v983
    %vm985 = vweird.f32 %v976
    %vm986 = vweird.f32 %v980
    %vm987 = vmor %vm985, %vm986
    %v988 = vsel %vm987, %v980, %v984
    %v989 = vand.u32 2147483647, %v976
    %vm990 = vcmp.eq.f32.partialorder %v989, 8.507059e+37
    %v991 = vand.u32 %v976, 2147483648
    %v992 = vor.u32 1.1754944e-38, %v991
    %v993 = vsel %vm990, %v992, %v988
    %v994 = vmul.f32 1.0, %v993
    %v995 = vrcp.pop %v977
    %v996 = vmul.f32 %v977, %v995
    %v997 = vsub.f32 1.0, %v996
    %v998 = vmul.f32 %v995, %v997
    %v999 = vadd.f32 %v995, %v998
    %vm1000 = vweird.f32 %v977
    %vm1001 = vweird.f32 %v995
    %vm1002 = vmor %vm1000, %vm1001
    %v1003 = vsel %vm1002, %v995, %v999
    %v1004 = vand.u32 2147483647, %v977
    %vm1005 = vcmp.eq.f32.partialorder %v1004, 8.507059e+37
    %v1006 = vand.u32 %v977, 2147483648
    %v1007 = vor.u32 1.1754944e-38, %v1006
    %v1008 = vsel %vm1005, %v1007, %v1003
    %v1009 = vmul.f32 1.0, %v1008
    %v1010 = vrcp.pop %v978
    %v1011 = vmul.f32 %v978, %v1010
    %v1012 = vsub.f32 1.0, %v1011
    %v1013 = vmul.f32 %v1010, %v1012
    %v1014 = vadd.f32 %v1010, %v1013
    %vm1015 = vweird.f32 %v978
    %vm1016 = vweird.f32 %v1010
    %vm1017 = vmor %vm1015, %vm1016
    %v1018 = vsel %vm1017, %v1010, %v1014
    %v1019 = vand.u32 2147483647, %v978
    %vm1020 = vcmp.eq.f32.partialorder %v1019, 8.507059e+37
    %v1021 = vand.u32 %v978, 2147483648
    %v1022 = vor.u32 1.1754944e-38, %v1021
    %v1023 = vsel %vm1020, %v1022, %v1018
    %v1024 = vmul.f32 1.0, %v1023
    %v1025 = vrcp.pop %v979
    %v1026 = vmul.f32 %v979, %v1025
    %v1027 = vsub.f32 1.0, %v1026
    %v1028 = vmul.f32 %v1025, %v1027
    %v1029 = vadd.f32 %v1025, %v1028
    %vm1030 = vweird.f32 %v979
    %vm1031 = vweird.f32 %v1025
    %vm1032 = vmor %vm1030, %vm1031
    %v1033 = vsel %vm1032, %v1025, %v1029
    %v1034 = vand.u32 2147483647, %v979
    %vm1035 = vcmp.eq.f32.partialorder %v1034, 8.507059e+37
    %v1036 = vand.u32 %v979, 2147483648
    %v1037 = vor.u32 1.1754944e-38, %v1036
    %v1038 = vsel %vm1035, %v1037, %v1033
    %v1039 = vmul.f32 1.0, %v1038
    %v1040 = vadd.f32 %v956, %v752
    %v1041 = vadd.f32 %v958, %v752
    %v1042 = vmul.f32 %v994, %v1040
    %v1043 = vmul.f32 %v1024, %v1041
    %v1044 = vadd.f32 %v913, %v1042
    %v1045 = vadd.f32 %v916, %v1043
    %v1046 = vtanh.pop %v1044
    %v1047 = vtanh.pop %v1045
    %v1048 = vsub.f32 %v909, %v1046
    %v1049 = vsub.f32 %v910, %v1047
    %v1050 = vmul.f32 %v1009, %v1048
    %v1051 = vmul.f32 %v1039, %v1049
    %v1052 = vadd.f32 %v1046, %v1050
    %v1053 = vadd.f32 %v1047, %v1051
    %v1054 = vld [vmem:[#allocation2 + $0x90] sm:$0xff]
    %v1055 = vld [vmem:[#allocation2 + $0x98] sm:$0xff]
    %v1056 = vld [vmem:[#allocation2 + $0xa0] sm:$0xff]
    %v1057 = vld [vmem:[#allocation2 + $0xa8] sm:$0xff]
    %v1058 = vld [vmem:[#allocation2 + $0xb0] sm:$0xff]
    %v1059 = vld [vmem:[#allocation2 + $0xb8] sm:$0xff]
    %v1060 = vpack.c.bf16 %v1053, %v1052
    %1061 = vmatpush.bf16.msra.mxu0 %v602
    %1062 = vmatpush.bf16.msra.mxu0 %v599
    %1063 = vmatpush.bf16.msra.mxu0 %v596
    %1064 = vmatpush.bf16.msra.mxu0 %v593
    %1065 = vmatpush.bf16.msra.mxu0 %v590
    %1066 = vmatpush.bf16.msra.mxu0 %v587
    %1067 = vmatpush.bf16.msra.mxu0 %v584
    %1068 = vmatpush.bf16.msra.mxu0 %v581
    %1069 = vmatmul.bf16.gmra.mxu0 %v1060
    %v1070 = vpop.f32.mrf.mxu0
    %v1071 = vadd.f32 0.0, %v1070
    %v1072 = vpop.f32.mrf.mxu0
    %v1073 = vadd.f32 0.0, %v1072
    %1074 = vdwg.mxu0
    %1075 = vmatpush.bf16.msra.mxu0 %v603
    %1076 = vmatpush.bf16.msra.mxu0 %v600
    %1077 = vmatpush.bf16.msra.mxu0 %v597
    %1078 = vmatpush.bf16.msra.mxu0 %v594
    %1079 = vmatpush.bf16.msra.mxu0 %v591
    %1080 = vmatpush.bf16.msra.mxu0 %v588
    %1081 = vmatpush.bf16.msra.mxu0 %v585
    %1082 = vmatpush.bf16.msra.mxu0 %v582
    %1083 = vmatmul.bf16.gmra.mxu0 %v1060
    %v1084 = vpop.f32.mrf.mxu0
    %v1085 = vadd.f32 0.0, %v1084
    %v1086 = vpop.f32.mrf.mxu0
    %v1087 = vadd.f32 0.0, %v1086
    %1088 = vdwg.mxu0
    %1089 = vmatpush.bf16.msra.mxu0 %v604
    %1090 = vmatpush.bf16.msra.mxu0 %v601
    %1091 = vmatpush.bf16.msra.mxu0 %v598
    %1092 = vmatpush.bf16.msra.mxu0 %v595
    %1093 = vmatpush.bf16.msra.mxu0 %v592
    %1094 = vmatpush.bf16.msra.mxu0 %v589
    %1095 = vmatpush.bf16.msra.mxu0 %v586
    %1096 = vmatpush.bf16.msra.mxu0 %v583
    %1097 = vmatmul.bf16.gmra.mxu0 %v1060
    %v1098 = vpop.f32.mrf.mxu0
    %v1099 = vadd.f32 0.0, %v1098
    %v1100 = vpop.f32.mrf.mxu0
    %v1101 = vadd.f32 0.0, %v1100
    %1102 = vdwg.mxu0
    %v1103 = vadd.f32 %v1054, %v1071
    %v1104 = vadd.f32 %v1055, %v1085
    %v1105 = vadd.f32 %v1057, %v1073
    %v1106 = vadd.f32 %v1058, %v1087
    %v1107 = vxor.u32 %v1103, 2147483648
    %v1108 = vxor.u32 %v1104, 2147483648
    %v1109 = vxor.u32 %v1105, 2147483648
    %v1110 = vxor.u32 %v1106, 2147483648
    %v1111 = vmul.f32 %v1107, 1.442695
    %v1112 = vpow.pop %v1111
    %v1113 = vmul.f32 %v1108, 1.442695
    %v1114 = vpow.pop %v1113
    %v1115 = vmul.f32 %v1109, 1.442695
    %v1116 = vpow.pop %v1115
    %v1117 = vmul.f32 %v1110, 1.442695
    %v1118 = vpow.pop %v1117
    %v1119 = vadd.f32 %v1112, 1.0
    %v1120 = vadd.f32 %v1114, 1.0
    %v1121 = vadd.f32 %v1116, 1.0
    %v1122 = vadd.f32 %v1118, 1.0
    %v1123 = vrcp.pop %v1119
    %v1124 = vmul.f32 %v1119, %v1123
    %v1125 = vsub.f32 1.0, %v1124
    %v1126 = vmul.f32 %v1123, %v1125
    %v1127 = vadd.f32 %v1123, %v1126
    %vm1128 = vweird.f32 %v1119
    %vm1129 = vweird.f32 %v1123
    %vm1130 = vmor %vm1128, %vm1129
    %v1131 = vsel %vm1130, %v1123, %v1127
    %v1132 = vand.u32 2147483647, %v1119
    %vm1133 = vcmp.eq.f32.partialorder %v1132, 8.507059e+37
    %v1134 = vand.u32 %v1119, 2147483648
    %v1135 = vor.u32 1.1754944e-38, %v1134
    %v1136 = vsel %vm1133, %v1135, %v1131
    %v1137 = vmul.f32 1.0, %v1136
    %v1138 = vrcp.pop %v1120
    %v1139 = vmul.f32 %v1120, %v1138
    %v1140 = vsub.f32 1.0, %v1139
    %v1141 = vmul.f32 %v1138, %v1140
    %v1142 = vadd.f32 %v1138, %v1141
    %vm1143 = vweird.f32 %v1120
    %vm1144 = vweird.f32 %v1138
    %vm1145 = vmor %vm1143, %vm1144
    %v1146 = vsel %vm1145, %v1138, %v1142
    %v1147 = vand.u32 2147483647, %v1120
    %vm1148 = vcmp.eq.f32.partialorder %v1147, 8.507059e+37
    %v1149 = vand.u32 %v1120, 2147483648
    %v1150 = vor.u32 1.1754944e-38, %v1149
    %v1151 = vsel %vm1148, %v1150, %v1146
    %v1152 = vmul.f32 1.0, %v1151
    %v1153 = vrcp.pop %v1121
    %v1154 = vmul.f32 %v1121, %v1153
    %v1155 = vsub.f32 1.0, %v1154
    %v1156 = vmul.f32 %v1153, %v1155
    %v1157 = vadd.f32 %v1153, %v1156
    %vm1158 = vweird.f32 %v1121
    %vm1159 = vweird.f32 %v1153
    %vm1160 = vmor %vm1158, %vm1159
    %v1161 = vsel %vm1160, %v1153, %v1157
    %v1162 = vand.u32 2147483647, %v1121
    %vm1163 = vcmp.eq.f32.partialorder %v1162, 8.507059e+37
    %v1164 = vand.u32 %v1121, 2147483648
    %v1165 = vor.u32 1.1754944e-38, %v1164
    %v1166 = vsel %vm1163, %v1165, %v1161
    %v1167 = vmul.f32 1.0, %v1166
    %v1168 = vrcp.pop %v1122
    %v1169 = vmul.f32 %v1122, %v1168
    %v1170 = vsub.f32 1.0, %v1169
    %v1171 = vmul.f32 %v1168, %v1170
    %v1172 = vadd.f32 %v1168, %v1171
    %vm1173 = vweird.f32 %v1122
    %vm1174 = vweird.f32 %v1168
    %vm1175 = vmor %vm1173, %vm1174
    %v1176 = vsel %vm1175, %v1168, %v1172
    %v1177 = vand.u32 2147483647, %v1122
    %vm1178 = vcmp.eq.f32.partialorder %v1177, 8.507059e+37
    %v1179 = vand.u32 %v1122, 2147483648
    %v1180 = vor.u32 1.1754944e-38, %v1179
    %v1181 = vsel %vm1178, %v1180, %v1176
    %v1182 = vmul.f32 1.0, %v1181
    %v1183 = vadd.f32 %v1099, %v752
    %v1184 = vadd.f32 %v1101, %v752
    %v1185 = vmul.f32 %v1137, %v1183
    %v1186 = vmul.f32 %v1167, %v1184
    %v1187 = vadd.f32 %v1056, %v1185
    %v1188 = vadd.f32 %v1059, %v1186
    %v1189 = vtanh.pop %v1187
    %v1190 = vtanh.pop %v1188
    %v1191 = vsub.f32 %v1052, %v1189
    %v1192 = vsub.f32 %v1053, %v1190
    %v1193 = vmul.f32 %v1152, %v1191
    %v1194 = vmul.f32 %v1182, %v1192
    %v1195 = vadd.f32 %v1189, %v1193
    %v1196 = vadd.f32 %v1190, %v1194
    %v1197 = vld [vmem:[#allocation2 + $0xc0] sm:$0xff]
    %v1198 = vld [vmem:[#allocation2 + $0xc8] sm:$0xff]
    %v1199 = vld [vmem:[#allocation2 + $0xd0] sm:$0xff]
    %v1200 = vld [vmem:[#allocation2 + $0xd8] sm:$0xff]
    %v1201 = vld [vmem:[#allocation2 + $0xe0] sm:$0xff]
    %v1202 = vld [vmem:[#allocation2 + $0xe8] sm:$0xff]
    %v1203 = vpack.c.bf16 %v1196, %v1195
    %1204 = vmatpush.bf16.msra.mxu0 %v602
    %1205 = vmatpush.bf16.msra.mxu0 %v599
    %1206 = vmatpush.bf16.msra.mxu0 %v596
    %1207 = vmatpush.bf16.msra.mxu0 %v593
    %1208 = vmatpush.bf16.msra.mxu0 %v590
    %1209 = vmatpush.bf16.msra.mxu0 %v587
    %1210 = vmatpush.bf16.msra.mxu0 %v584
    %1211 = vmatpush.bf16.msra.mxu0 %v581
    %1212 = vmatmul.bf16.gmra.mxu0 %v1203
    %v1213 = vpop.f32.mrf.mxu0
    %v1214 = vadd.f32 0.0, %v1213
    %v1215 = vpop.f32.mrf.mxu0
    %v1216 = vadd.f32 0.0, %v1215
    %1217 = vdwg.mxu0
    %1218 = vmatpush.bf16.msra.mxu0 %v603
    %1219 = vmatpush.bf16.msra.mxu0 %v600
    %1220 = vmatpush.bf16.msra.mxu0 %v597
    %1221 = vmatpush.bf16.msra.mxu0 %v594
    %1222 = vmatpush.bf16.msra.mxu0 %v591
    %1223 = vmatpush.bf16.msra.mxu0 %v588
    %1224 = vmatpush.bf16.msra.mxu0 %v585
    %1225 = vmatpush.bf16.msra.mxu0 %v582
    %1226 = vmatmul.bf16.gmra.mxu0 %v1203
    %v1227 = vpop.f32.mrf.mxu0
    %v1228 = vadd.f32 0.0, %v1227
    %v1229 = vpop.f32.mrf.mxu0
    %v1230 = vadd.f32 0.0, %v1229
    %1231 = vdwg.mxu0
    %1232 = vmatpush.bf16.msra.mxu0 %v604
    %1233 = vmatpush.bf16.msra.mxu0 %v601
    %1234 = vmatpush.bf16.msra.mxu0 %v598
    %1235 = vmatpush.bf16.msra.mxu0 %v595
    %1236 = vmatpush.bf16.msra.mxu0 %v592
    %1237 = vmatpush.bf16.msra.mxu0 %v589
    %1238 = vmatpush.bf16.msra.mxu0 %v586
    %1239 = vmatpush.bf16.msra.mxu0 %v583
    %1240 = vmatmul.bf16.gmra.mxu0 %v1203
    %v1241 = vpop.f32.mrf.mxu0
    %v1242 = vadd.f32 0.0, %v1241
    %v1243 = vpop.f32.mrf.mxu0
    %v1244 = vadd.f32 0.0, %v1243
    %1245 = vdwg.mxu0
    %v1246 = vadd.f32 %v1197, %v1214
    %v1247 = vadd.f32 %v1198, %v1228
    %v1248 = vadd.f32 %v1200, %v1216
    %v1249 = vadd.f32 %v1201, %v1230
    %v1250 = vxor.u32 %v1246, 2147483648
    %v1251 = vxor.u32 %v1247, 2147483648
    %v1252 = vxor.u32 %v1248, 2147483648
    %v1253 = vxor.u32 %v1249, 2147483648
    %v1254 = vmul.f32 %v1250, 1.442695
    %v1255 = vpow.pop %v1254
    %v1256 = vmul.f32 %v1251, 1.442695
    %v1257 = vpow.pop %v1256
    %v1258 = vmul.f32 %v1252, 1.442695
    %v1259 = vpow.pop %v1258
    %v1260 = vmul.f32 %v1253, 1.442695
    %v1261 = vpow.pop %v1260
    %v1262 = vadd.f32 %v1255, 1.0
    %v1263 = vadd.f32 %v1257, 1.0
    %v1264 = vadd.f32 %v1259, 1.0
    %v1265 = vadd.f32 %v1261, 1.0
    %v1266 = vrcp.pop %v1262
    %v1267 = vmul.f32 %v1262, %v1266
    %v1268 = vsub.f32 1.0, %v1267
    %v1269 = vmul.f32 %v1266, %v1268
    %v1270 = vadd.f32 %v1266, %v1269
    %vm1271 = vweird.f32 %v1262
    %vm1272 = vweird.f32 %v1266
    %vm1273 = vmor %vm1271, %vm1272
    %v1274 = vsel %vm1273, %v1266, %v1270
    %v1275 = vand.u32 2147483647, %v1262
    %vm1276 = vcmp.eq.f32.partialorder %v1275, 8.507059e+37
    %v1277 = vand.u32 %v1262, 2147483648
    %v1278 = vor.u32 1.1754944e-38, %v1277
    %v1279 = vsel %vm1276, %v1278, %v1274
    %v1280 = vmul.f32 1.0, %v1279
    %v1281 = vrcp.pop %v1263
    %v1282 = vmul.f32 %v1263, %v1281
    %v1283 = vsub.f32 1.0, %v1282
    %v1284 = vmul.f32 %v1281, %v1283
    %v1285 = vadd.f32 %v1281, %v1284
    %vm1286 = vweird.f32 %v1263
    %vm1287 = vweird.f32 %v1281
    %vm1288 = vmor %vm1286, %vm1287
    %v1289 = vsel %vm1288, %v1281, %v1285
    %v1290 = vand.u32 2147483647, %v1263
    %vm1291 = vcmp.eq.f32.partialorder %v1290, 8.507059e+37
    %v1292 = vand.u32 %v1263, 2147483648
    %v1293 = vor.u32 1.1754944e-38, %v1292
    %v1294 = vsel %vm1291, %v1293, %v1289
    %v1295 = vmul.f32 1.0, %v1294
    %v1296 = vrcp.pop %v1264
    %v1297 = vmul.f32 %v1264, %v1296
    %v1298 = vsub.f32 1.0, %v1297
    %v1299 = vmul.f32 %v1296, %v1298
    %v1300 = vadd.f32 %v1296, %v1299
    %vm1301 = vweird.f32 %v1264
    %vm1302 = vweird.f32 %v1296
    %vm1303 = vmor %vm1301, %vm1302
    %v1304 = vsel %vm1303, %v1296, %v1300
    %v1305 = vand.u32 2147483647, %v1264
    %vm1306 = vcmp.eq.f32.partialorder %v1305, 8.507059e+37
    %v1307 = vand.u32 %v1264, 2147483648
    %v1308 = vor.u32 1.1754944e-38, %v1307
    %v1309 = vsel %vm1306, %v1308, %v1304
    %v1310 = vmul.f32 1.0, %v1309
    %v1311 = vrcp.pop %v1265
    %v1312 = vmul.f32 %v1265, %v1311
    %v1313 = vsub.f32 1.0, %v1312
    %v1314 = vmul.f32 %v1311, %v1313
    %v1315 = vadd.f32 %v1311, %v1314
    %vm1316 = vweird.f32 %v1265
    %vm1317 = vweird.f32 %v1311
    %vm1318 = vmor %vm1316, %vm1317
    %v1319 = vsel %vm1318, %v1311, %v1315
    %v1320 = vand.u32 2147483647, %v1265
    %vm1321 = vcmp.eq.f32.partialorder %v1320, 8.507059e+37
    %v1322 = vand.u32 %v1265, 2147483648
    %v1323 = vor.u32 1.1754944e-38, %v1322
    %v1324 = vsel %vm1321, %v1323, %v1319
    %v1325 = vmul.f32 1.0, %v1324
    %v1326 = vadd.f32 %v1242, %v752
    %v1327 = vadd.f32 %v1244, %v752
    %v1328 = vmul.f32 %v1280, %v1326
    %v1329 = vmul.f32 %v1310, %v1327
    %v1330 = vadd.f32 %v1199, %v1328
    %v1331 = vadd.f32 %v1202, %v1329
    %v1332 = vtanh.pop %v1330
    %v1333 = vtanh.pop %v1331
    %v1334 = vsub.f32 %v1195, %v1332
    %v1335 = vsub.f32 %v1196, %v1333
    %v1336 = vmul.f32 %v1295, %v1334
    %v1337 = vmul.f32 %v1325, %v1335
    %v1338 = vadd.f32 %v1332, %v1336
    %v1339 = vadd.f32 %v1333, %v1337
    %v1340 = vld [vmem:[#allocation2 + $0xf0] sm:$0xff]
    %v1341 = vld [vmem:[#allocation2 + $0xf8] sm:$0xff]
    %v1342 = vld [vmem:[#allocation2 + $0x100] sm:$0xff]
    %v1343 = vld [vmem:[#allocation2 + $0x108] sm:$0xff]
    %v1344 = vld [vmem:[#allocation2 + $0x110] sm:$0xff]
    %v1345 = vld [vmem:[#allocation2 + $0x118] sm:$0xff]
    %v1346 = vpack.c.bf16 %v1339, %v1338
    %1347 = vmatpush.bf16.msra.mxu0 %v602
    %1348 = vmatpush.bf16.msra.mxu0 %v599
    %1349 = vmatpush.bf16.msra.mxu0 %v596
    %1350 = vmatpush.bf16.msra.mxu0 %v593
    %1351 = vmatpush.bf16.msra.mxu0 %v590
    %1352 = vmatpush.bf16.msra.mxu0 %v587
    %1353 = vmatpush.bf16.msra.mxu0 %v584
    %1354 = vmatpush.bf16.msra.mxu0 %v581
    %1355 = vmatmul.bf16.gmra.mxu0 %v1346
    %v1356 = vpop.f32.mrf.mxu0
    %v1357 = vadd.f32 0.0, %v1356
    %v1358 = vpop.f32.mrf.mxu0
    %v1359 = vadd.f32 0.0, %v1358
    %1360 = vdwg.mxu0
    %1361 = vmatpush.bf16.msra.mxu0 %v603
    %1362 = vmatpush.bf16.msra.mxu0 %v600
    %1363 = vmatpush.bf16.msra.mxu0 %v597
    %1364 = vmatpush.bf16.msra.mxu0 %v594
    %1365 = vmatpush.bf16.msra.mxu0 %v591
    %1366 = vmatpush.bf16.msra.mxu0 %v588
    %1367 = vmatpush.bf16.msra.mxu0 %v585
    %1368 = vmatpush.bf16.msra.mxu0 %v582
    %1369 = vmatmul.bf16.gmra.mxu0 %v1346
    %v1370 = vpop.f32.mrf.mxu0
    %v1371 = vadd.f32 0.0, %v1370
    %v1372 = vpop.f32.mrf.mxu0
    %v1373 = vadd.f32 0.0, %v1372
    %1374 = vdwg.mxu0
    %1375 = vmatpush.bf16.msra.mxu0 %v604
    %1376 = vmatpush.bf16.msra.mxu0 %v601
    %1377 = vmatpush.bf16.msra.mxu0 %v598
    %1378 = vmatpush.bf16.msra.mxu0 %v595
    %1379 = vmatpush.bf16.msra.mxu0 %v592
    %1380 = vmatpush.bf16.msra.mxu0 %v589
    %1381 = vmatpush.bf16.msra.mxu0 %v586
    %1382 = vmatpush.bf16.msra.mxu0 %v583
    %1383 = vmatmul.bf16.gmra.mxu0 %v1346
    %v1384 = vpop.f32.mrf.mxu0
    %v1385 = vadd.f32 0.0, %v1384
    %v1386 = vpop.f32.mrf.mxu0
    %v1387 = vadd.f32 0.0, %v1386
    %1388 = vdwg.mxu0
    %v1389 = vadd.f32 %v1340, %v1357
    %v1390 = vadd.f32 %v1341, %v1371
    %v1391 = vadd.f32 %v1343, %v1359
    %v1392 = vadd.f32 %v1344, %v1373
    %v1393 = vxor.u32 %v1389, 2147483648
    %v1394 = vxor.u32 %v1390, 2147483648
    %v1395 = vxor.u32 %v1391, 2147483648
    %v1396 = vxor.u32 %v1392, 2147483648
    %v1397 = vmul.f32 %v1393, 1.442695
    %v1398 = vpow.pop %v1397
    %v1399 = vmul.f32 %v1394, 1.442695
    %v1400 = vpow.pop %v1399
    %v1401 = vmul.f32 %v1395, 1.442695
    %v1402 = vpow.pop %v1401
    %v1403 = vmul.f32 %v1396, 1.442695
    %v1404 = vpow.pop %v1403
    %v1405 = vadd.f32 %v1398, 1.0
    %v1406 = vadd.f32 %v1400, 1.0
    %v1407 = vadd.f32 %v1402, 1.0
    %v1408 = vadd.f32 %v1404, 1.0
    %v1409 = vrcp.pop %v1405
    %v1410 = vmul.f32 %v1405, %v1409
    %v1411 = vsub.f32 1.0, %v1410
    %v1412 = vmul.f32 %v1409, %v1411
    %v1413 = vadd.f32 %v1409, %v1412
    %vm1414 = vweird.f32 %v1405
    %vm1415 = vweird.f32 %v1409
    %vm1416 = vmor %vm1414, %vm1415
    %v1417 = vsel %vm1416, %v1409, %v1413
    %v1418 = vand.u32 2147483647, %v1405
    %vm1419 = vcmp.eq.f32.partialorder %v1418, 8.507059e+37
    %v1420 = vand.u32 %v1405, 2147483648
    %v1421 = vor.u32 1.1754944e-38, %v1420
    %v1422 = vsel %vm1419, %v1421, %v1417
    %v1423 = vmul.f32 1.0, %v1422
    %v1424 = vrcp.pop %v1406
    %v1425 = vmul.f32 %v1406, %v1424
    %v1426 = vsub.f32 1.0, %v1425
    %v1427 = vmul.f32 %v1424, %v1426
    %v1428 = vadd.f32 %v1424, %v1427
    %vm1429 = vweird.f32 %v1406
    %vm1430 = vweird.f32 %v1424
    %vm1431 = vmor %vm1429, %vm1430
    %v1432 = vsel %vm1431, %v1424, %v1428
    %v1433 = vand.u32 2147483647, %v1406
    %vm1434 = vcmp.eq.f32.partialorder %v1433, 8.507059e+37
    %v1435 = vand.u32 %v1406, 2147483648
    %v1436 = vor.u32 1.1754944e-38, %v1435
    %v1437 = vsel %vm1434, %v1436, %v1432
    %v1438 = vmul.f32 1.0, %v1437
    %v1439 = vrcp.pop %v1407
    %v1440 = vmul.f32 %v1407, %v1439
    %v1441 = vsub.f32 1.0, %v1440
    %v1442 = vmul.f32 %v1439, %v1441
    %v1443 = vadd.f32 %v1439, %v1442
    %vm1444 = vweird.f32 %v1407
    %vm1445 = vweird.f32 %v1439
    %vm1446 = vmor %vm1444, %vm1445
    %v1447 = vsel %vm1446, %v1439, %v1443
    %v1448 = vand.u32 2147483647, %v1407
    %vm1449 = vcmp.eq.f32.partialorder %v1448, 8.507059e+37
    %v1450 = vand.u32 %v1407, 2147483648
    %v1451 = vor.u32 1.1754944e-38, %v1450
    %v1452 = vsel %vm1449, %v1451, %v1447
    %v1453 = vmul.f32 1.0, %v1452
    %v1454 = vrcp.pop %v1408
    %v1455 = vmul.f32 %v1408, %v1454
    %v1456 = vsub.f32 1.0, %v1455
    %v1457 = vmul.f32 %v1454, %v1456
    %v1458 = vadd.f32 %v1454, %v1457
    %vm1459 = vweird.f32 %v1408
    %vm1460 = vweird.f32 %v1454
    %vm1461 = vmor %vm1459, %vm1460
    %v1462 = vsel %vm1461, %v1454, %v1458
    %v1463 = vand.u32 2147483647, %v1408
    %vm1464 = vcmp.eq.f32.partialorder %v1463, 8.507059e+37
    %v1465 = vand.u32 %v1408, 2147483648
    %v1466 = vor.u32 1.1754944e-38, %v1465
    %v1467 = vsel %vm1464, %v1466, %v1462
    %v1468 = vmul.f32 1.0, %v1467
    %v1469 = vadd.f32 %v1385, %v752
    %v1470 = vadd.f32 %v1387, %v752
    %v1471 = vmul.f32 %v1423, %v1469
    %v1472 = vmul.f32 %v1453, %v1470
    %v1473 = vadd.f32 %v1342, %v1471
    %v1474 = vadd.f32 %v1345, %v1472
    %v1475 = vtanh.pop %v1473
    %v1476 = vtanh.pop %v1474
    %v1477 = vsub.f32 %v1338, %v1475
    %v1478 = vsub.f32 %v1339, %v1476
    %v1479 = vmul.f32 %v1438, %v1477
    %v1480 = vmul.f32 %v1468, %v1478
    %v1481 = vadd.f32 %v1475, %v1479
    %v1482 = vadd.f32 %v1476, %v1480
    %v1483 = vld [vmem:[#allocation2 + $0x120] sm:$0xff]
    %v1484 = vld [vmem:[#allocation2 + $0x128] sm:$0xff]
    %v1485 = vld [vmem:[#allocation2 + $0x130] sm:$0xff]
    %v1486 = vld [vmem:[#allocation2 + $0x138] sm:$0xff]
    %v1487 = vld [vmem:[#allocation2 + $0x140] sm:$0xff]
    %v1488 = vld [vmem:[#allocation2 + $0x148] sm:$0xff]
    %v1489 = vpack.c.bf16 %v1482, %v1481
    %1490 = vmatpush.bf16.msra.mxu0 %v602
    %1491 = vmatpush.bf16.msra.mxu0 %v599
    %1492 = vmatpush.bf16.msra.mxu0 %v596
    %1493 = vmatpush.bf16.msra.mxu0 %v593
    %1494 = vmatpush.bf16.msra.mxu0 %v590
    %1495 = vmatpush.bf16.msra.mxu0 %v587
    %1496 = vmatpush.bf16.msra.mxu0 %v584
    %1497 = vmatpush.bf16.msra.mxu0 %v581
    %1498 = vmatmul.bf16.gmra.mxu0 %v1489
    %v1499 = vpop.f32.mrf.mxu0
    %v1500 = vadd.f32 0.0, %v1499
    %v1501 = vpop.f32.mrf.mxu0
    %v1502 = vadd.f32 0.0, %v1501
    %1503 = vdwg.mxu0
    %1504 = vmatpush.bf16.msra.mxu0 %v603
    %1505 = vmatpush.bf16.msra.mxu0 %v600
    %1506 = vmatpush.bf16.msra.mxu0 %v597
    %1507 = vmatpush.bf16.msra.mxu0 %v594
    %1508 = vmatpush.bf16.msra.mxu0 %v591
    %1509 = vmatpush.bf16.msra.mxu0 %v588
    %1510 = vmatpush.bf16.msra.mxu0 %v585
    %1511 = vmatpush.bf16.msra.mxu0 %v582
    %1512 = vmatmul.bf16.gmra.mxu0 %v1489
    %v1513 = vpop.f32.mrf.mxu0
    %v1514 = vadd.f32 0.0, %v1513
    %v1515 = vpop.f32.mrf.mxu0
    %v1516 = vadd.f32 0.0, %v1515
    %1517 = vdwg.mxu0
    %1518 = vmatpush.bf16.msra.mxu0 %v604
    %1519 = vmatpush.bf16.msra.mxu0 %v601
    %1520 = vmatpush.bf16.msra.mxu0 %v598
    %1521 = vmatpush.bf16.msra.mxu0 %v595
    %1522 = vmatpush.bf16.msra.mxu0 %v592
    %1523 = vmatpush.bf16.msra.mxu0 %v589
    %1524 = vmatpush.bf16.msra.mxu0 %v586
    %1525 = vmatpush.bf16.msra.mxu0 %v583
    %1526 = vmatmul.bf16.gmra.mxu0 %v1489
    %v1527 = vpop.f32.mrf.mxu0
    %v1528 = vadd.f32 0.0, %v1527
    %v1529 = vpop.f32.mrf.mxu0
    %v1530 = vadd.f32 0.0, %v1529
    %1531 = vdwg.mxu0
    %v1532 = vadd.f32 %v1483, %v1500
    %v1533 = vadd.f32 %v1484, %v1514
    %v1534 = vadd.f32 %v1486, %v1502
    %v1535 = vadd.f32 %v1487, %v1516
    %v1536 = vxor.u32 %v1532, 2147483648
    %v1537 = vxor.u32 %v1533, 2147483648
    %v1538 = vxor.u32 %v1534, 2147483648
    %v1539 = vxor.u32 %v1535, 2147483648
    %v1540 = vmul.f32 %v1536, 1.442695
    %v1541 = vpow.pop %v1540
    %v1542 = vmul.f32 %v1537, 1.442695
    %v1543 = vpow.pop %v1542
    %v1544 = vmul.f32 %v1538, 1.442695
    %v1545 = vpow.pop %v1544
    %v1546 = vmul.f32 %v1539, 1.442695
    %v1547 = vpow.pop %v1546
    %v1548 = vadd.f32 %v1541, 1.0
    %v1549 = vadd.f32 %v1543, 1.0
    %v1550 = vadd.f32 %v1545, 1.0
    %v1551 = vadd.f32 %v1547, 1.0
    %v1552 = vrcp.pop %v1548
    %v1553 = vmul.f32 %v1548, %v1552
    %v1554 = vsub.f32 1.0, %v1553
    %v1555 = vmul.f32 %v1552, %v1554
    %v1556 = vadd.f32 %v1552, %v1555
    %vm1557 = vweird.f32 %v1548
    %vm1558 = vweird.f32 %v1552
    %vm1559 = vmor %vm1557, %vm1558
    %v1560 = vsel %vm1559, %v1552, %v1556
    %v1561 = vand.u32 2147483647, %v1548
    %vm1562 = vcmp.eq.f32.partialorder %v1561, 8.507059e+37
    %v1563 = vand.u32 %v1548, 2147483648
    %v1564 = vor.u32 1.1754944e-38, %v1563
    %v1565 = vsel %vm1562, %v1564, %v1560
    %v1566 = vmul.f32 1.0, %v1565
    %v1567 = vrcp.pop %v1549
    %v1568 = vmul.f32 %v1549, %v1567
    %v1569 = vsub.f32 1.0, %v1568
    %v1570 = vmul.f32 %v1567, %v1569
    %v1571 = vadd.f32 %v1567, %v1570
    %vm1572 = vweird.f32 %v1549
    %vm1573 = vweird.f32 %v1567
    %vm1574 = vmor %vm1572, %vm1573
    %v1575 = vsel %vm1574, %v1567, %v1571
    %v1576 = vand.u32 2147483647, %v1549
    %vm1577 = vcmp.eq.f32.partialorder %v1576, 8.507059e+37
    %v1578 = vand.u32 %v1549, 2147483648
    %v1579 = vor.u32 1.1754944e-38, %v1578
    %v1580 = vsel %vm1577, %v1579, %v1575
    %v1581 = vmul.f32 1.0, %v1580
    %v1582 = vrcp.pop %v1550
    %v1583 = vmul.f32 %v1550, %v1582
    %v1584 = vsub.f32 1.0, %v1583
    %v1585 = vmul.f32 %v1582, %v1584
    %v1586 = vadd.f32 %v1582, %v1585
    %vm1587 = vweird.f32 %v1550
    %vm1588 = vweird.f32 %v1582
    %vm1589 = vmor %vm1587, %vm1588
    %v1590 = vsel %vm1589, %v1582, %v1586
    %v1591 = vand.u32 2147483647, %v1550
    %vm1592 = vcmp.eq.f32.partialorder %v1591, 8.507059e+37
    %v1593 = vand.u32 %v1550, 2147483648
    %v1594 = vor.u32 1.1754944e-38, %v1593
    %v1595 = vsel %vm1592, %v1594, %v1590
    %v1596 = vmul.f32 1.0, %v1595
    %v1597 = vrcp.pop %v1551
    %v1598 = vmul.f32 %v1551, %v1597
    %v1599 = vsub.f32 1.0, %v1598
    %v1600 = vmul.f32 %v1597, %v1599
    %v1601 = vadd.f32 %v1597, %v1600
    %vm1602 = vweird.f32 %v1551
    %vm1603 = vweird.f32 %v1597
    %vm1604 = vmor %vm1602, %vm1603
    %v1605 = vsel %vm1604, %v1597, %v1601
    %v1606 = vand.u32 2147483647, %v1551
    %vm1607 = vcmp.eq.f32.partialorder %v1606, 8.507059e+37
    %v1608 = vand.u32 %v1551, 2147483648
    %v1609 = vor.u32 1.1754944e-38, %v1608
    %v1610 = vsel %vm1607, %v1609, %v1605
    %v1611 = vmul.f32 1.0, %v1610
    %v1612 = vadd.f32 %v1528, %v752
    %v1613 = vadd.f32 %v1530, %v752
    %v1614 = vmul.f32 %v1566, %v1612
    %v1615 = vmul.f32 %v1596, %v1613
    %v1616 = vadd.f32 %v1485, %v1614
    %v1617 = vadd.f32 %v1488, %v1615
    %v1618 = vtanh.pop %v1616
    %v1619 = vtanh.pop %v1617
    %v1620 = vsub.f32 %v1481, %v1618
    %v1621 = vsub.f32 %v1482, %v1619
    %v1622 = vmul.f32 %v1581, %v1620
    %v1623 = vmul.f32 %v1611, %v1621
    %v1624 = vadd.f32 %v1618, %v1622
    %v1625 = vadd.f32 %v1619, %v1623
    %v1626 = vld [vmem:[#allocation2 + $0x150] sm:$0xff]
    %v1627 = vld [vmem:[#allocation2 + $0x158] sm:$0xff]
    %v1628 = vld [vmem:[#allocation2 + $0x160] sm:$0xff]
    %v1629 = vld [vmem:[#allocation2 + $0x168] sm:$0xff]
    %v1630 = vld [vmem:[#allocation2 + $0x170] sm:$0xff]
    %v1631 = vld [vmem:[#allocation2 + $0x178] sm:$0xff]
    %v1632 = vpack.c.bf16 %v1625, %v1624
    %1633 = vmatpush.bf16.msra.mxu0 %v602
    %1634 = vmatpush.bf16.msra.mxu0 %v599
    %1635 = vmatpush.bf16.msra.mxu0 %v596
    %1636 = vmatpush.bf16.msra.mxu0 %v593
    %1637 = vmatpush.bf16.msra.mxu0 %v590
    %1638 = vmatpush.bf16.msra.mxu0 %v587
    %1639 = vmatpush.bf16.msra.mxu0 %v584
    %1640 = vmatpush.bf16.msra.mxu0 %v581
    %1641 = vmatmul.bf16.gmra.mxu0 %v1632
    %v1642 = vpop.f32.mrf.mxu0
    %v1643 = vadd.f32 0.0, %v1642
    %v1644 = vpop.f32.mrf.mxu0
    %v1645 = vadd.f32 0.0, %v1644
    %1646 = vdwg.mxu0
    %1647 = vmatpush.bf16.msra.mxu0 %v603
    %1648 = vmatpush.bf16.msra.mxu0 %v600
    %1649 = vmatpush.bf16.msra.mxu0 %v597
    %1650 = vmatpush.bf16.msra.mxu0 %v594
    %1651 = vmatpush.bf16.msra.mxu0 %v591
    %1652 = vmatpush.bf16.msra.mxu0 %v588
    %1653 = vmatpush.bf16.msra.mxu0 %v585
    %1654 = vmatpush.bf16.msra.mxu0 %v582
    %1655 = vmatmul.bf16.gmra.mxu0 %v1632
    %v1656 = vpop.f32.mrf.mxu0
    %v1657 = vadd.f32 0.0, %v1656
    %v1658 = vpop.f32.mrf.mxu0
    %v1659 = vadd.f32 0.0, %v1658
    %1660 = vdwg.mxu0
    %1661 = vmatpush.bf16.msra.mxu0 %v604
    %1662 = vmatpush.bf16.msra.mxu0 %v601
    %1663 = vmatpush.bf16.msra.mxu0 %v598
    %1664 = vmatpush.bf16.msra.mxu0 %v595
    %1665 = vmatpush.bf16.msra.mxu0 %v592
    %1666 = vmatpush.bf16.msra.mxu0 %v589
    %1667 = vmatpush.bf16.msra.mxu0 %v586
    %1668 = vmatpush.bf16.msra.mxu0 %v583
    %1669 = vmatmul.bf16.gmra.mxu0 %v1632
    %v1670 = vpop.f32.mrf.mxu0
    %v1671 = vadd.f32 0.0, %v1670
    %v1672 = vpop.f32.mrf.mxu0
    %v1673 = vadd.f32 0.0, %v1672
    %1674 = vdwg.mxu0
    %v1675 = vadd.f32 %v1626, %v1643
    %v1676 = vadd.f32 %v1627, %v1657
    %v1677 = vadd.f32 %v1629, %v1645
    %v1678 = vadd.f32 %v1630, %v1659
    %v1679 = vxor.u32 %v1675, 2147483648
    %v1680 = vxor.u32 %v1676, 2147483648
    %v1681 = vxor.u32 %v1677, 2147483648
    %v1682 = vxor.u32 %v1678, 2147483648
    %v1683 = vmul.f32 %v1679, 1.442695
    %v1684 = vpow.pop %v1683
    %v1685 = vmul.f32 %v1680, 1.442695
    %v1686 = vpow.pop %v1685
    %v1687 = vmul.f32 %v1681, 1.442695
    %v1688 = vpow.pop %v1687
    %v1689 = vmul.f32 %v1682, 1.442695
    %v1690 = vpow.pop %v1689
    %v1691 = vadd.f32 %v1684, 1.0
    %v1692 = vadd.f32 %v1686, 1.0
    %v1693 = vadd.f32 %v1688, 1.0
    %v1694 = vadd.f32 %v1690, 1.0
    %v1695 = vrcp.pop %v1691
    %v1696 = vmul.f32 %v1691, %v1695
    %v1697 = vsub.f32 1.0, %v1696
    %v1698 = vmul.f32 %v1695, %v1697
    %v1699 = vadd.f32 %v1695, %v1698
    %vm1700 = vweird.f32 %v1691
    %vm1701 = vweird.f32 %v1695
    %vm1702 = vmor %vm1700, %vm1701
    %v1703 = vsel %vm1702, %v1695, %v1699
    %v1704 = vand.u32 2147483647, %v1691
    %vm1705 = vcmp.eq.f32.partialorder %v1704, 8.507059e+37
    %v1706 = vand.u32 %v1691, 2147483648
    %v1707 = vor.u32 1.1754944e-38, %v1706
    %v1708 = vsel %vm1705, %v1707, %v1703
    %v1709 = vmul.f32 1.0, %v1708
    %v1710 = vrcp.pop %v1692
    %v1711 = vmul.f32 %v1692, %v1710
    %v1712 = vsub.f32 1.0, %v1711
    %v1713 = vmul.f32 %v1710, %v1712
    %v1714 = vadd.f32 %v1710, %v1713
    %vm1715 = vweird.f32 %v1692
    %vm1716 = vweird.f32 %v1710
    %vm1717 = vmor %vm1715, %vm1716
    %v1718 = vsel %vm1717, %v1710, %v1714
    %v1719 = vand.u32 2147483647, %v1692
    %vm1720 = vcmp.eq.f32.partialorder %v1719, 8.507059e+37
    %v1721 = vand.u32 %v1692, 2147483648
    %v1722 = vor.u32 1.1754944e-38, %v1721
    %v1723 = vsel %vm1720, %v1722, %v1718
    %v1724 = vmul.f32 1.0, %v1723
    %v1725 = vrcp.pop %v1693
    %v1726 = vmul.f32 %v1693, %v1725
    %v1727 = vsub.f32 1.0, %v1726
    %v1728 = vmul.f32 %v1725, %v1727
    %v1729 = vadd.f32 %v1725, %v1728
    %vm1730 = vweird.f32 %v1693
    %vm1731 = vweird.f32 %v1725
    %vm1732 = vmor %vm1730, %vm1731
    %v1733 = vsel %vm1732, %v1725, %v1729
    %v1734 = vand.u32 2147483647, %v1693
    %vm1735 = vcmp.eq.f32.partialorder %v1734, 8.507059e+37
    %v1736 = vand.u32 %v1693, 2147483648
    %v1737 = vor.u32 1.1754944e-38, %v1736
    %v1738 = vsel %vm1735, %v1737, %v1733
    %v1739 = vmul.f32 1.0, %v1738
    %v1740 = vrcp.pop %v1694
    %v1741 = vmul.f32 %v1694, %v1740
    %v1742 = vsub.f32 1.0, %v1741
    %v1743 = vmul.f32 %v1740, %v1742
    %v1744 = vadd.f32 %v1740, %v1743
    %vm1745 = vweird.f32 %v1694
    %vm1746 = vweird.f32 %v1740
    %vm1747 = vmor %vm1745, %vm1746
    %v1748 = vsel %vm1747, %v1740, %v1744
    %v1749 = vand.u32 2147483647, %v1694
    %vm1750 = vcmp.eq.f32.partialorder %v1749, 8.507059e+37
    %v1751 = vand.u32 %v1694, 2147483648
    %v1752 = vor.u32 1.1754944e-38, %v1751
    %v1753 = vsel %vm1750, %v1752, %v1748
    %v1754 = vmul.f32 1.0, %v1753
    %v1755 = vadd.f32 %v1671, %v752
    %v1756 = vadd.f32 %v1673, %v752
    %v1757 = vmul.f32 %v1709, %v1755
    %v1758 = vmul.f32 %v1739, %v1756
    %v1759 = vadd.f32 %v1628, %v1757
    %v1760 = vadd.f32 %v1631, %v1758
    %v1761 = vtanh.pop %v1759
    %v1762 = vtanh.pop %v1760
    %v1763 = vsub.f32 %v1624, %v1761
    %v1764 = vsub.f32 %v1625, %v1762
    %v1765 = vmul.f32 %v1724, %v1763
    %v1766 = vmul.f32 %v1754, %v1764
    %v1767 = vadd.f32 %v1761, %v1765
    %v1768 = vadd.f32 %v1762, %v1766
    %v1769 = vld [vmem:[#allocation2 + $0x180] sm:$0xff]
    %v1770 = vld [vmem:[#allocation2 + $0x188] sm:$0xff]
    %v1771 = vld [vmem:[#allocation2 + $0x190] sm:$0xff]
    %v1772 = vld [vmem:[#allocation2 + $0x198] sm:$0xff]
    %v1773 = vld [vmem:[#allocation2 + $0x1a0] sm:$0xff]
    %v1774 = vld [vmem:[#allocation2 + $0x1a8] sm:$0xff]
    %v1775 = vpack.c.bf16 %v1768, %v1767
    %1776 = vmatpush.bf16.msra.mxu0 %v602
    %1777 = vmatpush.bf16.msra.mxu0 %v599
    %1778 = vmatpush.bf16.msra.mxu0 %v596
    %1779 = vmatpush.bf16.msra.mxu0 %v593
    %1780 = vmatpush.bf16.msra.mxu0 %v590
    %1781 = vmatpush.bf16.msra.mxu0 %v587
    %1782 = vmatpush.bf16.msra.mxu0 %v584
    %1783 = vmatpush.bf16.msra.mxu0 %v581
    %1784 = vmatmul.bf16.gmra.mxu0 %v1775
    %v1785 = vpop.f32.mrf.mxu0
    %v1786 = vadd.f32 0.0, %v1785
    %v1787 = vpop.f32.mrf.mxu0
    %v1788 = vadd.f32 0.0, %v1787
    %1789 = vdwg.mxu0
    %1790 = vmatpush.bf16.msra.mxu0 %v603
    %1791 = vmatpush.bf16.msra.mxu0 %v600
    %1792 = vmatpush.bf16.msra.mxu0 %v597
    %1793 = vmatpush.bf16.msra.mxu0 %v594
    %1794 = vmatpush.bf16.msra.mxu0 %v591
    %1795 = vmatpush.bf16.msra.mxu0 %v588
    %1796 = vmatpush.bf16.msra.mxu0 %v585
    %1797 = vmatpush.bf16.msra.mxu0 %v582
    %1798 = vmatmul.bf16.gmra.mxu0 %v1775
    %v1799 = vpop.f32.mrf.mxu0
    %v1800 = vadd.f32 0.0, %v1799
    %v1801 = vpop.f32.mrf.mxu0
    %v1802 = vadd.f32 0.0, %v1801
    %1803 = vdwg.mxu0
    %1804 = vmatpush.bf16.msra.mxu0 %v604
    %1805 = vmatpush.bf16.msra.mxu0 %v601
    %1806 = vmatpush.bf16.msra.mxu0 %v598
    %1807 = vmatpush.bf16.msra.mxu0 %v595
    %1808 = vmatpush.bf16.msra.mxu0 %v592
    %1809 = vmatpush.bf16.msra.mxu0 %v589
    %1810 = vmatpush.bf16.msra.mxu0 %v586
    %1811 = vmatpush.bf16.msra.mxu0 %v583
    %1812 = vmatmul.bf16.gmra.mxu0 %v1775
    %v1813 = vpop.f32.mrf.mxu0
    %v1814 = vadd.f32 0.0, %v1813
    %v1815 = vpop.f32.mrf.mxu0
    %v1816 = vadd.f32 0.0, %v1815
    %1817 = vdwg.mxu0
    %v1818 = vadd.f32 %v1769, %v1786
    %v1819 = vadd.f32 %v1770, %v1800
    %v1820 = vadd.f32 %v1772, %v1788
    %v1821 = vadd.f32 %v1773, %v1802
    %v1822 = vxor.u32 %v1818, 2147483648
    %v1823 = vxor.u32 %v1819, 2147483648
    %v1824 = vxor.u32 %v1820, 2147483648
    %v1825 = vxor.u32 %v1821, 2147483648
    %v1826 = vmul.f32 %v1822, 1.442695
    %v1827 = vpow.pop %v1826
    %v1828 = vmul.f32 %v1823, 1.442695
    %v1829 = vpow.pop %v1828
    %v1830 = vmul.f32 %v1824, 1.442695
    %v1831 = vpow.pop %v1830
    %v1832 = vmul.f32 %v1825, 1.442695
    %v1833 = vpow.pop %v1832
    %v1834 = vadd.f32 %v1827, 1.0
    %v1835 = vadd.f32 %v1829, 1.0
    %v1836 = vadd.f32 %v1831, 1.0
    %v1837 = vadd.f32 %v1833, 1.0
    %v1838 = vrcp.pop %v1834
    %v1839 = vmul.f32 %v1834, %v1838
    %v1840 = vsub.f32 1.0, %v1839
    %v1841 = vmul.f32 %v1838, %v1840
    %v1842 = vadd.f32 %v1838, %v1841
    %vm1843 = vweird.f32 %v1834
    %vm1844 = vweird.f32 %v1838
    %vm1845 = vmor %vm1843, %vm1844
    %v1846 = vsel %vm1845, %v1838, %v1842
    %v1847 = vand.u32 2147483647, %v1834
    %vm1848 = vcmp.eq.f32.partialorder %v1847, 8.507059e+37
    %v1849 = vand.u32 %v1834, 2147483648
    %v1850 = vor.u32 1.1754944e-38, %v1849
    %v1851 = vsel %vm1848, %v1850, %v1846
    %v1852 = vmul.f32 1.0, %v1851
    %v1853 = vrcp.pop %v1835
    %v1854 = vmul.f32 %v1835, %v1853
    %v1855 = vsub.f32 1.0, %v1854
    %v1856 = vmul.f32 %v1853, %v1855
    %v1857 = vadd.f32 %v1853, %v1856
    %vm1858 = vweird.f32 %v1835
    %vm1859 = vweird.f32 %v1853
    %vm1860 = vmor %vm1858, %vm1859
    %v1861 = vsel %vm1860, %v1853, %v1857
    %v1862 = vand.u32 2147483647, %v1835
    %vm1863 = vcmp.eq.f32.partialorder %v1862, 8.507059e+37
    %v1864 = vand.u32 %v1835, 2147483648
    %v1865 = vor.u32 1.1754944e-38, %v1864
    %v1866 = vsel %vm1863, %v1865, %v1861
    %v1867 = vmul.f32 1.0, %v1866
    %v1868 = vrcp.pop %v1836
    %v1869 = vmul.f32 %v1836, %v1868
    %v1870 = vsub.f32 1.0, %v1869
    %v1871 = vmul.f32 %v1868, %v1870
    %v1872 = vadd.f32 %v1868, %v1871
    %vm1873 = vweird.f32 %v1836
    %vm1874 = vweird.f32 %v1868
    %vm1875 = vmor %vm1873, %vm1874
    %v1876 = vsel %vm1875, %v1868, %v1872
    %v1877 = vand.u32 2147483647, %v1836
    %vm1878 = vcmp.eq.f32.partialorder %v1877, 8.507059e+37
    %v1879 = vand.u32 %v1836, 2147483648
    %v1880 = vor.u32 1.1754944e-38, %v1879
    %v1881 = vsel %vm1878, %v1880, %v1876
    %v1882 = vmul.f32 1.0, %v1881
    %v1883 = vrcp.pop %v1837
    %v1884 = vmul.f32 %v1837, %v1883
    %v1885 = vsub.f32 1.0, %v1884
    %v1886 = vmul.f32 %v1883, %v1885
    %v1887 = vadd.f32 %v1883, %v1886
    %vm1888 = vweird.f32 %v1837
    %vm1889 = vweird.f32 %v1883
    %vm1890 = vmor %vm1888, %vm1889
    %v1891 = vsel %vm1890, %v1883, %v1887
    %v1892 = vand.u32 2147483647, %v1837
    %vm1893 = vcmp.eq.f32.partialorder %v1892, 8.507059e+37
    %v1894 = vand.u32 %v1837, 2147483648
    %v1895 = vor.u32 1.1754944e-38, %v1894
    %v1896 = vsel %vm1893, %v1895, %v1891
    %v1897 = vmul.f32 1.0, %v1896
    %v1898 = vadd.f32 %v1814, %v752
    %v1899 = vadd.f32 %v1816, %v752
    %v1900 = vmul.f32 %v1852, %v1898
    %v1901 = vmul.f32 %v1882, %v1899
    %v1902 = vadd.f32 %v1771, %v1900
    %v1903 = vadd.f32 %v1774, %v1901
    %v1904 = vtanh.pop %v1902
    %v1905 = vtanh.pop %v1903
    %v1906 = vsub.f32 %v1767, %v1904
    %v1907 = vsub.f32 %v1768, %v1905
    %v1908 = vmul.f32 %v1867, %v1906
    %v1909 = vmul.f32 %v1897, %v1907
    %v1910 = vadd.f32 %v1904, %v1908
    %v1911 = vadd.f32 %v1905, %v1909
    %v1912 = vld [vmem:[#allocation2 + $0x1b0] sm:$0xff]
    %v1913 = vld [vmem:[#allocation2 + $0x1b8] sm:$0xff]
    %v1914 = vld [vmem:[#allocation2 + $0x1c0] sm:$0xff]
    %v1915 = vld [vmem:[#allocation2 + $0x1c8] sm:$0xff]
    %v1916 = vld [vmem:[#allocation2 + $0x1d0] sm:$0xff]
    %v1917 = vld [vmem:[#allocation2 + $0x1d8] sm:$0xff]
    %v1918 = vpack.c.bf16 %v1911, %v1910
    %1919 = vmatpush.bf16.msra.mxu0 %v602
    %1920 = vmatpush.bf16.msra.mxu0 %v599
    %1921 = vmatpush.bf16.msra.mxu0 %v596
    %1922 = vmatpush.bf16.msra.mxu0 %v593
    %1923 = vmatpush.bf16.msra.mxu0 %v590
    %1924 = vmatpush.bf16.msra.mxu0 %v587
    %1925 = vmatpush.bf16.msra.mxu0 %v584
    %1926 = vmatpush.bf16.msra.mxu0 %v581
    %1927 = vmatmul.bf16.gmra.mxu0 %v1918
    %v1928 = vpop.f32.mrf.mxu0
    %v1929 = vadd.f32 0.0, %v1928
    %v1930 = vpop.f32.mrf.mxu0
    %v1931 = vadd.f32 0.0, %v1930
    %1932 = vdwg.mxu0
    %1933 = vmatpush.bf16.msra.mxu0 %v603
    %1934 = vmatpush.bf16.msra.mxu0 %v600
    %1935 = vmatpush.bf16.msra.mxu0 %v597
    %1936 = vmatpush.bf16.msra.mxu0 %v594
    %1937 = vmatpush.bf16.msra.mxu0 %v591
    %1938 = vmatpush.bf16.msra.mxu0 %v588
    %1939 = vmatpush.bf16.msra.mxu0 %v585
    %1940 = vmatpush.bf16.msra.mxu0 %v582
    %1941 = vmatmul.bf16.gmra.mxu0 %v1918
    %v1942 = vpop.f32.mrf.mxu0
    %v1943 = vadd.f32 0.0, %v1942
    %v1944 = vpop.f32.mrf.mxu0
    %v1945 = vadd.f32 0.0, %v1944
    %1946 = vdwg.mxu0
    %1947 = vmatpush.bf16.msra.mxu0 %v604
    %1948 = vmatpush.bf16.msra.mxu0 %v601
    %1949 = vmatpush.bf16.msra.mxu0 %v598
    %1950 = vmatpush.bf16.msra.mxu0 %v595
    %1951 = vmatpush.bf16.msra.mxu0 %v592
    %1952 = vmatpush.bf16.msra.mxu0 %v589
    %1953 = vmatpush.bf16.msra.mxu0 %v586
    %1954 = vmatpush.bf16.msra.mxu0 %v583
    %1955 = vmatmul.bf16.gmra.mxu0 %v1918
    %v1956 = vpop.f32.mrf.mxu0
    %v1957 = vadd.f32 0.0, %v1956
    %v1958 = vpop.f32.mrf.mxu0
    %v1959 = vadd.f32 0.0, %v1958
    %1960 = vdwg.mxu0
    %v1961 = vadd.f32 %v1912, %v1929
    %v1962 = vadd.f32 %v1913, %v1943
    %v1963 = vadd.f32 %v1915, %v1931
    %v1964 = vadd.f32 %v1916, %v1945
    %v1965 = vxor.u32 %v1961, 2147483648
    %v1966 = vxor.u32 %v1962, 2147483648
    %v1967 = vxor.u32 %v1963, 2147483648
    %v1968 = vxor.u32 %v1964, 2147483648
    %v1969 = vmul.f32 %v1965, 1.442695
    %v1970 = vpow.pop %v1969
    %v1971 = vmul.f32 %v1966, 1.442695
    %v1972 = vpow.pop %v1971
    %v1973 = vmul.f32 %v1967, 1.442695
    %v1974 = vpow.pop %v1973
    %v1975 = vmul.f32 %v1968, 1.442695
    %v1976 = vpow.pop %v1975
    %v1977 = vadd.f32 %v1970, 1.0
    %v1978 = vadd.f32 %v1972, 1.0
    %v1979 = vadd.f32 %v1974, 1.0
    %v1980 = vadd.f32 %v1976, 1.0
    %v1981 = vrcp.pop %v1977
    %v1982 = vmul.f32 %v1977, %v1981
    %v1983 = vsub.f32 1.0, %v1982
    %v1984 = vmul.f32 %v1981, %v1983
    %v1985 = vadd.f32 %v1981, %v1984
    %vm1986 = vweird.f32 %v1977
    %vm1987 = vweird.f32 %v1981
    %vm1988 = vmor %vm1986, %vm1987
    %v1989 = vsel %vm1988, %v1981, %v1985
    %v1990 = vand.u32 2147483647, %v1977
    %vm1991 = vcmp.eq.f32.partialorder %v1990, 8.507059e+37
    %v1992 = vand.u32 %v1977, 2147483648
    %v1993 = vor.u32 1.1754944e-38, %v1992
    %v1994 = vsel %vm1991, %v1993, %v1989
    %v1995 = vmul.f32 1.0, %v1994
    %v1996 = vrcp.pop %v1978
    %v1997 = vmul.f32 %v1978, %v1996
    %v1998 = vsub.f32 1.0, %v1997
    %v1999 = vmul.f32 %v1996, %v1998
    %v2000 = vadd.f32 %v1996, %v1999
    %vm2001 = vweird.f32 %v1978
    %vm2002 = vweird.f32 %v1996
    %vm2003 = vmor %vm2001, %vm2002
    %v2004 = vsel %vm2003, %v1996, %v2000
    %v2005 = vand.u32 2147483647, %v1978
    %vm2006 = vcmp.eq.f32.partialorder %v2005, 8.507059e+37
    %v2007 = vand.u32 %v1978, 2147483648
    %v2008 = vor.u32 1.1754944e-38, %v2007
    %v2009 = vsel %vm2006, %v2008, %v2004
    %v2010 = vmul.f32 1.0, %v2009
    %v2011 = vrcp.pop %v1979
    %v2012 = vmul.f32 %v1979, %v2011
    %v2013 = vsub.f32 1.0, %v2012
    %v2014 = vmul.f32 %v2011, %v2013
    %v2015 = vadd.f32 %v2011, %v2014
    %vm2016 = vweird.f32 %v1979
    %vm2017 = vweird.f32 %v2011
    %vm2018 = vmor %vm2016, %vm2017
    %v2019 = vsel %vm2018, %v2011, %v2015
    %v2020 = vand.u32 2147483647, %v1979
    %vm2021 = vcmp.eq.f32.partialorder %v2020, 8.507059e+37
    %v2022 = vand.u32 %v1979, 2147483648
    %v2023 = vor.u32 1.1754944e-38, %v2022
    %v2024 = vsel %vm2021, %v2023, %v2019
    %v2025 = vmul.f32 1.0, %v2024
    %v2026 = vrcp.pop %v1980
    %v2027 = vmul.f32 %v1980, %v2026
    %v2028 = vsub.f32 1.0, %v2027
    %v2029 = vmul.f32 %v2026, %v2028
    %v2030 = vadd.f32 %v2026, %v2029
    %vm2031 = vweird.f32 %v1980
    %vm2032 = vweird.f32 %v2026
    %vm2033 = vmor %vm2031, %vm2032
    %v2034 = vsel %vm2033, %v2026, %v2030
    %v2035 = vand.u32 2147483647, %v1980
    %vm2036 = vcmp.eq.f32.partialorder %v2035, 8.507059e+37
    %v2037 = vand.u32 %v1980, 2147483648
    %v2038 = vor.u32 1.1754944e-38, %v2037
    %v2039 = vsel %vm2036, %v2038, %v2034
    %v2040 = vmul.f32 1.0, %v2039
    %v2041 = vadd.f32 %v1957, %v752
    %v2042 = vadd.f32 %v1959, %v752
    %v2043 = vmul.f32 %v1995, %v2041
    %v2044 = vmul.f32 %v2025, %v2042
    %v2045 = vadd.f32 %v1914, %v2043
    %v2046 = vadd.f32 %v1917, %v2044
    %v2047 = vtanh.pop %v2045
    %v2048 = vtanh.pop %v2046
    %v2049 = vsub.f32 %v1910, %v2047
    %v2050 = vsub.f32 %v1911, %v2048
    %v2051 = vmul.f32 %v2010, %v2049
    %v2052 = vmul.f32 %v2040, %v2050
    %v2053 = vadd.f32 %v2047, %v2051
    %v2054 = vadd.f32 %v2048, %v2052
    %v2055 = vld [vmem:[#allocation2 + $0x1e0] sm:$0xff]
    %v2056 = vld [vmem:[#allocation2 + $0x1e8] sm:$0xff]
    %v2057 = vld [vmem:[#allocation2 + $0x1f0] sm:$0xff]
    %v2058 = vld [vmem:[#allocation2 + $0x1f8] sm:$0xff]
    %v2059 = vld [vmem:[#allocation2 + $0x200] sm:$0xff]
    %v2060 = vld [vmem:[#allocation2 + $0x208] sm:$0xff]
    %v2061 = vpack.c.bf16 %v2054, %v2053
    %2062 = vmatpush.bf16.msra.mxu0 %v602
    %2063 = vmatpush.bf16.msra.mxu0 %v599
    %2064 = vmatpush.bf16.msra.mxu0 %v596
    %2065 = vmatpush.bf16.msra.mxu0 %v593
    %2066 = vmatpush.bf16.msra.mxu0 %v590
    %2067 = vmatpush.bf16.msra.mxu0 %v587
    %2068 = vmatpush.bf16.msra.mxu0 %v584
    %2069 = vmatpush.bf16.msra.mxu0 %v581
    %2070 = vmatmul.bf16.gmra.mxu0 %v2061
    %v2071 = vpop.f32.mrf.mxu0
    %v2072 = vadd.f32 0.0, %v2071
    %v2073 = vpop.f32.mrf.mxu0
    %v2074 = vadd.f32 0.0, %v2073
    %2075 = vdwg.mxu0
    %2076 = vmatpush.bf16.msra.mxu0 %v603
    %2077 = vmatpush.bf16.msra.mxu0 %v600
    %2078 = vmatpush.bf16.msra.mxu0 %v597
    %2079 = vmatpush.bf16.msra.mxu0 %v594
    %2080 = vmatpush.bf16.msra.mxu0 %v591
    %2081 = vmatpush.bf16.msra.mxu0 %v588
    %2082 = vmatpush.bf16.msra.mxu0 %v585
    %2083 = vmatpush.bf16.msra.mxu0 %v582
    %2084 = vmatmul.bf16.gmra.mxu0 %v2061
    %v2085 = vpop.f32.mrf.mxu0
    %v2086 = vadd.f32 0.0, %v2085
    %v2087 = vpop.f32.mrf.mxu0
    %v2088 = vadd.f32 0.0, %v2087
    %2089 = vdwg.mxu0
    %2090 = vmatpush.bf16.msra.mxu0 %v604
    %2091 = vmatpush.bf16.msra.mxu0 %v601
    %2092 = vmatpush.bf16.msra.mxu0 %v598
    %2093 = vmatpush.bf16.msra.mxu0 %v595
    %2094 = vmatpush.bf16.msra.mxu0 %v592
    %2095 = vmatpush.bf16.msra.mxu0 %v589
    %2096 = vmatpush.bf16.msra.mxu0 %v586
    %2097 = vmatpush.bf16.msra.mxu0 %v583
    %2098 = vmatmul.bf16.gmra.mxu0 %v2061
    %v2099 = vpop.f32.mrf.mxu0
    %v2100 = vadd.f32 0.0, %v2099
    %v2101 = vpop.f32.mrf.mxu0
    %v2102 = vadd.f32 0.0, %v2101
    %2103 = vdwg.mxu0
    %v2104 = vadd.f32 %v2055, %v2072
    %v2105 = vadd.f32 %v2056, %v2086
    %v2106 = vadd.f32 %v2058, %v2074
    %v2107 = vadd.f32 %v2059, %v2088
    %v2108 = vxor.u32 %v2104, 2147483648
    %v2109 = vxor.u32 %v2105, 2147483648
    %v2110 = vxor.u32 %v2106, 2147483648
    %v2111 = vxor.u32 %v2107, 2147483648
    %v2112 = vmul.f32 %v2108, 1.442695
    %v2113 = vpow.pop %v2112
    %v2114 = vmul.f32 %v2109, 1.442695
    %v2115 = vpow.pop %v2114
    %v2116 = vmul.f32 %v2110, 1.442695
    %v2117 = vpow.pop %v2116
    %v2118 = vmul.f32 %v2111, 1.442695
    %v2119 = vpow.pop %v2118
    %v2120 = vadd.f32 %v2113, 1.0
    %v2121 = vadd.f32 %v2115, 1.0
    %v2122 = vadd.f32 %v2117, 1.0
    %v2123 = vadd.f32 %v2119, 1.0
    %v2124 = vrcp.pop %v2120
    %v2125 = vmul.f32 %v2120, %v2124
    %v2126 = vsub.f32 1.0, %v2125
    %v2127 = vmul.f32 %v2124, %v2126
    %v2128 = vadd.f32 %v2124, %v2127
    %vm2129 = vweird.f32 %v2120
    %vm2130 = vweird.f32 %v2124
    %vm2131 = vmor %vm2129, %vm2130
    %v2132 = vsel %vm2131, %v2124, %v2128
    %v2133 = vand.u32 2147483647, %v2120
    %vm2134 = vcmp.eq.f32.partialorder %v2133, 8.507059e+37
    %v2135 = vand.u32 %v2120, 2147483648
    %v2136 = vor.u32 1.1754944e-38, %v2135
    %v2137 = vsel %vm2134, %v2136, %v2132
    %v2138 = vmul.f32 1.0, %v2137
    %v2139 = vrcp.pop %v2121
    %v2140 = vmul.f32 %v2121, %v2139
    %v2141 = vsub.f32 1.0, %v2140
    %v2142 = vmul.f32 %v2139, %v2141
    %v2143 = vadd.f32 %v2139, %v2142
    %vm2144 = vweird.f32 %v2121
    %vm2145 = vweird.f32 %v2139
    %vm2146 = vmor %vm2144, %vm2145
    %v2147 = vsel %vm2146, %v2139, %v2143
    %v2148 = vand.u32 2147483647, %v2121
    %vm2149 = vcmp.eq.f32.partialorder %v2148, 8.507059e+37
    %v2150 = vand.u32 %v2121, 2147483648
    %v2151 = vor.u32 1.1754944e-38, %v2150
    %v2152 = vsel %vm2149, %v2151, %v2147
    %v2153 = vmul.f32 1.0, %v2152
    %v2154 = vrcp.pop %v2122
    %v2155 = vmul.f32 %v2122, %v2154
    %v2156 = vsub.f32 1.0, %v2155
    %v2157 = vmul.f32 %v2154, %v2156
    %v2158 = vadd.f32 %v2154, %v2157
    %vm2159 = vweird.f32 %v2122
    %vm2160 = vweird.f32 %v2154
    %vm2161 = vmor %vm2159, %vm2160
    %v2162 = vsel %vm2161, %v2154, %v2158
    %v2163 = vand.u32 2147483647, %v2122
    %vm2164 = vcmp.eq.f32.partialorder %v2163, 8.507059e+37
    %v2165 = vand.u32 %v2122, 2147483648
    %v2166 = vor.u32 1.1754944e-38, %v2165
    %v2167 = vsel %vm2164, %v2166, %v2162
    %v2168 = vmul.f32 1.0, %v2167
    %v2169 = vrcp.pop %v2123
    %v2170 = vmul.f32 %v2123, %v2169
    %v2171 = vsub.f32 1.0, %v2170
    %v2172 = vmul.f32 %v2169, %v2171
    %v2173 = vadd.f32 %v2169, %v2172
    %vm2174 = vweird.f32 %v2123
    %vm2175 = vweird.f32 %v2169
    %vm2176 = vmor %vm2174, %vm2175
    %v2177 = vsel %vm2176, %v2169, %v2173
    %v2178 = vand.u32 2147483647, %v2123
    %vm2179 = vcmp.eq.f32.partialorder %v2178, 8.507059e+37
    %v2180 = vand.u32 %v2123, 2147483648
    %v2181 = vor.u32 1.1754944e-38, %v2180
    %v2182 = vsel %vm2179, %v2181, %v2177
    %v2183 = vmul.f32 1.0, %v2182
    %v2184 = vadd.f32 %v2100, %v752
    %v2185 = vadd.f32 %v2102, %v752
    %v2186 = vmul.f32 %v2138, %v2184
    %v2187 = vmul.f32 %v2168, %v2185
    %v2188 = vadd.f32 %v2057, %v2186
    %v2189 = vadd.f32 %v2060, %v2187
    %v2190 = vtanh.pop %v2188
    %v2191 = vtanh.pop %v2189
    %v2192 = vsub.f32 %v2053, %v2190
    %v2193 = vsub.f32 %v2054, %v2191
    %v2194 = vmul.f32 %v2153, %v2192
    %v2195 = vmul.f32 %v2183, %v2193
    %v2196 = vadd.f32 %v2190, %v2194
    %v2197 = vadd.f32 %v2191, %v2195
    %v2198 = vld [vmem:[#allocation2 + $0x210] sm:$0xff]
    %v2199 = vld [vmem:[#allocation2 + $0x218] sm:$0xff]
    %v2200 = vld [vmem:[#allocation2 + $0x220] sm:$0xff]
    %v2201 = vld [vmem:[#allocation2 + $0x228] sm:$0xff]
    %v2202 = vld [vmem:[#allocation2 + $0x230] sm:$0xff]
    %v2203 = vld [vmem:[#allocation2 + $0x238] sm:$0xff]
    %v2204 = vpack.c.bf16 %v2197, %v2196
    %2205 = vmatpush.bf16.msra.mxu0 %v602
    %2206 = vmatpush.bf16.msra.mxu0 %v599
    %2207 = vmatpush.bf16.msra.mxu0 %v596
    %2208 = vmatpush.bf16.msra.mxu0 %v593
    %2209 = vmatpush.bf16.msra.mxu0 %v590
    %2210 = vmatpush.bf16.msra.mxu0 %v587
    %2211 = vmatpush.bf16.msra.mxu0 %v584
    %2212 = vmatpush.bf16.msra.mxu0 %v581
    %2213 = vmatmul.bf16.gmra.mxu0 %v2204
    %v2214 = vpop.f32.mrf.mxu0
    %v2215 = vadd.f32 0.0, %v2214
    %v2216 = vpop.f32.mrf.mxu0
    %v2217 = vadd.f32 0.0, %v2216
    %2218 = vdwg.mxu0
    %2219 = vmatpush.bf16.msra.mxu0 %v603
    %2220 = vmatpush.bf16.msra.mxu0 %v600
    %2221 = vmatpush.bf16.msra.mxu0 %v597
    %2222 = vmatpush.bf16.msra.mxu0 %v594
    %2223 = vmatpush.bf16.msra.mxu0 %v591
    %2224 = vmatpush.bf16.msra.mxu0 %v588
    %2225 = vmatpush.bf16.msra.mxu0 %v585
    %2226 = vmatpush.bf16.msra.mxu0 %v582
    %2227 = vmatmul.bf16.gmra.mxu0 %v2204
    %v2228 = vpop.f32.mrf.mxu0
    %v2229 = vadd.f32 0.0, %v2228
    %v2230 = vpop.f32.mrf.mxu0
    %v2231 = vadd.f32 0.0, %v2230
    %2232 = vdwg.mxu0
    %2233 = vmatpush.bf16.msra.mxu0 %v604
    %2234 = vmatpush.bf16.msra.mxu0 %v601
    %2235 = vmatpush.bf16.msra.mxu0 %v598
    %2236 = vmatpush.bf16.msra.mxu0 %v595
    %2237 = vmatpush.bf16.msra.mxu0 %v592
    %2238 = vmatpush.bf16.msra.mxu0 %v589
    %2239 = vmatpush.bf16.msra.mxu0 %v586
    %2240 = vmatpush.bf16.msra.mxu0 %v583
    %2241 = vmatmul.bf16.gmra.mxu0 %v2204
    %v2242 = vpop.f32.mrf.mxu0
    %v2243 = vadd.f32 0.0, %v2242
    %v2244 = vpop.f32.mrf.mxu0
    %v2245 = vadd.f32 0.0, %v2244
    %2246 = vdwg.mxu0
    %v2247 = vadd.f32 %v2198, %v2215
    %v2248 = vadd.f32 %v2199, %v2229
    %v2249 = vadd.f32 %v2201, %v2217
    %v2250 = vadd.f32 %v2202, %v2231
    %v2251 = vxor.u32 %v2247, 2147483648
    %v2252 = vxor.u32 %v2248, 2147483648
    %v2253 = vxor.u32 %v2249, 2147483648
    %v2254 = vxor.u32 %v2250, 2147483648
    %v2255 = vmul.f32 %v2251, 1.442695
    %v2256 = vpow.pop %v2255
    %v2257 = vmul.f32 %v2252, 1.442695
    %v2258 = vpow.pop %v2257
    %v2259 = vmul.f32 %v2253, 1.442695
    %v2260 = vpow.pop %v2259
    %v2261 = vmul.f32 %v2254, 1.442695
    %v2262 = vpow.pop %v2261
    %v2263 = vadd.f32 %v2256, 1.0
    %v2264 = vadd.f32 %v2258, 1.0
    %v2265 = vadd.f32 %v2260, 1.0
    %v2266 = vadd.f32 %v2262, 1.0
    %v2267 = vrcp.pop %v2263
    %v2268 = vmul.f32 %v2263, %v2267
    %v2269 = vsub.f32 1.0, %v2268
    %v2270 = vmul.f32 %v2267, %v2269
    %v2271 = vadd.f32 %v2267, %v2270
    %vm2272 = vweird.f32 %v2263
    %vm2273 = vweird.f32 %v2267
    %vm2274 = vmor %vm2272, %vm2273
    %v2275 = vsel %vm2274, %v2267, %v2271
    %v2276 = vand.u32 2147483647, %v2263
    %vm2277 = vcmp.eq.f32.partialorder %v2276, 8.507059e+37
    %v2278 = vand.u32 %v2263, 2147483648
    %v2279 = vor.u32 1.1754944e-38, %v2278
    %v2280 = vsel %vm2277, %v2279, %v2275
    %v2281 = vmul.f32 1.0, %v2280
    %v2282 = vrcp.pop %v2264
    %v2283 = vmul.f32 %v2264, %v2282
    %v2284 = vsub.f32 1.0, %v2283
    %v2285 = vmul.f32 %v2282, %v2284
    %v2286 = vadd.f32 %v2282, %v2285
    %vm2287 = vweird.f32 %v2264
    %vm2288 = vweird.f32 %v2282
    %vm2289 = vmor %vm2287, %vm2288
    %v2290 = vsel %vm2289, %v2282, %v2286
    %v2291 = vand.u32 2147483647, %v2264
    %vm2292 = vcmp.eq.f32.partialorder %v2291, 8.507059e+37
    %v2293 = vand.u32 %v2264, 2147483648
    %v2294 = vor.u32 1.1754944e-38, %v2293
    %v2295 = vsel %vm2292, %v2294, %v2290
    %v2296 = vmul.f32 1.0, %v2295
    %v2297 = vrcp.pop %v2265
    %v2298 = vmul.f32 %v2265, %v2297
    %v2299 = vsub.f32 1.0, %v2298
    %v2300 = vmul.f32 %v2297, %v2299
    %v2301 = vadd.f32 %v2297, %v2300
    %vm2302 = vweird.f32 %v2265
    %vm2303 = vweird.f32 %v2297
    %vm2304 = vmor %vm2302, %vm2303
    %v2305 = vsel %vm2304, %v2297, %v2301
    %v2306 = vand.u32 2147483647, %v2265
    %vm2307 = vcmp.eq.f32.partialorder %v2306, 8.507059e+37
    %v2308 = vand.u32 %v2265, 2147483648
    %v2309 = vor.u32 1.1754944e-38, %v2308
    %v2310 = vsel %vm2307, %v2309, %v2305
    %v2311 = vmul.f32 1.0, %v2310
    %v2312 = vrcp.pop %v2266
    %v2313 = vmul.f32 %v2266, %v2312
    %v2314 = vsub.f32 1.0, %v2313
    %v2315 = vmul.f32 %v2312, %v2314
    %v2316 = vadd.f32 %v2312, %v2315
    %vm2317 = vweird.f32 %v2266
    %vm2318 = vweird.f32 %v2312
    %vm2319 = vmor %vm2317, %vm2318
    %v2320 = vsel %vm2319, %v2312, %v2316
    %v2321 = vand.u32 2147483647, %v2266
    %vm2322 = vcmp.eq.f32.partialorder %v2321, 8.507059e+37
    %v2323 = vand.u32 %v2266, 2147483648
    %v2324 = vor.u32 1.1754944e-38, %v2323
    %v2325 = vsel %vm2322, %v2324, %v2320
    %v2326 = vmul.f32 1.0, %v2325
    %v2327 = vadd.f32 %v2243, %v752
    %v2328 = vadd.f32 %v2245, %v752
    %v2329 = vmul.f32 %v2281, %v2327
    %v2330 = vmul.f32 %v2311, %v2328
    %v2331 = vadd.f32 %v2200, %v2329
    %v2332 = vadd.f32 %v2203, %v2330
    %v2333 = vtanh.pop %v2331
    %v2334 = vtanh.pop %v2332
    %v2335 = vsub.f32 %v2196, %v2333
    %v2336 = vsub.f32 %v2197, %v2334
    %v2337 = vmul.f32 %v2296, %v2335
    %v2338 = vmul.f32 %v2326, %v2336
    %v2339 = vadd.f32 %v2333, %v2337
    %v2340 = vadd.f32 %v2334, %v2338
    %v2341 = vpack.c.bf16 %v2340, %v2339
    %v2342 = vld [vmem:[#allocation4] sm:$0xff]
    %v2343 = vld [vmem:[#allocation4 + $0x8] sm:$0xff]
    %v2344 = vld [vmem:[#allocation4 + $0x10] sm:$0xff]
    %v2345 = vld [vmem:[#allocation4 + $0x18] sm:$0xff]
    %v2346 = vld [vmem:[#allocation4 + $0x20] sm:$0xff]
    %v2347 = vld [vmem:[#allocation4 + $0x28] sm:$0xff]
    %v2348 = vld [vmem:[#allocation4 + $0x30] sm:$0xff]
    %v2349 = vld [vmem:[#allocation4 + $0x38] sm:$0xff]
    %v2350 = vld [vmem:[#allocation4 + $0x40] sm:$0xff]
    %v2351 = vld [vmem:[#allocation4 + $0x48] sm:$0xff]
    %v2352 = vld [vmem:[#allocation4 + $0x50] sm:$0xff]
    %v2353 = vld [vmem:[#allocation4 + $0x58] sm:$0xff]
    %v2354 = vld [vmem:[#allocation4 + $0x60] sm:$0xff]
    %v2355 = vld [vmem:[#allocation4 + $0x68] sm:$0xff]
    %v2356 = vld [vmem:[#allocation4 + $0x70] sm:$0xff]
    %v2357 = vld [vmem:[#allocation4 + $0x78] sm:$0xff]
    %v2358 = vld [vmem:[#allocation4 + $0x80] sm:$0xff]
    %v2359 = vld [vmem:[#allocation4 + $0x88] sm:$0xff]
    %v2360 = vld [vmem:[#allocation4 + $0x90] sm:$0xff]
    %v2361 = vld [vmem:[#allocation4 + $0x98] sm:$0xff]
    %v2362 = vld [vmem:[#allocation4 + $0xa0] sm:$0xff]
    %v2363 = vld [vmem:[#allocation4 + $0xa8] sm:$0xff]
    %v2364 = vld [vmem:[#allocation4 + $0xb0] sm:$0xff]
    %v2365 = vld [vmem:[#allocation4 + $0xb8] sm:$0xff]
    %v2366 = vld [vmem:[#allocation4 + $0xc0] sm:$0xff]
    %v2367 = vld [vmem:[#allocation4 + $0xc8] sm:$0xff]
    %v2368 = vld [vmem:[#allocation4 + $0xd0] sm:$0xff]
    %v2369 = vld [vmem:[#allocation4 + $0xd8] sm:$0xff]
    %v2370 = vld [vmem:[#allocation4 + $0xe0] sm:$0xff]
    %v2371 = vld [vmem:[#allocation4 + $0xe8] sm:$0xff]
    %v2372 = vld [vmem:[#allocation4 + $0xf0] sm:$0xff]
    %v2373 = vld [vmem:[#allocation4 + $0xf8] sm:$0xff]
    %v2374 = vld [vmem:[#allocation4 + $0x100] sm:$0xff]
    %v2375 = vld [vmem:[#allocation4 + $0x108] sm:$0xff]
    %v2376 = vld [vmem:[#allocation4 + $0x110] sm:$0xff]
    %v2377 = vld [vmem:[#allocation4 + $0x118] sm:$0xff]
    %v2378 = vld [vmem:[#allocation4 + $0x120] sm:$0xff]
    %v2379 = vld [vmem:[#allocation4 + $0x128] sm:$0xff]
    %v2380 = vld [vmem:[#allocation4 + $0x130] sm:$0xff]
    %v2381 = vld [vmem:[#allocation4 + $0x138] sm:$0xff]
    %v2382 = vld [vmem:[#allocation4 + $0x140] sm:$0xff]
    %v2383 = vld [vmem:[#allocation4 + $0x148] sm:$0xff]
    %v2384 = vld [vmem:[#allocation4 + $0x150] sm:$0xff]
    %v2385 = vld [vmem:[#allocation4 + $0x158] sm:$0xff]
    %v2386 = vld [vmem:[#allocation4 + $0x160] sm:$0xff]
    %v2387 = vld [vmem:[#allocation4 + $0x168] sm:$0xff]
    %v2388 = vld [vmem:[#allocation4 + $0x170] sm:$0xff]
    %v2389 = vld [vmem:[#allocation4 + $0x178] sm:$0xff]
    %v2390 = vld [vmem:[%s9] sm:$0x3f]
    %v2392 = vperm.slane %v2390, 0
    %v2393 = vperm.slane %v2390, 1
    %v2394 = vperm.slane %v2390, 2
    %v2395 = vperm.slane %v2390, 3
    %v2396 = vperm.slane %v2390, 4
    %v2397 = vperm.slane %v2390, 5
    %v2452 = vunpack.c.l.b16 %v2342
    %v2453 = vunpack.c.h.b16 %v2342
    %v2454 = vunpack.c.l.b16 %v2343
    %v2455 = vunpack.c.h.b16 %v2343
    %v2456 = vunpack.c.l.b16 %v2344
    %v2457 = vunpack.c.h.b16 %v2344
    %v2458 = vunpack.c.l.b16 %v2345
    %v2459 = vunpack.c.h.b16 %v2345
    %v2460 = vunpack.c.l.b16 %v2346
    %v2461 = vunpack.c.h.b16 %v2346
    %v2462 = vunpack.c.l.b16 %v2347
    %v2463 = vunpack.c.h.b16 %v2347
    %v2464 = vunpack.c.l.b16 %v2348
    %v2465 = vunpack.c.h.b16 %v2348
    %v2466 = vunpack.c.l.b16 %v2349
    %v2467 = vunpack.c.h.b16 %v2349
    %v2468 = vunpack.c.l.b16 %v2350
    %v2469 = vunpack.c.h.b16 %v2350
    %v2470 = vunpack.c.l.b16 %v2351
    %v2471 = vunpack.c.h.b16 %v2351
    %v2472 = vunpack.c.l.b16 %v2352
    %v2473 = vunpack.c.h.b16 %v2352
    %v2474 = vunpack.c.l.b16 %v2353
    %v2475 = vunpack.c.h.b16 %v2353
    %v2476 = vunpack.c.l.b16 %v2354
    %v2477 = vunpack.c.h.b16 %v2354
    %v2478 = vunpack.c.l.b16 %v2355
    %v2479 = vunpack.c.h.b16 %v2355
    %v2480 = vunpack.c.l.b16 %v2356
    %v2481 = vunpack.c.h.b16 %v2356
    %v2482 = vunpack.c.l.b16 %v2357
    %v2483 = vunpack.c.h.b16 %v2357
    %v2484 = vunpack.c.l.b16 %v2358
    %v2485 = vunpack.c.h.b16 %v2358
    %v2486 = vunpack.c.l.b16 %v2359
    %v2487 = vunpack.c.h.b16 %v2359
    %v2488 = vunpack.c.l.b16 %v2360
    %v2489 = vunpack.c.h.b16 %v2360
    %v2490 = vunpack.c.l.b16 %v2361
    %v2491 = vunpack.c.h.b16 %v2361
    %v2492 = vunpack.c.l.b16 %v2362
    %v2493 = vunpack.c.h.b16 %v2362
    %v2494 = vunpack.c.l.b16 %v2363
    %v2495 = vunpack.c.h.b16 %v2363
    %v2496 = vunpack.c.l.b16 %v2364
    %v2497 = vunpack.c.h.b16 %v2364
    %v2498 = vunpack.c.l.b16 %v2365
    %v2499 = vunpack.c.h.b16 %v2365
    %v2500 = vunpack.c.l.b16 %v2366
    %v2501 = vunpack.c.h.b16 %v2366
    %v2502 = vunpack.c.l.b16 %v2367
    %v2503 = vunpack.c.h.b16 %v2367
    %v2504 = vunpack.c.l.b16 %v2368
    %v2505 = vunpack.c.h.b16 %v2368
    %v2506 = vunpack.c.l.b16 %v2369
    %v2507 = vunpack.c.h.b16 %v2369
    %v2508 = vunpack.c.l.b16 %v2370
    %v2509 = vunpack.c.h.b16 %v2370
    %v2510 = vunpack.c.l.b16 %v2371
    %v2511 = vunpack.c.h.b16 %v2371
    %v2512 = vunpack.c.l.b16 %v2372
    %v2513 = vunpack.c.h.b16 %v2372
    %v2514 = vunpack.c.l.b16 %v2373
    %v2515 = vunpack.c.h.b16 %v2373
    %v2516 = vunpack.c.l.b16 %v2374
    %v2517 = vunpack.c.h.b16 %v2374
    %v2518 = vunpack.c.l.b16 %v2375
    %v2519 = vunpack.c.h.b16 %v2375
    %v2520 = vunpack.c.l.b16 %v2376
    %v2521 = vunpack.c.h.b16 %v2376
    %v2522 = vunpack.c.l.b16 %v2377
    %v2523 = vunpack.c.h.b16 %v2377
    %v2524 = vunpack.c.l.b16 %v2378
    %v2525 = vunpack.c.h.b16 %v2378
    %v2526 = vunpack.c.l.b16 %v2379
    %v2527 = vunpack.c.h.b16 %v2379
    %v2528 = vunpack.c.l.b16 %v2380
    %v2529 = vunpack.c.h.b16 %v2380
    %v2530 = vunpack.c.l.b16 %v2381
    %v2531 = vunpack.c.h.b16 %v2381
    %v2532 = vunpack.c.l.b16 %v2382
    %v2533 = vunpack.c.h.b16 %v2382
    %v2534 = vunpack.c.l.b16 %v2383
    %v2535 = vunpack.c.h.b16 %v2383
    %v2536 = vunpack.c.l.b16 %v2384
    %v2537 = vunpack.c.h.b16 %v2384
    %v2538 = vunpack.c.l.b16 %v2385
    %v2539 = vunpack.c.h.b16 %v2385
    %v2540 = vunpack.c.l.b16 %v2386
    %v2541 = vunpack.c.h.b16 %v2386
    %v2542 = vunpack.c.l.b16 %v2387
    %v2543 = vunpack.c.h.b16 %v2387
    %v2544 = vunpack.c.l.b16 %v2388
    %v2545 = vunpack.c.h.b16 %v2388
    %v2546 = vunpack.c.l.b16 %v2389
    %v2547 = vunpack.c.h.b16 %v2389
    %v2548 = vpack.c.b16 %v2458, %v2452
    %v2549 = vpack.c.b16 %v2459, %v2453
    %v2550 = vpack.c.b16 %v2460, %v2454
    %v2551 = vpack.c.b16 %v2461, %v2455
    %v2552 = vpack.c.b16 %v2462, %v2456
    %v2553 = vpack.c.b16 %v2463, %v2457
    %v2554 = vpack.c.b16 %v2470, %v2464
    %v2555 = vpack.c.b16 %v2471, %v2465
    %v2556 = vpack.c.b16 %v2472, %v2466
    %v2557 = vpack.c.b16 %v2473, %v2467
    %v2558 = vpack.c.b16 %v2474, %v2468
    %v2559 = vpack.c.b16 %v2475, %v2469
    %v2560 = vpack.c.b16 %v2482, %v2476
    %v2561 = vpack.c.b16 %v2483, %v2477
    %v2562 = vpack.c.b16 %v2484, %v2478
    %v2563 = vpack.c.b16 %v2485, %v2479
    %v2564 = vpack.c.b16 %v2486, %v2480
    %v2565 = vpack.c.b16 %v2487, %v2481
    %v2566 = vpack.c.b16 %v2494, %v2488
    %v2567 = vpack.c.b16 %v2495, %v2489
    %v2568 = vpack.c.b16 %v2496, %v2490
    %v2569 = vpack.c.b16 %v2497, %v2491
    %v2570 = vpack.c.b16 %v2498, %v2492
    %v2571 = vpack.c.b16 %v2499, %v2493
    %v2572 = vpack.c.b16 %v2506, %v2500
    %v2573 = vpack.c.b16 %v2507, %v2501
    %v2574 = vpack.c.b16 %v2508, %v2502
    %v2575 = vpack.c.b16 %v2509, %v2503
    %v2576 = vpack.c.b16 %v2510, %v2504
    %v2577 = vpack.c.b16 %v2511, %v2505
    %v2578 = vpack.c.b16 %v2518, %v2512
    %v2579 = vpack.c.b16 %v2519, %v2513
    %v2580 = vpack.c.b16 %v2520, %v2514
    %v2581 = vpack.c.b16 %v2521, %v2515
    %v2582 = vpack.c.b16 %v2522, %v2516
    %v2583 = vpack.c.b16 %v2523, %v2517
    %v2584 = vpack.c.b16 %v2530, %v2524
    %v2585 = vpack.c.b16 %v2531, %v2525
    %v2586 = vpack.c.b16 %v2532, %v2526
    %v2587 = vpack.c.b16 %v2533, %v2527
    %v2588 = vpack.c.b16 %v2534, %v2528
    %v2589 = vpack.c.b16 %v2535, %v2529
    %v2590 = vpack.c.b16 %v2542, %v2536
    %v2591 = vpack.c.b16 %v2543, %v2537
    %v2592 = vpack.c.b16 %v2544, %v2538
    %v2593 = vpack.c.b16 %v2545, %v2539
    %v2594 = vpack.c.b16 %v2546, %v2540
    %v2595 = vpack.c.b16 %v2547, %v2541
    %2644 = vmatpush.bf16.msra.mxu0 %v2590
    %2645 = vmatpush.bf16.msra.mxu0 %v2584
    %2646 = vmatpush.bf16.msra.mxu0 %v2578
    %2647 = vmatpush.bf16.msra.mxu0 %v2572
    %2648 = vmatpush.bf16.msra.mxu0 %v2566
    %2649 = vmatpush.bf16.msra.mxu0 %v2560
    %2650 = vmatpush.bf16.msra.mxu0 %v2554
    %2651 = vmatpush.bf16.msra.mxu0 %v2548
    %2652 = vmatmul.bf16.gmra.mxu0 %v2341
    %v2653 = vpop.f32.mrf.mxu0
    %v2654 = vadd.f32 %v2392, %v2653
    %v2655 = vpop.f32.mrf.mxu0
    %v2656 = vadd.f32 %v2392, %v2655
    %2657 = vdwg.mxu0
    %2658 = vmatpush.bf16.msra.mxu0 %v2591
    %2659 = vmatpush.bf16.msra.mxu0 %v2585
    %2660 = vmatpush.bf16.msra.mxu0 %v2579
    %2661 = vmatpush.bf16.msra.mxu0 %v2573
    %2662 = vmatpush.bf16.msra.mxu0 %v2567
    %2663 = vmatpush.bf16.msra.mxu0 %v2561
    %2664 = vmatpush.bf16.msra.mxu0 %v2555
    %2665 = vmatpush.bf16.msra.mxu0 %v2549
    %2666 = vmatmul.bf16.gmra.mxu0 %v2341
    %v2667 = vpop.f32.mrf.mxu0
    %v2668 = vadd.f32 %v2393, %v2667
    %v2669 = vpop.f32.mrf.mxu0
    %v2670 = vadd.f32 %v2393, %v2669
    %2671 = vdwg.mxu0
    %2672 = vmatpush.bf16.msra.mxu0 %v2592
    %2673 = vmatpush.bf16.msra.mxu0 %v2586
    %2674 = vmatpush.bf16.msra.mxu0 %v2580
    %2675 = vmatpush.bf16.msra.mxu0 %v2574
    %2676 = vmatpush.bf16.msra.mxu0 %v2568
    %2677 = vmatpush.bf16.msra.mxu0 %v2562
    %2678 = vmatpush.bf16.msra.mxu0 %v2556
    %2679 = vmatpush.bf16.msra.mxu0 %v2550
    %2680 = vmatmul.bf16.gmra.mxu0 %v2341
    %v2681 = vpop.f32.mrf.mxu0
    %v2682 = vadd.f32 %v2394, %v2681
    %v2683 = vpop.f32.mrf.mxu0
    %v2684 = vadd.f32 %v2394, %v2683
    %2685 = vdwg.mxu0
    %2686 = vmatpush.bf16.msra.mxu0 %v2593
    %2687 = vmatpush.bf16.msra.mxu0 %v2587
    %2688 = vmatpush.bf16.msra.mxu0 %v2581
    %2689 = vmatpush.bf16.msra.mxu0 %v2575
    %2690 = vmatpush.bf16.msra.mxu0 %v2569
    %2691 = vmatpush.bf16.msra.mxu0 %v2563
    %2692 = vmatpush.bf16.msra.mxu0 %v2557
    %2693 = vmatpush.bf16.msra.mxu0 %v2551
    %2694 = vmatmul.bf16.gmra.mxu0 %v2341
    %v2695 = vpop.f32.mrf.mxu0
    %v2696 = vadd.f32 %v2395, %v2695
    %v2697 = vpop.f32.mrf.mxu0
    %v2698 = vadd.f32 %v2395, %v2697
    %2699 = vdwg.mxu0
    %2700 = vmatpush.bf16.msra.mxu0 %v2594
    %2701 = vmatpush.bf16.msra.mxu0 %v2588
    %2702 = vmatpush.bf16.msra.mxu0 %v2582
    %2703 = vmatpush.bf16.msra.mxu0 %v2576
    %2704 = vmatpush.bf16.msra.mxu0 %v2570
    %2705 = vmatpush.bf16.msra.mxu0 %v2564
    %2706 = vmatpush.bf16.msra.mxu0 %v2558
    %2707 = vmatpush.bf16.msra.mxu0 %v2552
    %2708 = vmatmul.bf16.gmra.mxu0 %v2341
    %v2709 = vpop.f32.mrf.mxu0
    %v2710 = vadd.f32 %v2396, %v2709
    %v2711 = vpop.f32.mrf.mxu0
    %v2712 = vadd.f32 %v2396, %v2711
    %2713 = vdwg.mxu0
    %2714 = vmatpush.bf16.msra.mxu0 %v2595
    %2715 = vmatpush.bf16.msra.mxu0 %v2589
    %2716 = vmatpush.bf16.msra.mxu0 %v2583
    %2717 = vmatpush.bf16.msra.mxu0 %v2577
    %2718 = vmatpush.bf16.msra.mxu0 %v2571
    %2719 = vmatpush.bf16.msra.mxu0 %v2565
    %2720 = vmatpush.bf16.msra.mxu0 %v2559
    %2721 = vmatpush.bf16.msra.mxu0 %v2553
    %2722 = vmatmul.bf16.gmra.mxu0 %v2341
    %v2723 = vpop.f32.mrf.mxu0
    %v2724 = vadd.f32 %v2397, %v2723
    %v2725 = vpop.f32.mrf.mxu0
    %v2726 = vadd.f32 %v2397, %v2725
    %2727 = vdwg.mxu0
    %v2728 = vld [vmem:[%s7] sm:$0x3f]
    %v2730 = vperm.slane %v2728, 0
    %v2731 = vperm.slane %v2728, 1
    %v2732 = vperm.slane %v2728, 2
    %v2733 = vperm.slane %v2728, 3
    %v2734 = vperm.slane %v2728, 4
    %v2735 = vperm.slane %v2728, 5
    %v2742 = vld [vmem:[%s10] sm:$0x3]
    %v2743 = vld [vmem:[#allocation7] sm:$0xff]
    %v2744 = vld [vmem:[#allocation7 + $0x8] sm:$0xff]
    %v2745 = vld [vmem:[#allocation7 + $0x10] sm:$0xff]
    %v2746 = vld [vmem:[#allocation7 + $0x18] sm:$0xff]
    %v2747 = vld [vmem:[#allocation7 + $0x20] sm:$0xff]
    %v2748 = vld [vmem:[#allocation7 + $0x28] sm:$0xff]
    %v2749 = vld [vmem:[#allocation7 + $0x30] sm:$0xff]
    %v2750 = vld [vmem:[#allocation7 + $0x38] sm:$0xff]
    %v2751 = vld [vmem:[#allocation7 + $0x40] sm:$0xff]
    %v2752 = vld [vmem:[#allocation7 + $0x48] sm:$0xff]
    %v2753 = vld [vmem:[#allocation7 + $0x50] sm:$0xff]
    %v2754 = vld [vmem:[#allocation7 + $0x58] sm:$0xff]
    %v2755 = vld [vmem:[#allocation7 + $0x60] sm:$0xff]
    %v2756 = vld [vmem:[#allocation7 + $0x68] sm:$0xff]
    %v2757 = vld [vmem:[#allocation7 + $0x70] sm:$0xff]
    %v2758 = vld [vmem:[#allocation7 + $0x78] sm:$0xff]
    %v2759 = vld [vmem:[#allocation7 + $0x80] sm:$0xff]
    %v2760 = vld [vmem:[#allocation7 + $0x88] sm:$0xff]
    %v2761 = vld [vmem:[#allocation7 + $0x90] sm:$0xff]
    %v2762 = vld [vmem:[#allocation7 + $0x98] sm:$0xff]
    %v2763 = vld [vmem:[#allocation7 + $0xa0] sm:$0xff]
    %v2764 = vld [vmem:[#allocation7 + $0xa8] sm:$0xff]
    %v2765 = vld [vmem:[#allocation7 + $0xb0] sm:$0xff]
    %v2766 = vld [vmem:[#allocation7 + $0xb8] sm:$0xff]
    %v2767 = vld [vmem:[#allocation7 + $0xc0] sm:$0xff]
    %v2768 = vld [vmem:[#allocation7 + $0xc8] sm:$0xff]
    %v2769 = vld [vmem:[#allocation7 + $0xd0] sm:$0xff]
    %v2770 = vld [vmem:[#allocation7 + $0xd8] sm:$0xff]
    %v2771 = vld [vmem:[#allocation7 + $0xe0] sm:$0xff]
    %v2772 = vld [vmem:[#allocation7 + $0xe8] sm:$0xff]
    %v2773 = vld [vmem:[#allocation7 + $0xf0] sm:$0xff]
    %v2774 = vld [vmem:[#allocation7 + $0xf8] sm:$0xff]
    %v2775 = vld [vmem:[#allocation7 + $0x100] sm:$0xff]
    %v2776 = vld [vmem:[#allocation7 + $0x108] sm:$0xff]
    %v2777 = vld [vmem:[#allocation7 + $0x110] sm:$0xff]
    %v2778 = vld [vmem:[#allocation7 + $0x118] sm:$0xff]
    %v2779 = vld [vmem:[#allocation7 + $0x120] sm:$0xff]
    %v2780 = vld [vmem:[#allocation7 + $0x128] sm:$0xff]
    %v2781 = vld [vmem:[#allocation7 + $0x130] sm:$0xff]
    %v2782 = vld [vmem:[#allocation7 + $0x138] sm:$0xff]
    %v2783 = vld [vmem:[#allocation7 + $0x140] sm:$0xff]
    %v2784 = vld [vmem:[#allocation7 + $0x148] sm:$0xff]
    %v2785 = vld [vmem:[#allocation7 + $0x150] sm:$0xff]
    %v2786 = vld [vmem:[#allocation7 + $0x158] sm:$0xff]
    %v2787 = vld [vmem:[#allocation7 + $0x160] sm:$0xff]
    %v2788 = vld [vmem:[#allocation7 + $0x168] sm:$0xff]
    %v2789 = vld [vmem:[#allocation7 + $0x170] sm:$0xff]
    %v2790 = vld [vmem:[#allocation7 + $0x178] sm:$0xff]
    %v2791 = vld [vmem:[#allocation7 + $0x180] sm:$0xff]
    %v2792 = vld [vmem:[#allocation7 + $0x188] sm:$0xff]
    %v2793 = vld [vmem:[#allocation7 + $0x190] sm:$0xff]
    %v2794 = vld [vmem:[#allocation7 + $0x198] sm:$0xff]
    %v2795 = vld [vmem:[#allocation7 + $0x1a0] sm:$0xff]
    %v2796 = vld [vmem:[#allocation7 + $0x1a8] sm:$0xff]
    %v2797 = vld [vmem:[#allocation7 + $0x1b0] sm:$0xff]
    %v2798 = vld [vmem:[#allocation7 + $0x1b8] sm:$0xff]
    %v2799 = vld [vmem:[#allocation7 + $0x1c0] sm:$0xff]
    %v2800 = vld [vmem:[#allocation7 + $0x1c8] sm:$0xff]
    %v2801 = vld [vmem:[#allocation7 + $0x1d0] sm:$0xff]
    %v2802 = vld [vmem:[#allocation7 + $0x1d8] sm:$0xff]
    %v2803 = vld [vmem:[#allocation7 + $0x1e0] sm:$0xff]
    %v2804 = vld [vmem:[#allocation7 + $0x1e8] sm:$0xff]
    %v2805 = vld [vmem:[#allocation7 + $0x1f0] sm:$0xff]
    %v2806 = vld [vmem:[#allocation7 + $0x1f8] sm:$0xff]
    %v2807 = vld [vmem:[#allocation7 + $0x200] sm:$0xff]
    %v2808 = vld [vmem:[#allocation7 + $0x208] sm:$0xff]
    %v2809 = vld [vmem:[#allocation7 + $0x210] sm:$0xff]
    %v2810 = vld [vmem:[#allocation7 + $0x218] sm:$0xff]
    %v2811 = vld [vmem:[#allocation7 + $0x220] sm:$0xff]
    %v2812 = vld [vmem:[#allocation7 + $0x228] sm:$0xff]
    %v2813 = vld [vmem:[#allocation7 + $0x230] sm:$0xff]
    %v2814 = vld [vmem:[#allocation7 + $0x238] sm:$0xff]
    %v2815 = vld [vmem:[#allocation7 + $0x240] sm:$0xff]
    %v2816 = vld [vmem:[#allocation7 + $0x248] sm:$0xff]
    %v2817 = vld [vmem:[#allocation7 + $0x250] sm:$0xff]
    %v2818 = vld [vmem:[#allocation7 + $0x258] sm:$0xff]
    %v2819 = vld [vmem:[#allocation7 + $0x260] sm:$0xff]
    %v2820 = vld [vmem:[#allocation7 + $0x268] sm:$0xff]
    %v2821 = vld [vmem:[#allocation7 + $0x270] sm:$0xff]
    %v2822 = vld [vmem:[#allocation7 + $0x278] sm:$0xff]
    %v2823 = vld [vmem:[#allocation7 + $0x280] sm:$0xff]
    %v2824 = vld [vmem:[#allocation7 + $0x288] sm:$0xff]
    %v2825 = vld [vmem:[#allocation7 + $0x290] sm:$0xff]
    %v2826 = vld [vmem:[#allocation7 + $0x298] sm:$0xff]
    %v2827 = vld [vmem:[#allocation7 + $0x2a0] sm:$0xff]
    %v2828 = vld [vmem:[#allocation7 + $0x2a8] sm:$0xff]
    %v2829 = vld [vmem:[#allocation7 + $0x2b0] sm:$0xff]
    %v2830 = vld [vmem:[#allocation7 + $0x2b8] sm:$0xff]
    %v2831 = vld [vmem:[#allocation7 + $0x2c0] sm:$0xff]
    %v2832 = vld [vmem:[#allocation7 + $0x2c8] sm:$0xff]
    %v2833 = vld [vmem:[#allocation7 + $0x2d0] sm:$0xff]
    %v2834 = vld [vmem:[#allocation7 + $0x2d8] sm:$0xff]
    %v2835 = vld [vmem:[#allocation7 + $0x2e0] sm:$0xff]
    %v2836 = vld [vmem:[#allocation7 + $0x2e8] sm:$0xff]
    %v2837 = vld [vmem:[#allocation7 + $0x2f0] sm:$0xff]
    %v2838 = vld [vmem:[#allocation7 + $0x2f8] sm:$0xff]
    %v2839 = vld [vmem:[%s1] sm:$0xff]
    %v2840 = vld [vmem:[%s1 + $0x8] sm:$0xff]
    %2842 = vset.pattern.permute.xlu0 0
    %2843 = vperm.xlu0 %2842, %v2839
    %v2844 = vpop.permute.xlu0 %2843
    %2847 = vset.pattern.permute.xlu0 0
    %2848 = vperm.xlu0 %2847, %v2840
    %v2849 = vpop.permute.xlu0 %2848
    %v2851 = vmul.f32 %v2844, %v2730
    %v2852 = vmul.f32 %v2844, %v2731
    %v2853 = vmul.f32 %v2844, %v2732
    %v2854 = vmul.f32 %v2844, %v2733
    %v2855 = vmul.f32 %v2844, %v2734
    %v2856 = vmul.f32 %v2844, %v2735
    %v2857 = vmul.f32 %v2849, %v2730
    %v2858 = vmul.f32 %v2849, %v2731
    %v2859 = vmul.f32 %v2849, %v2732
    %v2860 = vmul.f32 %v2849, %v2733
    %v2861 = vmul.f32 %v2849, %v2734
    %v2862 = vmul.f32 %v2849, %v2735
    %v2863 = vadd.f32 %v2654, %v2851
    %v2864 = vadd.f32 %v2668, %v2852
    %v2865 = vadd.f32 %v2682, %v2853
    %v2866 = vadd.f32 %v2696, %v2854
    %v2867 = vadd.f32 %v2710, %v2855
    %v2868 = vadd.f32 %v2724, %v2856
    %v2869 = vadd.f32 %v2656, %v2857
    %v2870 = vadd.f32 %v2670, %v2858
    %v2871 = vadd.f32 %v2684, %v2859
    %v2872 = vadd.f32 %v2698, %v2860
    %v2873 = vadd.f32 %v2712, %v2861
    %v2874 = vadd.f32 %v2726, %v2862
    %v2971 = vunpack.c.l.b16 %v2743
    %v2972 = vunpack.c.h.b16 %v2743
    %v2973 = vunpack.c.l.b16 %v2744
    %v2974 = vunpack.c.h.b16 %v2744
    %v2975 = vunpack.c.l.b16 %v2745
    %v2976 = vunpack.c.h.b16 %v2745
    %v2977 = vunpack.c.l.b16 %v2746
    %v2978 = vunpack.c.h.b16 %v2746
    %v2979 = vunpack.c.l.b16 %v2747
    %v2980 = vunpack.c.h.b16 %v2747
    %v2981 = vunpack.c.l.b16 %v2748
    %v2982 = vunpack.c.h.b16 %v2748
    %v2983 = vunpack.c.l.b16 %v2749
    %v2984 = vunpack.c.h.b16 %v2749
    %v2985 = vunpack.c.l.b16 %v2750
    %v2986 = vunpack.c.h.b16 %v2750
    %v2987 = vunpack.c.l.b16 %v2751
    %v2988 = vunpack.c.h.b16 %v2751
    %v2989 = vunpack.c.l.b16 %v2752
    %v2990 = vunpack.c.h.b16 %v2752
    %v2991 = vunpack.c.l.b16 %v2753
    %v2992 = vunpack.c.h.b16 %v2753
    %v2993 = vunpack.c.l.b16 %v2754
    %v2994 = vunpack.c.h.b16 %v2754
    %v2995 = vunpack.c.l.b16 %v2755
    %v2996 = vunpack.c.h.b16 %v2755
    %v2997 = vunpack.c.l.b16 %v2756
    %v2998 = vunpack.c.h.b16 %v2756
    %v2999 = vunpack.c.l.b16 %v2757
    %v3000 = vunpack.c.h.b16 %v2757
    %v3001 = vunpack.c.l.b16 %v2758
    %v3002 = vunpack.c.h.b16 %v2758
    %v3003 = vunpack.c.l.b16 %v2759
    %v3004 = vunpack.c.h.b16 %v2759
    %v3005 = vunpack.c.l.b16 %v2760
    %v3006 = vunpack.c.h.b16 %v2760
    %v3007 = vunpack.c.l.b16 %v2761
    %v3008 = vunpack.c.h.b16 %v2761
    %v3009 = vunpack.c.l.b16 %v2762
    %v3010 = vunpack.c.h.b16 %v2762
    %v3011 = vunpack.c.l.b16 %v2763
    %v3012 = vunpack.c.h.b16 %v2763
    %v3013 = vunpack.c.l.b16 %v2764
    %v3014 = vunpack.c.h.b16 %v2764
    %v3015 = vunpack.c.l.b16 %v2765
    %v3016 = vunpack.c.h.b16 %v2765
    %v3017 = vunpack.c.l.b16 %v2766
    %v3018 = vunpack.c.h.b16 %v2766
    %v3019 = vunpack.c.l.b16 %v2767
    %v3020 = vunpack.c.h.b16 %v2767
    %v3021 = vunpack.c.l.b16 %v2768
    %v3022 = vunpack.c.h.b16 %v2768
    %v3023 = vunpack.c.l.b16 %v2769
    %v3024 = vunpack.c.h.b16 %v2769
    %v3025 = vunpack.c.l.b16 %v2770
    %v3026 = vunpack.c.h.b16 %v2770
    %v3027 = vunpack.c.l.b16 %v2771
    %v3028 = vunpack.c.h.b16 %v2771
    %v3029 = vunpack.c.l.b16 %v2772
    %v3030 = vunpack.c.h.b16 %v2772
    %v3031 = vunpack.c.l.b16 %v2773
    %v3032 = vunpack.c.h.b16 %v2773
    %v3033 = vunpack.c.l.b16 %v2774
    %v3034 = vunpack.c.h.b16 %v2774
    %v3035 = vunpack.c.l.b16 %v2775
    %v3036 = vunpack.c.h.b16 %v2775
    %v3037 = vunpack.c.l.b16 %v2776
    %v3038 = vunpack.c.h.b16 %v2776
    %v3039 = vunpack.c.l.b16 %v2777
    %v3040 = vunpack.c.h.b16 %v2777
    %v3041 = vunpack.c.l.b16 %v2778
    %v3042 = vunpack.c.h.b16 %v2778
    %v3043 = vunpack.c.l.b16 %v2779
    %v3044 = vunpack.c.h.b16 %v2779
    %v3045 = vunpack.c.l.b16 %v2780
    %v3046 = vunpack.c.h.b16 %v2780
    %v3047 = vunpack.c.l.b16 %v2781
    %v3048 = vunpack.c.h.b16 %v2781
    %v3049 = vunpack.c.l.b16 %v2782
    %v3050 = vunpack.c.h.b16 %v2782
    %v3051 = vunpack.c.l.b16 %v2783
    %v3052 = vunpack.c.h.b16 %v2783
    %v3053 = vunpack.c.l.b16 %v2784
    %v3054 = vunpack.c.h.b16 %v2784
    %v3055 = vunpack.c.l.b16 %v2785
    %v3056 = vunpack.c.h.b16 %v2785
    %v3057 = vunpack.c.l.b16 %v2786
    %v3058 = vunpack.c.h.b16 %v2786
    %v3059 = vunpack.c.l.b16 %v2787
    %v3060 = vunpack.c.h.b16 %v2787
    %v3061 = vunpack.c.l.b16 %v2788
    %v3062 = vunpack.c.h.b16 %v2788
    %v3063 = vunpack.c.l.b16 %v2789
    %v3064 = vunpack.c.h.b16 %v2789
    %v3065 = vunpack.c.l.b16 %v2790
    %v3066 = vunpack.c.h.b16 %v2790
    %v3067 = vunpack.c.l.b16 %v2791
    %v3068 = vunpack.c.h.b16 %v2791
    %v3069 = vunpack.c.l.b16 %v2792
    %v3070 = vunpack.c.h.b16 %v2792
    %v3071 = vunpack.c.l.b16 %v2793
    %v3072 = vunpack.c.h.b16 %v2793
    %v3073 = vunpack.c.l.b16 %v2794
    %v3074 = vunpack.c.h.b16 %v2794
    %v3075 = vunpack.c.l.b16 %v2795
    %v3076 = vunpack.c.h.b16 %v2795
    %v3077 = vunpack.c.l.b16 %v2796
    %v3078 = vunpack.c.h.b16 %v2796
    %v3079 = vunpack.c.l.b16 %v2797
    %v3080 = vunpack.c.h.b16 %v2797
    %v3081 = vunpack.c.l.b16 %v2798
    %v3082 = vunpack.c.h.b16 %v2798
    %v3083 = vunpack.c.l.b16 %v2799
    %v3084 = vunpack.c.h.b16 %v2799
    %v3085 = vunpack.c.l.b16 %v2800
    %v3086 = vunpack.c.h.b16 %v2800
    %v3087 = vunpack.c.l.b16 %v2801
    %v3088 = vunpack.c.h.b16 %v2801
    %v3089 = vunpack.c.l.b16 %v2802
    %v3090 = vunpack.c.h.b16 %v2802
    %v3091 = vunpack.c.l.b16 %v2803
    %v3092 = vunpack.c.h.b16 %v2803
    %v3093 = vunpack.c.l.b16 %v2804
    %v3094 = vunpack.c.h.b16 %v2804
    %v3095 = vunpack.c.l.b16 %v2805
    %v3096 = vunpack.c.h.b16 %v2805
    %v3097 = vunpack.c.l.b16 %v2806
    %v3098 = vunpack.c.h.b16 %v2806
    %v3099 = vunpack.c.l.b16 %v2807
    %v3100 = vunpack.c.h.b16 %v2807
    %v3101 = vunpack.c.l.b16 %v2808
    %v3102 = vunpack.c.h.b16 %v2808
    %v3103 = vunpack.c.l.b16 %v2809
    %v3104 = vunpack.c.h.b16 %v2809
    %v3105 = vunpack.c.l.b16 %v2810
    %v3106 = vunpack.c.h.b16 %v2810
    %v3107 = vunpack.c.l.b16 %v2811
    %v3108 = vunpack.c.h.b16 %v2811
    %v3109 = vunpack.c.l.b16 %v2812
    %v3110 = vunpack.c.h.b16 %v2812
    %v3111 = vunpack.c.l.b16 %v2813
    %v3112 = vunpack.c.h.b16 %v2813
    %v3113 = vunpack.c.l.b16 %v2814
    %v3114 = vunpack.c.h.b16 %v2814
    %v3115 = vunpack.c.l.b16 %v2815
    %v3116 = vunpack.c.h.b16 %v2815
    %v3117 = vunpack.c.l.b16 %v2816
    %v3118 = vunpack.c.h.b16 %v2816
    %v3119 = vunpack.c.l.b16 %v2817
    %v3120 = vunpack.c.h.b16 %v2817
    %v3121 = vunpack.c.l.b16 %v2818
    %v3122 = vunpack.c.h.b16 %v2818
    %v3123 = vunpack.c.l.b16 %v2819
    %v3124 = vunpack.c.h.b16 %v2819
    %v3125 = vunpack.c.l.b16 %v2820
    %v3126 = vunpack.c.h.b16 %v2820
    %v3127 = vunpack.c.l.b16 %v2821
    %v3128 = vunpack.c.h.b16 %v2821
    %v3129 = vunpack.c.l.b16 %v2822
    %v3130 = vunpack.c.h.b16 %v2822
    %v3131 = vunpack.c.l.b16 %v2823
    %v3132 = vunpack.c.h.b16 %v2823
    %v3133 = vunpack.c.l.b16 %v2824
    %v3134 = vunpack.c.h.b16 %v2824
    %v3135 = vunpack.c.l.b16 %v2825
    %v3136 = vunpack.c.h.b16 %v2825
    %v3137 = vunpack.c.l.b16 %v2826
    %v3138 = vunpack.c.h.b16 %v2826
    %v3139 = vunpack.c.l.b16 %v2827
    %v3140 = vunpack.c.h.b16 %v2827
    %v3141 = vunpack.c.l.b16 %v2828
    %v3142 = vunpack.c.h.b16 %v2828
    %v3143 = vunpack.c.l.b16 %v2829
    %v3144 = vunpack.c.h.b16 %v2829
    %v3145 = vunpack.c.l.b16 %v2830
    %v3146 = vunpack.c.h.b16 %v2830
    %v3147 = vunpack.c.l.b16 %v2831
    %v3148 = vunpack.c.h.b16 %v2831
    %v3149 = vunpack.c.l.b16 %v2832
    %v3150 = vunpack.c.h.b16 %v2832
    %v3151 = vunpack.c.l.b16 %v2833
    %v3152 = vunpack.c.h.b16 %v2833
    %v3153 = vunpack.c.l.b16 %v2834
    %v3154 = vunpack.c.h.b16 %v2834
    %v3155 = vunpack.c.l.b16 %v2835
    %v3156 = vunpack.c.h.b16 %v2835
    %v3157 = vunpack.c.l.b16 %v2836
    %v3158 = vunpack.c.h.b16 %v2836
    %v3159 = vunpack.c.l.b16 %v2837
    %v3160 = vunpack.c.h.b16 %v2837
    %v3161 = vunpack.c.l.b16 %v2838
    %v3162 = vunpack.c.h.b16 %v2838
    %v3163 = vpack.c.b16 %v2977, %v2971
    %v3164 = vpack.c.b16 %v2978, %v2972
    %v3165 = vpack.c.b16 %v2979, %v2973
    %v3166 = vpack.c.b16 %v2980, %v2974
    %v3167 = vpack.c.b16 %v2981, %v2975
    %v3168 = vpack.c.b16 %v2982, %v2976
    %v3169 = vpack.c.b16 %v2989, %v2983
    %v3170 = vpack.c.b16 %v2990, %v2984
    %v3171 = vpack.c.b16 %v2991, %v2985
    %v3172 = vpack.c.b16 %v2992, %v2986
    %v3173 = vpack.c.b16 %v2993, %v2987
    %v3174 = vpack.c.b16 %v2994, %v2988
    %v3175 = vpack.c.b16 %v3001, %v2995
    %v3176 = vpack.c.b16 %v3002, %v2996
    %v3177 = vpack.c.b16 %v3003, %v2997
    %v3178 = vpack.c.b16 %v3004, %v2998
    %v3179 = vpack.c.b16 %v3005, %v2999
    %v3180 = vpack.c.b16 %v3006, %v3000
    %v3181 = vpack.c.b16 %v3013, %v3007
    %v3182 = vpack.c.b16 %v3014, %v3008
    %v3183 = vpack.c.b16 %v3015, %v3009
    %v3184 = vpack.c.b16 %v3016, %v3010
    %v3185 = vpack.c.b16 %v3017, %v3011
    %v3186 = vpack.c.b16 %v3018, %v3012
    %v3187 = vpack.c.b16 %v3025, %v3019
    %v3188 = vpack.c.b16 %v3026, %v3020
    %v3189 = vpack.c.b16 %v3027, %v3021
    %v3190 = vpack.c.b16 %v3028, %v3022
    %v3191 = vpack.c.b16 %v3029, %v3023
    %v3192 = vpack.c.b16 %v3030, %v3024
    %v3193 = vpack.c.b16 %v3037, %v3031
    %v3194 = vpack.c.b16 %v3038, %v3032
    %v3195 = vpack.c.b16 %v3039, %v3033
    %v3196 = vpack.c.b16 %v3040, %v3034
    %v3197 = vpack.c.b16 %v3041, %v3035
    %v3198 = vpack.c.b16 %v3042, %v3036
    %v3199 = vpack.c.b16 %v3049, %v3043
    %v3200 = vpack.c.b16 %v3050, %v3044
    %v3201 = vpack.c.b16 %v3051, %v3045
    %v3202 = vpack.c.b16 %v3052, %v3046
    %v3203 = vpack.c.b16 %v3053, %v3047
    %v3204 = vpack.c.b16 %v3054, %v3048
    %v3205 = vpack.c.b16 %v3061, %v3055
    %v3206 = vpack.c.b16 %v3062, %v3056
    %v3207 = vpack.c.b16 %v3063, %v3057
    %v3208 = vpack.c.b16 %v3064, %v3058
    %v3209 = vpack.c.b16 %v3065, %v3059
    %v3210 = vpack.c.b16 %v3066, %v3060
    %v3211 = vpack.c.b16 %v3073, %v3067
    %v3212 = vpack.c.b16 %v3074, %v3068
    %v3213 = vpack.c.b16 %v3075, %v3069
    %v3214 = vpack.c.b16 %v3076, %v3070
    %v3215 = vpack.c.b16 %v3077, %v3071
    %v3216 = vpack.c.b16 %v3078, %v3072
    %v3217 = vpack.c.b16 %v3085, %v3079
    %v3218 = vpack.c.b16 %v3086, %v3080
    %v3219 = vpack.c.b16 %v3087, %v3081
    %v3220 = vpack.c.b16 %v3088, %v3082
    %v3221 = vpack.c.b16 %v3089, %v3083
    %v3222 = vpack.c.b16 %v3090, %v3084
    %v3223 = vpack.c.b16 %v3097, %v3091
    %v3224 = vpack.c.b16 %v3098, %v3092
    %v3225 = vpack.c.b16 %v3099, %v3093
    %v3226 = vpack.c.b16 %v3100, %v3094
    %v3227 = vpack.c.b16 %v3101, %v3095
    %v3228 = vpack.c.b16 %v3102, %v3096
    %v3229 = vpack.c.b16 %v3109, %v3103
    %v3230 = vpack.c.b16 %v3110, %v3104
    %v3231 = vpack.c.b16 %v3111, %v3105
    %v3232 = vpack.c.b16 %v3112, %v3106
    %v3233 = vpack.c.b16 %v3113, %v3107
    %v3234 = vpack.c.b16 %v3114, %v3108
    %v3235 = vpack.c.b16 %v3121, %v3115
    %v3236 = vpack.c.b16 %v3122, %v3116
    %v3237 = vpack.c.b16 %v3123, %v3117
    %v3238 = vpack.c.b16 %v3124, %v3118
    %v3239 = vpack.c.b16 %v3125, %v3119
    %v3240 = vpack.c.b16 %v3126, %v3120
    %v3241 = vpack.c.b16 %v3133, %v3127
    %v3242 = vpack.c.b16 %v3134, %v3128
    %v3243 = vpack.c.b16 %v3135, %v3129
    %v3244 = vpack.c.b16 %v3136, %v3130
    %v3245 = vpack.c.b16 %v3137, %v3131
    %v3246 = vpack.c.b16 %v3138, %v3132
    %v3247 = vpack.c.b16 %v3145, %v3139
    %v3248 = vpack.c.b16 %v3146, %v3140
    %v3249 = vpack.c.b16 %v3147, %v3141
    %v3250 = vpack.c.b16 %v3148, %v3142
    %v3251 = vpack.c.b16 %v3149, %v3143
    %v3252 = vpack.c.b16 %v3150, %v3144
    %v3253 = vpack.c.b16 %v3157, %v3151
    %v3254 = vpack.c.b16 %v3158, %v3152
    %v3255 = vpack.c.b16 %v3159, %v3153
    %v3256 = vpack.c.b16 %v3160, %v3154
    %v3257 = vpack.c.b16 %v3161, %v3155
    %v3258 = vpack.c.b16 %v3162, %v3156
    %3355 = vmatpush.bf16.msra.mxu0 %v3205
    %3356 = vmatpush.bf16.msra.mxu0 %v3199
    %3357 = vmatpush.bf16.msra.mxu0 %v3193
    %3358 = vmatpush.bf16.msra.mxu0 %v3187
    %3359 = vmatpush.bf16.msra.mxu0 %v3181
    %3360 = vmatpush.bf16.msra.mxu0 %v3175
    %3361 = vmatpush.bf16.msra.mxu0 %v3169
    %3362 = vmatpush.bf16.msra.mxu0 %v3163
    %3363 = vmatmul.bf16.gmra.mxu0 1065369472
    %v3364 = vpop.f32.mrf.mxu0
    %v3365 = vadd.f32 0.0, %v3364
    %v3366 = vpop.f32.mrf.mxu0
    %v3367 = vadd.f32 0.0, %v3366
    %3368 = vdwg.mxu0
    %3369 = vmatpush.bf16.msra.mxu0 %v3253
    %3370 = vmatpush.bf16.msra.mxu0 %v3247
    %3371 = vmatpush.bf16.msra.mxu0 %v3241
    %3372 = vmatpush.bf16.msra.mxu0 %v3235
    %3373 = vmatpush.bf16.msra.mxu0 %v3229
    %3374 = vmatpush.bf16.msra.mxu0 %v3223
    %3375 = vmatpush.bf16.msra.mxu0 %v3217
    %3376 = vmatpush.bf16.msra.mxu0 %v3211
    %3377 = vmatmul.bf16.gmra.mxu0 1065369472
    %v3378 = vpop.f32.mrf.mxu0
    %v3379 = vadd.f32 %v3365, %v3378
    %v3380 = vpop.f32.mrf.mxu0
    %v3381 = vadd.f32 %v3367, %v3380
    %3382 = vdwg.mxu0
    %3383 = vmatpush.bf16.msra.mxu0 %v3206
    %3384 = vmatpush.bf16.msra.mxu0 %v3200
    %3385 = vmatpush.bf16.msra.mxu0 %v3194
    %3386 = vmatpush.bf16.msra.mxu0 %v3188
    %3387 = vmatpush.bf16.msra.mxu0 %v3182
    %3388 = vmatpush.bf16.msra.mxu0 %v3176
    %3389 = vmatpush.bf16.msra.mxu0 %v3170
    %3390 = vmatpush.bf16.msra.mxu0 %v3164
    %3391 = vmatmul.bf16.gmra.mxu0 1065369472
    %v3392 = vpop.f32.mrf.mxu0
    %v3393 = vadd.f32 0.0, %v3392
    %v3394 = vpop.f32.mrf.mxu0
    %v3395 = vadd.f32 0.0, %v3394
    %3396 = vdwg.mxu0
    %3397 = vmatpush.bf16.msra.mxu0 %v3254
    %3398 = vmatpush.bf16.msra.mxu0 %v3248
    %3399 = vmatpush.bf16.msra.mxu0 %v3242
    %3400 = vmatpush.bf16.msra.mxu0 %v3236
    %3401 = vmatpush.bf16.msra.mxu0 %v3230
    %3402 = vmatpush.bf16.msra.mxu0 %v3224
    %3403 = vmatpush.bf16.msra.mxu0 %v3218
    %3404 = vmatpush.bf16.msra.mxu0 %v3212
    %3405 = vmatmul.bf16.gmra.mxu0 1065369472
    %v3406 = vpop.f32.mrf.mxu0
    %v3407 = vadd.f32 %v3393, %v3406
    %v3408 = vpop.f32.mrf.mxu0
    %v3409 = vadd.f32 %v3395, %v3408
    %3410 = vdwg.mxu0
    %3411 = vmatpush.bf16.msra.mxu0 %v3207
    %3412 = vmatpush.bf16.msra.mxu0 %v3201
    %3413 = vmatpush.bf16.msra.mxu0 %v3195
    %3414 = vmatpush.bf16.msra.mxu0 %v3189
    %3415 = vmatpush.bf16.msra.mxu0 %v3183
    %3416 = vmatpush.bf16.msra.mxu0 %v3177
    %3417 = vmatpush.bf16.msra.mxu0 %v3171
    %3418 = vmatpush.bf16.msra.mxu0 %v3165
    %3419 = vmatmul.bf16.gmra.mxu0 1065369472
    %v3420 = vpop.f32.mrf.mxu0
    %v3421 = vadd.f32 0.0, %v3420
    %v3422 = vpop.f32.mrf.mxu0
    %v3423 = vadd.f32 0.0, %v3422
    %3424 = vdwg.mxu0
    %3425 = vmatpush.bf16.msra.mxu0 %v3255
    %3426 = vmatpush.bf16.msra.mxu0 %v3249
    %3427 = vmatpush.bf16.msra.mxu0 %v3243
    %3428 = vmatpush.bf16.msra.mxu0 %v3237
    %3429 = vmatpush.bf16.msra.mxu0 %v3231
    %3430 = vmatpush.bf16.msra.mxu0 %v3225
    %3431 = vmatpush.bf16.msra.mxu0 %v3219
    %3432 = vmatpush.bf16.msra.mxu0 %v3213
    %3433 = vmatmul.bf16.gmra.mxu0 1065369472
    %v3434 = vpop.f32.mrf.mxu0
    %v3435 = vadd.f32 %v3421, %v3434
    %v3436 = vpop.f32.mrf.mxu0
    %v3437 = vadd.f32 %v3423, %v3436
    %3438 = vdwg.mxu0
    %3439 = vmatpush.bf16.msra.mxu0 %v3208
    %3440 = vmatpush.bf16.msra.mxu0 %v3202
    %3441 = vmatpush.bf16.msra.mxu0 %v3196
    %3442 = vmatpush.bf16.msra.mxu0 %v3190
    %3443 = vmatpush.bf16.msra.mxu0 %v3184
    %3444 = vmatpush.bf16.msra.mxu0 %v3178
    %3445 = vmatpush.bf16.msra.mxu0 %v3172
    %3446 = vmatpush.bf16.msra.mxu0 %v3166
    %3447 = vmatmul.bf16.gmra.mxu0 1065369472
    %v3448 = vpop.f32.mrf.mxu0
    %v3449 = vadd.f32 0.0, %v3448
    %v3450 = vpop.f32.mrf.mxu0
    %v3451 = vadd.f32 0.0, %v3450
    %3452 = vdwg.mxu0
    %3453 = vmatpush.bf16.msra.mxu0 %v3256
    %3454 = vmatpush.bf16.msra.mxu0 %v3250
    %3455 = vmatpush.bf16.msra.mxu0 %v3244
    %3456 = vmatpush.bf16.msra.mxu0 %v3238
    %3457 = vmatpush.bf16.msra.mxu0 %v3232
    %3458 = vmatpush.bf16.msra.mxu0 %v3226
    %3459 = vmatpush.bf16.msra.mxu0 %v3220
    %3460 = vmatpush.bf16.msra.mxu0 %v3214
    %3461 = vmatmul.bf16.gmra.mxu0 1065369472
    %v3462 = vpop.f32.mrf.mxu0
    %v3463 = vadd.f32 %v3449, %v3462
    %v3464 = vpop.f32.mrf.mxu0
    %v3465 = vadd.f32 %v3451, %v3464
    %3466 = vdwg.mxu0
    %3467 = vmatpush.bf16.msra.mxu0 %v3209
    %3468 = vmatpush.bf16.msra.mxu0 %v3203
    %3469 = vmatpush.bf16.msra.mxu0 %v3197
    %3470 = vmatpush.bf16.msra.mxu0 %v3191
    %3471 = vmatpush.bf16.msra.mxu0 %v3185
    %3472 = vmatpush.bf16.msra.mxu0 %v3179
    %3473 = vmatpush.bf16.msra.mxu0 %v3173
    %3474 = vmatpush.bf16.msra.mxu0 %v3167
    %3475 = vmatmul.bf16.gmra.mxu0 1065369472
    %v3476 = vpop.f32.mrf.mxu0
    %v3477 = vadd.f32 0.0, %v3476
    %v3478 = vpop.f32.mrf.mxu0
    %v3479 = vadd.f32 0.0, %v3478
    %3480 = vdwg.mxu0
    %3481 = vmatpush.bf16.msra.mxu0 %v3257
    %3482 = vmatpush.bf16.msra.mxu0 %v3251
    %3483 = vmatpush.bf16.msra.mxu0 %v3245
    %3484 = vmatpush.bf16.msra.mxu0 %v3239
    %3485 = vmatpush.bf16.msra.mxu0 %v3233
    %3486 = vmatpush.bf16.msra.mxu0 %v3227
    %3487 = vmatpush.bf16.msra.mxu0 %v3221
    %3488 = vmatpush.bf16.msra.mxu0 %v3215
    %3489 = vmatmul.bf16.gmra.mxu0 1065369472
    %v3490 = vpop.f32.mrf.mxu0
    %v3491 = vadd.f32 %v3477, %v3490
    %v3492 = vpop.f32.mrf.mxu0
    %v3493 = vadd.f32 %v3479, %v3492
    %3494 = vdwg.mxu0
    %3495 = vmatpush.bf16.msra.mxu0 %v3210
    %3496 = vmatpush.bf16.msra.mxu0 %v3204
    %3497 = vmatpush.bf16.msra.mxu0 %v3198
    %3498 = vmatpush.bf16.msra.mxu0 %v3192
    %3499 = vmatpush.bf16.msra.mxu0 %v3186
    %3500 = vmatpush.bf16.msra.mxu0 %v3180
    %3501 = vmatpush.bf16.msra.mxu0 %v3174
    %3502 = vmatpush.bf16.msra.mxu0 %v3168
    %3503 = vmatmul.bf16.gmra.mxu0 1065369472
    %v3504 = vpop.f32.mrf.mxu0
    %v3505 = vadd.f32 0.0, %v3504
    %v3506 = vpop.f32.mrf.mxu0
    %v3507 = vadd.f32 0.0, %v3506
    %3508 = vdwg.mxu0
    %3509 = vmatpush.bf16.msra.mxu0 %v3258
    %3510 = vmatpush.bf16.msra.mxu0 %v3252
    %3511 = vmatpush.bf16.msra.mxu0 %v3246
    %3512 = vmatpush.bf16.msra.mxu0 %v3240
    %3513 = vmatpush.bf16.msra.mxu0 %v3234
    %3514 = vmatpush.bf16.msra.mxu0 %v3228
    %3515 = vmatpush.bf16.msra.mxu0 %v3222
    %3516 = vmatpush.bf16.msra.mxu0 %v3216
    %3517 = vmatmul.bf16.gmra.mxu0 1065369472
    %v3518 = vpop.f32.mrf.mxu0
    %v3519 = vadd.f32 %v3505, %v3518
    %v3520 = vpop.f32.mrf.mxu0
    %v3521 = vadd.f32 %v3507, %v3520
    %3522 = vdwg.mxu0
    %v3523 = vadd.f32 %v2863, %v3379
    %v3524 = vadd.f32 %v2864, %v3407
    %v3525 = vadd.f32 %v2865, %v3435
    %v3526 = vadd.f32 %v2866, %v3463
    %v3527 = vadd.f32 %v2869, %v3381
    %v3528 = vadd.f32 %v2870, %v3409
    %v3529 = vadd.f32 %v2871, %v3437
    %v3530 = vadd.f32 %v2872, %v3465
    %v3531 = vxor.u32 %v3523, 2147483648
    %v3532 = vxor.u32 %v3524, 2147483648
    %v3533 = vxor.u32 %v3525, 2147483648
    %v3534 = vxor.u32 %v3526, 2147483648
    %v3535 = vxor.u32 %v3527, 2147483648
    %v3536 = vxor.u32 %v3528, 2147483648
    %v3537 = vxor.u32 %v3529, 2147483648
    %v3538 = vxor.u32 %v3530, 2147483648
    %v3539 = vmul.f32 %v3531, 1.442695
    %v3540 = vpow.pop %v3539
    %v3541 = vmul.f32 %v3532, 1.442695
    %v3542 = vpow.pop %v3541
    %v3543 = vmul.f32 %v3533, 1.442695
    %v3544 = vpow.pop %v3543
    %v3545 = vmul.f32 %v3534, 1.442695
    %v3546 = vpow.pop %v3545
    %v3547 = vmul.f32 %v3535, 1.442695
    %v3548 = vpow.pop %v3547
    %v3549 = vmul.f32 %v3536, 1.442695
    %v3550 = vpow.pop %v3549
    %v3551 = vmul.f32 %v3537, 1.442695
    %v3552 = vpow.pop %v3551
    %v3553 = vmul.f32 %v3538, 1.442695
    %v3554 = vpow.pop %v3553
    %v3555 = vadd.f32 %v3540, 1.0
    %v3556 = vadd.f32 %v3542, 1.0
    %v3557 = vadd.f32 %v3544, 1.0
    %v3558 = vadd.f32 %v3546, 1.0
    %v3559 = vadd.f32 %v3548, 1.0
    %v3560 = vadd.f32 %v3550, 1.0
    %v3561 = vadd.f32 %v3552, 1.0
    %v3562 = vadd.f32 %v3554, 1.0
    %v3563 = vrcp.pop %v3555
    %v3564 = vmul.f32 %v3555, %v3563
    %v3565 = vsub.f32 1.0, %v3564
    %v3566 = vmul.f32 %v3563, %v3565
    %v3567 = vadd.f32 %v3563, %v3566
    %vm3568 = vweird.f32 %v3555
    %vm3569 = vweird.f32 %v3563
    %vm3570 = vmor %vm3568, %vm3569
    %v3571 = vsel %vm3570, %v3563, %v3567
    %v3572 = vand.u32 2147483647, %v3555
    %vm3573 = vcmp.eq.f32.partialorder %v3572, 8.507059e+37
    %v3574 = vand.u32 %v3555, 2147483648
    %v3575 = vor.u32 1.1754944e-38, %v3574
    %v3576 = vsel %vm3573, %v3575, %v3571
    %v3577 = vmul.f32 1.0, %v3576
    %v3578 = vrcp.pop %v3556
    %v3579 = vmul.f32 %v3556, %v3578
    %v3580 = vsub.f32 1.0, %v3579
    %v3581 = vmul.f32 %v3578, %v3580
    %v3582 = vadd.f32 %v3578, %v3581
    %vm3583 = vweird.f32 %v3556
    %vm3584 = vweird.f32 %v3578
    %vm3585 = vmor %vm3583, %vm3584
    %v3586 = vsel %vm3585, %v3578, %v3582
    %v3587 = vand.u32 2147483647, %v3556
    %vm3588 = vcmp.eq.f32.partialorder %v3587, 8.507059e+37
    %v3589 = vand.u32 %v3556, 2147483648
    %v3590 = vor.u32 1.1754944e-38, %v3589
    %v3591 = vsel %vm3588, %v3590, %v3586
    %v3592 = vmul.f32 1.0, %v3591
    %v3593 = vrcp.pop %v3557
    %v3594 = vmul.f32 %v3557, %v3593
    %v3595 = vsub.f32 1.0, %v3594
    %v3596 = vmul.f32 %v3593, %v3595
    %v3597 = vadd.f32 %v3593, %v3596
    %vm3598 = vweird.f32 %v3557
    %vm3599 = vweird.f32 %v3593
    %vm3600 = vmor %vm3598, %vm3599
    %v3601 = vsel %vm3600, %v3593, %v3597
    %v3602 = vand.u32 2147483647, %v3557
    %vm3603 = vcmp.eq.f32.partialorder %v3602, 8.507059e+37
    %v3604 = vand.u32 %v3557, 2147483648
    %v3605 = vor.u32 1.1754944e-38, %v3604
    %v3606 = vsel %vm3603, %v3605, %v3601
    %v3607 = vmul.f32 1.0, %v3606
    %v3608 = vrcp.pop %v3558
    %v3609 = vmul.f32 %v3558, %v3608
    %v3610 = vsub.f32 1.0, %v3609
    %v3611 = vmul.f32 %v3608, %v3610
    %v3612 = vadd.f32 %v3608, %v3611
    %vm3613 = vweird.f32 %v3558
    %vm3614 = vweird.f32 %v3608
    %vm3615 = vmor %vm3613, %vm3614
    %v3616 = vsel %vm3615, %v3608, %v3612
    %v3617 = vand.u32 2147483647, %v3558
    %vm3618 = vcmp.eq.f32.partialorder %v3617, 8.507059e+37
    %v3619 = vand.u32 %v3558, 2147483648
    %v3620 = vor.u32 1.1754944e-38, %v3619
    %v3621 = vsel %vm3618, %v3620, %v3616
    %v3622 = vmul.f32 1.0, %v3621
    %v3623 = vrcp.pop %v3559
    %v3624 = vmul.f32 %v3559, %v3623
    %v3625 = vsub.f32 1.0, %v3624
    %v3626 = vmul.f32 %v3623, %v3625
    %v3627 = vadd.f32 %v3623, %v3626
    %vm3628 = vweird.f32 %v3559
    %vm3629 = vweird.f32 %v3623
    %vm3630 = vmor %vm3628, %vm3629
    %v3631 = vsel %vm3630, %v3623, %v3627
    %v3632 = vand.u32 2147483647, %v3559
    %vm3633 = vcmp.eq.f32.partialorder %v3632, 8.507059e+37
    %v3634 = vand.u32 %v3559, 2147483648
    %v3635 = vor.u32 1.1754944e-38, %v3634
    %v3636 = vsel %vm3633, %v3635, %v3631
    %v3637 = vmul.f32 1.0, %v3636
    %v3638 = vrcp.pop %v3560
    %v3639 = vmul.f32 %v3560, %v3638
    %v3640 = vsub.f32 1.0, %v3639
    %v3641 = vmul.f32 %v3638, %v3640
    %v3642 = vadd.f32 %v3638, %v3641
    %vm3643 = vweird.f32 %v3560
    %vm3644 = vweird.f32 %v3638
    %vm3645 = vmor %vm3643, %vm3644
    %v3646 = vsel %vm3645, %v3638, %v3642
    %v3647 = vand.u32 2147483647, %v3560
    %vm3648 = vcmp.eq.f32.partialorder %v3647, 8.507059e+37
    %v3649 = vand.u32 %v3560, 2147483648
    %v3650 = vor.u32 1.1754944e-38, %v3649
    %v3651 = vsel %vm3648, %v3650, %v3646
    %v3652 = vmul.f32 1.0, %v3651
    %v3653 = vrcp.pop %v3561
    %v3654 = vmul.f32 %v3561, %v3653
    %v3655 = vsub.f32 1.0, %v3654
    %v3656 = vmul.f32 %v3653, %v3655
    %v3657 = vadd.f32 %v3653, %v3656
    %vm3658 = vweird.f32 %v3561
    %vm3659 = vweird.f32 %v3653
    %vm3660 = vmor %vm3658, %vm3659
    %v3661 = vsel %vm3660, %v3653, %v3657
    %v3662 = vand.u32 2147483647, %v3561
    %vm3663 = vcmp.eq.f32.partialorder %v3662, 8.507059e+37
    %v3664 = vand.u32 %v3561, 2147483648
    %v3665 = vor.u32 1.1754944e-38, %v3664
    %v3666 = vsel %vm3663, %v3665, %v3661
    %v3667 = vmul.f32 1.0, %v3666
    %v3668 = vrcp.pop %v3562
    %v3669 = vmul.f32 %v3562, %v3668
    %v3670 = vsub.f32 1.0, %v3669
    %v3671 = vmul.f32 %v3668, %v3670
    %v3672 = vadd.f32 %v3668, %v3671
    %vm3673 = vweird.f32 %v3562
    %vm3674 = vweird.f32 %v3668
    %vm3675 = vmor %vm3673, %vm3674
    %v3676 = vsel %vm3675, %v3668, %v3672
    %v3677 = vand.u32 2147483647, %v3562
    %vm3678 = vcmp.eq.f32.partialorder %v3677, 8.507059e+37
    %v3679 = vand.u32 %v3562, 2147483648
    %v3680 = vor.u32 1.1754944e-38, %v3679
    %v3681 = vsel %vm3678, %v3680, %v3676
    %v3682 = vmul.f32 1.0, %v3681
    %v3684 = vperm.slane %v2742, 0
    %v3685 = vperm.slane %v2742, 1
    %v3688 = vadd.f32 %v3491, %v3684
    %v3689 = vadd.f32 %v3519, %v3685
    %v3690 = vadd.f32 %v3493, %v3684
    %v3691 = vadd.f32 %v3521, %v3685
    %v3692 = vmul.f32 %v3577, %v3688
    %v3693 = vmul.f32 %v3592, %v3689
    %v3694 = vmul.f32 %v3637, %v3690
    %v3695 = vmul.f32 %v3652, %v3691
    %v3696 = vadd.f32 %v2867, %v3692
    %v3697 = vadd.f32 %v2868, %v3693
    %v3698 = vadd.f32 %v2873, %v3694
    %v3699 = vadd.f32 %v2874, %v3695
    %v3700 = vtanh.pop %v3696
    %v3701 = vtanh.pop %v3697
    %v3702 = vtanh.pop %v3698
    %v3703 = vtanh.pop %v3699
    %v3704 = vsub.f32 1.0, %v3700
    %v3705 = vsub.f32 1.0, %v3701
    %v3706 = vsub.f32 1.0, %v3702
    %v3707 = vsub.f32 1.0, %v3703
    %v3708 = vmul.f32 %v3607, %v3704
    %v3709 = vmul.f32 %v3622, %v3705
    %v3710 = vmul.f32 %v3667, %v3706
    %v3711 = vmul.f32 %v3682, %v3707
    %v3712 = vadd.f32 %v3700, %v3708
    %v3713 = vadd.f32 %v3701, %v3709
    %v3714 = vadd.f32 %v3702, %v3710
    %v3715 = vadd.f32 %v3703, %v3711
    %3716 = vst [vmem:[#allocation3] sm:$0xff] %v3712
    %3717 = vst [vmem:[#allocation3 + $0x8] sm:$0xff] %v3713
    %3718 = vst [vmem:[#allocation3 + $0x10] sm:$0xff] %v3714
    %3719 = vst [vmem:[#allocation3 + $0x18] sm:$0xff] %v3715
    %v3720 = vld [vmem:[%s1 + $0x10] sm:$0xff]
    %v3721 = vld [vmem:[%s1 + $0x18] sm:$0xff]
    %3723 = vset.pattern.permute.xlu0 0
    %3724 = vperm.xlu0 %3723, %v3720
    %v3725 = vpop.permute.xlu0 %3724
    %3728 = vset.pattern.permute.xlu0 0
    %3729 = vperm.xlu0 %3728, %v3721
    %v3730 = vpop.permute.xlu0 %3729
    %v3732 = vmul.f32 %v3725, %v2730
    %v3733 = vmul.f32 %v3725, %v2731
    %v3734 = vmul.f32 %v3725, %v2732
    %v3735 = vmul.f32 %v3725, %v2733
    %v3736 = vmul.f32 %v3725, %v2734
    %v3737 = vmul.f32 %v3725, %v2735
    %v3738 = vmul.f32 %v3730, %v2730
    %v3739 = vmul.f32 %v3730, %v2731
    %v3740 = vmul.f32 %v3730, %v2732
    %v3741 = vmul.f32 %v3730, %v2733
    %v3742 = vmul.f32 %v3730, %v2734
    %v3743 = vmul.f32 %v3730, %v2735
    %v3744 = vadd.f32 %v2654, %v3732
    %v3745 = vadd.f32 %v2668, %v3733
    %v3746 = vadd.f32 %v2682, %v3734
    %v3747 = vadd.f32 %v2696, %v3735
    %v3748 = vadd.f32 %v2710, %v3736
    %v3749 = vadd.f32 %v2724, %v3737
    %v3750 = vadd.f32 %v2656, %v3738
    %v3751 = vadd.f32 %v2670, %v3739
    %v3752 = vadd.f32 %v2684, %v3740
    %v3753 = vadd.f32 %v2698, %v3741
    %v3754 = vadd.f32 %v2712, %v3742
    %v3755 = vadd.f32 %v2726, %v3743
    %v3756 = vpack.c.bf16 %v3714, %v3712
    %v3757 = vpack.c.bf16 %v3715, %v3713
    %3758 = vmatpush.bf16.msra.mxu0 %v3205
    %3759 = vmatpush.bf16.msra.mxu0 %v3199
    %3760 = vmatpush.bf16.msra.mxu0 %v3193
    %3761 = vmatpush.bf16.msra.mxu0 %v3187
    %3762 = vmatpush.bf16.msra.mxu0 %v3181
    %3763 = vmatpush.bf16.msra.mxu0 %v3175
    %3764 = vmatpush.bf16.msra.mxu0 %v3169
    %3765 = vmatpush.bf16.msra.mxu0 %v3163
    %3766 = vmatmul.bf16.gmra.mxu0 %v3756
    %v3767 = vpop.f32.mrf.mxu0
    %v3768 = vadd.f32 0.0, %v3767
    %v3769 = vpop.f32.mrf.mxu0
    %v3770 = vadd.f32 0.0, %v3769
    %3771 = vdwg.mxu0
    %3772 = vmatpush.bf16.msra.mxu0 %v3253
    %3773 = vmatpush.bf16.msra.mxu0 %v3247
    %3774 = vmatpush.bf16.msra.mxu0 %v3241
    %3775 = vmatpush.bf16.msra.mxu0 %v3235
    %3776 = vmatpush.bf16.msra.mxu0 %v3229
    %3777 = vmatpush.bf16.msra.mxu0 %v3223
    %3778 = vmatpush.bf16.msra.mxu0 %v3217
    %3779 = vmatpush.bf16.msra.mxu0 %v3211
    %3780 = vmatmul.bf16.gmra.mxu0 %v3757
    %v3781 = vpop.f32.mrf.mxu0
    %v3782 = vadd.f32 %v3768, %v3781
    %v3783 = vpop.f32.mrf.mxu0
    %v3784 = vadd.f32 %v3770, %v3783
    %3785 = vdwg.mxu0
    %3786 = vmatpush.bf16.msra.mxu0 %v3206
    %3787 = vmatpush.bf16.msra.mxu0 %v3200
    %3788 = vmatpush.bf16.msra.mxu0 %v3194
    %3789 = vmatpush.bf16.msra.mxu0 %v3188
    %3790 = vmatpush.bf16.msra.mxu0 %v3182
    %3791 = vmatpush.bf16.msra.mxu0 %v3176
    %3792 = vmatpush.bf16.msra.mxu0 %v3170
    %3793 = vmatpush.bf16.msra.mxu0 %v3164
    %3794 = vmatmul.bf16.gmra.mxu0 %v3756
    %v3795 = vpop.f32.mrf.mxu0
    %v3796 = vadd.f32 0.0, %v3795
    %v3797 = vpop.f32.mrf.mxu0
    %v3798 = vadd.f32 0.0, %v3797
    %3799 = vdwg.mxu0
    %3800 = vmatpush.bf16.msra.mxu0 %v3254
    %3801 = vmatpush.bf16.msra.mxu0 %v3248
    %3802 = vmatpush.bf16.msra.mxu0 %v3242
    %3803 = vmatpush.bf16.msra.mxu0 %v3236
    %3804 = vmatpush.bf16.msra.mxu0 %v3230
    %3805 = vmatpush.bf16.msra.mxu0 %v3224
    %3806 = vmatpush.bf16.msra.mxu0 %v3218
    %3807 = vmatpush.bf16.msra.mxu0 %v3212
    %3808 = vmatmul.bf16.gmra.mxu0 %v3757
    %v3809 = vpop.f32.mrf.mxu0
    %v3810 = vadd.f32 %v3796, %v3809
    %v3811 = vpop.f32.mrf.mxu0
    %v3812 = vadd.f32 %v3798, %v3811
    %3813 = vdwg.mxu0
    %3814 = vmatpush.bf16.msra.mxu0 %v3207
    %3815 = vmatpush.bf16.msra.mxu0 %v3201
    %3816 = vmatpush.bf16.msra.mxu0 %v3195
    %3817 = vmatpush.bf16.msra.mxu0 %v3189
    %3818 = vmatpush.bf16.msra.mxu0 %v3183
    %3819 = vmatpush.bf16.msra.mxu0 %v3177
    %3820 = vmatpush.bf16.msra.mxu0 %v3171
    %3821 = vmatpush.bf16.msra.mxu0 %v3165
    %3822 = vmatmul.bf16.gmra.mxu0 %v3756
    %v3823 = vpop.f32.mrf.mxu0
    %v3824 = vadd.f32 0.0, %v3823
    %v3825 = vpop.f32.mrf.mxu0
    %v3826 = vadd.f32 0.0, %v3825
    %3827 = vdwg.mxu0
    %3828 = vmatpush.bf16.msra.mxu0 %v3255
    %3829 = vmatpush.bf16.msra.mxu0 %v3249
    %3830 = vmatpush.bf16.msra.mxu0 %v3243
    %3831 = vmatpush.bf16.msra.mxu0 %v3237
    %3832 = vmatpush.bf16.msra.mxu0 %v3231
    %3833 = vmatpush.bf16.msra.mxu0 %v3225
    %3834 = vmatpush.bf16.msra.mxu0 %v3219
    %3835 = vmatpush.bf16.msra.mxu0 %v3213
    %3836 = vmatmul.bf16.gmra.mxu0 %v3757
    %v3837 = vpop.f32.mrf.mxu0
    %v3838 = vadd.f32 %v3824, %v3837
    %v3839 = vpop.f32.mrf.mxu0
    %v3840 = vadd.f32 %v3826, %v3839
    %3841 = vdwg.mxu0
    %3842 = vmatpush.bf16.msra.mxu0 %v3208
    %3843 = vmatpush.bf16.msra.mxu0 %v3202
    %3844 = vmatpush.bf16.msra.mxu0 %v3196
    %3845 = vmatpush.bf16.msra.mxu0 %v3190
    %3846 = vmatpush.bf16.msra.mxu0 %v3184
    %3847 = vmatpush.bf16.msra.mxu0 %v3178
    %3848 = vmatpush.bf16.msra.mxu0 %v3172
    %3849 = vmatpush.bf16.msra.mxu0 %v3166
    %3850 = vmatmul.bf16.gmra.mxu0 %v3756
    %v3851 = vpop.f32.mrf.mxu0
    %v3852 = vadd.f32 0.0, %v3851
    %v3853 = vpop.f32.mrf.mxu0
    %v3854 = vadd.f32 0.0, %v3853
    %3855 = vdwg.mxu0
    %3856 = vmatpush.bf16.msra.mxu0 %v3256
    %3857 = vmatpush.bf16.msra.mxu0 %v3250
    %3858 = vmatpush.bf16.msra.mxu0 %v3244
    %3859 = vmatpush.bf16.msra.mxu0 %v3238
    %3860 = vmatpush.bf16.msra.mxu0 %v3232
    %3861 = vmatpush.bf16.msra.mxu0 %v3226
    %3862 = vmatpush.bf16.msra.mxu0 %v3220
    %3863 = vmatpush.bf16.msra.mxu0 %v3214
    %3864 = vmatmul.bf16.gmra.mxu0 %v3757
    %v3865 = vpop.f32.mrf.mxu0
    %v3866 = vadd.f32 %v3852, %v3865
    %v3867 = vpop.f32.mrf.mxu0
    %v3868 = vadd.f32 %v3854, %v3867
    %3869 = vdwg.mxu0
    %3870 = vmatpush.bf16.msra.mxu0 %v3209
    %3871 = vmatpush.bf16.msra.mxu0 %v3203
    %3872 = vmatpush.bf16.msra.mxu0 %v3197
    %3873 = vmatpush.bf16.msra.mxu0 %v3191
    %3874 = vmatpush.bf16.msra.mxu0 %v3185
    %3875 = vmatpush.bf16.msra.mxu0 %v3179
    %3876 = vmatpush.bf16.msra.mxu0 %v3173
    %3877 = vmatpush.bf16.msra.mxu0 %v3167
    %3878 = vmatmul.bf16.gmra.mxu0 %v3756
    %v3879 = vpop.f32.mrf.mxu0
    %v3880 = vadd.f32 0.0, %v3879
    %v3881 = vpop.f32.mrf.mxu0
    %v3882 = vadd.f32 0.0, %v3881
    %3883 = vdwg.mxu0
    %3884 = vmatpush.bf16.msra.mxu0 %v3257
    %3885 = vmatpush.bf16.msra.mxu0 %v3251
    %3886 = vmatpush.bf16.msra.mxu0 %v3245
    %3887 = vmatpush.bf16.msra.mxu0 %v3239
    %3888 = vmatpush.bf16.msra.mxu0 %v3233
    %3889 = vmatpush.bf16.msra.mxu0 %v3227
    %3890 = vmatpush.bf16.msra.mxu0 %v3221
    %3891 = vmatpush.bf16.msra.mxu0 %v3215
    %3892 = vmatmul.bf16.gmra.mxu0 %v3757
    %v3893 = vpop.f32.mrf.mxu0
    %v3894 = vadd.f32 %v3880, %v3893
    %v3895 = vpop.f32.mrf.mxu0
    %v3896 = vadd.f32 %v3882, %v3895
    %3897 = vdwg.mxu0
    %3898 = vmatpush.bf16.msra.mxu0 %v3210
    %3899 = vmatpush.bf16.msra.mxu0 %v3204
    %3900 = vmatpush.bf16.msra.mxu0 %v3198
    %3901 = vmatpush.bf16.msra.mxu0 %v3192
    %3902 = vmatpush.bf16.msra.mxu0 %v3186
    %3903 = vmatpush.bf16.msra.mxu0 %v3180
    %3904 = vmatpush.bf16.msra.mxu0 %v3174
    %3905 = vmatpush.bf16.msra.mxu0 %v3168
    %3906 = vmatmul.bf16.gmra.mxu0 %v3756
    %v3907 = vpop.f32.mrf.mxu0
    %v3908 = vadd.f32 0.0, %v3907
    %v3909 = vpop.f32.mrf.mxu0
    %v3910 = vadd.f32 0.0, %v3909
    %3911 = vdwg.mxu0
    %3912 = vmatpush.bf16.msra.mxu0 %v3258
    %3913 = vmatpush.bf16.msra.mxu0 %v3252
    %3914 = vmatpush.bf16.msra.mxu0 %v3246
    %3915 = vmatpush.bf16.msra.mxu0 %v3240
    %3916 = vmatpush.bf16.msra.mxu0 %v3234
    %3917 = vmatpush.bf16.msra.mxu0 %v3228
    %3918 = vmatpush.bf16.msra.mxu0 %v3222
    %3919 = vmatpush.bf16.msra.mxu0 %v3216
    %3920 = vmatmul.bf16.gmra.mxu0 %v3757
    %v3921 = vpop.f32.mrf.mxu0
    %v3922 = vadd.f32 %v3908, %v3921
    %v3923 = vpop.f32.mrf.mxu0
    %v3924 = vadd.f32 %v3910, %v3923
    %3925 = vdwg.mxu0
    %v3926 = vadd.f32 %v3744, %v3782
    %v3927 = vadd.f32 %v3745, %v3810
    %v3928 = vadd.f32 %v3746, %v3838
    %v3929 = vadd.f32 %v3747, %v3866
    %v3930 = vadd.f32 %v3750, %v3784
    %v3931 = vadd.f32 %v3751, %v3812
    %v3932 = vadd.f32 %v3752, %v3840
    %v3933 = vadd.f32 %v3753, %v3868
    %v3934 = vxor.u32 %v3926, 2147483648
    %v3935 = vxor.u32 %v3927, 2147483648
    %v3936 = vxor.u32 %v3928, 2147483648
    %v3937 = vxor.u32 %v3929, 2147483648
    %v3938 = vxor.u32 %v3930, 2147483648
    %v3939 = vxor.u32 %v3931, 2147483648
    %v3940 = vxor.u32 %v3932, 2147483648
    %v3941 = vxor.u32 %v3933, 2147483648
    %v3942 = vmul.f32 %v3934, 1.442695
    %v3943 = vpow.pop %v3942
    %v3944 = vmul.f32 %v3935, 1.442695
    %v3945 = vpow.pop %v3944
    %v3946 = vmul.f32 %v3936, 1.442695
    %v3947 = vpow.pop %v3946
    %v3948 = vmul.f32 %v3937, 1.442695
    %v3949 = vpow.pop %v3948
    %v3950 = vmul.f32 %v3938, 1.442695
    %v3951 = vpow.pop %v3950
    %v3952 = vmul.f32 %v3939, 1.442695
    %v3953 = vpow.pop %v3952
    %v3954 = vmul.f32 %v3940, 1.442695
    %v3955 = vpow.pop %v3954
    %v3956 = vmul.f32 %v3941, 1.442695
    %v3957 = vpow.pop %v3956
    %v3958 = vadd.f32 %v3943, 1.0
    %v3959 = vadd.f32 %v3945, 1.0
    %v3960 = vadd.f32 %v3947, 1.0
    %v3961 = vadd.f32 %v3949, 1.0
    %v3962 = vadd.f32 %v3951, 1.0
    %v3963 = vadd.f32 %v3953, 1.0
    %v3964 = vadd.f32 %v3955, 1.0
    %v3965 = vadd.f32 %v3957, 1.0
    %v3966 = vrcp.pop %v3958
    %v3967 = vmul.f32 %v3958, %v3966
    %v3968 = vsub.f32 1.0, %v3967
    %v3969 = vmul.f32 %v3966, %v3968
    %v3970 = vadd.f32 %v3966, %v3969
    %vm3971 = vweird.f32 %v3958
    %vm3972 = vweird.f32 %v3966
    %vm3973 = vmor %vm3971, %vm3972
    %v3974 = vsel %vm3973, %v3966, %v3970
    %v3975 = vand.u32 2147483647, %v3958
    %vm3976 = vcmp.eq.f32.partialorder %v3975, 8.507059e+37
    %v3977 = vand.u32 %v3958, 2147483648
    %v3978 = vor.u32 1.1754944e-38, %v3977
    %v3979 = vsel %vm3976, %v3978, %v3974
    %v3980 = vmul.f32 1.0, %v3979
    %v3981 = vrcp.pop %v3959
    %v3982 = vmul.f32 %v3959, %v3981
    %v3983 = vsub.f32 1.0, %v3982
    %v3984 = vmul.f32 %v3981, %v3983
    %v3985 = vadd.f32 %v3981, %v3984
    %vm3986 = vweird.f32 %v3959
    %vm3987 = vweird.f32 %v3981
    %vm3988 = vmor %vm3986, %vm3987
    %v3989 = vsel %vm3988, %v3981, %v3985
    %v3990 = vand.u32 2147483647, %v3959
    %vm3991 = vcmp.eq.f32.partialorder %v3990, 8.507059e+37
    %v3992 = vand.u32 %v3959, 2147483648
    %v3993 = vor.u32 1.1754944e-38, %v3992
    %v3994 = vsel %vm3991, %v3993, %v3989
    %v3995 = vmul.f32 1.0, %v3994
    %v3996 = vrcp.pop %v3960
    %v3997 = vmul.f32 %v3960, %v3996
    %v3998 = vsub.f32 1.0, %v3997
    %v3999 = vmul.f32 %v3996, %v3998
    %v4000 = vadd.f32 %v3996, %v3999
    %vm4001 = vweird.f32 %v3960
    %vm4002 = vweird.f32 %v3996
    %vm4003 = vmor %vm4001, %vm4002
    %v4004 = vsel %vm4003, %v3996, %v4000
    %v4005 = vand.u32 2147483647, %v3960
    %vm4006 = vcmp.eq.f32.partialorder %v4005, 8.507059e+37
    %v4007 = vand.u32 %v3960, 2147483648
    %v4008 = vor.u32 1.1754944e-38, %v4007
    %v4009 = vsel %vm4006, %v4008, %v4004
    %v4010 = vmul.f32 1.0, %v4009
    %v4011 = vrcp.pop %v3961
    %v4012 = vmul.f32 %v3961, %v4011
    %v4013 = vsub.f32 1.0, %v4012
    %v4014 = vmul.f32 %v4011, %v4013
    %v4015 = vadd.f32 %v4011, %v4014
    %vm4016 = vweird.f32 %v3961
    %vm4017 = vweird.f32 %v4011
    %vm4018 = vmor %vm4016, %vm4017
    %v4019 = vsel %vm4018, %v4011, %v4015
    %v4020 = vand.u32 2147483647, %v3961
    %vm4021 = vcmp.eq.f32.partialorder %v4020, 8.507059e+37
    %v4022 = vand.u32 %v3961, 2147483648
    %v4023 = vor.u32 1.1754944e-38, %v4022
    %v4024 = vsel %vm4021, %v4023, %v4019
    %v4025 = vmul.f32 1.0, %v4024
    %v4026 = vrcp.pop %v3962
    %v4027 = vmul.f32 %v3962, %v4026
    %v4028 = vsub.f32 1.0, %v4027
    %v4029 = vmul.f32 %v4026, %v4028
    %v4030 = vadd.f32 %v4026, %v4029
    %vm4031 = vweird.f32 %v3962
    %vm4032 = vweird.f32 %v4026
    %vm4033 = vmor %vm4031, %vm4032
    %v4034 = vsel %vm4033, %v4026, %v4030
    %v4035 = vand.u32 2147483647, %v3962
    %vm4036 = vcmp.eq.f32.partialorder %v4035, 8.507059e+37
    %v4037 = vand.u32 %v3962, 2147483648
    %v4038 = vor.u32 1.1754944e-38, %v4037
    %v4039 = vsel %vm4036, %v4038, %v4034
    %v4040 = vmul.f32 1.0, %v4039
    %v4041 = vrcp.pop %v3963
    %v4042 = vmul.f32 %v3963, %v4041
    %v4043 = vsub.f32 1.0, %v4042
    %v4044 = vmul.f32 %v4041, %v4043
    %v4045 = vadd.f32 %v4041, %v4044
    %vm4046 = vweird.f32 %v3963
    %vm4047 = vweird.f32 %v4041
    %vm4048 = vmor %vm4046, %vm4047
    %v4049 = vsel %vm4048, %v4041, %v4045
    %v4050 = vand.u32 2147483647, %v3963
    %vm4051 = vcmp.eq.f32.partialorder %v4050, 8.507059e+37
    %v4052 = vand.u32 %v3963, 2147483648
    %v4053 = vor.u32 1.1754944e-38, %v4052
    %v4054 = vsel %vm4051, %v4053, %v4049
    %v4055 = vmul.f32 1.0, %v4054
    %v4056 = vrcp.pop %v3964
    %v4057 = vmul.f32 %v3964, %v4056
    %v4058 = vsub.f32 1.0, %v4057
    %v4059 = vmul.f32 %v4056, %v4058
    %v4060 = vadd.f32 %v4056, %v4059
    %vm4061 = vweird.f32 %v3964
    %vm4062 = vweird.f32 %v4056
    %vm4063 = vmor %vm4061, %vm4062
    %v4064 = vsel %vm4063, %v4056, %v4060
    %v4065 = vand.u32 2147483647, %v3964
    %vm4066 = vcmp.eq.f32.partialorder %v4065, 8.507059e+37
    %v4067 = vand.u32 %v3964, 2147483648
    %v4068 = vor.u32 1.1754944e-38, %v4067
    %v4069 = vsel %vm4066, %v4068, %v4064
    %v4070 = vmul.f32 1.0, %v4069
    %v4071 = vrcp.pop %v3965
    %v4072 = vmul.f32 %v3965, %v4071
    %v4073 = vsub.f32 1.0, %v4072
    %v4074 = vmul.f32 %v4071, %v4073
    %v4075 = vadd.f32 %v4071, %v4074
    %vm4076 = vweird.f32 %v3965
    %vm4077 = vweird.f32 %v4071
    %vm4078 = vmor %vm4076, %vm4077
    %v4079 = vsel %vm4078, %v4071, %v4075
    %v4080 = vand.u32 2147483647, %v3965
    %vm4081 = vcmp.eq.f32.partialorder %v4080, 8.507059e+37
    %v4082 = vand.u32 %v3965, 2147483648
    %v4083 = vor.u32 1.1754944e-38, %v4082
    %v4084 = vsel %vm4081, %v4083, %v4079
    %v4085 = vmul.f32 1.0, %v4084
    %v4086 = vadd.f32 %v3894, %v3684
    %v4087 = vadd.f32 %v3922, %v3685
    %v4088 = vadd.f32 %v3896, %v3684
    %v4089 = vadd.f32 %v3924, %v3685
    %v4090 = vmul.f32 %v3980, %v4086
    %v4091 = vmul.f32 %v3995, %v4087
    %v4092 = vmul.f32 %v4040, %v4088
    %v4093 = vmul.f32 %v4055, %v4089
    %v4094 = vadd.f32 %v3748, %v4090
    %v4095 = vadd.f32 %v3749, %v4091
    %v4096 = vadd.f32 %v3754, %v4092
    %v4097 = vadd.f32 %v3755, %v4093
    %v4098 = vtanh.pop %v4094
    %v4099 = vtanh.pop %v4095
    %v4100 = vtanh.pop %v4096
    %v4101 = vtanh.pop %v4097
    %v4102 = vsub.f32 %v3712, %v4098
    %v4103 = vsub.f32 %v3713, %v4099
    %v4104 = vsub.f32 %v3714, %v4100
    %v4105 = vsub.f32 %v3715, %v4101
    %v4106 = vmul.f32 %v4010, %v4102
    %v4107 = vmul.f32 %v4025, %v4103
    %v4108 = vmul.f32 %v4070, %v4104
    %v4109 = vmul.f32 %v4085, %v4105
    %v4110 = vadd.f32 %v4098, %v4106
    %v4111 = vadd.f32 %v4099, %v4107
    %v4112 = vadd.f32 %v4100, %v4108
    %v4113 = vadd.f32 %v4101, %v4109
    %4114 = vst [vmem:[#allocation3 + $0x20] sm:$0xff] %v4110
    %4115 = vst [vmem:[#allocation3 + $0x28] sm:$0xff] %v4111
    %4116 = vst [vmem:[#allocation3 + $0x30] sm:$0xff] %v4112
    %4117 = vst [vmem:[#allocation3 + $0x38] sm:$0xff] %v4113
    %v4118 = vld [vmem:[%s1 + $0x20] sm:$0xff]
    %v4119 = vld [vmem:[%s1 + $0x28] sm:$0xff]
    %4121 = vset.pattern.permute.xlu0 0
    %4122 = vperm.xlu0 %4121, %v4118
    %v4123 = vpop.permute.xlu0 %4122
    %4126 = vset.pattern.permute.xlu0 0
    %4127 = vperm.xlu0 %4126, %v4119
    %v4128 = vpop.permute.xlu0 %4127
    %v4130 = vmul.f32 %v4123, %v2730
    %v4131 = vmul.f32 %v4123, %v2731
    %v4132 = vmul.f32 %v4123, %v2732
    %v4133 = vmul.f32 %v4123, %v2733
    %v4134 = vmul.f32 %v4123, %v2734
    %v4135 = vmul.f32 %v4123, %v2735
    %v4136 = vmul.f32 %v4128, %v2730
    %v4137 = vmul.f32 %v4128, %v2731
    %v4138 = vmul.f32 %v4128, %v2732
    %v4139 = vmul.f32 %v4128, %v2733
    %v4140 = vmul.f32 %v4128, %v2734
    %v4141 = vmul.f32 %v4128, %v2735
    %v4142 = vadd.f32 %v2654, %v4130
    %v4143 = vadd.f32 %v2668, %v4131
    %v4144 = vadd.f32 %v2682, %v4132
    %v4145 = vadd.f32 %v2696, %v4133
    %v4146 = vadd.f32 %v2710, %v4134
    %v4147 = vadd.f32 %v2724, %v4135
    %v4148 = vadd.f32 %v2656, %v4136
    %v4149 = vadd.f32 %v2670, %v4137
    %v4150 = vadd.f32 %v2684, %v4138
    %v4151 = vadd.f32 %v2698, %v4139
    %v4152 = vadd.f32 %v2712, %v4140
    %v4153 = vadd.f32 %v2726, %v4141
    %v4154 = vpack.c.bf16 %v4112, %v4110
    %v4155 = vpack.c.bf16 %v4113, %v4111
    %4156 = vmatpush.bf16.msra.mxu0 %v3205
    %4157 = vmatpush.bf16.msra.mxu0 %v3199
    %4158 = vmatpush.bf16.msra.mxu0 %v3193
    %4159 = vmatpush.bf16.msra.mxu0 %v3187
    %4160 = vmatpush.bf16.msra.mxu0 %v3181
    %4161 = vmatpush.bf16.msra.mxu0 %v3175
    %4162 = vmatpush.bf16.msra.mxu0 %v3169
    %4163 = vmatpush.bf16.msra.mxu0 %v3163
    %4164 = vmatmul.bf16.gmra.mxu0 %v4154
    %v4165 = vpop.f32.mrf.mxu0
    %v4166 = vadd.f32 0.0, %v4165
    %v4167 = vpop.f32.mrf.mxu0
    %v4168 = vadd.f32 0.0, %v4167
    %4169 = vdwg.mxu0
    %4170 = vmatpush.bf16.msra.mxu0 %v3253
    %4171 = vmatpush.bf16.msra.mxu0 %v3247
    %4172 = vmatpush.bf16.msra.mxu0 %v3241
    %4173 = vmatpush.bf16.msra.mxu0 %v3235
    %4174 = vmatpush.bf16.msra.mxu0 %v3229
    %4175 = vmatpush.bf16.msra.mxu0 %v3223
    %4176 = vmatpush.bf16.msra.mxu0 %v3217
    %4177 = vmatpush.bf16.msra.mxu0 %v3211
    %4178 = vmatmul.bf16.gmra.mxu0 %v4155
    %v4179 = vpop.f32.mrf.mxu0
    %v4180 = vadd.f32 %v4166, %v4179
    %v4181 = vpop.f32.mrf.mxu0
    %v4182 = vadd.f32 %v4168, %v4181
    %4183 = vdwg.mxu0
    %4184 = vmatpush.bf16.msra.mxu0 %v3206
    %4185 = vmatpush.bf16.msra.mxu0 %v3200
    %4186 = vmatpush.bf16.msra.mxu0 %v3194
    %4187 = vmatpush.bf16.msra.mxu0 %v3188
    %4188 = vmatpush.bf16.msra.mxu0 %v3182
    %4189 = vmatpush.bf16.msra.mxu0 %v3176
    %4190 = vmatpush.bf16.msra.mxu0 %v3170
    %4191 = vmatpush.bf16.msra.mxu0 %v3164
    %4192 = vmatmul.bf16.gmra.mxu0 %v4154
    %v4193 = vpop.f32.mrf.mxu0
    %v4194 = vadd.f32 0.0, %v4193
    %v4195 = vpop.f32.mrf.mxu0
    %v4196 = vadd.f32 0.0, %v4195
    %4197 = vdwg.mxu0
    %4198 = vmatpush.bf16.msra.mxu0 %v3254
    %4199 = vmatpush.bf16.msra.mxu0 %v3248
    %4200 = vmatpush.bf16.msra.mxu0 %v3242
    %4201 = vmatpush.bf16.msra.mxu0 %v3236
    %4202 = vmatpush.bf16.msra.mxu0 %v3230
    %4203 = vmatpush.bf16.msra.mxu0 %v3224
    %4204 = vmatpush.bf16.msra.mxu0 %v3218
    %4205 = vmatpush.bf16.msra.mxu0 %v3212
    %4206 = vmatmul.bf16.gmra.mxu0 %v4155
    %v4207 = vpop.f32.mrf.mxu0
    %v4208 = vadd.f32 %v4194, %v4207
    %v4209 = vpop.f32.mrf.mxu0
    %v4210 = vadd.f32 %v4196, %v4209
    %4211 = vdwg.mxu0
    %4212 = vmatpush.bf16.msra.mxu0 %v3207
    %4213 = vmatpush.bf16.msra.mxu0 %v3201
    %4214 = vmatpush.bf16.msra.mxu0 %v3195
    %4215 = vmatpush.bf16.msra.mxu0 %v3189
    %4216 = vmatpush.bf16.msra.mxu0 %v3183
    %4217 = vmatpush.bf16.msra.mxu0 %v3177
    %4218 = vmatpush.bf16.msra.mxu0 %v3171
    %4219 = vmatpush.bf16.msra.mxu0 %v3165
    %4220 = vmatmul.bf16.gmra.mxu0 %v4154
    %v4221 = vpop.f32.mrf.mxu0
    %v4222 = vadd.f32 0.0, %v4221
    %v4223 = vpop.f32.mrf.mxu0
    %v4224 = vadd.f32 0.0, %v4223
    %4225 = vdwg.mxu0
    %4226 = vmatpush.bf16.msra.mxu0 %v3255
    %4227 = vmatpush.bf16.msra.mxu0 %v3249
    %4228 = vmatpush.bf16.msra.mxu0 %v3243
    %4229 = vmatpush.bf16.msra.mxu0 %v3237
    %4230 = vmatpush.bf16.msra.mxu0 %v3231
    %4231 = vmatpush.bf16.msra.mxu0 %v3225
    %4232 = vmatpush.bf16.msra.mxu0 %v3219
    %4233 = vmatpush.bf16.msra.mxu0 %v3213
    %4234 = vmatmul.bf16.gmra.mxu0 %v4155
    %v4235 = vpop.f32.mrf.mxu0
    %v4236 = vadd.f32 %v4222, %v4235
    %v4237 = vpop.f32.mrf.mxu0
    %v4238 = vadd.f32 %v4224, %v4237
    %4239 = vdwg.mxu0
    %4240 = vmatpush.bf16.msra.mxu0 %v3208
    %4241 = vmatpush.bf16.msra.mxu0 %v3202
    %4242 = vmatpush.bf16.msra.mxu0 %v3196
    %4243 = vmatpush.bf16.msra.mxu0 %v3190
    %4244 = vmatpush.bf16.msra.mxu0 %v3184
    %4245 = vmatpush.bf16.msra.mxu0 %v3178
    %4246 = vmatpush.bf16.msra.mxu0 %v3172
    %4247 = vmatpush.bf16.msra.mxu0 %v3166
    %4248 = vmatmul.bf16.gmra.mxu0 %v4154
    %v4249 = vpop.f32.mrf.mxu0
    %v4250 = vadd.f32 0.0, %v4249
    %v4251 = vpop.f32.mrf.mxu0
    %v4252 = vadd.f32 0.0, %v4251
    %4253 = vdwg.mxu0
    %4254 = vmatpush.bf16.msra.mxu0 %v3256
    %4255 = vmatpush.bf16.msra.mxu0 %v3250
    %4256 = vmatpush.bf16.msra.mxu0 %v3244
    %4257 = vmatpush.bf16.msra.mxu0 %v3238
    %4258 = vmatpush.bf16.msra.mxu0 %v3232
    %4259 = vmatpush.bf16.msra.mxu0 %v3226
    %4260 = vmatpush.bf16.msra.mxu0 %v3220
    %4261 = vmatpush.bf16.msra.mxu0 %v3214
    %4262 = vmatmul.bf16.gmra.mxu0 %v4155
    %v4263 = vpop.f32.mrf.mxu0
    %v4264 = vadd.f32 %v4250, %v4263
    %v4265 = vpop.f32.mrf.mxu0
    %v4266 = vadd.f32 %v4252, %v4265
    %4267 = vdwg.mxu0
    %4268 = vmatpush.bf16.msra.mxu0 %v3209
    %4269 = vmatpush.bf16.msra.mxu0 %v3203
    %4270 = vmatpush.bf16.msra.mxu0 %v3197
    %4271 = vmatpush.bf16.msra.mxu0 %v3191
    %4272 = vmatpush.bf16.msra.mxu0 %v3185
    %4273 = vmatpush.bf16.msra.mxu0 %v3179
    %4274 = vmatpush.bf16.msra.mxu0 %v3173
    %4275 = vmatpush.bf16.msra.mxu0 %v3167
    %4276 = vmatmul.bf16.gmra.mxu0 %v4154
    %v4277 = vpop.f32.mrf.mxu0
    %v4278 = vadd.f32 0.0, %v4277
    %v4279 = vpop.f32.mrf.mxu0
    %v4280 = vadd.f32 0.0, %v4279
    %4281 = vdwg.mxu0
    %4282 = vmatpush.bf16.msra.mxu0 %v3257
    %4283 = vmatpush.bf16.msra.mxu0 %v3251
    %4284 = vmatpush.bf16.msra.mxu0 %v3245
    %4285 = vmatpush.bf16.msra.mxu0 %v3239
    %4286 = vmatpush.bf16.msra.mxu0 %v3233
    %4287 = vmatpush.bf16.msra.mxu0 %v3227
    %4288 = vmatpush.bf16.msra.mxu0 %v3221
    %4289 = vmatpush.bf16.msra.mxu0 %v3215
    %4290 = vmatmul.bf16.gmra.mxu0 %v4155
    %v4291 = vpop.f32.mrf.mxu0
    %v4292 = vadd.f32 %v4278, %v4291
    %v4293 = vpop.f32.mrf.mxu0
    %v4294 = vadd.f32 %v4280, %v4293
    %4295 = vdwg.mxu0
    %4296 = vmatpush.bf16.msra.mxu0 %v3210
    %4297 = vmatpush.bf16.msra.mxu0 %v3204
    %4298 = vmatpush.bf16.msra.mxu0 %v3198
    %4299 = vmatpush.bf16.msra.mxu0 %v3192
    %4300 = vmatpush.bf16.msra.mxu0 %v3186
    %4301 = vmatpush.bf16.msra.mxu0 %v3180
    %4302 = vmatpush.bf16.msra.mxu0 %v3174
    %4303 = vmatpush.bf16.msra.mxu0 %v3168
    %4304 = vmatmul.bf16.gmra.mxu0 %v4154
    %v4305 = vpop.f32.mrf.mxu0
    %v4306 = vadd.f32 0.0, %v4305
    %v4307 = vpop.f32.mrf.mxu0
    %v4308 = vadd.f32 0.0, %v4307
    %4309 = vdwg.mxu0
    %4310 = vmatpush.bf16.msra.mxu0 %v3258
    %4311 = vmatpush.bf16.msra.mxu0 %v3252
    %4312 = vmatpush.bf16.msra.mxu0 %v3246
    %4313 = vmatpush.bf16.msra.mxu0 %v3240
    %4314 = vmatpush.bf16.msra.mxu0 %v3234
    %4315 = vmatpush.bf16.msra.mxu0 %v3228
    %4316 = vmatpush.bf16.msra.mxu0 %v3222
    %4317 = vmatpush.bf16.msra.mxu0 %v3216
    %4318 = vmatmul.bf16.gmra.mxu0 %v4155
    %v4319 = vpop.f32.mrf.mxu0
    %v4320 = vadd.f32 %v4306, %v4319
    %v4321 = vpop.f32.mrf.mxu0
    %v4322 = vadd.f32 %v4308, %v4321
    %4323 = vdwg.mxu0
    %v4324 = vadd.f32 %v4142, %v4180
    %v4325 = vadd.f32 %v4143, %v4208
    %v4326 = vadd.f32 %v4144, %v4236
    %v4327 = vadd.f32 %v4145, %v4264
    %v4328 = vadd.f32 %v4148, %v4182
    %v4329 = vadd.f32 %v4149, %v4210
    %v4330 = vadd.f32 %v4150, %v4238
    %v4331 = vadd.f32 %v4151, %v4266
    %v4332 = vxor.u32 %v4324, 2147483648
    %v4333 = vxor.u32 %v4325, 2147483648
    %v4334 = vxor.u32 %v4326, 2147483648
    %v4335 = vxor.u32 %v4327, 2147483648
    %v4336 = vxor.u32 %v4328, 2147483648
    %v4337 = vxor.u32 %v4329, 2147483648
    %v4338 = vxor.u32 %v4330, 2147483648
    %v4339 = vxor.u32 %v4331, 2147483648
    %v4340 = vmul.f32 %v4332, 1.442695
    %v4341 = vpow.pop %v4340
    %v4342 = vmul.f32 %v4333, 1.442695
    %v4343 = vpow.pop %v4342
    %v4344 = vmul.f32 %v4334, 1.442695
    %v4345 = vpow.pop %v4344
    %v4346 = vmul.f32 %v4335, 1.442695
    %v4347 = vpow.pop %v4346
    %v4348 = vmul.f32 %v4336, 1.442695
    %v4349 = vpow.pop %v4348
    %v4350 = vmul.f32 %v4337, 1.442695
    %v4351 = vpow.pop %v4350
    %v4352 = vmul.f32 %v4338, 1.442695
    %v4353 = vpow.pop %v4352
    %v4354 = vmul.f32 %v4339, 1.442695
    %v4355 = vpow.pop %v4354
    %v4356 = vadd.f32 %v4341, 1.0
    %v4357 = vadd.f32 %v4343, 1.0
    %v4358 = vadd.f32 %v4345, 1.0
    %v4359 = vadd.f32 %v4347, 1.0
    %v4360 = vadd.f32 %v4349, 1.0
    %v4361 = vadd.f32 %v4351, 1.0
    %v4362 = vadd.f32 %v4353, 1.0
    %v4363 = vadd.f32 %v4355, 1.0
    %v4364 = vrcp.pop %v4356
    %v4365 = vmul.f32 %v4356, %v4364
    %v4366 = vsub.f32 1.0, %v4365
    %v4367 = vmul.f32 %v4364, %v4366
    %v4368 = vadd.f32 %v4364, %v4367
    %vm4369 = vweird.f32 %v4356
    %vm4370 = vweird.f32 %v4364
    %vm4371 = vmor %vm4369, %vm4370
    %v4372 = vsel %vm4371, %v4364, %v4368
    %v4373 = vand.u32 2147483647, %v4356
    %vm4374 = vcmp.eq.f32.partialorder %v4373, 8.507059e+37
    %v4375 = vand.u32 %v4356, 2147483648
    %v4376 = vor.u32 1.1754944e-38, %v4375
    %v4377 = vsel %vm4374, %v4376, %v4372
    %v4378 = vmul.f32 1.0, %v4377
    %v4379 = vrcp.pop %v4357
    %v4380 = vmul.f32 %v4357, %v4379
    %v4381 = vsub.f32 1.0, %v4380
    %v4382 = vmul.f32 %v4379, %v4381
    %v4383 = vadd.f32 %v4379, %v4382
    %vm4384 = vweird.f32 %v4357
    %vm4385 = vweird.f32 %v4379
    %vm4386 = vmor %vm4384, %vm4385
    %v4387 = vsel %vm4386, %v4379, %v4383
    %v4388 = vand.u32 2147483647, %v4357
    %vm4389 = vcmp.eq.f32.partialorder %v4388, 8.507059e+37
    %v4390 = vand.u32 %v4357, 2147483648
    %v4391 = vor.u32 1.1754944e-38, %v4390
    %v4392 = vsel %vm4389, %v4391, %v4387
    %v4393 = vmul.f32 1.0, %v4392
    %v4394 = vrcp.pop %v4358
    %v4395 = vmul.f32 %v4358, %v4394
    %v4396 = vsub.f32 1.0, %v4395
    %v4397 = vmul.f32 %v4394, %v4396
    %v4398 = vadd.f32 %v4394, %v4397
    %vm4399 = vweird.f32 %v4358
    %vm4400 = vweird.f32 %v4394
    %vm4401 = vmor %vm4399, %vm4400
    %v4402 = vsel %vm4401, %v4394, %v4398
    %v4403 = vand.u32 2147483647, %v4358
    %vm4404 = vcmp.eq.f32.partialorder %v4403, 8.507059e+37
    %v4405 = vand.u32 %v4358, 2147483648
    %v4406 = vor.u32 1.1754944e-38, %v4405
    %v4407 = vsel %vm4404, %v4406, %v4402
    %v4408 = vmul.f32 1.0, %v4407
    %v4409 = vrcp.pop %v4359
    %v4410 = vmul.f32 %v4359, %v4409
    %v4411 = vsub.f32 1.0, %v4410
    %v4412 = vmul.f32 %v4409, %v4411
    %v4413 = vadd.f32 %v4409, %v4412
    %vm4414 = vweird.f32 %v4359
    %vm4415 = vweird.f32 %v4409
    %vm4416 = vmor %vm4414, %vm4415
    %v4417 = vsel %vm4416, %v4409, %v4413
    %v4418 = vand.u32 2147483647, %v4359
    %vm4419 = vcmp.eq.f32.partialorder %v4418, 8.507059e+37
    %v4420 = vand.u32 %v4359, 2147483648
    %v4421 = vor.u32 1.1754944e-38, %v4420
    %v4422 = vsel %vm4419, %v4421, %v4417
    %v4423 = vmul.f32 1.0, %v4422
    %v4424 = vrcp.pop %v4360
    %v4425 = vmul.f32 %v4360, %v4424
    %v4426 = vsub.f32 1.0, %v4425
    %v4427 = vmul.f32 %v4424, %v4426
    %v4428 = vadd.f32 %v4424, %v4427
    %vm4429 = vweird.f32 %v4360
    %vm4430 = vweird.f32 %v4424
    %vm4431 = vmor %vm4429, %vm4430
    %v4432 = vsel %vm4431, %v4424, %v4428
    %v4433 = vand.u32 2147483647, %v4360
    %vm4434 = vcmp.eq.f32.partialorder %v4433, 8.507059e+37
    %v4435 = vand.u32 %v4360, 2147483648
    %v4436 = vor.u32 1.1754944e-38, %v4435
    %v4437 = vsel %vm4434, %v4436, %v4432
    %v4438 = vmul.f32 1.0, %v4437
    %v4439 = vrcp.pop %v4361
    %v4440 = vmul.f32 %v4361, %v4439
    %v4441 = vsub.f32 1.0, %v4440
    %v4442 = vmul.f32 %v4439, %v4441
    %v4443 = vadd.f32 %v4439, %v4442
    %vm4444 = vweird.f32 %v4361
    %vm4445 = vweird.f32 %v4439
    %vm4446 = vmor %vm4444, %vm4445
    %v4447 = vsel %vm4446, %v4439, %v4443
    %v4448 = vand.u32 2147483647, %v4361
    %vm4449 = vcmp.eq.f32.partialorder %v4448, 8.507059e+37
    %v4450 = vand.u32 %v4361, 2147483648
    %v4451 = vor.u32 1.1754944e-38, %v4450
    %v4452 = vsel %vm4449, %v4451, %v4447
    %v4453 = vmul.f32 1.0, %v4452
    %v4454 = vrcp.pop %v4362
    %v4455 = vmul.f32 %v4362, %v4454
    %v4456 = vsub.f32 1.0, %v4455
    %v4457 = vmul.f32 %v4454, %v4456
    %v4458 = vadd.f32 %v4454, %v4457
    %vm4459 = vweird.f32 %v4362
    %vm4460 = vweird.f32 %v4454
    %vm4461 = vmor %vm4459, %vm4460
    %v4462 = vsel %vm4461, %v4454, %v4458
    %v4463 = vand.u32 2147483647, %v4362
    %vm4464 = vcmp.eq.f32.partialorder %v4463, 8.507059e+37
    %v4465 = vand.u32 %v4362, 2147483648
    %v4466 = vor.u32 1.1754944e-38, %v4465
    %v4467 = vsel %vm4464, %v4466, %v4462
    %v4468 = vmul.f32 1.0, %v4467
    %v4469 = vrcp.pop %v4363
    %v4470 = vmul.f32 %v4363, %v4469
    %v4471 = vsub.f32 1.0, %v4470
    %v4472 = vmul.f32 %v4469, %v4471
    %v4473 = vadd.f32 %v4469, %v4472
    %vm4474 = vweird.f32 %v4363
    %vm4475 = vweird.f32 %v4469
    %vm4476 = vmor %vm4474, %vm4475
    %v4477 = vsel %vm4476, %v4469, %v4473
    %v4478 = vand.u32 2147483647, %v4363
    %vm4479 = vcmp.eq.f32.partialorder %v4478, 8.507059e+37
    %v4480 = vand.u32 %v4363, 2147483648
    %v4481 = vor.u32 1.1754944e-38, %v4480
    %v4482 = vsel %vm4479, %v4481, %v4477
    %v4483 = vmul.f32 1.0, %v4482
    %v4484 = vadd.f32 %v4292, %v3684
    %v4485 = vadd.f32 %v4320, %v3685
    %v4486 = vadd.f32 %v4294, %v3684
    %v4487 = vadd.f32 %v4322, %v3685
    %v4488 = vmul.f32 %v4378, %v4484
    %v4489 = vmul.f32 %v4393, %v4485
    %v4490 = vmul.f32 %v4438, %v4486
    %v4491 = vmul.f32 %v4453, %v4487
    %v4492 = vadd.f32 %v4146, %v4488
    %v4493 = vadd.f32 %v4147, %v4489
    %v4494 = vadd.f32 %v4152, %v4490
    %v4495 = vadd.f32 %v4153, %v4491
    %v4496 = vtanh.pop %v4492
    %v4497 = vtanh.pop %v4493
    %v4498 = vtanh.pop %v4494
    %v4499 = vtanh.pop %v4495
    %v4500 = vsub.f32 %v4110, %v4496
    %v4501 = vsub.f32 %v4111, %v4497
    %v4502 = vsub.f32 %v4112, %v4498
    %v4503 = vsub.f32 %v4113, %v4499
    %v4504 = vmul.f32 %v4408, %v4500
    %v4505 = vmul.f32 %v4423, %v4501
    %v4506 = vmul.f32 %v4468, %v4502
    %v4507 = vmul.f32 %v4483, %v4503
    %v4508 = vadd.f32 %v4496, %v4504
    %v4509 = vadd.f32 %v4497, %v4505
    %v4510 = vadd.f32 %v4498, %v4506
    %v4511 = vadd.f32 %v4499, %v4507
    %4512 = vst [vmem:[#allocation3 + $0x40] sm:$0xff] %v4508
    %4513 = vst [vmem:[#allocation3 + $0x48] sm:$0xff] %v4509
    %4514 = vst [vmem:[#allocation3 + $0x50] sm:$0xff] %v4510
    %4515 = vst [vmem:[#allocation3 + $0x58] sm:$0xff] %v4511
    %v4516 = vld [vmem:[%s1 + $0x30] sm:$0xff]
    %v4517 = vld [vmem:[%s1 + $0x38] sm:$0xff]
    %4519 = vset.pattern.permute.xlu0 0
    %4520 = vperm.xlu0 %4519, %v4516
    %v4521 = vpop.permute.xlu0 %4520
    %4524 = vset.pattern.permute.xlu0 0
    %4525 = vperm.xlu0 %4524, %v4517
    %v4526 = vpop.permute.xlu0 %4525
    %v4528 = vmul.f32 %v4521, %v2730
    %v4529 = vmul.f32 %v4521, %v2731
    %v4530 = vmul.f32 %v4521, %v2732
    %v4531 = vmul.f32 %v4521, %v2733
    %v4532 = vmul.f32 %v4521, %v2734
    %v4533 = vmul.f32 %v4521, %v2735
    %v4534 = vmul.f32 %v4526, %v2730
    %v4535 = vmul.f32 %v4526, %v2731
    %v4536 = vmul.f32 %v4526, %v2732
    %v4537 = vmul.f32 %v4526, %v2733
    %v4538 = vmul.f32 %v4526, %v2734
    %v4539 = vmul.f32 %v4526, %v2735
    %v4540 = vadd.f32 %v2654, %v4528
    %v4541 = vadd.f32 %v2668, %v4529
    %v4542 = vadd.f32 %v2682, %v4530
    %v4543 = vadd.f32 %v2696, %v4531
    %v4544 = vadd.f32 %v2710, %v4532
    %v4545 = vadd.f32 %v2724, %v4533
    %v4546 = vadd.f32 %v2656, %v4534
    %v4547 = vadd.f32 %v2670, %v4535
    %v4548 = vadd.f32 %v2684, %v4536
    %v4549 = vadd.f32 %v2698, %v4537
    %v4550 = vadd.f32 %v2712, %v4538
    %v4551 = vadd.f32 %v2726, %v4539
    %v4552 = vpack.c.bf16 %v4510, %v4508
    %v4553 = vpack.c.bf16 %v4511, %v4509
    %4554 = vmatpush.bf16.msra.mxu0 %v3205
    %4555 = vmatpush.bf16.msra.mxu0 %v3199
    %4556 = vmatpush.bf16.msra.mxu0 %v3193
    %4557 = vmatpush.bf16.msra.mxu0 %v3187
    %4558 = vmatpush.bf16.msra.mxu0 %v3181
    %4559 = vmatpush.bf16.msra.mxu0 %v3175
    %4560 = vmatpush.bf16.msra.mxu0 %v3169
    %4561 = vmatpush.bf16.msra.mxu0 %v3163
    %4562 = vmatmul.bf16.gmra.mxu0 %v4552
    %v4563 = vpop.f32.mrf.mxu0
    %v4564 = vadd.f32 0.0, %v4563
    %v4565 = vpop.f32.mrf.mxu0
    %v4566 = vadd.f32 0.0, %v4565
    %4567 = vdwg.mxu0
    %4568 = vmatpush.bf16.msra.mxu0 %v3253
    %4569 = vmatpush.bf16.msra.mxu0 %v3247
    %4570 = vmatpush.bf16.msra.mxu0 %v3241
    %4571 = vmatpush.bf16.msra.mxu0 %v3235
    %4572 = vmatpush.bf16.msra.mxu0 %v3229
    %4573 = vmatpush.bf16.msra.mxu0 %v3223
    %4574 = vmatpush.bf16.msra.mxu0 %v3217
    %4575 = vmatpush.bf16.msra.mxu0 %v3211
    %4576 = vmatmul.bf16.gmra.mxu0 %v4553
    %v4577 = vpop.f32.mrf.mxu0
    %v4578 = vadd.f32 %v4564, %v4577
    %v4579 = vpop.f32.mrf.mxu0
    %v4580 = vadd.f32 %v4566, %v4579
    %4581 = vdwg.mxu0
    %4582 = vmatpush.bf16.msra.mxu0 %v3206
    %4583 = vmatpush.bf16.msra.mxu0 %v3200
    %4584 = vmatpush.bf16.msra.mxu0 %v3194
    %4585 = vmatpush.bf16.msra.mxu0 %v3188
    %4586 = vmatpush.bf16.msra.mxu0 %v3182
    %4587 = vmatpush.bf16.msra.mxu0 %v3176
    %4588 = vmatpush.bf16.msra.mxu0 %v3170
    %4589 = vmatpush.bf16.msra.mxu0 %v3164
    %4590 = vmatmul.bf16.gmra.mxu0 %v4552
    %v4591 = vpop.f32.mrf.mxu0
    %v4592 = vadd.f32 0.0, %v4591
    %v4593 = vpop.f32.mrf.mxu0
    %v4594 = vadd.f32 0.0, %v4593
    %4595 = vdwg.mxu0
    %4596 = vmatpush.bf16.msra.mxu0 %v3254
    %4597 = vmatpush.bf16.msra.mxu0 %v3248
    %4598 = vmatpush.bf16.msra.mxu0 %v3242
    %4599 = vmatpush.bf16.msra.mxu0 %v3236
    %4600 = vmatpush.bf16.msra.mxu0 %v3230
    %4601 = vmatpush.bf16.msra.mxu0 %v3224
    %4602 = vmatpush.bf16.msra.mxu0 %v3218
    %4603 = vmatpush.bf16.msra.mxu0 %v3212
    %4604 = vmatmul.bf16.gmra.mxu0 %v4553
    %v4605 = vpop.f32.mrf.mxu0
    %v4606 = vadd.f32 %v4592, %v4605
    %v4607 = vpop.f32.mrf.mxu0
    %v4608 = vadd.f32 %v4594, %v4607
    %4609 = vdwg.mxu0
    %4610 = vmatpush.bf16.msra.mxu0 %v3207
    %4611 = vmatpush.bf16.msra.mxu0 %v3201
    %4612 = vmatpush.bf16.msra.mxu0 %v3195
    %4613 = vmatpush.bf16.msra.mxu0 %v3189
    %4614 = vmatpush.bf16.msra.mxu0 %v3183
    %4615 = vmatpush.bf16.msra.mxu0 %v3177
    %4616 = vmatpush.bf16.msra.mxu0 %v3171
    %4617 = vmatpush.bf16.msra.mxu0 %v3165
    %4618 = vmatmul.bf16.gmra.mxu0 %v4552
    %v4619 = vpop.f32.mrf.mxu0
    %v4620 = vadd.f32 0.0, %v4619
    %v4621 = vpop.f32.mrf.mxu0
    %v4622 = vadd.f32 0.0, %v4621
    %4623 = vdwg.mxu0
    %4624 = vmatpush.bf16.msra.mxu0 %v3255
    %4625 = vmatpush.bf16.msra.mxu0 %v3249
    %4626 = vmatpush.bf16.msra.mxu0 %v3243
    %4627 = vmatpush.bf16.msra.mxu0 %v3237
    %4628 = vmatpush.bf16.msra.mxu0 %v3231
    %4629 = vmatpush.bf16.msra.mxu0 %v3225
    %4630 = vmatpush.bf16.msra.mxu0 %v3219
    %4631 = vmatpush.bf16.msra.mxu0 %v3213
    %4632 = vmatmul.bf16.gmra.mxu0 %v4553
    %v4633 = vpop.f32.mrf.mxu0
    %v4634 = vadd.f32 %v4620, %v4633
    %v4635 = vpop.f32.mrf.mxu0
    %v4636 = vadd.f32 %v4622, %v4635
    %4637 = vdwg.mxu0
    %4638 = vmatpush.bf16.msra.mxu0 %v3208
    %4639 = vmatpush.bf16.msra.mxu0 %v3202
    %4640 = vmatpush.bf16.msra.mxu0 %v3196
    %4641 = vmatpush.bf16.msra.mxu0 %v3190
    %4642 = vmatpush.bf16.msra.mxu0 %v3184
    %4643 = vmatpush.bf16.msra.mxu0 %v3178
    %4644 = vmatpush.bf16.msra.mxu0 %v3172
    %4645 = vmatpush.bf16.msra.mxu0 %v3166
    %4646 = vmatmul.bf16.gmra.mxu0 %v4552
    %v4647 = vpop.f32.mrf.mxu0
    %v4648 = vadd.f32 0.0, %v4647
    %v4649 = vpop.f32.mrf.mxu0
    %v4650 = vadd.f32 0.0, %v4649
    %4651 = vdwg.mxu0
    %4652 = vmatpush.bf16.msra.mxu0 %v3256
    %4653 = vmatpush.bf16.msra.mxu0 %v3250
    %4654 = vmatpush.bf16.msra.mxu0 %v3244
    %4655 = vmatpush.bf16.msra.mxu0 %v3238
    %4656 = vmatpush.bf16.msra.mxu0 %v3232
    %4657 = vmatpush.bf16.msra.mxu0 %v3226
    %4658 = vmatpush.bf16.msra.mxu0 %v3220
    %4659 = vmatpush.bf16.msra.mxu0 %v3214
    %4660 = vmatmul.bf16.gmra.mxu0 %v4553
    %v4661 = vpop.f32.mrf.mxu0
    %v4662 = vadd.f32 %v4648, %v4661
    %v4663 = vpop.f32.mrf.mxu0
    %v4664 = vadd.f32 %v4650, %v4663
    %4665 = vdwg.mxu0
    %4666 = vmatpush.bf16.msra.mxu0 %v3209
    %4667 = vmatpush.bf16.msra.mxu0 %v3203
    %4668 = vmatpush.bf16.msra.mxu0 %v3197
    %4669 = vmatpush.bf16.msra.mxu0 %v3191
    %4670 = vmatpush.bf16.msra.mxu0 %v3185
    %4671 = vmatpush.bf16.msra.mxu0 %v3179
    %4672 = vmatpush.bf16.msra.mxu0 %v3173
    %4673 = vmatpush.bf16.msra.mxu0 %v3167
    %4674 = vmatmul.bf16.gmra.mxu0 %v4552
    %v4675 = vpop.f32.mrf.mxu0
    %v4676 = vadd.f32 0.0, %v4675
    %v4677 = vpop.f32.mrf.mxu0
    %v4678 = vadd.f32 0.0, %v4677
    %4679 = vdwg.mxu0
    %4680 = vmatpush.bf16.msra.mxu0 %v3257
    %4681 = vmatpush.bf16.msra.mxu0 %v3251
    %4682 = vmatpush.bf16.msra.mxu0 %v3245
    %4683 = vmatpush.bf16.msra.mxu0 %v3239
    %4684 = vmatpush.bf16.msra.mxu0 %v3233
    %4685 = vmatpush.bf16.msra.mxu0 %v3227
    %4686 = vmatpush.bf16.msra.mxu0 %v3221
    %4687 = vmatpush.bf16.msra.mxu0 %v3215
    %4688 = vmatmul.bf16.gmra.mxu0 %v4553
    %v4689 = vpop.f32.mrf.mxu0
    %v4690 = vadd.f32 %v4676, %v4689
    %v4691 = vpop.f32.mrf.mxu0
    %v4692 = vadd.f32 %v4678, %v4691
    %4693 = vdwg.mxu0
    %4694 = vmatpush.bf16.msra.mxu0 %v3210
    %4695 = vmatpush.bf16.msra.mxu0 %v3204
    %4696 = vmatpush.bf16.msra.mxu0 %v3198
    %4697 = vmatpush.bf16.msra.mxu0 %v3192
    %4698 = vmatpush.bf16.msra.mxu0 %v3186
    %4699 = vmatpush.bf16.msra.mxu0 %v3180
    %4700 = vmatpush.bf16.msra.mxu0 %v3174
    %4701 = vmatpush.bf16.msra.mxu0 %v3168
    %4702 = vmatmul.bf16.gmra.mxu0 %v4552
    %v4703 = vpop.f32.mrf.mxu0
    %v4704 = vadd.f32 0.0, %v4703
    %v4705 = vpop.f32.mrf.mxu0
    %v4706 = vadd.f32 0.0, %v4705
    %4707 = vdwg.mxu0
    %4708 = vmatpush.bf16.msra.mxu0 %v3258
    %4709 = vmatpush.bf16.msra.mxu0 %v3252
    %4710 = vmatpush.bf16.msra.mxu0 %v3246
    %4711 = vmatpush.bf16.msra.mxu0 %v3240
    %4712 = vmatpush.bf16.msra.mxu0 %v3234
    %4713 = vmatpush.bf16.msra.mxu0 %v3228
    %4714 = vmatpush.bf16.msra.mxu0 %v3222
    %4715 = vmatpush.bf16.msra.mxu0 %v3216
    %4716 = vmatmul.bf16.gmra.mxu0 %v4553
    %v4717 = vpop.f32.mrf.mxu0
    %v4718 = vadd.f32 %v4704, %v4717
    %v4719 = vpop.f32.mrf.mxu0
    %v4720 = vadd.f32 %v4706, %v4719
    %4721 = vdwg.mxu0
    %v4722 = vadd.f32 %v4540, %v4578
    %v4723 = vadd.f32 %v4541, %v4606
    %v4724 = vadd.f32 %v4542, %v4634
    %v4725 = vadd.f32 %v4543, %v4662
    %v4726 = vadd.f32 %v4546, %v4580
    %v4727 = vadd.f32 %v4547, %v4608
    %v4728 = vadd.f32 %v4548, %v4636
    %v4729 = vadd.f32 %v4549, %v4664
    %v4730 = vxor.u32 %v4722, 2147483648
    %v4731 = vxor.u32 %v4723, 2147483648
    %v4732 = vxor.u32 %v4724, 2147483648
    %v4733 = vxor.u32 %v4725, 2147483648
    %v4734 = vxor.u32 %v4726, 2147483648
    %v4735 = vxor.u32 %v4727, 2147483648
    %v4736 = vxor.u32 %v4728, 2147483648
    %v4737 = vxor.u32 %v4729, 2147483648
    %v4738 = vmul.f32 %v4730, 1.442695
    %v4739 = vpow.pop %v4738
    %v4740 = vmul.f32 %v4731, 1.442695
    %v4741 = vpow.pop %v4740
    %v4742 = vmul.f32 %v4732, 1.442695
    %v4743 = vpow.pop %v4742
    %v4744 = vmul.f32 %v4733, 1.442695
    %v4745 = vpow.pop %v4744
    %v4746 = vmul.f32 %v4734, 1.442695
    %v4747 = vpow.pop %v4746
    %v4748 = vmul.f32 %v4735, 1.442695
    %v4749 = vpow.pop %v4748
    %v4750 = vmul.f32 %v4736, 1.442695
    %v4751 = vpow.pop %v4750
    %v4752 = vmul.f32 %v4737, 1.442695
    %v4753 = vpow.pop %v4752
    %v4754 = vadd.f32 %v4739, 1.0
    %v4755 = vadd.f32 %v4741, 1.0
    %v4756 = vadd.f32 %v4743, 1.0
    %v4757 = vadd.f32 %v4745, 1.0
    %v4758 = vadd.f32 %v4747, 1.0
    %v4759 = vadd.f32 %v4749, 1.0
    %v4760 = vadd.f32 %v4751, 1.0
    %v4761 = vadd.f32 %v4753, 1.0
    %v4762 = vrcp.pop %v4754
    %v4763 = vmul.f32 %v4754, %v4762
    %v4764 = vsub.f32 1.0, %v4763
    %v4765 = vmul.f32 %v4762, %v4764
    %v4766 = vadd.f32 %v4762, %v4765
    %vm4767 = vweird.f32 %v4754
    %vm4768 = vweird.f32 %v4762
    %vm4769 = vmor %vm4767, %vm4768
    %v4770 = vsel %vm4769, %v4762, %v4766
    %v4771 = vand.u32 2147483647, %v4754
    %vm4772 = vcmp.eq.f32.partialorder %v4771, 8.507059e+37
    %v4773 = vand.u32 %v4754, 2147483648
    %v4774 = vor.u32 1.1754944e-38, %v4773
    %v4775 = vsel %vm4772, %v4774, %v4770
    %v4776 = vmul.f32 1.0, %v4775
    %v4777 = vrcp.pop %v4755
    %v4778 = vmul.f32 %v4755, %v4777
    %v4779 = vsub.f32 1.0, %v4778
    %v4780 = vmul.f32 %v4777, %v4779
    %v4781 = vadd.f32 %v4777, %v4780
    %vm4782 = vweird.f32 %v4755
    %vm4783 = vweird.f32 %v4777
    %vm4784 = vmor %vm4782, %vm4783
    %v4785 = vsel %vm4784, %v4777, %v4781
    %v4786 = vand.u32 2147483647, %v4755
    %vm4787 = vcmp.eq.f32.partialorder %v4786, 8.507059e+37
    %v4788 = vand.u32 %v4755, 2147483648
    %v4789 = vor.u32 1.1754944e-38, %v4788
    %v4790 = vsel %vm4787, %v4789, %v4785
    %v4791 = vmul.f32 1.0, %v4790
    %v4792 = vrcp.pop %v4756
    %v4793 = vmul.f32 %v4756, %v4792
    %v4794 = vsub.f32 1.0, %v4793
    %v4795 = vmul.f32 %v4792, %v4794
    %v4796 = vadd.f32 %v4792, %v4795
    %vm4797 = vweird.f32 %v4756
    %vm4798 = vweird.f32 %v4792
    %vm4799 = vmor %vm4797, %vm4798
    %v4800 = vsel %vm4799, %v4792, %v4796
    %v4801 = vand.u32 2147483647, %v4756
    %vm4802 = vcmp.eq.f32.partialorder %v4801, 8.507059e+37
    %v4803 = vand.u32 %v4756, 2147483648
    %v4804 = vor.u32 1.1754944e-38, %v4803
    %v4805 = vsel %vm4802, %v4804, %v4800
    %v4806 = vmul.f32 1.0, %v4805
    %v4807 = vrcp.pop %v4757
    %v4808 = vmul.f32 %v4757, %v4807
    %v4809 = vsub.f32 1.0, %v4808
    %v4810 = vmul.f32 %v4807, %v4809
    %v4811 = vadd.f32 %v4807, %v4810
    %vm4812 = vweird.f32 %v4757
    %vm4813 = vweird.f32 %v4807
    %vm4814 = vmor %vm4812, %vm4813
    %v4815 = vsel %vm4814, %v4807, %v4811
    %v4816 = vand.u32 2147483647, %v4757
    %vm4817 = vcmp.eq.f32.partialorder %v4816, 8.507059e+37
    %v4818 = vand.u32 %v4757, 2147483648
    %v4819 = vor.u32 1.1754944e-38, %v4818
    %v4820 = vsel %vm4817, %v4819, %v4815
    %v4821 = vmul.f32 1.0, %v4820
    %v4822 = vrcp.pop %v4758
    %v4823 = vmul.f32 %v4758, %v4822
    %v4824 = vsub.f32 1.0, %v4823
    %v4825 = vmul.f32 %v4822, %v4824
    %v4826 = vadd.f32 %v4822, %v4825
    %vm4827 = vweird.f32 %v4758
    %vm4828 = vweird.f32 %v4822
    %vm4829 = vmor %vm4827, %vm4828
    %v4830 = vsel %vm4829, %v4822, %v4826
    %v4831 = vand.u32 2147483647, %v4758
    %vm4832 = vcmp.eq.f32.partialorder %v4831, 8.507059e+37
    %v4833 = vand.u32 %v4758, 2147483648
    %v4834 = vor.u32 1.1754944e-38, %v4833
    %v4835 = vsel %vm4832, %v4834, %v4830
    %v4836 = vmul.f32 1.0, %v4835
    %v4837 = vrcp.pop %v4759
    %v4838 = vmul.f32 %v4759, %v4837
    %v4839 = vsub.f32 1.0, %v4838
    %v4840 = vmul.f32 %v4837, %v4839
    %v4841 = vadd.f32 %v4837, %v4840
    %vm4842 = vweird.f32 %v4759
    %vm4843 = vweird.f32 %v4837
    %vm4844 = vmor %vm4842, %vm4843
    %v4845 = vsel %vm4844, %v4837, %v4841
    %v4846 = vand.u32 2147483647, %v4759
    %vm4847 = vcmp.eq.f32.partialorder %v4846, 8.507059e+37
    %v4848 = vand.u32 %v4759, 2147483648
    %v4849 = vor.u32 1.1754944e-38, %v4848
    %v4850 = vsel %vm4847, %v4849, %v4845
    %v4851 = vmul.f32 1.0, %v4850
    %v4852 = vrcp.pop %v4760
    %v4853 = vmul.f32 %v4760, %v4852
    %v4854 = vsub.f32 1.0, %v4853
    %v4855 = vmul.f32 %v4852, %v4854
    %v4856 = vadd.f32 %v4852, %v4855
    %vm4857 = vweird.f32 %v4760
    %vm4858 = vweird.f32 %v4852
    %vm4859 = vmor %vm4857, %vm4858
    %v4860 = vsel %vm4859, %v4852, %v4856
    %v4861 = vand.u32 2147483647, %v4760
    %vm4862 = vcmp.eq.f32.partialorder %v4861, 8.507059e+37
    %v4863 = vand.u32 %v4760, 2147483648
    %v4864 = vor.u32 1.1754944e-38, %v4863
    %v4865 = vsel %vm4862, %v4864, %v4860
    %v4866 = vmul.f32 1.0, %v4865
    %v4867 = vrcp.pop %v4761
    %v4868 = vmul.f32 %v4761, %v4867
    %v4869 = vsub.f32 1.0, %v4868
    %v4870 = vmul.f32 %v4867, %v4869
    %v4871 = vadd.f32 %v4867, %v4870
    %vm4872 = vweird.f32 %v4761
    %vm4873 = vweird.f32 %v4867
    %vm4874 = vmor %vm4872, %vm4873
    %v4875 = vsel %vm4874, %v4867, %v4871
    %v4876 = vand.u32 2147483647, %v4761
    %vm4877 = vcmp.eq.f32.partialorder %v4876, 8.507059e+37
    %v4878 = vand.u32 %v4761, 2147483648
    %v4879 = vor.u32 1.1754944e-38, %v4878
    %v4880 = vsel %vm4877, %v4879, %v4875
    %v4881 = vmul.f32 1.0, %v4880
    %v4882 = vadd.f32 %v4690, %v3684
    %v4883 = vadd.f32 %v4718, %v3685
    %v4884 = vadd.f32 %v4692, %v3684
    %v4885 = vadd.f32 %v4720, %v3685
    %v4886 = vmul.f32 %v4776, %v4882
    %v4887 = vmul.f32 %v4791, %v4883
    %v4888 = vmul.f32 %v4836, %v4884
    %v4889 = vmul.f32 %v4851, %v4885
    %v4890 = vadd.f32 %v4544, %v4886
    %v4891 = vadd.f32 %v4545, %v4887
    %v4892 = vadd.f32 %v4550, %v4888
    %v4893 = vadd.f32 %v4551, %v4889
    %v4894 = vtanh.pop %v4890
    %v4895 = vtanh.pop %v4891
    %v4896 = vtanh.pop %v4892
    %v4897 = vtanh.pop %v4893
    %v4898 = vsub.f32 %v4508, %v4894
    %v4899 = vsub.f32 %v4509, %v4895
    %v4900 = vsub.f32 %v4510, %v4896
    %v4901 = vsub.f32 %v4511, %v4897
    %v4902 = vmul.f32 %v4806, %v4898
    %v4903 = vmul.f32 %v4821, %v4899
    %v4904 = vmul.f32 %v4866, %v4900
    %v4905 = vmul.f32 %v4881, %v4901
    %v4906 = vadd.f32 %v4894, %v4902
    %v4907 = vadd.f32 %v4895, %v4903
    %v4908 = vadd.f32 %v4896, %v4904
    %v4909 = vadd.f32 %v4897, %v4905
    %4910 = vst [vmem:[#allocation3 + $0x60] sm:$0xff] %v4906
    %4911 = vst [vmem:[#allocation3 + $0x68] sm:$0xff] %v4907
    %4912 = vst [vmem:[#allocation3 + $0x70] sm:$0xff] %v4908
    %4913 = vst [vmem:[#allocation3 + $0x78] sm:$0xff] %v4909
    %v4914 = vld [vmem:[%s1 + $0x40] sm:$0xff]
    %v4915 = vld [vmem:[%s1 + $0x48] sm:$0xff]
    %4917 = vset.pattern.permute.xlu0 0
    %4918 = vperm.xlu0 %4917, %v4914
    %v4919 = vpop.permute.xlu0 %4918
    %4922 = vset.pattern.permute.xlu0 0
    %4923 = vperm.xlu0 %4922, %v4915
    %v4924 = vpop.permute.xlu0 %4923
    %v4926 = vmul.f32 %v4919, %v2730
    %v4927 = vmul.f32 %v4919, %v2731
    %v4928 = vmul.f32 %v4919, %v2732
    %v4929 = vmul.f32 %v4919, %v2733
    %v4930 = vmul.f32 %v4919, %v2734
    %v4931 = vmul.f32 %v4919, %v2735
    %v4932 = vmul.f32 %v4924, %v2730
    %v4933 = vmul.f32 %v4924, %v2731
    %v4934 = vmul.f32 %v4924, %v2732
    %v4935 = vmul.f32 %v4924, %v2733
    %v4936 = vmul.f32 %v4924, %v2734
    %v4937 = vmul.f32 %v4924, %v2735
    %v4938 = vadd.f32 %v2654, %v4926
    %v4939 = vadd.f32 %v2668, %v4927
    %v4940 = vadd.f32 %v2682, %v4928
    %v4941 = vadd.f32 %v2696, %v4929
    %v4942 = vadd.f32 %v2710, %v4930
    %v4943 = vadd.f32 %v2724, %v4931
    %v4944 = vadd.f32 %v2656, %v4932
    %v4945 = vadd.f32 %v2670, %v4933
    %v4946 = vadd.f32 %v2684, %v4934
    %v4947 = vadd.f32 %v2698, %v4935
    %v4948 = vadd.f32 %v2712, %v4936
    %v4949 = vadd.f32 %v2726, %v4937
    %v4950 = vpack.c.bf16 %v4908, %v4906
    %v4951 = vpack.c.bf16 %v4909, %v4907
    %4952 = vmatpush.bf16.msra.mxu0 %v3205
    %4953 = vmatpush.bf16.msra.mxu0 %v3199
    %4954 = vmatpush.bf16.msra.mxu0 %v3193
    %4955 = vmatpush.bf16.msra.mxu0 %v3187
    %4956 = vmatpush.bf16.msra.mxu0 %v3181
    %4957 = vmatpush.bf16.msra.mxu0 %v3175
    %4958 = vmatpush.bf16.msra.mxu0 %v3169
    %4959 = vmatpush.bf16.msra.mxu0 %v3163
    %4960 = vmatmul.bf16.gmra.mxu0 %v4950
    %v4961 = vpop.f32.mrf.mxu0
    %v4962 = vadd.f32 0.0, %v4961
    %v4963 = vpop.f32.mrf.mxu0
    %v4964 = vadd.f32 0.0, %v4963
    %4965 = vdwg.mxu0
    %4966 = vmatpush.bf16.msra.mxu0 %v3253
    %4967 = vmatpush.bf16.msra.mxu0 %v3247
    %4968 = vmatpush.bf16.msra.mxu0 %v3241
    %4969 = vmatpush.bf16.msra.mxu0 %v3235
    %4970 = vmatpush.bf16.msra.mxu0 %v3229
    %4971 = vmatpush.bf16.msra.mxu0 %v3223
    %4972 = vmatpush.bf16.msra.mxu0 %v3217
    %4973 = vmatpush.bf16.msra.mxu0 %v3211
    %4974 = vmatmul.bf16.gmra.mxu0 %v4951
    %v4975 = vpop.f32.mrf.mxu0
    %v4976 = vadd.f32 %v4962, %v4975
    %v4977 = vpop.f32.mrf.mxu0
    %v4978 = vadd.f32 %v4964, %v4977
    %4979 = vdwg.mxu0
    %4980 = vmatpush.bf16.msra.mxu0 %v3206
    %4981 = vmatpush.bf16.msra.mxu0 %v3200
    %4982 = vmatpush.bf16.msra.mxu0 %v3194
    %4983 = vmatpush.bf16.msra.mxu0 %v3188
    %4984 = vmatpush.bf16.msra.mxu0 %v3182
    %4985 = vmatpush.bf16.msra.mxu0 %v3176
    %4986 = vmatpush.bf16.msra.mxu0 %v3170
    %4987 = vmatpush.bf16.msra.mxu0 %v3164
    %4988 = vmatmul.bf16.gmra.mxu0 %v4950
    %v4989 = vpop.f32.mrf.mxu0
    %v4990 = vadd.f32 0.0, %v4989
    %v4991 = vpop.f32.mrf.mxu0
    %v4992 = vadd.f32 0.0, %v4991
    %4993 = vdwg.mxu0
    %4994 = vmatpush.bf16.msra.mxu0 %v3254
    %4995 = vmatpush.bf16.msra.mxu0 %v3248
    %4996 = vmatpush.bf16.msra.mxu0 %v3242
    %4997 = vmatpush.bf16.msra.mxu0 %v3236
    %4998 = vmatpush.bf16.msra.mxu0 %v3230
    %4999 = vmatpush.bf16.msra.mxu0 %v3224
    %5000 = vmatpush.bf16.msra.mxu0 %v3218
    %5001 = vmatpush.bf16.msra.mxu0 %v3212
    %5002 = vmatmul.bf16.gmra.mxu0 %v4951
    %v5003 = vpop.f32.mrf.mxu0
    %v5004 = vadd.f32 %v4990, %v5003
    %v5005 = vpop.f32.mrf.mxu0
    %v5006 = vadd.f32 %v4992, %v5005
    %5007 = vdwg.mxu0
    %5008 = vmatpush.bf16.msra.mxu0 %v3207
    %5009 = vmatpush.bf16.msra.mxu0 %v3201
    %5010 = vmatpush.bf16.msra.mxu0 %v3195
    %5011 = vmatpush.bf16.msra.mxu0 %v3189
    %5012 = vmatpush.bf16.msra.mxu0 %v3183
    %5013 = vmatpush.bf16.msra.mxu0 %v3177
    %5014 = vmatpush.bf16.msra.mxu0 %v3171
    %5015 = vmatpush.bf16.msra.mxu0 %v3165
    %5016 = vmatmul.bf16.gmra.mxu0 %v4950
    %v5017 = vpop.f32.mrf.mxu0
    %v5018 = vadd.f32 0.0, %v5017
    %v5019 = vpop.f32.mrf.mxu0
    %v5020 = vadd.f32 0.0, %v5019
    %5021 = vdwg.mxu0
    %5022 = vmatpush.bf16.msra.mxu0 %v3255
    %5023 = vmatpush.bf16.msra.mxu0 %v3249
    %5024 = vmatpush.bf16.msra.mxu0 %v3243
    %5025 = vmatpush.bf16.msra.mxu0 %v3237
    %5026 = vmatpush.bf16.msra.mxu0 %v3231
    %5027 = vmatpush.bf16.msra.mxu0 %v3225
    %5028 = vmatpush.bf16.msra.mxu0 %v3219
    %5029 = vmatpush.bf16.msra.mxu0 %v3213
    %5030 = vmatmul.bf16.gmra.mxu0 %v4951
    %v5031 = vpop.f32.mrf.mxu0
    %v5032 = vadd.f32 %v5018, %v5031
    %v5033 = vpop.f32.mrf.mxu0
    %v5034 = vadd.f32 %v5020, %v5033
    %5035 = vdwg.mxu0
    %5036 = vmatpush.bf16.msra.mxu0 %v3208
    %5037 = vmatpush.bf16.msra.mxu0 %v3202
    %5038 = vmatpush.bf16.msra.mxu0 %v3196
    %5039 = vmatpush.bf16.msra.mxu0 %v3190
    %5040 = vmatpush.bf16.msra.mxu0 %v3184
    %5041 = vmatpush.bf16.msra.mxu0 %v3178
    %5042 = vmatpush.bf16.msra.mxu0 %v3172
    %5043 = vmatpush.bf16.msra.mxu0 %v3166
    %5044 = vmatmul.bf16.gmra.mxu0 %v4950
    %v5045 = vpop.f32.mrf.mxu0
    %v5046 = vadd.f32 0.0, %v5045
    %v5047 = vpop.f32.mrf.mxu0
    %v5048 = vadd.f32 0.0, %v5047
    %5049 = vdwg.mxu0
    %5050 = vmatpush.bf16.msra.mxu0 %v3256
    %5051 = vmatpush.bf16.msra.mxu0 %v3250
    %5052 = vmatpush.bf16.msra.mxu0 %v3244
    %5053 = vmatpush.bf16.msra.mxu0 %v3238
    %5054 = vmatpush.bf16.msra.mxu0 %v3232
    %5055 = vmatpush.bf16.msra.mxu0 %v3226
    %5056 = vmatpush.bf16.msra.mxu0 %v3220
    %5057 = vmatpush.bf16.msra.mxu0 %v3214
    %5058 = vmatmul.bf16.gmra.mxu0 %v4951
    %v5059 = vpop.f32.mrf.mxu0
    %v5060 = vadd.f32 %v5046, %v5059
    %v5061 = vpop.f32.mrf.mxu0
    %v5062 = vadd.f32 %v5048, %v5061
    %5063 = vdwg.mxu0
    %5064 = vmatpush.bf16.msra.mxu0 %v3209
    %5065 = vmatpush.bf16.msra.mxu0 %v3203
    %5066 = vmatpush.bf16.msra.mxu0 %v3197
    %5067 = vmatpush.bf16.msra.mxu0 %v3191
    %5068 = vmatpush.bf16.msra.mxu0 %v3185
    %5069 = vmatpush.bf16.msra.mxu0 %v3179
    %5070 = vmatpush.bf16.msra.mxu0 %v3173
    %5071 = vmatpush.bf16.msra.mxu0 %v3167
    %5072 = vmatmul.bf16.gmra.mxu0 %v4950
    %v5073 = vpop.f32.mrf.mxu0
    %v5074 = vadd.f32 0.0, %v5073
    %v5075 = vpop.f32.mrf.mxu0
    %v5076 = vadd.f32 0.0, %v5075
    %5077 = vdwg.mxu0
    %5078 = vmatpush.bf16.msra.mxu0 %v3257
    %5079 = vmatpush.bf16.msra.mxu0 %v3251
    %5080 = vmatpush.bf16.msra.mxu0 %v3245
    %5081 = vmatpush.bf16.msra.mxu0 %v3239
    %5082 = vmatpush.bf16.msra.mxu0 %v3233
    %5083 = vmatpush.bf16.msra.mxu0 %v3227
    %5084 = vmatpush.bf16.msra.mxu0 %v3221
    %5085 = vmatpush.bf16.msra.mxu0 %v3215
    %5086 = vmatmul.bf16.gmra.mxu0 %v4951
    %v5087 = vpop.f32.mrf.mxu0
    %v5088 = vadd.f32 %v5074, %v5087
    %v5089 = vpop.f32.mrf.mxu0
    %v5090 = vadd.f32 %v5076, %v5089
    %5091 = vdwg.mxu0
    %5092 = vmatpush.bf16.msra.mxu0 %v3210
    %5093 = vmatpush.bf16.msra.mxu0 %v3204
    %5094 = vmatpush.bf16.msra.mxu0 %v3198
    %5095 = vmatpush.bf16.msra.mxu0 %v3192
    %5096 = vmatpush.bf16.msra.mxu0 %v3186
    %5097 = vmatpush.bf16.msra.mxu0 %v3180
    %5098 = vmatpush.bf16.msra.mxu0 %v3174
    %5099 = vmatpush.bf16.msra.mxu0 %v3168
    %5100 = vmatmul.bf16.gmra.mxu0 %v4950
    %v5101 = vpop.f32.mrf.mxu0
    %v5102 = vadd.f32 0.0, %v5101
    %v5103 = vpop.f32.mrf.mxu0
    %v5104 = vadd.f32 0.0, %v5103
    %5105 = vdwg.mxu0
    %5106 = vmatpush.bf16.msra.mxu0 %v3258
    %5107 = vmatpush.bf16.msra.mxu0 %v3252
    %5108 = vmatpush.bf16.msra.mxu0 %v3246
    %5109 = vmatpush.bf16.msra.mxu0 %v3240
    %5110 = vmatpush.bf16.msra.mxu0 %v3234
    %5111 = vmatpush.bf16.msra.mxu0 %v3228
    %5112 = vmatpush.bf16.msra.mxu0 %v3222
    %5113 = vmatpush.bf16.msra.mxu0 %v3216
    %5114 = vmatmul.bf16.gmra.mxu0 %v4951
    %v5115 = vpop.f32.mrf.mxu0
    %v5116 = vadd.f32 %v5102, %v5115
    %v5117 = vpop.f32.mrf.mxu0
    %v5118 = vadd.f32 %v5104, %v5117
    %5119 = vdwg.mxu0
    %v5120 = vadd.f32 %v4938, %v4976
    %v5121 = vadd.f32 %v4939, %v5004
    %v5122 = vadd.f32 %v4940, %v5032
    %v5123 = vadd.f32 %v4941, %v5060
    %v5124 = vadd.f32 %v4944, %v4978
    %v5125 = vadd.f32 %v4945, %v5006
    %v5126 = vadd.f32 %v4946, %v5034
    %v5127 = vadd.f32 %v4947, %v5062
    %v5128 = vxor.u32 %v5120, 2147483648
    %v5129 = vxor.u32 %v5121, 2147483648
    %v5130 = vxor.u32 %v5122, 2147483648
    %v5131 = vxor.u32 %v5123, 2147483648
    %v5132 = vxor.u32 %v5124, 2147483648
    %v5133 = vxor.u32 %v5125, 2147483648
    %v5134 = vxor.u32 %v5126, 2147483648
    %v5135 = vxor.u32 %v5127, 2147483648
    %v5136 = vmul.f32 %v5128, 1.442695
    %v5137 = vpow.pop %v5136
    %v5138 = vmul.f32 %v5129, 1.442695
    %v5139 = vpow.pop %v5138
    %v5140 = vmul.f32 %v5130, 1.442695
    %v5141 = vpow.pop %v5140
    %v5142 = vmul.f32 %v5131, 1.442695
    %v5143 = vpow.pop %v5142
    %v5144 = vmul.f32 %v5132, 1.442695
    %v5145 = vpow.pop %v5144
    %v5146 = vmul.f32 %v5133, 1.442695
    %v5147 = vpow.pop %v5146
    %v5148 = vmul.f32 %v5134, 1.442695
    %v5149 = vpow.pop %v5148
    %v5150 = vmul.f32 %v5135, 1.442695
    %v5151 = vpow.pop %v5150
    %v5152 = vadd.f32 %v5137, 1.0
    %v5153 = vadd.f32 %v5139, 1.0
    %v5154 = vadd.f32 %v5141, 1.0
    %v5155 = vadd.f32 %v5143, 1.0
    %v5156 = vadd.f32 %v5145, 1.0
    %v5157 = vadd.f32 %v5147, 1.0
    %v5158 = vadd.f32 %v5149, 1.0
    %v5159 = vadd.f32 %v5151, 1.0
    %v5160 = vrcp.pop %v5152
    %v5161 = vmul.f32 %v5152, %v5160
    %v5162 = vsub.f32 1.0, %v5161
    %v5163 = vmul.f32 %v5160, %v5162
    %v5164 = vadd.f32 %v5160, %v5163
    %vm5165 = vweird.f32 %v5152
    %vm5166 = vweird.f32 %v5160
    %vm5167 = vmor %vm5165, %vm5166
    %v5168 = vsel %vm5167, %v5160, %v5164
    %v5169 = vand.u32 2147483647, %v5152
    %vm5170 = vcmp.eq.f32.partialorder %v5169, 8.507059e+37
    %v5171 = vand.u32 %v5152, 2147483648
    %v5172 = vor.u32 1.1754944e-38, %v5171
    %v5173 = vsel %vm5170, %v5172, %v5168
    %v5174 = vmul.f32 1.0, %v5173
    %v5175 = vrcp.pop %v5153
    %v5176 = vmul.f32 %v5153, %v5175
    %v5177 = vsub.f32 1.0, %v5176
    %v5178 = vmul.f32 %v5175, %v5177
    %v5179 = vadd.f32 %v5175, %v5178
    %vm5180 = vweird.f32 %v5153
    %vm5181 = vweird.f32 %v5175
    %vm5182 = vmor %vm5180, %vm5181
    %v5183 = vsel %vm5182, %v5175, %v5179
    %v5184 = vand.u32 2147483647, %v5153
    %vm5185 = vcmp.eq.f32.partialorder %v5184, 8.507059e+37
    %v5186 = vand.u32 %v5153, 2147483648
    %v5187 = vor.u32 1.1754944e-38, %v5186
    %v5188 = vsel %vm5185, %v5187, %v5183
    %v5189 = vmul.f32 1.0, %v5188
    %v5190 = vrcp.pop %v5154
    %v5191 = vmul.f32 %v5154, %v5190
    %v5192 = vsub.f32 1.0, %v5191
    %v5193 = vmul.f32 %v5190, %v5192
    %v5194 = vadd.f32 %v5190, %v5193
    %vm5195 = vweird.f32 %v5154
    %vm5196 = vweird.f32 %v5190
    %vm5197 = vmor %vm5195, %vm5196
    %v5198 = vsel %vm5197, %v5190, %v5194
    %v5199 = vand.u32 2147483647, %v5154
    %vm5200 = vcmp.eq.f32.partialorder %v5199, 8.507059e+37
    %v5201 = vand.u32 %v5154, 2147483648
    %v5202 = vor.u32 1.1754944e-38, %v5201
    %v5203 = vsel %vm5200, %v5202, %v5198
    %v5204 = vmul.f32 1.0, %v5203
    %v5205 = vrcp.pop %v5155
    %v5206 = vmul.f32 %v5155, %v5205
    %v5207 = vsub.f32 1.0, %v5206
    %v5208 = vmul.f32 %v5205, %v5207
    %v5209 = vadd.f32 %v5205, %v5208
    %vm5210 = vweird.f32 %v5155
    %vm5211 = vweird.f32 %v5205
    %vm5212 = vmor %vm5210, %vm5211
    %v5213 = vsel %vm5212, %v5205, %v5209
    %v5214 = vand.u32 2147483647, %v5155
    %vm5215 = vcmp.eq.f32.partialorder %v5214, 8.507059e+37
    %v5216 = vand.u32 %v5155, 2147483648
    %v5217 = vor.u32 1.1754944e-38, %v5216
    %v5218 = vsel %vm5215, %v5217, %v5213
    %v5219 = vmul.f32 1.0, %v5218
    %v5220 = vrcp.pop %v5156
    %v5221 = vmul.f32 %v5156, %v5220
    %v5222 = vsub.f32 1.0, %v5221
    %v5223 = vmul.f32 %v5220, %v5222
    %v5224 = vadd.f32 %v5220, %v5223
    %vm5225 = vweird.f32 %v5156
    %vm5226 = vweird.f32 %v5220
    %vm5227 = vmor %vm5225, %vm5226
    %v5228 = vsel %vm5227, %v5220, %v5224
    %v5229 = vand.u32 2147483647, %v5156
    %vm5230 = vcmp.eq.f32.partialorder %v5229, 8.507059e+37
    %v5231 = vand.u32 %v5156, 2147483648
    %v5232 = vor.u32 1.1754944e-38, %v5231
    %v5233 = vsel %vm5230, %v5232, %v5228
    %v5234 = vmul.f32 1.0, %v5233
    %v5235 = vrcp.pop %v5157
    %v5236 = vmul.f32 %v5157, %v5235
    %v5237 = vsub.f32 1.0, %v5236
    %v5238 = vmul.f32 %v5235, %v5237
    %v5239 = vadd.f32 %v5235, %v5238
    %vm5240 = vweird.f32 %v5157
    %vm5241 = vweird.f32 %v5235
    %vm5242 = vmor %vm5240, %vm5241
    %v5243 = vsel %vm5242, %v5235, %v5239
    %v5244 = vand.u32 2147483647, %v5157
    %vm5245 = vcmp.eq.f32.partialorder %v5244, 8.507059e+37
    %v5246 = vand.u32 %v5157, 2147483648
    %v5247 = vor.u32 1.1754944e-38, %v5246
    %v5248 = vsel %vm5245, %v5247, %v5243
    %v5249 = vmul.f32 1.0, %v5248
    %v5250 = vrcp.pop %v5158
    %v5251 = vmul.f32 %v5158, %v5250
    %v5252 = vsub.f32 1.0, %v5251
    %v5253 = vmul.f32 %v5250, %v5252
    %v5254 = vadd.f32 %v5250, %v5253
    %vm5255 = vweird.f32 %v5158
    %vm5256 = vweird.f32 %v5250
    %vm5257 = vmor %vm5255, %vm5256
    %v5258 = vsel %vm5257, %v5250, %v5254
    %v5259 = vand.u32 2147483647, %v5158
    %vm5260 = vcmp.eq.f32.partialorder %v5259, 8.507059e+37
    %v5261 = vand.u32 %v5158, 2147483648
    %v5262 = vor.u32 1.1754944e-38, %v5261
    %v5263 = vsel %vm5260, %v5262, %v5258
    %v5264 = vmul.f32 1.0, %v5263
    %v5265 = vrcp.pop %v5159
    %v5266 = vmul.f32 %v5159, %v5265
    %v5267 = vsub.f32 1.0, %v5266
    %v5268 = vmul.f32 %v5265, %v5267
    %v5269 = vadd.f32 %v5265, %v5268
    %vm5270 = vweird.f32 %v5159
    %vm5271 = vweird.f32 %v5265
    %vm5272 = vmor %vm5270, %vm5271
    %v5273 = vsel %vm5272, %v5265, %v5269
    %v5274 = vand.u32 2147483647, %v5159
    %vm5275 = vcmp.eq.f32.partialorder %v5274, 8.507059e+37
    %v5276 = vand.u32 %v5159, 2147483648
    %v5277 = vor.u32 1.1754944e-38, %v5276
    %v5278 = vsel %vm5275, %v5277, %v5273
    %v5279 = vmul.f32 1.0, %v5278
    %v5280 = vadd.f32 %v5088, %v3684
    %v5281 = vadd.f32 %v5116, %v3685
    %v5282 = vadd.f32 %v5090, %v3684
    %v5283 = vadd.f32 %v5118, %v3685
    %v5284 = vmul.f32 %v5174, %v5280
    %v5285 = vmul.f32 %v5189, %v5281
    %v5286 = vmul.f32 %v5234, %v5282
    %v5287 = vmul.f32 %v5249, %v5283
    %v5288 = vadd.f32 %v4942, %v5284
    %v5289 = vadd.f32 %v4943, %v5285
    %v5290 = vadd.f32 %v4948, %v5286
    %v5291 = vadd.f32 %v4949, %v5287
    %v5292 = vtanh.pop %v5288
    %v5293 = vtanh.pop %v5289
    %v5294 = vtanh.pop %v5290
    %v5295 = vtanh.pop %v5291
    %v5296 = vsub.f32 %v4906, %v5292
    %v5297 = vsub.f32 %v4907, %v5293
    %v5298 = vsub.f32 %v4908, %v5294
    %v5299 = vsub.f32 %v4909, %v5295
    %v5300 = vmul.f32 %v5204, %v5296
    %v5301 = vmul.f32 %v5219, %v5297
    %v5302 = vmul.f32 %v5264, %v5298
    %v5303 = vmul.f32 %v5279, %v5299
    %v5304 = vadd.f32 %v5292, %v5300
    %v5305 = vadd.f32 %v5293, %v5301
    %v5306 = vadd.f32 %v5294, %v5302
    %v5307 = vadd.f32 %v5295, %v5303
    %5308 = vst [vmem:[#allocation3 + $0x80] sm:$0xff] %v5304
    %5309 = vst [vmem:[#allocation3 + $0x88] sm:$0xff] %v5305
    %5310 = vst [vmem:[#allocation3 + $0x90] sm:$0xff] %v5306
    %5311 = vst [vmem:[#allocation3 + $0x98] sm:$0xff] %v5307
    %v5312 = vld [vmem:[%s1 + $0x50] sm:$0xff]
    %v5313 = vld [vmem:[%s1 + $0x58] sm:$0xff]
    %5315 = vset.pattern.permute.xlu0 0
    %5316 = vperm.xlu0 %5315, %v5312
    %v5317 = vpop.permute.xlu0 %5316
    %5320 = vset.pattern.permute.xlu0 0
    %5321 = vperm.xlu0 %5320, %v5313
    %v5322 = vpop.permute.xlu0 %5321
    %v5324 = vmul.f32 %v5317, %v2730
    %v5325 = vmul.f32 %v5317, %v2731
    %v5326 = vmul.f32 %v5317, %v2732
    %v5327 = vmul.f32 %v5317, %v2733
    %v5328 = vmul.f32 %v5317, %v2734
    %v5329 = vmul.f32 %v5317, %v2735
    %v5330 = vmul.f32 %v5322, %v2730
    %v5331 = vmul.f32 %v5322, %v2731
    %v5332 = vmul.f32 %v5322, %v2732
    %v5333 = vmul.f32 %v5322, %v2733
    %v5334 = vmul.f32 %v5322, %v2734
    %v5335 = vmul.f32 %v5322, %v2735
    %v5336 = vadd.f32 %v2654, %v5324
    %v5337 = vadd.f32 %v2668, %v5325
    %v5338 = vadd.f32 %v2682, %v5326
    %v5339 = vadd.f32 %v2696, %v5327
    %v5340 = vadd.f32 %v2710, %v5328
    %v5341 = vadd.f32 %v2724, %v5329
    %v5342 = vadd.f32 %v2656, %v5330
    %v5343 = vadd.f32 %v2670, %v5331
    %v5344 = vadd.f32 %v2684, %v5332
    %v5345 = vadd.f32 %v2698, %v5333
    %v5346 = vadd.f32 %v2712, %v5334
    %v5347 = vadd.f32 %v2726, %v5335
    %v5348 = vpack.c.bf16 %v5306, %v5304
    %v5349 = vpack.c.bf16 %v5307, %v5305
    %5350 = vmatpush.bf16.msra.mxu0 %v3205
    %5351 = vmatpush.bf16.msra.mxu0 %v3199
    %5352 = vmatpush.bf16.msra.mxu0 %v3193
    %5353 = vmatpush.bf16.msra.mxu0 %v3187
    %5354 = vmatpush.bf16.msra.mxu0 %v3181
    %5355 = vmatpush.bf16.msra.mxu0 %v3175
    %5356 = vmatpush.bf16.msra.mxu0 %v3169
    %5357 = vmatpush.bf16.msra.mxu0 %v3163
    %5358 = vmatmul.bf16.gmra.mxu0 %v5348
    %v5359 = vpop.f32.mrf.mxu0
    %v5360 = vadd.f32 0.0, %v5359
    %v5361 = vpop.f32.mrf.mxu0
    %v5362 = vadd.f32 0.0, %v5361
    %5363 = vdwg.mxu0
    %5364 = vmatpush.bf16.msra.mxu0 %v3253
    %5365 = vmatpush.bf16.msra.mxu0 %v3247
    %5366 = vmatpush.bf16.msra.mxu0 %v3241
    %5367 = vmatpush.bf16.msra.mxu0 %v3235
    %5368 = vmatpush.bf16.msra.mxu0 %v3229
    %5369 = vmatpush.bf16.msra.mxu0 %v3223
    %5370 = vmatpush.bf16.msra.mxu0 %v3217
    %5371 = vmatpush.bf16.msra.mxu0 %v3211
    %5372 = vmatmul.bf16.gmra.mxu0 %v5349
    %v5373 = vpop.f32.mrf.mxu0
    %v5374 = vadd.f32 %v5360, %v5373
    %v5375 = vpop.f32.mrf.mxu0
    %v5376 = vadd.f32 %v5362, %v5375
    %5377 = vdwg.mxu0
    %5378 = vmatpush.bf16.msra.mxu0 %v3206
    %5379 = vmatpush.bf16.msra.mxu0 %v3200
    %5380 = vmatpush.bf16.msra.mxu0 %v3194
    %5381 = vmatpush.bf16.msra.mxu0 %v3188
    %5382 = vmatpush.bf16.msra.mxu0 %v3182
    %5383 = vmatpush.bf16.msra.mxu0 %v3176
    %5384 = vmatpush.bf16.msra.mxu0 %v3170
    %5385 = vmatpush.bf16.msra.mxu0 %v3164
    %5386 = vmatmul.bf16.gmra.mxu0 %v5348
    %v5387 = vpop.f32.mrf.mxu0
    %v5388 = vadd.f32 0.0, %v5387
    %v5389 = vpop.f32.mrf.mxu0
    %v5390 = vadd.f32 0.0, %v5389
    %5391 = vdwg.mxu0
    %5392 = vmatpush.bf16.msra.mxu0 %v3254
    %5393 = vmatpush.bf16.msra.mxu0 %v3248
    %5394 = vmatpush.bf16.msra.mxu0 %v3242
    %5395 = vmatpush.bf16.msra.mxu0 %v3236
    %5396 = vmatpush.bf16.msra.mxu0 %v3230
    %5397 = vmatpush.bf16.msra.mxu0 %v3224
    %5398 = vmatpush.bf16.msra.mxu0 %v3218
    %5399 = vmatpush.bf16.msra.mxu0 %v3212
    %5400 = vmatmul.bf16.gmra.mxu0 %v5349
    %v5401 = vpop.f32.mrf.mxu0
    %v5402 = vadd.f32 %v5388, %v5401
    %v5403 = vpop.f32.mrf.mxu0
    %v5404 = vadd.f32 %v5390, %v5403
    %5405 = vdwg.mxu0
    %5406 = vmatpush.bf16.msra.mxu0 %v3207
    %5407 = vmatpush.bf16.msra.mxu0 %v3201
    %5408 = vmatpush.bf16.msra.mxu0 %v3195
    %5409 = vmatpush.bf16.msra.mxu0 %v3189
    %5410 = vmatpush.bf16.msra.mxu0 %v3183
    %5411 = vmatpush.bf16.msra.mxu0 %v3177
    %5412 = vmatpush.bf16.msra.mxu0 %v3171
    %5413 = vmatpush.bf16.msra.mxu0 %v3165
    %5414 = vmatmul.bf16.gmra.mxu0 %v5348
    %v5415 = vpop.f32.mrf.mxu0
    %v5416 = vadd.f32 0.0, %v5415
    %v5417 = vpop.f32.mrf.mxu0
    %v5418 = vadd.f32 0.0, %v5417
    %5419 = vdwg.mxu0
    %5420 = vmatpush.bf16.msra.mxu0 %v3255
    %5421 = vmatpush.bf16.msra.mxu0 %v3249
    %5422 = vmatpush.bf16.msra.mxu0 %v3243
    %5423 = vmatpush.bf16.msra.mxu0 %v3237
    %5424 = vmatpush.bf16.msra.mxu0 %v3231
    %5425 = vmatpush.bf16.msra.mxu0 %v3225
    %5426 = vmatpush.bf16.msra.mxu0 %v3219
    %5427 = vmatpush.bf16.msra.mxu0 %v3213
    %5428 = vmatmul.bf16.gmra.mxu0 %v5349
    %v5429 = vpop.f32.mrf.mxu0
    %v5430 = vadd.f32 %v5416, %v5429
    %v5431 = vpop.f32.mrf.mxu0
    %v5432 = vadd.f32 %v5418, %v5431
    %5433 = vdwg.mxu0
    %5434 = vmatpush.bf16.msra.mxu0 %v3208
    %5435 = vmatpush.bf16.msra.mxu0 %v3202
    %5436 = vmatpush.bf16.msra.mxu0 %v3196
    %5437 = vmatpush.bf16.msra.mxu0 %v3190
    %5438 = vmatpush.bf16.msra.mxu0 %v3184
    %5439 = vmatpush.bf16.msra.mxu0 %v3178
    %5440 = vmatpush.bf16.msra.mxu0 %v3172
    %5441 = vmatpush.bf16.msra.mxu0 %v3166
    %5442 = vmatmul.bf16.gmra.mxu0 %v5348
    %v5443 = vpop.f32.mrf.mxu0
    %v5444 = vadd.f32 0.0, %v5443
    %v5445 = vpop.f32.mrf.mxu0
    %v5446 = vadd.f32 0.0, %v5445
    %5447 = vdwg.mxu0
    %5448 = vmatpush.bf16.msra.mxu0 %v3256
    %5449 = vmatpush.bf16.msra.mxu0 %v3250
    %5450 = vmatpush.bf16.msra.mxu0 %v3244
    %5451 = vmatpush.bf16.msra.mxu0 %v3238
    %5452 = vmatpush.bf16.msra.mxu0 %v3232
    %5453 = vmatpush.bf16.msra.mxu0 %v3226
    %5454 = vmatpush.bf16.msra.mxu0 %v3220
    %5455 = vmatpush.bf16.msra.mxu0 %v3214
    %5456 = vmatmul.bf16.gmra.mxu0 %v5349
    %v5457 = vpop.f32.mrf.mxu0
    %v5458 = vadd.f32 %v5444, %v5457
    %v5459 = vpop.f32.mrf.mxu0
    %v5460 = vadd.f32 %v5446, %v5459
    %5461 = vdwg.mxu0
    %5462 = vmatpush.bf16.msra.mxu0 %v3209
    %5463 = vmatpush.bf16.msra.mxu0 %v3203
    %5464 = vmatpush.bf16.msra.mxu0 %v3197
    %5465 = vmatpush.bf16.msra.mxu0 %v3191
    %5466 = vmatpush.bf16.msra.mxu0 %v3185
    %5467 = vmatpush.bf16.msra.mxu0 %v3179
    %5468 = vmatpush.bf16.msra.mxu0 %v3173
    %5469 = vmatpush.bf16.msra.mxu0 %v3167
    %5470 = vmatmul.bf16.gmra.mxu0 %v5348
    %v5471 = vpop.f32.mrf.mxu0
    %v5472 = vadd.f32 0.0, %v5471
    %v5473 = vpop.f32.mrf.mxu0
    %v5474 = vadd.f32 0.0, %v5473
    %5475 = vdwg.mxu0
    %5476 = vmatpush.bf16.msra.mxu0 %v3257
    %5477 = vmatpush.bf16.msra.mxu0 %v3251
    %5478 = vmatpush.bf16.msra.mxu0 %v3245
    %5479 = vmatpush.bf16.msra.mxu0 %v3239
    %5480 = vmatpush.bf16.msra.mxu0 %v3233
    %5481 = vmatpush.bf16.msra.mxu0 %v3227
    %5482 = vmatpush.bf16.msra.mxu0 %v3221
    %5483 = vmatpush.bf16.msra.mxu0 %v3215
    %5484 = vmatmul.bf16.gmra.mxu0 %v5349
    %v5485 = vpop.f32.mrf.mxu0
    %v5486 = vadd.f32 %v5472, %v5485
    %v5487 = vpop.f32.mrf.mxu0
    %v5488 = vadd.f32 %v5474, %v5487
    %5489 = vdwg.mxu0
    %5490 = vmatpush.bf16.msra.mxu0 %v3210
    %5491 = vmatpush.bf16.msra.mxu0 %v3204
    %5492 = vmatpush.bf16.msra.mxu0 %v3198
    %5493 = vmatpush.bf16.msra.mxu0 %v3192
    %5494 = vmatpush.bf16.msra.mxu0 %v3186
    %5495 = vmatpush.bf16.msra.mxu0 %v3180
    %5496 = vmatpush.bf16.msra.mxu0 %v3174
    %5497 = vmatpush.bf16.msra.mxu0 %v3168
    %5498 = vmatmul.bf16.gmra.mxu0 %v5348
    %v5499 = vpop.f32.mrf.mxu0
    %v5500 = vadd.f32 0.0, %v5499
    %v5501 = vpop.f32.mrf.mxu0
    %v5502 = vadd.f32 0.0, %v5501
    %5503 = vdwg.mxu0
    %5504 = vmatpush.bf16.msra.mxu0 %v3258
    %5505 = vmatpush.bf16.msra.mxu0 %v3252
    %5506 = vmatpush.bf16.msra.mxu0 %v3246
    %5507 = vmatpush.bf16.msra.mxu0 %v3240
    %5508 = vmatpush.bf16.msra.mxu0 %v3234
    %5509 = vmatpush.bf16.msra.mxu0 %v3228
    %5510 = vmatpush.bf16.msra.mxu0 %v3222
    %5511 = vmatpush.bf16.msra.mxu0 %v3216
    %5512 = vmatmul.bf16.gmra.mxu0 %v5349
    %v5513 = vpop.f32.mrf.mxu0
    %v5514 = vadd.f32 %v5500, %v5513
    %v5515 = vpop.f32.mrf.mxu0
    %v5516 = vadd.f32 %v5502, %v5515
    %5517 = vdwg.mxu0
    %v5518 = vadd.f32 %v5336, %v5374
    %v5519 = vadd.f32 %v5337, %v5402
    %v5520 = vadd.f32 %v5338, %v5430
    %v5521 = vadd.f32 %v5339, %v5458
    %v5522 = vadd.f32 %v5342, %v5376
    %v5523 = vadd.f32 %v5343, %v5404
    %v5524 = vadd.f32 %v5344, %v5432
    %v5525 = vadd.f32 %v5345, %v5460
    %v5526 = vxor.u32 %v5518, 2147483648
    %v5527 = vxor.u32 %v5519, 2147483648
    %v5528 = vxor.u32 %v5520, 2147483648
    %v5529 = vxor.u32 %v5521, 2147483648
    %v5530 = vxor.u32 %v5522, 2147483648
    %v5531 = vxor.u32 %v5523, 2147483648
    %v5532 = vxor.u32 %v5524, 2147483648
    %v5533 = vxor.u32 %v5525, 2147483648
    %v5534 = vmul.f32 %v5526, 1.442695
    %v5535 = vpow.pop %v5534
    %v5536 = vmul.f32 %v5527, 1.442695
    %v5537 = vpow.pop %v5536
    %v5538 = vmul.f32 %v5528, 1.442695
    %v5539 = vpow.pop %v5538
    %v5540 = vmul.f32 %v5529, 1.442695
    %v5541 = vpow.pop %v5540
    %v5542 = vmul.f32 %v5530, 1.442695
    %v5543 = vpow.pop %v5542
    %v5544 = vmul.f32 %v5531, 1.442695
    %v5545 = vpow.pop %v5544
    %v5546 = vmul.f32 %v5532, 1.442695
    %v5547 = vpow.pop %v5546
    %v5548 = vmul.f32 %v5533, 1.442695
    %v5549 = vpow.pop %v5548
    %v5550 = vadd.f32 %v5535, 1.0
    %v5551 = vadd.f32 %v5537, 1.0
    %v5552 = vadd.f32 %v5539, 1.0
    %v5553 = vadd.f32 %v5541, 1.0
    %v5554 = vadd.f32 %v5543, 1.0
    %v5555 = vadd.f32 %v5545, 1.0
    %v5556 = vadd.f32 %v5547, 1.0
    %v5557 = vadd.f32 %v5549, 1.0
    %v5558 = vrcp.pop %v5550
    %v5559 = vmul.f32 %v5550, %v5558
    %v5560 = vsub.f32 1.0, %v5559
    %v5561 = vmul.f32 %v5558, %v5560
    %v5562 = vadd.f32 %v5558, %v5561
    %vm5563 = vweird.f32 %v5550
    %vm5564 = vweird.f32 %v5558
    %vm5565 = vmor %vm5563, %vm5564
    %v5566 = vsel %vm5565, %v5558, %v5562
    %v5567 = vand.u32 2147483647, %v5550
    %vm5568 = vcmp.eq.f32.partialorder %v5567, 8.507059e+37
    %v5569 = vand.u32 %v5550, 2147483648
    %v5570 = vor.u32 1.1754944e-38, %v5569
    %v5571 = vsel %vm5568, %v5570, %v5566
    %v5572 = vmul.f32 1.0, %v5571
    %v5573 = vrcp.pop %v5551
    %v5574 = vmul.f32 %v5551, %v5573
    %v5575 = vsub.f32 1.0, %v5574
    %v5576 = vmul.f32 %v5573, %v5575
    %v5577 = vadd.f32 %v5573, %v5576
    %vm5578 = vweird.f32 %v5551
    %vm5579 = vweird.f32 %v5573
    %vm5580 = vmor %vm5578, %vm5579
    %v5581 = vsel %vm5580, %v5573, %v5577
    %v5582 = vand.u32 2147483647, %v5551
    %vm5583 = vcmp.eq.f32.partialorder %v5582, 8.507059e+37
    %v5584 = vand.u32 %v5551, 2147483648
    %v5585 = vor.u32 1.1754944e-38, %v5584
    %v5586 = vsel %vm5583, %v5585, %v5581
    %v5587 = vmul.f32 1.0, %v5586
    %v5588 = vrcp.pop %v5552
    %v5589 = vmul.f32 %v5552, %v5588
    %v5590 = vsub.f32 1.0, %v5589
    %v5591 = vmul.f32 %v5588, %v5590
    %v5592 = vadd.f32 %v5588, %v5591
    %vm5593 = vweird.f32 %v5552
    %vm5594 = vweird.f32 %v5588
    %vm5595 = vmor %vm5593, %vm5594
    %v5596 = vsel %vm5595, %v5588, %v5592
    %v5597 = vand.u32 2147483647, %v5552
    %vm5598 = vcmp.eq.f32.partialorder %v5597, 8.507059e+37
    %v5599 = vand.u32 %v5552, 2147483648
    %v5600 = vor.u32 1.1754944e-38, %v5599
    %v5601 = vsel %vm5598, %v5600, %v5596
    %v5602 = vmul.f32 1.0, %v5601
    %v5603 = vrcp.pop %v5553
    %v5604 = vmul.f32 %v5553, %v5603
    %v5605 = vsub.f32 1.0, %v5604
    %v5606 = vmul.f32 %v5603, %v5605
    %v5607 = vadd.f32 %v5603, %v5606
    %vm5608 = vweird.f32 %v5553
    %vm5609 = vweird.f32 %v5603
    %vm5610 = vmor %vm5608, %vm5609
    %v5611 = vsel %vm5610, %v5603, %v5607
    %v5612 = vand.u32 2147483647, %v5553
    %vm5613 = vcmp.eq.f32.partialorder %v5612, 8.507059e+37
    %v5614 = vand.u32 %v5553, 2147483648
    %v5615 = vor.u32 1.1754944e-38, %v5614
    %v5616 = vsel %vm5613, %v5615, %v5611
    %v5617 = vmul.f32 1.0, %v5616
    %v5618 = vrcp.pop %v5554
    %v5619 = vmul.f32 %v5554, %v5618
    %v5620 = vsub.f32 1.0, %v5619
    %v5621 = vmul.f32 %v5618, %v5620
    %v5622 = vadd.f32 %v5618, %v5621
    %vm5623 = vweird.f32 %v5554
    %vm5624 = vweird.f32 %v5618
    %vm5625 = vmor %vm5623, %vm5624
    %v5626 = vsel %vm5625, %v5618, %v5622
    %v5627 = vand.u32 2147483647, %v5554
    %vm5628 = vcmp.eq.f32.partialorder %v5627, 8.507059e+37
    %v5629 = vand.u32 %v5554, 2147483648
    %v5630 = vor.u32 1.1754944e-38, %v5629
    %v5631 = vsel %vm5628, %v5630, %v5626
    %v5632 = vmul.f32 1.0, %v5631
    %v5633 = vrcp.pop %v5555
    %v5634 = vmul.f32 %v5555, %v5633
    %v5635 = vsub.f32 1.0, %v5634
    %v5636 = vmul.f32 %v5633, %v5635
    %v5637 = vadd.f32 %v5633, %v5636
    %vm5638 = vweird.f32 %v5555
    %vm5639 = vweird.f32 %v5633
    %vm5640 = vmor %vm5638, %vm5639
    %v5641 = vsel %vm5640, %v5633, %v5637
    %v5642 = vand.u32 2147483647, %v5555
    %vm5643 = vcmp.eq.f32.partialorder %v5642, 8.507059e+37
    %v5644 = vand.u32 %v5555, 2147483648
    %v5645 = vor.u32 1.1754944e-38, %v5644
    %v5646 = vsel %vm5643, %v5645, %v5641
    %v5647 = vmul.f32 1.0, %v5646
    %v5648 = vrcp.pop %v5556
    %v5649 = vmul.f32 %v5556, %v5648
    %v5650 = vsub.f32 1.0, %v5649
    %v5651 = vmul.f32 %v5648, %v5650
    %v5652 = vadd.f32 %v5648, %v5651
    %vm5653 = vweird.f32 %v5556
    %vm5654 = vweird.f32 %v5648
    %vm5655 = vmor %vm5653, %vm5654
    %v5656 = vsel %vm5655, %v5648, %v5652
    %v5657 = vand.u32 2147483647, %v5556
    %vm5658 = vcmp.eq.f32.partialorder %v5657, 8.507059e+37
    %v5659 = vand.u32 %v5556, 2147483648
    %v5660 = vor.u32 1.1754944e-38, %v5659
    %v5661 = vsel %vm5658, %v5660, %v5656
    %v5662 = vmul.f32 1.0, %v5661
    %v5663 = vrcp.pop %v5557
    %v5664 = vmul.f32 %v5557, %v5663
    %v5665 = vsub.f32 1.0, %v5664
    %v5666 = vmul.f32 %v5663, %v5665
    %v5667 = vadd.f32 %v5663, %v5666
    %vm5668 = vweird.f32 %v5557
    %vm5669 = vweird.f32 %v5663
    %vm5670 = vmor %vm5668, %vm5669
    %v5671 = vsel %vm5670, %v5663, %v5667
    %v5672 = vand.u32 2147483647, %v5557
    %vm5673 = vcmp.eq.f32.partialorder %v5672, 8.507059e+37
    %v5674 = vand.u32 %v5557, 2147483648
    %v5675 = vor.u32 1.1754944e-38, %v5674
    %v5676 = vsel %vm5673, %v5675, %v5671
    %v5677 = vmul.f32 1.0, %v5676
    %v5678 = vadd.f32 %v5486, %v3684
    %v5679 = vadd.f32 %v5514, %v3685
    %v5680 = vadd.f32 %v5488, %v3684
    %v5681 = vadd.f32 %v5516, %v3685
    %v5682 = vmul.f32 %v5572, %v5678
    %v5683 = vmul.f32 %v5587, %v5679
    %v5684 = vmul.f32 %v5632, %v5680
    %v5685 = vmul.f32 %v5647, %v5681
    %v5686 = vadd.f32 %v5340, %v5682
    %v5687 = vadd.f32 %v5341, %v5683
    %v5688 = vadd.f32 %v5346, %v5684
    %v5689 = vadd.f32 %v5347, %v5685
    %v5690 = vtanh.pop %v5686
    %v5691 = vtanh.pop %v5687
    %v5692 = vtanh.pop %v5688
    %v5693 = vtanh.pop %v5689
    %v5694 = vsub.f32 %v5304, %v5690
    %v5695 = vsub.f32 %v5305, %v5691
    %v5696 = vsub.f32 %v5306, %v5692
    %v5697 = vsub.f32 %v5307, %v5693
    %v5698 = vmul.f32 %v5602, %v5694
    %v5699 = vmul.f32 %v5617, %v5695
    %v5700 = vmul.f32 %v5662, %v5696
    %v5701 = vmul.f32 %v5677, %v5697
    %v5702 = vadd.f32 %v5690, %v5698
    %v5703 = vadd.f32 %v5691, %v5699
    %v5704 = vadd.f32 %v5692, %v5700
    %v5705 = vadd.f32 %v5693, %v5701
    %5706 = vst [vmem:[#allocation3 + $0xa0] sm:$0xff] %v5702
    %5707 = vst [vmem:[#allocation3 + $0xa8] sm:$0xff] %v5703
    %5708 = vst [vmem:[#allocation3 + $0xb0] sm:$0xff] %v5704
    %5709 = vst [vmem:[#allocation3 + $0xb8] sm:$0xff] %v5705
    %v5710 = vld [vmem:[%s1 + $0x60] sm:$0xff]
    %v5711 = vld [vmem:[%s1 + $0x68] sm:$0xff]
    %5713 = vset.pattern.permute.xlu0 0
    %5714 = vperm.xlu0 %5713, %v5710
    %v5715 = vpop.permute.xlu0 %5714
    %5718 = vset.pattern.permute.xlu0 0
    %5719 = vperm.xlu0 %5718, %v5711
    %v5720 = vpop.permute.xlu0 %5719
    %v5722 = vmul.f32 %v5715, %v2730
    %v5723 = vmul.f32 %v5715, %v2731
    %v5724 = vmul.f32 %v5715, %v2732
    %v5725 = vmul.f32 %v5715, %v2733
    %v5726 = vmul.f32 %v5715, %v2734
    %v5727 = vmul.f32 %v5715, %v2735
    %v5728 = vmul.f32 %v5720, %v2730
    %v5729 = vmul.f32 %v5720, %v2731
    %v5730 = vmul.f32 %v5720, %v2732
    %v5731 = vmul.f32 %v5720, %v2733
    %v5732 = vmul.f32 %v5720, %v2734
    %v5733 = vmul.f32 %v5720, %v2735
    %v5734 = vadd.f32 %v2654, %v5722
    %v5735 = vadd.f32 %v2668, %v5723
    %v5736 = vadd.f32 %v2682, %v5724
    %v5737 = vadd.f32 %v2696, %v5725
    %v5738 = vadd.f32 %v2710, %v5726
    %v5739 = vadd.f32 %v2724, %v5727
    %v5740 = vadd.f32 %v2656, %v5728
    %v5741 = vadd.f32 %v2670, %v5729
    %v5742 = vadd.f32 %v2684, %v5730
    %v5743 = vadd.f32 %v2698, %v5731
    %v5744 = vadd.f32 %v2712, %v5732
    %v5745 = vadd.f32 %v2726, %v5733
    %v5746 = vpack.c.bf16 %v5704, %v5702
    %v5747 = vpack.c.bf16 %v5705, %v5703
    %5748 = vmatpush.bf16.msra.mxu0 %v3205
    %5749 = vmatpush.bf16.msra.mxu0 %v3199
    %5750 = vmatpush.bf16.msra.mxu0 %v3193
    %5751 = vmatpush.bf16.msra.mxu0 %v3187
    %5752 = vmatpush.bf16.msra.mxu0 %v3181
    %5753 = vmatpush.bf16.msra.mxu0 %v3175
    %5754 = vmatpush.bf16.msra.mxu0 %v3169
    %5755 = vmatpush.bf16.msra.mxu0 %v3163
    %5756 = vmatmul.bf16.gmra.mxu0 %v5746
    %v5757 = vpop.f32.mrf.mxu0
    %v5758 = vadd.f32 0.0, %v5757
    %v5759 = vpop.f32.mrf.mxu0
    %v5760 = vadd.f32 0.0, %v5759
    %5761 = vdwg.mxu0
    %5762 = vmatpush.bf16.msra.mxu0 %v3253
    %5763 = vmatpush.bf16.msra.mxu0 %v3247
    %5764 = vmatpush.bf16.msra.mxu0 %v3241
    %5765 = vmatpush.bf16.msra.mxu0 %v3235
    %5766 = vmatpush.bf16.msra.mxu0 %v3229
    %5767 = vmatpush.bf16.msra.mxu0 %v3223
    %5768 = vmatpush.bf16.msra.mxu0 %v3217
    %5769 = vmatpush.bf16.msra.mxu0 %v3211
    %5770 = vmatmul.bf16.gmra.mxu0 %v5747
    %v5771 = vpop.f32.mrf.mxu0
    %v5772 = vadd.f32 %v5758, %v5771
    %v5773 = vpop.f32.mrf.mxu0
    %v5774 = vadd.f32 %v5760, %v5773
    %5775 = vdwg.mxu0
    %5776 = vmatpush.bf16.msra.mxu0 %v3206
    %5777 = vmatpush.bf16.msra.mxu0 %v3200
    %5778 = vmatpush.bf16.msra.mxu0 %v3194
    %5779 = vmatpush.bf16.msra.mxu0 %v3188
    %5780 = vmatpush.bf16.msra.mxu0 %v3182
    %5781 = vmatpush.bf16.msra.mxu0 %v3176
    %5782 = vmatpush.bf16.msra.mxu0 %v3170
    %5783 = vmatpush.bf16.msra.mxu0 %v3164
    %5784 = vmatmul.bf16.gmra.mxu0 %v5746
    %v5785 = vpop.f32.mrf.mxu0
    %v5786 = vadd.f32 0.0, %v5785
    %v5787 = vpop.f32.mrf.mxu0
    %v5788 = vadd.f32 0.0, %v5787
    %5789 = vdwg.mxu0
    %5790 = vmatpush.bf16.msra.mxu0 %v3254
    %5791 = vmatpush.bf16.msra.mxu0 %v3248
    %5792 = vmatpush.bf16.msra.mxu0 %v3242
    %5793 = vmatpush.bf16.msra.mxu0 %v3236
    %5794 = vmatpush.bf16.msra.mxu0 %v3230
    %5795 = vmatpush.bf16.msra.mxu0 %v3224
    %5796 = vmatpush.bf16.msra.mxu0 %v3218
    %5797 = vmatpush.bf16.msra.mxu0 %v3212
    %5798 = vmatmul.bf16.gmra.mxu0 %v5747
    %v5799 = vpop.f32.mrf.mxu0
    %v5800 = vadd.f32 %v5786, %v5799
    %v5801 = vpop.f32.mrf.mxu0
    %v5802 = vadd.f32 %v5788, %v5801
    %5803 = vdwg.mxu0
    %5804 = vmatpush.bf16.msra.mxu0 %v3207
    %5805 = vmatpush.bf16.msra.mxu0 %v3201
    %5806 = vmatpush.bf16.msra.mxu0 %v3195
    %5807 = vmatpush.bf16.msra.mxu0 %v3189
    %5808 = vmatpush.bf16.msra.mxu0 %v3183
    %5809 = vmatpush.bf16.msra.mxu0 %v3177
    %5810 = vmatpush.bf16.msra.mxu0 %v3171
    %5811 = vmatpush.bf16.msra.mxu0 %v3165
    %5812 = vmatmul.bf16.gmra.mxu0 %v5746
    %v5813 = vpop.f32.mrf.mxu0
    %v5814 = vadd.f32 0.0, %v5813
    %v5815 = vpop.f32.mrf.mxu0
    %v5816 = vadd.f32 0.0, %v5815
    %5817 = vdwg.mxu0
    %5818 = vmatpush.bf16.msra.mxu0 %v3255
    %5819 = vmatpush.bf16.msra.mxu0 %v3249
    %5820 = vmatpush.bf16.msra.mxu0 %v3243
    %5821 = vmatpush.bf16.msra.mxu0 %v3237
    %5822 = vmatpush.bf16.msra.mxu0 %v3231
    %5823 = vmatpush.bf16.msra.mxu0 %v3225
    %5824 = vmatpush.bf16.msra.mxu0 %v3219
    %5825 = vmatpush.bf16.msra.mxu0 %v3213
    %5826 = vmatmul.bf16.gmra.mxu0 %v5747
    %v5827 = vpop.f32.mrf.mxu0
    %v5828 = vadd.f32 %v5814, %v5827
    %v5829 = vpop.f32.mrf.mxu0
    %v5830 = vadd.f32 %v5816, %v5829
    %5831 = vdwg.mxu0
    %5832 = vmatpush.bf16.msra.mxu0 %v3208
    %5833 = vmatpush.bf16.msra.mxu0 %v3202
    %5834 = vmatpush.bf16.msra.mxu0 %v3196
    %5835 = vmatpush.bf16.msra.mxu0 %v3190
    %5836 = vmatpush.bf16.msra.mxu0 %v3184
    %5837 = vmatpush.bf16.msra.mxu0 %v3178
    %5838 = vmatpush.bf16.msra.mxu0 %v3172
    %5839 = vmatpush.bf16.msra.mxu0 %v3166
    %5840 = vmatmul.bf16.gmra.mxu0 %v5746
    %v5841 = vpop.f32.mrf.mxu0
    %v5842 = vadd.f32 0.0, %v5841
    %v5843 = vpop.f32.mrf.mxu0
    %v5844 = vadd.f32 0.0, %v5843
    %5845 = vdwg.mxu0
    %5846 = vmatpush.bf16.msra.mxu0 %v3256
    %5847 = vmatpush.bf16.msra.mxu0 %v3250
    %5848 = vmatpush.bf16.msra.mxu0 %v3244
    %5849 = vmatpush.bf16.msra.mxu0 %v3238
    %5850 = vmatpush.bf16.msra.mxu0 %v3232
    %5851 = vmatpush.bf16.msra.mxu0 %v3226
    %5852 = vmatpush.bf16.msra.mxu0 %v3220
    %5853 = vmatpush.bf16.msra.mxu0 %v3214
    %5854 = vmatmul.bf16.gmra.mxu0 %v5747
    %v5855 = vpop.f32.mrf.mxu0
    %v5856 = vadd.f32 %v5842, %v5855
    %v5857 = vpop.f32.mrf.mxu0
    %v5858 = vadd.f32 %v5844, %v5857
    %5859 = vdwg.mxu0
    %5860 = vmatpush.bf16.msra.mxu0 %v3209
    %5861 = vmatpush.bf16.msra.mxu0 %v3203
    %5862 = vmatpush.bf16.msra.mxu0 %v3197
    %5863 = vmatpush.bf16.msra.mxu0 %v3191
    %5864 = vmatpush.bf16.msra.mxu0 %v3185
    %5865 = vmatpush.bf16.msra.mxu0 %v3179
    %5866 = vmatpush.bf16.msra.mxu0 %v3173
    %5867 = vmatpush.bf16.msra.mxu0 %v3167
    %5868 = vmatmul.bf16.gmra.mxu0 %v5746
    %v5869 = vpop.f32.mrf.mxu0
    %v5870 = vadd.f32 0.0, %v5869
    %v5871 = vpop.f32.mrf.mxu0
    %v5872 = vadd.f32 0.0, %v5871
    %5873 = vdwg.mxu0
    %5874 = vmatpush.bf16.msra.mxu0 %v3257
    %5875 = vmatpush.bf16.msra.mxu0 %v3251
    %5876 = vmatpush.bf16.msra.mxu0 %v3245
    %5877 = vmatpush.bf16.msra.mxu0 %v3239
    %5878 = vmatpush.bf16.msra.mxu0 %v3233
    %5879 = vmatpush.bf16.msra.mxu0 %v3227
    %5880 = vmatpush.bf16.msra.mxu0 %v3221
    %5881 = vmatpush.bf16.msra.mxu0 %v3215
    %5882 = vmatmul.bf16.gmra.mxu0 %v5747
    %v5883 = vpop.f32.mrf.mxu0
    %v5884 = vadd.f32 %v5870, %v5883
    %v5885 = vpop.f32.mrf.mxu0
    %v5886 = vadd.f32 %v5872, %v5885
    %5887 = vdwg.mxu0
    %5888 = vmatpush.bf16.msra.mxu0 %v3210
    %5889 = vmatpush.bf16.msra.mxu0 %v3204
    %5890 = vmatpush.bf16.msra.mxu0 %v3198
    %5891 = vmatpush.bf16.msra.mxu0 %v3192
    %5892 = vmatpush.bf16.msra.mxu0 %v3186
    %5893 = vmatpush.bf16.msra.mxu0 %v3180
    %5894 = vmatpush.bf16.msra.mxu0 %v3174
    %5895 = vmatpush.bf16.msra.mxu0 %v3168
    %5896 = vmatmul.bf16.gmra.mxu0 %v5746
    %v5897 = vpop.f32.mrf.mxu0
    %v5898 = vadd.f32 0.0, %v5897
    %v5899 = vpop.f32.mrf.mxu0
    %v5900 = vadd.f32 0.0, %v5899
    %5901 = vdwg.mxu0
    %5902 = vmatpush.bf16.msra.mxu0 %v3258
    %5903 = vmatpush.bf16.msra.mxu0 %v3252
    %5904 = vmatpush.bf16.msra.mxu0 %v3246
    %5905 = vmatpush.bf16.msra.mxu0 %v3240
    %5906 = vmatpush.bf16.msra.mxu0 %v3234
    %5907 = vmatpush.bf16.msra.mxu0 %v3228
    %5908 = vmatpush.bf16.msra.mxu0 %v3222
    %5909 = vmatpush.bf16.msra.mxu0 %v3216
    %5910 = vmatmul.bf16.gmra.mxu0 %v5747
    %v5911 = vpop.f32.mrf.mxu0
    %v5912 = vadd.f32 %v5898, %v5911
    %v5913 = vpop.f32.mrf.mxu0
    %v5914 = vadd.f32 %v5900, %v5913
    %5915 = vdwg.mxu0
    %v5916 = vadd.f32 %v5734, %v5772
    %v5917 = vadd.f32 %v5735, %v5800
    %v5918 = vadd.f32 %v5736, %v5828
    %v5919 = vadd.f32 %v5737, %v5856
    %v5920 = vadd.f32 %v5740, %v5774
    %v5921 = vadd.f32 %v5741, %v5802
    %v5922 = vadd.f32 %v5742, %v5830
    %v5923 = vadd.f32 %v5743, %v5858
    %v5924 = vxor.u32 %v5916, 2147483648
    %v5925 = vxor.u32 %v5917, 2147483648
    %v5926 = vxor.u32 %v5918, 2147483648
    %v5927 = vxor.u32 %v5919, 2147483648
    %v5928 = vxor.u32 %v5920, 2147483648
    %v5929 = vxor.u32 %v5921, 2147483648
    %v5930 = vxor.u32 %v5922, 2147483648
    %v5931 = vxor.u32 %v5923, 2147483648
    %v5932 = vmul.f32 %v5924, 1.442695
    %v5933 = vpow.pop %v5932
    %v5934 = vmul.f32 %v5925, 1.442695
    %v5935 = vpow.pop %v5934
    %v5936 = vmul.f32 %v5926, 1.442695
    %v5937 = vpow.pop %v5936
    %v5938 = vmul.f32 %v5927, 1.442695
    %v5939 = vpow.pop %v5938
    %v5940 = vmul.f32 %v5928, 1.442695
    %v5941 = vpow.pop %v5940
    %v5942 = vmul.f32 %v5929, 1.442695
    %v5943 = vpow.pop %v5942
    %v5944 = vmul.f32 %v5930, 1.442695
    %v5945 = vpow.pop %v5944
    %v5946 = vmul.f32 %v5931, 1.442695
    %v5947 = vpow.pop %v5946
    %v5948 = vadd.f32 %v5933, 1.0
    %v5949 = vadd.f32 %v5935, 1.0
    %v5950 = vadd.f32 %v5937, 1.0
    %v5951 = vadd.f32 %v5939, 1.0
    %v5952 = vadd.f32 %v5941, 1.0
    %v5953 = vadd.f32 %v5943, 1.0
    %v5954 = vadd.f32 %v5945, 1.0
    %v5955 = vadd.f32 %v5947, 1.0
    %v5956 = vrcp.pop %v5948
    %v5957 = vmul.f32 %v5948, %v5956
    %v5958 = vsub.f32 1.0, %v5957
    %v5959 = vmul.f32 %v5956, %v5958
    %v5960 = vadd.f32 %v5956, %v5959
    %vm5961 = vweird.f32 %v5948
    %vm5962 = vweird.f32 %v5956
    %vm5963 = vmor %vm5961, %vm5962
    %v5964 = vsel %vm5963, %v5956, %v5960
    %v5965 = vand.u32 2147483647, %v5948
    %vm5966 = vcmp.eq.f32.partialorder %v5965, 8.507059e+37
    %v5967 = vand.u32 %v5948, 2147483648
    %v5968 = vor.u32 1.1754944e-38, %v5967
    %v5969 = vsel %vm5966, %v5968, %v5964
    %v5970 = vmul.f32 1.0, %v5969
    %v5971 = vrcp.pop %v5949
    %v5972 = vmul.f32 %v5949, %v5971
    %v5973 = vsub.f32 1.0, %v5972
    %v5974 = vmul.f32 %v5971, %v5973
    %v5975 = vadd.f32 %v5971, %v5974
    %vm5976 = vweird.f32 %v5949
    %vm5977 = vweird.f32 %v5971
    %vm5978 = vmor %vm5976, %vm5977
    %v5979 = vsel %vm5978, %v5971, %v5975
    %v5980 = vand.u32 2147483647, %v5949
    %vm5981 = vcmp.eq.f32.partialorder %v5980, 8.507059e+37
    %v5982 = vand.u32 %v5949, 2147483648
    %v5983 = vor.u32 1.1754944e-38, %v5982
    %v5984 = vsel %vm5981, %v5983, %v5979
    %v5985 = vmul.f32 1.0, %v5984
    %v5986 = vrcp.pop %v5950
    %v5987 = vmul.f32 %v5950, %v5986
    %v5988 = vsub.f32 1.0, %v5987
    %v5989 = vmul.f32 %v5986, %v5988
    %v5990 = vadd.f32 %v5986, %v5989
    %vm5991 = vweird.f32 %v5950
    %vm5992 = vweird.f32 %v5986
    %vm5993 = vmor %vm5991, %vm5992
    %v5994 = vsel %vm5993, %v5986, %v5990
    %v5995 = vand.u32 2147483647, %v5950
    %vm5996 = vcmp.eq.f32.partialorder %v5995, 8.507059e+37
    %v5997 = vand.u32 %v5950, 2147483648
    %v5998 = vor.u32 1.1754944e-38, %v5997
    %v5999 = vsel %vm5996, %v5998, %v5994
    %v6000 = vmul.f32 1.0, %v5999
    %v6001 = vrcp.pop %v5951
    %v6002 = vmul.f32 %v5951, %v6001
    %v6003 = vsub.f32 1.0, %v6002
    %v6004 = vmul.f32 %v6001, %v6003
    %v6005 = vadd.f32 %v6001, %v6004
    %vm6006 = vweird.f32 %v5951
    %vm6007 = vweird.f32 %v6001
    %vm6008 = vmor %vm6006, %vm6007
    %v6009 = vsel %vm6008, %v6001, %v6005
    %v6010 = vand.u32 2147483647, %v5951
    %vm6011 = vcmp.eq.f32.partialorder %v6010, 8.507059e+37
    %v6012 = vand.u32 %v5951, 2147483648
    %v6013 = vor.u32 1.1754944e-38, %v6012
    %v6014 = vsel %vm6011, %v6013, %v6009
    %v6015 = vmul.f32 1.0, %v6014
    %v6016 = vrcp.pop %v5952
    %v6017 = vmul.f32 %v5952, %v6016
    %v6018 = vsub.f32 1.0, %v6017
    %v6019 = vmul.f32 %v6016, %v6018
    %v6020 = vadd.f32 %v6016, %v6019
    %vm6021 = vweird.f32 %v5952
    %vm6022 = vweird.f32 %v6016
    %vm6023 = vmor %vm6021, %vm6022
    %v6024 = vsel %vm6023, %v6016, %v6020
    %v6025 = vand.u32 2147483647, %v5952
    %vm6026 = vcmp.eq.f32.partialorder %v6025, 8.507059e+37
    %v6027 = vand.u32 %v5952, 2147483648
    %v6028 = vor.u32 1.1754944e-38, %v6027
    %v6029 = vsel %vm6026, %v6028, %v6024
    %v6030 = vmul.f32 1.0, %v6029
    %v6031 = vrcp.pop %v5953
    %v6032 = vmul.f32 %v5953, %v6031
    %v6033 = vsub.f32 1.0, %v6032
    %v6034 = vmul.f32 %v6031, %v6033
    %v6035 = vadd.f32 %v6031, %v6034
    %vm6036 = vweird.f32 %v5953
    %vm6037 = vweird.f32 %v6031
    %vm6038 = vmor %vm6036, %vm6037
    %v6039 = vsel %vm6038, %v6031, %v6035
    %v6040 = vand.u32 2147483647, %v5953
    %vm6041 = vcmp.eq.f32.partialorder %v6040, 8.507059e+37
    %v6042 = vand.u32 %v5953, 2147483648
    %v6043 = vor.u32 1.1754944e-38, %v6042
    %v6044 = vsel %vm6041, %v6043, %v6039
    %v6045 = vmul.f32 1.0, %v6044
    %v6046 = vrcp.pop %v5954
    %v6047 = vmul.f32 %v5954, %v6046
    %v6048 = vsub.f32 1.0, %v6047
    %v6049 = vmul.f32 %v6046, %v6048
    %v6050 = vadd.f32 %v6046, %v6049
    %vm6051 = vweird.f32 %v5954
    %vm6052 = vweird.f32 %v6046
    %vm6053 = vmor %vm6051, %vm6052
    %v6054 = vsel %vm6053, %v6046, %v6050
    %v6055 = vand.u32 2147483647, %v5954
    %vm6056 = vcmp.eq.f32.partialorder %v6055, 8.507059e+37
    %v6057 = vand.u32 %v5954, 2147483648
    %v6058 = vor.u32 1.1754944e-38, %v6057
    %v6059 = vsel %vm6056, %v6058, %v6054
    %v6060 = vmul.f32 1.0, %v6059
    %v6061 = vrcp.pop %v5955
    %v6062 = vmul.f32 %v5955, %v6061
    %v6063 = vsub.f32 1.0, %v6062
    %v6064 = vmul.f32 %v6061, %v6063
    %v6065 = vadd.f32 %v6061, %v6064
    %vm6066 = vweird.f32 %v5955
    %vm6067 = vweird.f32 %v6061
    %vm6068 = vmor %vm6066, %vm6067
    %v6069 = vsel %vm6068, %v6061, %v6065
    %v6070 = vand.u32 2147483647, %v5955
    %vm6071 = vcmp.eq.f32.partialorder %v6070, 8.507059e+37
    %v6072 = vand.u32 %v5955, 2147483648
    %v6073 = vor.u32 1.1754944e-38, %v6072
    %v6074 = vsel %vm6071, %v6073, %v6069
    %v6075 = vmul.f32 1.0, %v6074
    %v6076 = vadd.f32 %v5884, %v3684
    %v6077 = vadd.f32 %v5912, %v3685
    %v6078 = vadd.f32 %v5886, %v3684
    %v6079 = vadd.f32 %v5914, %v3685
    %v6080 = vmul.f32 %v5970, %v6076
    %v6081 = vmul.f32 %v5985, %v6077
    %v6082 = vmul.f32 %v6030, %v6078
    %v6083 = vmul.f32 %v6045, %v6079
    %v6084 = vadd.f32 %v5738, %v6080
    %v6085 = vadd.f32 %v5739, %v6081
    %v6086 = vadd.f32 %v5744, %v6082
    %v6087 = vadd.f32 %v5745, %v6083
    %v6088 = vtanh.pop %v6084
    %v6089 = vtanh.pop %v6085
    %v6090 = vtanh.pop %v6086
    %v6091 = vtanh.pop %v6087
    %v6092 = vsub.f32 %v5702, %v6088
    %v6093 = vsub.f32 %v5703, %v6089
    %v6094 = vsub.f32 %v5704, %v6090
    %v6095 = vsub.f32 %v5705, %v6091
    %v6096 = vmul.f32 %v6000, %v6092
    %v6097 = vmul.f32 %v6015, %v6093
    %v6098 = vmul.f32 %v6060, %v6094
    %v6099 = vmul.f32 %v6075, %v6095
    %v6100 = vadd.f32 %v6088, %v6096
    %v6101 = vadd.f32 %v6089, %v6097
    %v6102 = vadd.f32 %v6090, %v6098
    %v6103 = vadd.f32 %v6091, %v6099
    %6104 = vst [vmem:[#allocation3 + $0xc0] sm:$0xff] %v6100
    %6105 = vst [vmem:[#allocation3 + $0xc8] sm:$0xff] %v6101
    %6106 = vst [vmem:[#allocation3 + $0xd0] sm:$0xff] %v6102
    %6107 = vst [vmem:[#allocation3 + $0xd8] sm:$0xff] %v6103
    %v6108 = vld [vmem:[%s1 + $0x70] sm:$0xff]
    %v6109 = vld [vmem:[%s1 + $0x78] sm:$0xff]
    %6111 = vset.pattern.permute.xlu0 0
    %6112 = vperm.xlu0 %6111, %v6108
    %v6113 = vpop.permute.xlu0 %6112
    %6116 = vset.pattern.permute.xlu0 0
    %6117 = vperm.xlu0 %6116, %v6109
    %v6118 = vpop.permute.xlu0 %6117
    %v6120 = vmul.f32 %v6113, %v2730
    %v6121 = vmul.f32 %v6113, %v2731
    %v6122 = vmul.f32 %v6113, %v2732
    %v6123 = vmul.f32 %v6113, %v2733
    %v6124 = vmul.f32 %v6113, %v2734
    %v6125 = vmul.f32 %v6113, %v2735
    %v6126 = vmul.f32 %v6118, %v2730
    %v6127 = vmul.f32 %v6118, %v2731
    %v6128 = vmul.f32 %v6118, %v2732
    %v6129 = vmul.f32 %v6118, %v2733
    %v6130 = vmul.f32 %v6118, %v2734
    %v6131 = vmul.f32 %v6118, %v2735
    %v6132 = vadd.f32 %v2654, %v6120
    %v6133 = vadd.f32 %v2668, %v6121
    %v6134 = vadd.f32 %v2682, %v6122
    %v6135 = vadd.f32 %v2696, %v6123
    %v6136 = vadd.f32 %v2710, %v6124
    %v6137 = vadd.f32 %v2724, %v6125
    %v6138 = vadd.f32 %v2656, %v6126
    %v6139 = vadd.f32 %v2670, %v6127
    %v6140 = vadd.f32 %v2684, %v6128
    %v6141 = vadd.f32 %v2698, %v6129
    %v6142 = vadd.f32 %v2712, %v6130
    %v6143 = vadd.f32 %v2726, %v6131
    %v6144 = vpack.c.bf16 %v6102, %v6100
    %v6145 = vpack.c.bf16 %v6103, %v6101
    %6146 = vmatpush.bf16.msra.mxu0 %v3205
    %6147 = vmatpush.bf16.msra.mxu0 %v3199
    %6148 = vmatpush.bf16.msra.mxu0 %v3193
    %6149 = vmatpush.bf16.msra.mxu0 %v3187
    %6150 = vmatpush.bf16.msra.mxu0 %v3181
    %6151 = vmatpush.bf16.msra.mxu0 %v3175
    %6152 = vmatpush.bf16.msra.mxu0 %v3169
    %6153 = vmatpush.bf16.msra.mxu0 %v3163
    %6154 = vmatmul.bf16.gmra.mxu0 %v6144
    %v6155 = vpop.f32.mrf.mxu0
    %v6156 = vadd.f32 0.0, %v6155
    %v6157 = vpop.f32.mrf.mxu0
    %v6158 = vadd.f32 0.0, %v6157
    %6159 = vdwg.mxu0
    %6160 = vmatpush.bf16.msra.mxu0 %v3253
    %6161 = vmatpush.bf16.msra.mxu0 %v3247
    %6162 = vmatpush.bf16.msra.mxu0 %v3241
    %6163 = vmatpush.bf16.msra.mxu0 %v3235
    %6164 = vmatpush.bf16.msra.mxu0 %v3229
    %6165 = vmatpush.bf16.msra.mxu0 %v3223
    %6166 = vmatpush.bf16.msra.mxu0 %v3217
    %6167 = vmatpush.bf16.msra.mxu0 %v3211
    %6168 = vmatmul.bf16.gmra.mxu0 %v6145
    %v6169 = vpop.f32.mrf.mxu0
    %v6170 = vadd.f32 %v6156, %v6169
    %v6171 = vpop.f32.mrf.mxu0
    %v6172 = vadd.f32 %v6158, %v6171
    %6173 = vdwg.mxu0
    %6174 = vmatpush.bf16.msra.mxu0 %v3206
    %6175 = vmatpush.bf16.msra.mxu0 %v3200
    %6176 = vmatpush.bf16.msra.mxu0 %v3194
    %6177 = vmatpush.bf16.msra.mxu0 %v3188
    %6178 = vmatpush.bf16.msra.mxu0 %v3182
    %6179 = vmatpush.bf16.msra.mxu0 %v3176
    %6180 = vmatpush.bf16.msra.mxu0 %v3170
    %6181 = vmatpush.bf16.msra.mxu0 %v3164
    %6182 = vmatmul.bf16.gmra.mxu0 %v6144
    %v6183 = vpop.f32.mrf.mxu0
    %v6184 = vadd.f32 0.0, %v6183
    %v6185 = vpop.f32.mrf.mxu0
    %v6186 = vadd.f32 0.0, %v6185
    %6187 = vdwg.mxu0
    %6188 = vmatpush.bf16.msra.mxu0 %v3254
    %6189 = vmatpush.bf16.msra.mxu0 %v3248
    %6190 = vmatpush.bf16.msra.mxu0 %v3242
    %6191 = vmatpush.bf16.msra.mxu0 %v3236
    %6192 = vmatpush.bf16.msra.mxu0 %v3230
    %6193 = vmatpush.bf16.msra.mxu0 %v3224
    %6194 = vmatpush.bf16.msra.mxu0 %v3218
    %6195 = vmatpush.bf16.msra.mxu0 %v3212
    %6196 = vmatmul.bf16.gmra.mxu0 %v6145
    %v6197 = vpop.f32.mrf.mxu0
    %v6198 = vadd.f32 %v6184, %v6197
    %v6199 = vpop.f32.mrf.mxu0
    %v6200 = vadd.f32 %v6186, %v6199
    %6201 = vdwg.mxu0
    %6202 = vmatpush.bf16.msra.mxu0 %v3207
    %6203 = vmatpush.bf16.msra.mxu0 %v3201
    %6204 = vmatpush.bf16.msra.mxu0 %v3195
    %6205 = vmatpush.bf16.msra.mxu0 %v3189
    %6206 = vmatpush.bf16.msra.mxu0 %v3183
    %6207 = vmatpush.bf16.msra.mxu0 %v3177
    %6208 = vmatpush.bf16.msra.mxu0 %v3171
    %6209 = vmatpush.bf16.msra.mxu0 %v3165
    %6210 = vmatmul.bf16.gmra.mxu0 %v6144
    %v6211 = vpop.f32.mrf.mxu0
    %v6212 = vadd.f32 0.0, %v6211
    %v6213 = vpop.f32.mrf.mxu0
    %v6214 = vadd.f32 0.0, %v6213
    %6215 = vdwg.mxu0
    %6216 = vmatpush.bf16.msra.mxu0 %v3255
    %6217 = vmatpush.bf16.msra.mxu0 %v3249
    %6218 = vmatpush.bf16.msra.mxu0 %v3243
    %6219 = vmatpush.bf16.msra.mxu0 %v3237
    %6220 = vmatpush.bf16.msra.mxu0 %v3231
    %6221 = vmatpush.bf16.msra.mxu0 %v3225
    %6222 = vmatpush.bf16.msra.mxu0 %v3219
    %6223 = vmatpush.bf16.msra.mxu0 %v3213
    %6224 = vmatmul.bf16.gmra.mxu0 %v6145
    %v6225 = vpop.f32.mrf.mxu0
    %v6226 = vadd.f32 %v6212, %v6225
    %v6227 = vpop.f32.mrf.mxu0
    %v6228 = vadd.f32 %v6214, %v6227
    %6229 = vdwg.mxu0
    %6230 = vmatpush.bf16.msra.mxu0 %v3208
    %6231 = vmatpush.bf16.msra.mxu0 %v3202
    %6232 = vmatpush.bf16.msra.mxu0 %v3196
    %6233 = vmatpush.bf16.msra.mxu0 %v3190
    %6234 = vmatpush.bf16.msra.mxu0 %v3184
    %6235 = vmatpush.bf16.msra.mxu0 %v3178
    %6236 = vmatpush.bf16.msra.mxu0 %v3172
    %6237 = vmatpush.bf16.msra.mxu0 %v3166
    %6238 = vmatmul.bf16.gmra.mxu0 %v6144
    %v6239 = vpop.f32.mrf.mxu0
    %v6240 = vadd.f32 0.0, %v6239
    %v6241 = vpop.f32.mrf.mxu0
    %v6242 = vadd.f32 0.0, %v6241
    %6243 = vdwg.mxu0
    %6244 = vmatpush.bf16.msra.mxu0 %v3256
    %6245 = vmatpush.bf16.msra.mxu0 %v3250
    %6246 = vmatpush.bf16.msra.mxu0 %v3244
    %6247 = vmatpush.bf16.msra.mxu0 %v3238
    %6248 = vmatpush.bf16.msra.mxu0 %v3232
    %6249 = vmatpush.bf16.msra.mxu0 %v3226
    %6250 = vmatpush.bf16.msra.mxu0 %v3220
    %6251 = vmatpush.bf16.msra.mxu0 %v3214
    %6252 = vmatmul.bf16.gmra.mxu0 %v6145
    %v6253 = vpop.f32.mrf.mxu0
    %v6254 = vadd.f32 %v6240, %v6253
    %v6255 = vpop.f32.mrf.mxu0
    %v6256 = vadd.f32 %v6242, %v6255
    %6257 = vdwg.mxu0
    %6258 = vmatpush.bf16.msra.mxu0 %v3209
    %6259 = vmatpush.bf16.msra.mxu0 %v3203
    %6260 = vmatpush.bf16.msra.mxu0 %v3197
    %6261 = vmatpush.bf16.msra.mxu0 %v3191
    %6262 = vmatpush.bf16.msra.mxu0 %v3185
    %6263 = vmatpush.bf16.msra.mxu0 %v3179
    %6264 = vmatpush.bf16.msra.mxu0 %v3173
    %6265 = vmatpush.bf16.msra.mxu0 %v3167
    %6266 = vmatmul.bf16.gmra.mxu0 %v6144
    %v6267 = vpop.f32.mrf.mxu0
    %v6268 = vadd.f32 0.0, %v6267
    %v6269 = vpop.f32.mrf.mxu0
    %v6270 = vadd.f32 0.0, %v6269
    %6271 = vdwg.mxu0
    %6272 = vmatpush.bf16.msra.mxu0 %v3257
    %6273 = vmatpush.bf16.msra.mxu0 %v3251
    %6274 = vmatpush.bf16.msra.mxu0 %v3245
    %6275 = vmatpush.bf16.msra.mxu0 %v3239
    %6276 = vmatpush.bf16.msra.mxu0 %v3233
    %6277 = vmatpush.bf16.msra.mxu0 %v3227
    %6278 = vmatpush.bf16.msra.mxu0 %v3221
    %6279 = vmatpush.bf16.msra.mxu0 %v3215
    %6280 = vmatmul.bf16.gmra.mxu0 %v6145
    %v6281 = vpop.f32.mrf.mxu0
    %v6282 = vadd.f32 %v6268, %v6281
    %v6283 = vpop.f32.mrf.mxu0
    %v6284 = vadd.f32 %v6270, %v6283
    %6285 = vdwg.mxu0
    %6286 = vmatpush.bf16.msra.mxu0 %v3210
    %6287 = vmatpush.bf16.msra.mxu0 %v3204
    %6288 = vmatpush.bf16.msra.mxu0 %v3198
    %6289 = vmatpush.bf16.msra.mxu0 %v3192
    %6290 = vmatpush.bf16.msra.mxu0 %v3186
    %6291 = vmatpush.bf16.msra.mxu0 %v3180
    %6292 = vmatpush.bf16.msra.mxu0 %v3174
    %6293 = vmatpush.bf16.msra.mxu0 %v3168
    %6294 = vmatmul.bf16.gmra.mxu0 %v6144
    %v6295 = vpop.f32.mrf.mxu0
    %v6296 = vadd.f32 0.0, %v6295
    %v6297 = vpop.f32.mrf.mxu0
    %v6298 = vadd.f32 0.0, %v6297
    %6299 = vdwg.mxu0
    %6300 = vmatpush.bf16.msra.mxu0 %v3258
    %6301 = vmatpush.bf16.msra.mxu0 %v3252
    %6302 = vmatpush.bf16.msra.mxu0 %v3246
    %6303 = vmatpush.bf16.msra.mxu0 %v3240
    %6304 = vmatpush.bf16.msra.mxu0 %v3234
    %6305 = vmatpush.bf16.msra.mxu0 %v3228
    %6306 = vmatpush.bf16.msra.mxu0 %v3222
    %6307 = vmatpush.bf16.msra.mxu0 %v3216
    %6308 = vmatmul.bf16.gmra.mxu0 %v6145
    %v6309 = vpop.f32.mrf.mxu0
    %v6310 = vadd.f32 %v6296, %v6309
    %v6311 = vpop.f32.mrf.mxu0
    %v6312 = vadd.f32 %v6298, %v6311
    %6313 = vdwg.mxu0
    %v6314 = vadd.f32 %v6132, %v6170
    %v6315 = vadd.f32 %v6133, %v6198
    %v6316 = vadd.f32 %v6134, %v6226
    %v6317 = vadd.f32 %v6135, %v6254
    %v6318 = vadd.f32 %v6138, %v6172
    %v6319 = vadd.f32 %v6139, %v6200
    %v6320 = vadd.f32 %v6140, %v6228
    %v6321 = vadd.f32 %v6141, %v6256
    %v6322 = vxor.u32 %v6314, 2147483648
    %v6323 = vxor.u32 %v6315, 2147483648
    %v6324 = vxor.u32 %v6316, 2147483648
    %v6325 = vxor.u32 %v6317, 2147483648
    %v6326 = vxor.u32 %v6318, 2147483648
    %v6327 = vxor.u32 %v6319, 2147483648
    %v6328 = vxor.u32 %v6320, 2147483648
    %v6329 = vxor.u32 %v6321, 2147483648
    %v6330 = vmul.f32 %v6322, 1.442695
    %v6331 = vpow.pop %v6330
    %v6332 = vmul.f32 %v6323, 1.442695
    %v6333 = vpow.pop %v6332
    %v6334 = vmul.f32 %v6324, 1.442695
    %v6335 = vpow.pop %v6334
    %v6336 = vmul.f32 %v6325, 1.442695
    %v6337 = vpow.pop %v6336
    %v6338 = vmul.f32 %v6326, 1.442695
    %v6339 = vpow.pop %v6338
    %v6340 = vmul.f32 %v6327, 1.442695
    %v6341 = vpow.pop %v6340
    %v6342 = vmul.f32 %v6328, 1.442695
    %v6343 = vpow.pop %v6342
    %v6344 = vmul.f32 %v6329, 1.442695
    %v6345 = vpow.pop %v6344
    %v6346 = vadd.f32 %v6331, 1.0
    %v6347 = vadd.f32 %v6333, 1.0
    %v6348 = vadd.f32 %v6335, 1.0
    %v6349 = vadd.f32 %v6337, 1.0
    %v6350 = vadd.f32 %v6339, 1.0
    %v6351 = vadd.f32 %v6341, 1.0
    %v6352 = vadd.f32 %v6343, 1.0
    %v6353 = vadd.f32 %v6345, 1.0
    %v6354 = vrcp.pop %v6346
    %v6355 = vmul.f32 %v6346, %v6354
    %v6356 = vsub.f32 1.0, %v6355
    %v6357 = vmul.f32 %v6354, %v6356
    %v6358 = vadd.f32 %v6354, %v6357
    %vm6359 = vweird.f32 %v6346
    %vm6360 = vweird.f32 %v6354
    %vm6361 = vmor %vm6359, %vm6360
    %v6362 = vsel %vm6361, %v6354, %v6358
    %v6363 = vand.u32 2147483647, %v6346
    %vm6364 = vcmp.eq.f32.partialorder %v6363, 8.507059e+37
    %v6365 = vand.u32 %v6346, 2147483648
    %v6366 = vor.u32 1.1754944e-38, %v6365
    %v6367 = vsel %vm6364, %v6366, %v6362
    %v6368 = vmul.f32 1.0, %v6367
    %v6369 = vrcp.pop %v6347
    %v6370 = vmul.f32 %v6347, %v6369
    %v6371 = vsub.f32 1.0, %v6370
    %v6372 = vmul.f32 %v6369, %v6371
    %v6373 = vadd.f32 %v6369, %v6372
    %vm6374 = vweird.f32 %v6347
    %vm6375 = vweird.f32 %v6369
    %vm6376 = vmor %vm6374, %vm6375
    %v6377 = vsel %vm6376, %v6369, %v6373
    %v6378 = vand.u32 2147483647, %v6347
    %vm6379 = vcmp.eq.f32.partialorder %v6378, 8.507059e+37
    %v6380 = vand.u32 %v6347, 2147483648
    %v6381 = vor.u32 1.1754944e-38, %v6380
    %v6382 = vsel %vm6379, %v6381, %v6377
    %v6383 = vmul.f32 1.0, %v6382
    %v6384 = vrcp.pop %v6348
    %v6385 = vmul.f32 %v6348, %v6384
    %v6386 = vsub.f32 1.0, %v6385
    %v6387 = vmul.f32 %v6384, %v6386
    %v6388 = vadd.f32 %v6384, %v6387
    %vm6389 = vweird.f32 %v6348
    %vm6390 = vweird.f32 %v6384
    %vm6391 = vmor %vm6389, %vm6390
    %v6392 = vsel %vm6391, %v6384, %v6388
    %v6393 = vand.u32 2147483647, %v6348
    %vm6394 = vcmp.eq.f32.partialorder %v6393, 8.507059e+37
    %v6395 = vand.u32 %v6348, 2147483648
    %v6396 = vor.u32 1.1754944e-38, %v6395
    %v6397 = vsel %vm6394, %v6396, %v6392
    %v6398 = vmul.f32 1.0, %v6397
    %v6399 = vrcp.pop %v6349
    %v6400 = vmul.f32 %v6349, %v6399
    %v6401 = vsub.f32 1.0, %v6400
    %v6402 = vmul.f32 %v6399, %v6401
    %v6403 = vadd.f32 %v6399, %v6402
    %vm6404 = vweird.f32 %v6349
    %vm6405 = vweird.f32 %v6399
    %vm6406 = vmor %vm6404, %vm6405
    %v6407 = vsel %vm6406, %v6399, %v6403
    %v6408 = vand.u32 2147483647, %v6349
    %vm6409 = vcmp.eq.f32.partialorder %v6408, 8.507059e+37
    %v6410 = vand.u32 %v6349, 2147483648
    %v6411 = vor.u32 1.1754944e-38, %v6410
    %v6412 = vsel %vm6409, %v6411, %v6407
    %v6413 = vmul.f32 1.0, %v6412
    %v6414 = vrcp.pop %v6350
    %v6415 = vmul.f32 %v6350, %v6414
    %v6416 = vsub.f32 1.0, %v6415
    %v6417 = vmul.f32 %v6414, %v6416
    %v6418 = vadd.f32 %v6414, %v6417
    %vm6419 = vweird.f32 %v6350
    %vm6420 = vweird.f32 %v6414
    %vm6421 = vmor %vm6419, %vm6420
    %v6422 = vsel %vm6421, %v6414, %v6418
    %v6423 = vand.u32 2147483647, %v6350
    %vm6424 = vcmp.eq.f32.partialorder %v6423, 8.507059e+37
    %v6425 = vand.u32 %v6350, 2147483648
    %v6426 = vor.u32 1.1754944e-38, %v6425
    %v6427 = vsel %vm6424, %v6426, %v6422
    %v6428 = vmul.f32 1.0, %v6427
    %v6429 = vrcp.pop %v6351
    %v6430 = vmul.f32 %v6351, %v6429
    %v6431 = vsub.f32 1.0, %v6430
    %v6432 = vmul.f32 %v6429, %v6431
    %v6433 = vadd.f32 %v6429, %v6432
    %vm6434 = vweird.f32 %v6351
    %vm6435 = vweird.f32 %v6429
    %vm6436 = vmor %vm6434, %vm6435
    %v6437 = vsel %vm6436, %v6429, %v6433
    %v6438 = vand.u32 2147483647, %v6351
    %vm6439 = vcmp.eq.f32.partialorder %v6438, 8.507059e+37
    %v6440 = vand.u32 %v6351, 2147483648
    %v6441 = vor.u32 1.1754944e-38, %v6440
    %v6442 = vsel %vm6439, %v6441, %v6437
    %v6443 = vmul.f32 1.0, %v6442
    %v6444 = vrcp.pop %v6352
    %v6445 = vmul.f32 %v6352, %v6444
    %v6446 = vsub.f32 1.0, %v6445
    %v6447 = vmul.f32 %v6444, %v6446
    %v6448 = vadd.f32 %v6444, %v6447
    %vm6449 = vweird.f32 %v6352
    %vm6450 = vweird.f32 %v6444
    %vm6451 = vmor %vm6449, %vm6450
    %v6452 = vsel %vm6451, %v6444, %v6448
    %v6453 = vand.u32 2147483647, %v6352
    %vm6454 = vcmp.eq.f32.partialorder %v6453, 8.507059e+37
    %v6455 = vand.u32 %v6352, 2147483648
    %v6456 = vor.u32 1.1754944e-38, %v6455
    %v6457 = vsel %vm6454, %v6456, %v6452
    %v6458 = vmul.f32 1.0, %v6457
    %v6459 = vrcp.pop %v6353
    %v6460 = vmul.f32 %v6353, %v6459
    %v6461 = vsub.f32 1.0, %v6460
    %v6462 = vmul.f32 %v6459, %v6461
    %v6463 = vadd.f32 %v6459, %v6462
    %vm6464 = vweird.f32 %v6353
    %vm6465 = vweird.f32 %v6459
    %vm6466 = vmor %vm6464, %vm6465
    %v6467 = vsel %vm6466, %v6459, %v6463
    %v6468 = vand.u32 2147483647, %v6353
    %vm6469 = vcmp.eq.f32.partialorder %v6468, 8.507059e+37
    %v6470 = vand.u32 %v6353, 2147483648
    %v6471 = vor.u32 1.1754944e-38, %v6470
    %v6472 = vsel %vm6469, %v6471, %v6467
    %v6473 = vmul.f32 1.0, %v6472
    %v6474 = vadd.f32 %v6282, %v3684
    %v6475 = vadd.f32 %v6310, %v3685
    %v6476 = vadd.f32 %v6284, %v3684
    %v6477 = vadd.f32 %v6312, %v3685
    %v6478 = vmul.f32 %v6368, %v6474
    %v6479 = vmul.f32 %v6383, %v6475
    %v6480 = vmul.f32 %v6428, %v6476
    %v6481 = vmul.f32 %v6443, %v6477
    %v6482 = vadd.f32 %v6136, %v6478
    %v6483 = vadd.f32 %v6137, %v6479
    %v6484 = vadd.f32 %v6142, %v6480
    %v6485 = vadd.f32 %v6143, %v6481
    %v6486 = vtanh.pop %v6482
    %v6487 = vtanh.pop %v6483
    %v6488 = vtanh.pop %v6484
    %v6489 = vtanh.pop %v6485
    %v6490 = vsub.f32 %v6100, %v6486
    %v6491 = vsub.f32 %v6101, %v6487
    %v6492 = vsub.f32 %v6102, %v6488
    %v6493 = vsub.f32 %v6103, %v6489
    %v6494 = vmul.f32 %v6398, %v6490
    %v6495 = vmul.f32 %v6413, %v6491
    %v6496 = vmul.f32 %v6458, %v6492
    %v6497 = vmul.f32 %v6473, %v6493
    %v6498 = vadd.f32 %v6486, %v6494
    %v6499 = vadd.f32 %v6487, %v6495
    %v6500 = vadd.f32 %v6488, %v6496
    %v6501 = vadd.f32 %v6489, %v6497
    %6502 = vst [vmem:[#allocation3 + $0xe0] sm:$0xff] %v6498
    %6503 = vst [vmem:[#allocation3 + $0xe8] sm:$0xff] %v6499
    %6504 = vst [vmem:[#allocation3 + $0xf0] sm:$0xff] %v6500
    %6505 = vst [vmem:[#allocation3 + $0xf8] sm:$0xff] %v6501
    %v6506 = vld [vmem:[%s1 + $0x80] sm:$0xff]
    %v6507 = vld [vmem:[%s1 + $0x88] sm:$0xff]
    %6509 = vset.pattern.permute.xlu0 0
    %6510 = vperm.xlu0 %6509, %v6506
    %v6511 = vpop.permute.xlu0 %6510
    %6514 = vset.pattern.permute.xlu0 0
    %6515 = vperm.xlu0 %6514, %v6507
    %v6516 = vpop.permute.xlu0 %6515
    %v6518 = vmul.f32 %v6511, %v2730
    %v6519 = vmul.f32 %v6511, %v2731
    %v6520 = vmul.f32 %v6511, %v2732
    %v6521 = vmul.f32 %v6511, %v2733
    %v6522 = vmul.f32 %v6511, %v2734
    %v6523 = vmul.f32 %v6511, %v2735
    %v6524 = vmul.f32 %v6516, %v2730
    %v6525 = vmul.f32 %v6516, %v2731
    %v6526 = vmul.f32 %v6516, %v2732
    %v6527 = vmul.f32 %v6516, %v2733
    %v6528 = vmul.f32 %v6516, %v2734
    %v6529 = vmul.f32 %v6516, %v2735
    %v6530 = vadd.f32 %v2654, %v6518
    %v6531 = vadd.f32 %v2668, %v6519
    %v6532 = vadd.f32 %v2682, %v6520
    %v6533 = vadd.f32 %v2696, %v6521
    %v6534 = vadd.f32 %v2710, %v6522
    %v6535 = vadd.f32 %v2724, %v6523
    %v6536 = vadd.f32 %v2656, %v6524
    %v6537 = vadd.f32 %v2670, %v6525
    %v6538 = vadd.f32 %v2684, %v6526
    %v6539 = vadd.f32 %v2698, %v6527
    %v6540 = vadd.f32 %v2712, %v6528
    %v6541 = vadd.f32 %v2726, %v6529
    %v6542 = vpack.c.bf16 %v6500, %v6498
    %v6543 = vpack.c.bf16 %v6501, %v6499
    %6544 = vmatpush.bf16.msra.mxu0 %v3205
    %6545 = vmatpush.bf16.msra.mxu0 %v3199
    %6546 = vmatpush.bf16.msra.mxu0 %v3193
    %6547 = vmatpush.bf16.msra.mxu0 %v3187
    %6548 = vmatpush.bf16.msra.mxu0 %v3181
    %6549 = vmatpush.bf16.msra.mxu0 %v3175
    %6550 = vmatpush.bf16.msra.mxu0 %v3169
    %6551 = vmatpush.bf16.msra.mxu0 %v3163
    %6552 = vmatmul.bf16.gmra.mxu0 %v6542
    %v6553 = vpop.f32.mrf.mxu0
    %v6554 = vadd.f32 0.0, %v6553
    %v6555 = vpop.f32.mrf.mxu0
    %v6556 = vadd.f32 0.0, %v6555
    %6557 = vdwg.mxu0
    %6558 = vmatpush.bf16.msra.mxu0 %v3253
    %6559 = vmatpush.bf16.msra.mxu0 %v3247
    %6560 = vmatpush.bf16.msra.mxu0 %v3241
    %6561 = vmatpush.bf16.msra.mxu0 %v3235
    %6562 = vmatpush.bf16.msra.mxu0 %v3229
    %6563 = vmatpush.bf16.msra.mxu0 %v3223
    %6564 = vmatpush.bf16.msra.mxu0 %v3217
    %6565 = vmatpush.bf16.msra.mxu0 %v3211
    %6566 = vmatmul.bf16.gmra.mxu0 %v6543
    %v6567 = vpop.f32.mrf.mxu0
    %v6568 = vadd.f32 %v6554, %v6567
    %v6569 = vpop.f32.mrf.mxu0
    %v6570 = vadd.f32 %v6556, %v6569
    %6571 = vdwg.mxu0
    %6572 = vmatpush.bf16.msra.mxu0 %v3206
    %6573 = vmatpush.bf16.msra.mxu0 %v3200
    %6574 = vmatpush.bf16.msra.mxu0 %v3194
    %6575 = vmatpush.bf16.msra.mxu0 %v3188
    %6576 = vmatpush.bf16.msra.mxu0 %v3182
    %6577 = vmatpush.bf16.msra.mxu0 %v3176
    %6578 = vmatpush.bf16.msra.mxu0 %v3170
    %6579 = vmatpush.bf16.msra.mxu0 %v3164
    %6580 = vmatmul.bf16.gmra.mxu0 %v6542
    %v6581 = vpop.f32.mrf.mxu0
    %v6582 = vadd.f32 0.0, %v6581
    %v6583 = vpop.f32.mrf.mxu0
    %v6584 = vadd.f32 0.0, %v6583
    %6585 = vdwg.mxu0
    %6586 = vmatpush.bf16.msra.mxu0 %v3254
    %6587 = vmatpush.bf16.msra.mxu0 %v3248
    %6588 = vmatpush.bf16.msra.mxu0 %v3242
    %6589 = vmatpush.bf16.msra.mxu0 %v3236
    %6590 = vmatpush.bf16.msra.mxu0 %v3230
    %6591 = vmatpush.bf16.msra.mxu0 %v3224
    %6592 = vmatpush.bf16.msra.mxu0 %v3218
    %6593 = vmatpush.bf16.msra.mxu0 %v3212
    %6594 = vmatmul.bf16.gmra.mxu0 %v6543
    %v6595 = vpop.f32.mrf.mxu0
    %v6596 = vadd.f32 %v6582, %v6595
    %v6597 = vpop.f32.mrf.mxu0
    %v6598 = vadd.f32 %v6584, %v6597
    %6599 = vdwg.mxu0
    %6600 = vmatpush.bf16.msra.mxu0 %v3207
    %6601 = vmatpush.bf16.msra.mxu0 %v3201
    %6602 = vmatpush.bf16.msra.mxu0 %v3195
    %6603 = vmatpush.bf16.msra.mxu0 %v3189
    %6604 = vmatpush.bf16.msra.mxu0 %v3183
    %6605 = vmatpush.bf16.msra.mxu0 %v3177
    %6606 = vmatpush.bf16.msra.mxu0 %v3171
    %6607 = vmatpush.bf16.msra.mxu0 %v3165
    %6608 = vmatmul.bf16.gmra.mxu0 %v6542
    %v6609 = vpop.f32.mrf.mxu0
    %v6610 = vadd.f32 0.0, %v6609
    %v6611 = vpop.f32.mrf.mxu0
    %v6612 = vadd.f32 0.0, %v6611
    %6613 = vdwg.mxu0
    %6614 = vmatpush.bf16.msra.mxu0 %v3255
    %6615 = vmatpush.bf16.msra.mxu0 %v3249
    %6616 = vmatpush.bf16.msra.mxu0 %v3243
    %6617 = vmatpush.bf16.msra.mxu0 %v3237
    %6618 = vmatpush.bf16.msra.mxu0 %v3231
    %6619 = vmatpush.bf16.msra.mxu0 %v3225
    %6620 = vmatpush.bf16.msra.mxu0 %v3219
    %6621 = vmatpush.bf16.msra.mxu0 %v3213
    %6622 = vmatmul.bf16.gmra.mxu0 %v6543
    %v6623 = vpop.f32.mrf.mxu0
    %v6624 = vadd.f32 %v6610, %v6623
    %v6625 = vpop.f32.mrf.mxu0
    %v6626 = vadd.f32 %v6612, %v6625
    %6627 = vdwg.mxu0
    %6628 = vmatpush.bf16.msra.mxu0 %v3208
    %6629 = vmatpush.bf16.msra.mxu0 %v3202
    %6630 = vmatpush.bf16.msra.mxu0 %v3196
    %6631 = vmatpush.bf16.msra.mxu0 %v3190
    %6632 = vmatpush.bf16.msra.mxu0 %v3184
    %6633 = vmatpush.bf16.msra.mxu0 %v3178
    %6634 = vmatpush.bf16.msra.mxu0 %v3172
    %6635 = vmatpush.bf16.msra.mxu0 %v3166
    %6636 = vmatmul.bf16.gmra.mxu0 %v6542
    %v6637 = vpop.f32.mrf.mxu0
    %v6638 = vadd.f32 0.0, %v6637
    %v6639 = vpop.f32.mrf.mxu0
    %v6640 = vadd.f32 0.0, %v6639
    %6641 = vdwg.mxu0
    %6642 = vmatpush.bf16.msra.mxu0 %v3256
    %6643 = vmatpush.bf16.msra.mxu0 %v3250
    %6644 = vmatpush.bf16.msra.mxu0 %v3244
    %6645 = vmatpush.bf16.msra.mxu0 %v3238
    %6646 = vmatpush.bf16.msra.mxu0 %v3232
    %6647 = vmatpush.bf16.msra.mxu0 %v3226
    %6648 = vmatpush.bf16.msra.mxu0 %v3220
    %6649 = vmatpush.bf16.msra.mxu0 %v3214
    %6650 = vmatmul.bf16.gmra.mxu0 %v6543
    %v6651 = vpop.f32.mrf.mxu0
    %v6652 = vadd.f32 %v6638, %v6651
    %v6653 = vpop.f32.mrf.mxu0
    %v6654 = vadd.f32 %v6640, %v6653
    %6655 = vdwg.mxu0
    %6656 = vmatpush.bf16.msra.mxu0 %v3209
    %6657 = vmatpush.bf16.msra.mxu0 %v3203
    %6658 = vmatpush.bf16.msra.mxu0 %v3197
    %6659 = vmatpush.bf16.msra.mxu0 %v3191
    %6660 = vmatpush.bf16.msra.mxu0 %v3185
    %6661 = vmatpush.bf16.msra.mxu0 %v3179
    %6662 = vmatpush.bf16.msra.mxu0 %v3173
    %6663 = vmatpush.bf16.msra.mxu0 %v3167
    %6664 = vmatmul.bf16.gmra.mxu0 %v6542
    %v6665 = vpop.f32.mrf.mxu0
    %v6666 = vadd.f32 0.0, %v6665
    %v6667 = vpop.f32.mrf.mxu0
    %v6668 = vadd.f32 0.0, %v6667
    %6669 = vdwg.mxu0
    %6670 = vmatpush.bf16.msra.mxu0 %v3257
    %6671 = vmatpush.bf16.msra.mxu0 %v3251
    %6672 = vmatpush.bf16.msra.mxu0 %v3245
    %6673 = vmatpush.bf16.msra.mxu0 %v3239
    %6674 = vmatpush.bf16.msra.mxu0 %v3233
    %6675 = vmatpush.bf16.msra.mxu0 %v3227
    %6676 = vmatpush.bf16.msra.mxu0 %v3221
    %6677 = vmatpush.bf16.msra.mxu0 %v3215
    %6678 = vmatmul.bf16.gmra.mxu0 %v6543
    %v6679 = vpop.f32.mrf.mxu0
    %v6680 = vadd.f32 %v6666, %v6679
    %v6681 = vpop.f32.mrf.mxu0
    %v6682 = vadd.f32 %v6668, %v6681
    %6683 = vdwg.mxu0
    %6684 = vmatpush.bf16.msra.mxu0 %v3210
    %6685 = vmatpush.bf16.msra.mxu0 %v3204
    %6686 = vmatpush.bf16.msra.mxu0 %v3198
    %6687 = vmatpush.bf16.msra.mxu0 %v3192
    %6688 = vmatpush.bf16.msra.mxu0 %v3186
    %6689 = vmatpush.bf16.msra.mxu0 %v3180
    %6690 = vmatpush.bf16.msra.mxu0 %v3174
    %6691 = vmatpush.bf16.msra.mxu0 %v3168
    %6692 = vmatmul.bf16.gmra.mxu0 %v6542
    %v6693 = vpop.f32.mrf.mxu0
    %v6694 = vadd.f32 0.0, %v6693
    %v6695 = vpop.f32.mrf.mxu0
    %v6696 = vadd.f32 0.0, %v6695
    %6697 = vdwg.mxu0
    %6698 = vmatpush.bf16.msra.mxu0 %v3258
    %6699 = vmatpush.bf16.msra.mxu0 %v3252
    %6700 = vmatpush.bf16.msra.mxu0 %v3246
    %6701 = vmatpush.bf16.msra.mxu0 %v3240
    %6702 = vmatpush.bf16.msra.mxu0 %v3234
    %6703 = vmatpush.bf16.msra.mxu0 %v3228
    %6704 = vmatpush.bf16.msra.mxu0 %v3222
    %6705 = vmatpush.bf16.msra.mxu0 %v3216
    %6706 = vmatmul.bf16.gmra.mxu0 %v6543
    %v6707 = vpop.f32.mrf.mxu0
    %v6708 = vadd.f32 %v6694, %v6707
    %v6709 = vpop.f32.mrf.mxu0
    %v6710 = vadd.f32 %v6696, %v6709
    %6711 = vdwg.mxu0
    %v6712 = vadd.f32 %v6530, %v6568
    %v6713 = vadd.f32 %v6531, %v6596
    %v6714 = vadd.f32 %v6532, %v6624
    %v6715 = vadd.f32 %v6533, %v6652
    %v6716 = vadd.f32 %v6536, %v6570
    %v6717 = vadd.f32 %v6537, %v6598
    %v6718 = vadd.f32 %v6538, %v6626
    %v6719 = vadd.f32 %v6539, %v6654
    %v6720 = vxor.u32 %v6712, 2147483648
    %v6721 = vxor.u32 %v6713, 2147483648
    %v6722 = vxor.u32 %v6714, 2147483648
    %v6723 = vxor.u32 %v6715, 2147483648
    %v6724 = vxor.u32 %v6716, 2147483648
    %v6725 = vxor.u32 %v6717, 2147483648
    %v6726 = vxor.u32 %v6718, 2147483648
    %v6727 = vxor.u32 %v6719, 2147483648
    %v6728 = vmul.f32 %v6720, 1.442695
    %v6729 = vpow.pop %v6728
    %v6730 = vmul.f32 %v6721, 1.442695
    %v6731 = vpow.pop %v6730
    %v6732 = vmul.f32 %v6722, 1.442695
    %v6733 = vpow.pop %v6732
    %v6734 = vmul.f32 %v6723, 1.442695
    %v6735 = vpow.pop %v6734
    %v6736 = vmul.f32 %v6724, 1.442695
    %v6737 = vpow.pop %v6736
    %v6738 = vmul.f32 %v6725, 1.442695
    %v6739 = vpow.pop %v6738
    %v6740 = vmul.f32 %v6726, 1.442695
    %v6741 = vpow.pop %v6740
    %v6742 = vmul.f32 %v6727, 1.442695
    %v6743 = vpow.pop %v6742
    %v6744 = vadd.f32 %v6729, 1.0
    %v6745 = vadd.f32 %v6731, 1.0
    %v6746 = vadd.f32 %v6733, 1.0
    %v6747 = vadd.f32 %v6735, 1.0
    %v6748 = vadd.f32 %v6737, 1.0
    %v6749 = vadd.f32 %v6739, 1.0
    %v6750 = vadd.f32 %v6741, 1.0
    %v6751 = vadd.f32 %v6743, 1.0
    %v6752 = vrcp.pop %v6744
    %v6753 = vmul.f32 %v6744, %v6752
    %v6754 = vsub.f32 1.0, %v6753
    %v6755 = vmul.f32 %v6752, %v6754
    %v6756 = vadd.f32 %v6752, %v6755
    %vm6757 = vweird.f32 %v6744
    %vm6758 = vweird.f32 %v6752
    %vm6759 = vmor %vm6757, %vm6758
    %v6760 = vsel %vm6759, %v6752, %v6756
    %v6761 = vand.u32 2147483647, %v6744
    %vm6762 = vcmp.eq.f32.partialorder %v6761, 8.507059e+37
    %v6763 = vand.u32 %v6744, 2147483648
    %v6764 = vor.u32 1.1754944e-38, %v6763
    %v6765 = vsel %vm6762, %v6764, %v6760
    %v6766 = vmul.f32 1.0, %v6765
    %v6767 = vrcp.pop %v6745
    %v6768 = vmul.f32 %v6745, %v6767
    %v6769 = vsub.f32 1.0, %v6768
    %v6770 = vmul.f32 %v6767, %v6769
    %v6771 = vadd.f32 %v6767, %v6770
    %vm6772 = vweird.f32 %v6745
    %vm6773 = vweird.f32 %v6767
    %vm6774 = vmor %vm6772, %vm6773
    %v6775 = vsel %vm6774, %v6767, %v6771
    %v6776 = vand.u32 2147483647, %v6745
    %vm6777 = vcmp.eq.f32.partialorder %v6776, 8.507059e+37
    %v6778 = vand.u32 %v6745, 2147483648
    %v6779 = vor.u32 1.1754944e-38, %v6778
    %v6780 = vsel %vm6777, %v6779, %v6775
    %v6781 = vmul.f32 1.0, %v6780
    %v6782 = vrcp.pop %v6746
    %v6783 = vmul.f32 %v6746, %v6782
    %v6784 = vsub.f32 1.0, %v6783
    %v6785 = vmul.f32 %v6782, %v6784
    %v6786 = vadd.f32 %v6782, %v6785
    %vm6787 = vweird.f32 %v6746
    %vm6788 = vweird.f32 %v6782
    %vm6789 = vmor %vm6787, %vm6788
    %v6790 = vsel %vm6789, %v6782, %v6786
    %v6791 = vand.u32 2147483647, %v6746
    %vm6792 = vcmp.eq.f32.partialorder %v6791, 8.507059e+37
    %v6793 = vand.u32 %v6746, 2147483648
    %v6794 = vor.u32 1.1754944e-38, %v6793
    %v6795 = vsel %vm6792, %v6794, %v6790
    %v6796 = vmul.f32 1.0, %v6795
    %v6797 = vrcp.pop %v6747
    %v6798 = vmul.f32 %v6747, %v6797
    %v6799 = vsub.f32 1.0, %v6798
    %v6800 = vmul.f32 %v6797, %v6799
    %v6801 = vadd.f32 %v6797, %v6800
    %vm6802 = vweird.f32 %v6747
    %vm6803 = vweird.f32 %v6797
    %vm6804 = vmor %vm6802, %vm6803
    %v6805 = vsel %vm6804, %v6797, %v6801
    %v6806 = vand.u32 2147483647, %v6747
    %vm6807 = vcmp.eq.f32.partialorder %v6806, 8.507059e+37
    %v6808 = vand.u32 %v6747, 2147483648
    %v6809 = vor.u32 1.1754944e-38, %v6808
    %v6810 = vsel %vm6807, %v6809, %v6805
    %v6811 = vmul.f32 1.0, %v6810
    %v6812 = vrcp.pop %v6748
    %v6813 = vmul.f32 %v6748, %v6812
    %v6814 = vsub.f32 1.0, %v6813
    %v6815 = vmul.f32 %v6812, %v6814
    %v6816 = vadd.f32 %v6812, %v6815
    %vm6817 = vweird.f32 %v6748
    %vm6818 = vweird.f32 %v6812
    %vm6819 = vmor %vm6817, %vm6818
    %v6820 = vsel %vm6819, %v6812, %v6816
    %v6821 = vand.u32 2147483647, %v6748
    %vm6822 = vcmp.eq.f32.partialorder %v6821, 8.507059e+37
    %v6823 = vand.u32 %v6748, 2147483648
    %v6824 = vor.u32 1.1754944e-38, %v6823
    %v6825 = vsel %vm6822, %v6824, %v6820
    %v6826 = vmul.f32 1.0, %v6825
    %v6827 = vrcp.pop %v6749
    %v6828 = vmul.f32 %v6749, %v6827
    %v6829 = vsub.f32 1.0, %v6828
    %v6830 = vmul.f32 %v6827, %v6829
    %v6831 = vadd.f32 %v6827, %v6830
    %vm6832 = vweird.f32 %v6749
    %vm6833 = vweird.f32 %v6827
    %vm6834 = vmor %vm6832, %vm6833
    %v6835 = vsel %vm6834, %v6827, %v6831
    %v6836 = vand.u32 2147483647, %v6749
    %vm6837 = vcmp.eq.f32.partialorder %v6836, 8.507059e+37
    %v6838 = vand.u32 %v6749, 2147483648
    %v6839 = vor.u32 1.1754944e-38, %v6838
    %v6840 = vsel %vm6837, %v6839, %v6835
    %v6841 = vmul.f32 1.0, %v6840
    %v6842 = vrcp.pop %v6750
    %v6843 = vmul.f32 %v6750, %v6842
    %v6844 = vsub.f32 1.0, %v6843
    %v6845 = vmul.f32 %v6842, %v6844
    %v6846 = vadd.f32 %v6842, %v6845
    %vm6847 = vweird.f32 %v6750
    %vm6848 = vweird.f32 %v6842
    %vm6849 = vmor %vm6847, %vm6848
    %v6850 = vsel %vm6849, %v6842, %v6846
    %v6851 = vand.u32 2147483647, %v6750
    %vm6852 = vcmp.eq.f32.partialorder %v6851, 8.507059e+37
    %v6853 = vand.u32 %v6750, 2147483648
    %v6854 = vor.u32 1.1754944e-38, %v6853
    %v6855 = vsel %vm6852, %v6854, %v6850
    %v6856 = vmul.f32 1.0, %v6855
    %v6857 = vrcp.pop %v6751
    %v6858 = vmul.f32 %v6751, %v6857
    %v6859 = vsub.f32 1.0, %v6858
    %v6860 = vmul.f32 %v6857, %v6859
    %v6861 = vadd.f32 %v6857, %v6860
    %vm6862 = vweird.f32 %v6751
    %vm6863 = vweird.f32 %v6857
    %vm6864 = vmor %vm6862, %vm6863
    %v6865 = vsel %vm6864, %v6857, %v6861
    %v6866 = vand.u32 2147483647, %v6751
    %vm6867 = vcmp.eq.f32.partialorder %v6866, 8.507059e+37
    %v6868 = vand.u32 %v6751, 2147483648
    %v6869 = vor.u32 1.1754944e-38, %v6868
    %v6870 = vsel %vm6867, %v6869, %v6865
    %v6871 = vmul.f32 1.0, %v6870
    %v6872 = vadd.f32 %v6680, %v3684
    %v6873 = vadd.f32 %v6708, %v3685
    %v6874 = vadd.f32 %v6682, %v3684
    %v6875 = vadd.f32 %v6710, %v3685
    %v6876 = vmul.f32 %v6766, %v6872
    %v6877 = vmul.f32 %v6781, %v6873
    %v6878 = vmul.f32 %v6826, %v6874
    %v6879 = vmul.f32 %v6841, %v6875
    %v6880 = vadd.f32 %v6534, %v6876
    %v6881 = vadd.f32 %v6535, %v6877
    %v6882 = vadd.f32 %v6540, %v6878
    %v6883 = vadd.f32 %v6541, %v6879
    %v6884 = vtanh.pop %v6880
    %v6885 = vtanh.pop %v6881
    %v6886 = vtanh.pop %v6882
    %v6887 = vtanh.pop %v6883
    %v6888 = vsub.f32 %v6498, %v6884
    %v6889 = vsub.f32 %v6499, %v6885
    %v6890 = vsub.f32 %v6500, %v6886
    %v6891 = vsub.f32 %v6501, %v6887
    %v6892 = vmul.f32 %v6796, %v6888
    %v6893 = vmul.f32 %v6811, %v6889
    %v6894 = vmul.f32 %v6856, %v6890
    %v6895 = vmul.f32 %v6871, %v6891
    %v6896 = vadd.f32 %v6884, %v6892
    %v6897 = vadd.f32 %v6885, %v6893
    %v6898 = vadd.f32 %v6886, %v6894
    %v6899 = vadd.f32 %v6887, %v6895
    %6900 = vst [vmem:[#allocation3 + $0x100] sm:$0xff] %v6896
    %6901 = vst [vmem:[#allocation3 + $0x108] sm:$0xff] %v6897
    %6902 = vst [vmem:[#allocation3 + $0x110] sm:$0xff] %v6898
    %6903 = vst [vmem:[#allocation3 + $0x118] sm:$0xff] %v6899
    %v6904 = vld [vmem:[%s1 + $0x90] sm:$0xff]
    %v6905 = vld [vmem:[%s1 + $0x98] sm:$0xff]
    %6907 = vset.pattern.permute.xlu0 0
    %6908 = vperm.xlu0 %6907, %v6904
    %v6909 = vpop.permute.xlu0 %6908
    %6912 = vset.pattern.permute.xlu0 0
    %6913 = vperm.xlu0 %6912, %v6905
    %v6914 = vpop.permute.xlu0 %6913
    %v6916 = vmul.f32 %v6909, %v2730
    %v6917 = vmul.f32 %v6909, %v2731
    %v6918 = vmul.f32 %v6909, %v2732
    %v6919 = vmul.f32 %v6909, %v2733
    %v6920 = vmul.f32 %v6909, %v2734
    %v6921 = vmul.f32 %v6909, %v2735
    %v6922 = vmul.f32 %v6914, %v2730
    %v6923 = vmul.f32 %v6914, %v2731
    %v6924 = vmul.f32 %v6914, %v2732
    %v6925 = vmul.f32 %v6914, %v2733
    %v6926 = vmul.f32 %v6914, %v2734
    %v6927 = vmul.f32 %v6914, %v2735
    %v6928 = vadd.f32 %v2654, %v6916
    %v6929 = vadd.f32 %v2668, %v6917
    %v6930 = vadd.f32 %v2682, %v6918
    %v6931 = vadd.f32 %v2696, %v6919
    %v6932 = vadd.f32 %v2710, %v6920
    %v6933 = vadd.f32 %v2724, %v6921
    %v6934 = vadd.f32 %v2656, %v6922
    %v6935 = vadd.f32 %v2670, %v6923
    %v6936 = vadd.f32 %v2684, %v6924
    %v6937 = vadd.f32 %v2698, %v6925
    %v6938 = vadd.f32 %v2712, %v6926
    %v6939 = vadd.f32 %v2726, %v6927
    %v6940 = vpack.c.bf16 %v6898, %v6896
    %v6941 = vpack.c.bf16 %v6899, %v6897
    %6942 = vmatpush.bf16.msra.mxu0 %v3205
    %6943 = vmatpush.bf16.msra.mxu0 %v3199
    %6944 = vmatpush.bf16.msra.mxu0 %v3193
    %6945 = vmatpush.bf16.msra.mxu0 %v3187
    %6946 = vmatpush.bf16.msra.mxu0 %v3181
    %6947 = vmatpush.bf16.msra.mxu0 %v3175
    %6948 = vmatpush.bf16.msra.mxu0 %v3169
    %6949 = vmatpush.bf16.msra.mxu0 %v3163
    %6950 = vmatmul.bf16.gmra.mxu0 %v6940
    %v6951 = vpop.f32.mrf.mxu0
    %v6952 = vadd.f32 0.0, %v6951
    %v6953 = vpop.f32.mrf.mxu0
    %v6954 = vadd.f32 0.0, %v6953
    %6955 = vdwg.mxu0
    %6956 = vmatpush.bf16.msra.mxu0 %v3253
    %6957 = vmatpush.bf16.msra.mxu0 %v3247
    %6958 = vmatpush.bf16.msra.mxu0 %v3241
    %6959 = vmatpush.bf16.msra.mxu0 %v3235
    %6960 = vmatpush.bf16.msra.mxu0 %v3229
    %6961 = vmatpush.bf16.msra.mxu0 %v3223
    %6962 = vmatpush.bf16.msra.mxu0 %v3217
    %6963 = vmatpush.bf16.msra.mxu0 %v3211
    %6964 = vmatmul.bf16.gmra.mxu0 %v6941
    %v6965 = vpop.f32.mrf.mxu0
    %v6966 = vadd.f32 %v6952, %v6965
    %v6967 = vpop.f32.mrf.mxu0
    %v6968 = vadd.f32 %v6954, %v6967
    %6969 = vdwg.mxu0
    %6970 = vmatpush.bf16.msra.mxu0 %v3206
    %6971 = vmatpush.bf16.msra.mxu0 %v3200
    %6972 = vmatpush.bf16.msra.mxu0 %v3194
    %6973 = vmatpush.bf16.msra.mxu0 %v3188
    %6974 = vmatpush.bf16.msra.mxu0 %v3182
    %6975 = vmatpush.bf16.msra.mxu0 %v3176
    %6976 = vmatpush.bf16.msra.mxu0 %v3170
    %6977 = vmatpush.bf16.msra.mxu0 %v3164
    %6978 = vmatmul.bf16.gmra.mxu0 %v6940
    %v6979 = vpop.f32.mrf.mxu0
    %v6980 = vadd.f32 0.0, %v6979
    %v6981 = vpop.f32.mrf.mxu0
    %v6982 = vadd.f32 0.0, %v6981
    %6983 = vdwg.mxu0
    %6984 = vmatpush.bf16.msra.mxu0 %v3254
    %6985 = vmatpush.bf16.msra.mxu0 %v3248
    %6986 = vmatpush.bf16.msra.mxu0 %v3242
    %6987 = vmatpush.bf16.msra.mxu0 %v3236
    %6988 = vmatpush.bf16.msra.mxu0 %v3230
    %6989 = vmatpush.bf16.msra.mxu0 %v3224
    %6990 = vmatpush.bf16.msra.mxu0 %v3218
    %6991 = vmatpush.bf16.msra.mxu0 %v3212
    %6992 = vmatmul.bf16.gmra.mxu0 %v6941
    %v6993 = vpop.f32.mrf.mxu0
    %v6994 = vadd.f32 %v6980, %v6993
    %v6995 = vpop.f32.mrf.mxu0
    %v6996 = vadd.f32 %v6982, %v6995
    %6997 = vdwg.mxu0
    %6998 = vmatpush.bf16.msra.mxu0 %v3207
    %6999 = vmatpush.bf16.msra.mxu0 %v3201
    %7000 = vmatpush.bf16.msra.mxu0 %v3195
    %7001 = vmatpush.bf16.msra.mxu0 %v3189
    %7002 = vmatpush.bf16.msra.mxu0 %v3183
    %7003 = vmatpush.bf16.msra.mxu0 %v3177
    %7004 = vmatpush.bf16.msra.mxu0 %v3171
    %7005 = vmatpush.bf16.msra.mxu0 %v3165
    %7006 = vmatmul.bf16.gmra.mxu0 %v6940
    %v7007 = vpop.f32.mrf.mxu0
    %v7008 = vadd.f32 0.0, %v7007
    %v7009 = vpop.f32.mrf.mxu0
    %v7010 = vadd.f32 0.0, %v7009
    %7011 = vdwg.mxu0
    %7012 = vmatpush.bf16.msra.mxu0 %v3255
    %7013 = vmatpush.bf16.msra.mxu0 %v3249
    %7014 = vmatpush.bf16.msra.mxu0 %v3243
    %7015 = vmatpush.bf16.msra.mxu0 %v3237
    %7016 = vmatpush.bf16.msra.mxu0 %v3231
    %7017 = vmatpush.bf16.msra.mxu0 %v3225
    %7018 = vmatpush.bf16.msra.mxu0 %v3219
    %7019 = vmatpush.bf16.msra.mxu0 %v3213
    %7020 = vmatmul.bf16.gmra.mxu0 %v6941
    %v7021 = vpop.f32.mrf.mxu0
    %v7022 = vadd.f32 %v7008, %v7021
    %v7023 = vpop.f32.mrf.mxu0
    %v7024 = vadd.f32 %v7010, %v7023
    %7025 = vdwg.mxu0
    %7026 = vmatpush.bf16.msra.mxu0 %v3208
    %7027 = vmatpush.bf16.msra.mxu0 %v3202
    %7028 = vmatpush.bf16.msra.mxu0 %v3196
    %7029 = vmatpush.bf16.msra.mxu0 %v3190
    %7030 = vmatpush.bf16.msra.mxu0 %v3184
    %7031 = vmatpush.bf16.msra.mxu0 %v3178
    %7032 = vmatpush.bf16.msra.mxu0 %v3172
    %7033 = vmatpush.bf16.msra.mxu0 %v3166
    %7034 = vmatmul.bf16.gmra.mxu0 %v6940
    %v7035 = vpop.f32.mrf.mxu0
    %v7036 = vadd.f32 0.0, %v7035
    %v7037 = vpop.f32.mrf.mxu0
    %v7038 = vadd.f32 0.0, %v7037
    %7039 = vdwg.mxu0
    %7040 = vmatpush.bf16.msra.mxu0 %v3256
    %7041 = vmatpush.bf16.msra.mxu0 %v3250
    %7042 = vmatpush.bf16.msra.mxu0 %v3244
    %7043 = vmatpush.bf16.msra.mxu0 %v3238
    %7044 = vmatpush.bf16.msra.mxu0 %v3232
    %7045 = vmatpush.bf16.msra.mxu0 %v3226
    %7046 = vmatpush.bf16.msra.mxu0 %v3220
    %7047 = vmatpush.bf16.msra.mxu0 %v3214
    %7048 = vmatmul.bf16.gmra.mxu0 %v6941
    %v7049 = vpop.f32.mrf.mxu0
    %v7050 = vadd.f32 %v7036, %v7049
    %v7051 = vpop.f32.mrf.mxu0
    %v7052 = vadd.f32 %v7038, %v7051
    %7053 = vdwg.mxu0
    %7054 = vmatpush.bf16.msra.mxu0 %v3209
    %7055 = vmatpush.bf16.msra.mxu0 %v3203
    %7056 = vmatpush.bf16.msra.mxu0 %v3197
    %7057 = vmatpush.bf16.msra.mxu0 %v3191
    %7058 = vmatpush.bf16.msra.mxu0 %v3185
    %7059 = vmatpush.bf16.msra.mxu0 %v3179
    %7060 = vmatpush.bf16.msra.mxu0 %v3173
    %7061 = vmatpush.bf16.msra.mxu0 %v3167
    %7062 = vmatmul.bf16.gmra.mxu0 %v6940
    %v7063 = vpop.f32.mrf.mxu0
    %v7064 = vadd.f32 0.0, %v7063
    %v7065 = vpop.f32.mrf.mxu0
    %v7066 = vadd.f32 0.0, %v7065
    %7067 = vdwg.mxu0
    %7068 = vmatpush.bf16.msra.mxu0 %v3257
    %7069 = vmatpush.bf16.msra.mxu0 %v3251
    %7070 = vmatpush.bf16.msra.mxu0 %v3245
    %7071 = vmatpush.bf16.msra.mxu0 %v3239
    %7072 = vmatpush.bf16.msra.mxu0 %v3233
    %7073 = vmatpush.bf16.msra.mxu0 %v3227
    %7074 = vmatpush.bf16.msra.mxu0 %v3221
    %7075 = vmatpush.bf16.msra.mxu0 %v3215
    %7076 = vmatmul.bf16.gmra.mxu0 %v6941
    %v7077 = vpop.f32.mrf.mxu0
    %v7078 = vadd.f32 %v7064, %v7077
    %v7079 = vpop.f32.mrf.mxu0
    %v7080 = vadd.f32 %v7066, %v7079
    %7081 = vdwg.mxu0
    %7082 = vmatpush.bf16.msra.mxu0 %v3210
    %7083 = vmatpush.bf16.msra.mxu0 %v3204
    %7084 = vmatpush.bf16.msra.mxu0 %v3198
    %7085 = vmatpush.bf16.msra.mxu0 %v3192
    %7086 = vmatpush.bf16.msra.mxu0 %v3186
    %7087 = vmatpush.bf16.msra.mxu0 %v3180
    %7088 = vmatpush.bf16.msra.mxu0 %v3174
    %7089 = vmatpush.bf16.msra.mxu0 %v3168
    %7090 = vmatmul.bf16.gmra.mxu0 %v6940
    %v7091 = vpop.f32.mrf.mxu0
    %v7092 = vadd.f32 0.0, %v7091
    %v7093 = vpop.f32.mrf.mxu0
    %v7094 = vadd.f32 0.0, %v7093
    %7095 = vdwg.mxu0
    %7096 = vmatpush.bf16.msra.mxu0 %v3258
    %7097 = vmatpush.bf16.msra.mxu0 %v3252
    %7098 = vmatpush.bf16.msra.mxu0 %v3246
    %7099 = vmatpush.bf16.msra.mxu0 %v3240
    %7100 = vmatpush.bf16.msra.mxu0 %v3234
    %7101 = vmatpush.bf16.msra.mxu0 %v3228
    %7102 = vmatpush.bf16.msra.mxu0 %v3222
    %7103 = vmatpush.bf16.msra.mxu0 %v3216
    %7104 = vmatmul.bf16.gmra.mxu0 %v6941
    %v7105 = vpop.f32.mrf.mxu0
    %v7106 = vadd.f32 %v7092, %v7105
    %v7107 = vpop.f32.mrf.mxu0
    %v7108 = vadd.f32 %v7094, %v7107
    %7109 = vdwg.mxu0
    %v7110 = vadd.f32 %v6928, %v6966
    %v7111 = vadd.f32 %v6929, %v6994
    %v7112 = vadd.f32 %v6930, %v7022
    %v7113 = vadd.f32 %v6931, %v7050
    %v7114 = vadd.f32 %v6934, %v6968
    %v7115 = vadd.f32 %v6935, %v6996
    %v7116 = vadd.f32 %v6936, %v7024
    %v7117 = vadd.f32 %v6937, %v7052
    %v7118 = vxor.u32 %v7110, 2147483648
    %v7119 = vxor.u32 %v7111, 2147483648
    %v7120 = vxor.u32 %v7112, 2147483648
    %v7121 = vxor.u32 %v7113, 2147483648
    %v7122 = vxor.u32 %v7114, 2147483648
    %v7123 = vxor.u32 %v7115, 2147483648
    %v7124 = vxor.u32 %v7116, 2147483648
    %v7125 = vxor.u32 %v7117, 2147483648
    %v7126 = vmul.f32 %v7118, 1.442695
    %v7127 = vpow.pop %v7126
    %v7128 = vmul.f32 %v7119, 1.442695
    %v7129 = vpow.pop %v7128
    %v7130 = vmul.f32 %v7120, 1.442695
    %v7131 = vpow.pop %v7130
    %v7132 = vmul.f32 %v7121, 1.442695
    %v7133 = vpow.pop %v7132
    %v7134 = vmul.f32 %v7122, 1.442695
    %v7135 = vpow.pop %v7134
    %v7136 = vmul.f32 %v7123, 1.442695
    %v7137 = vpow.pop %v7136
    %v7138 = vmul.f32 %v7124, 1.442695
    %v7139 = vpow.pop %v7138
    %v7140 = vmul.f32 %v7125, 1.442695
    %v7141 = vpow.pop %v7140
    %v7142 = vadd.f32 %v7127, 1.0
    %v7143 = vadd.f32 %v7129, 1.0
    %v7144 = vadd.f32 %v7131, 1.0
    %v7145 = vadd.f32 %v7133, 1.0
    %v7146 = vadd.f32 %v7135, 1.0
    %v7147 = vadd.f32 %v7137, 1.0
    %v7148 = vadd.f32 %v7139, 1.0
    %v7149 = vadd.f32 %v7141, 1.0
    %v7150 = vrcp.pop %v7142
    %v7151 = vmul.f32 %v7142, %v7150
    %v7152 = vsub.f32 1.0, %v7151
    %v7153 = vmul.f32 %v7150, %v7152
    %v7154 = vadd.f32 %v7150, %v7153
    %vm7155 = vweird.f32 %v7142
    %vm7156 = vweird.f32 %v7150
    %vm7157 = vmor %vm7155, %vm7156
    %v7158 = vsel %vm7157, %v7150, %v7154
    %v7159 = vand.u32 2147483647, %v7142
    %vm7160 = vcmp.eq.f32.partialorder %v7159, 8.507059e+37
    %v7161 = vand.u32 %v7142, 2147483648
    %v7162 = vor.u32 1.1754944e-38, %v7161
    %v7163 = vsel %vm7160, %v7162, %v7158
    %v7164 = vmul.f32 1.0, %v7163
    %v7165 = vrcp.pop %v7143
    %v7166 = vmul.f32 %v7143, %v7165
    %v7167 = vsub.f32 1.0, %v7166
    %v7168 = vmul.f32 %v7165, %v7167
    %v7169 = vadd.f32 %v7165, %v7168
    %vm7170 = vweird.f32 %v7143
    %vm7171 = vweird.f32 %v7165
    %vm7172 = vmor %vm7170, %vm7171
    %v7173 = vsel %vm7172, %v7165, %v7169
    %v7174 = vand.u32 2147483647, %v7143
    %vm7175 = vcmp.eq.f32.partialorder %v7174, 8.507059e+37
    %v7176 = vand.u32 %v7143, 2147483648
    %v7177 = vor.u32 1.1754944e-38, %v7176
    %v7178 = vsel %vm7175, %v7177, %v7173
    %v7179 = vmul.f32 1.0, %v7178
    %v7180 = vrcp.pop %v7144
    %v7181 = vmul.f32 %v7144, %v7180
    %v7182 = vsub.f32 1.0, %v7181
    %v7183 = vmul.f32 %v7180, %v7182
    %v7184 = vadd.f32 %v7180, %v7183
    %vm7185 = vweird.f32 %v7144
    %vm7186 = vweird.f32 %v7180
    %vm7187 = vmor %vm7185, %vm7186
    %v7188 = vsel %vm7187, %v7180, %v7184
    %v7189 = vand.u32 2147483647, %v7144
    %vm7190 = vcmp.eq.f32.partialorder %v7189, 8.507059e+37
    %v7191 = vand.u32 %v7144, 2147483648
    %v7192 = vor.u32 1.1754944e-38, %v7191
    %v7193 = vsel %vm7190, %v7192, %v7188
    %v7194 = vmul.f32 1.0, %v7193
    %v7195 = vrcp.pop %v7145
    %v7196 = vmul.f32 %v7145, %v7195
    %v7197 = vsub.f32 1.0, %v7196
    %v7198 = vmul.f32 %v7195, %v7197
    %v7199 = vadd.f32 %v7195, %v7198
    %vm7200 = vweird.f32 %v7145
    %vm7201 = vweird.f32 %v7195
    %vm7202 = vmor %vm7200, %vm7201
    %v7203 = vsel %vm7202, %v7195, %v7199
    %v7204 = vand.u32 2147483647, %v7145
    %vm7205 = vcmp.eq.f32.partialorder %v7204, 8.507059e+37
    %v7206 = vand.u32 %v7145, 2147483648
    %v7207 = vor.u32 1.1754944e-38, %v7206
    %v7208 = vsel %vm7205, %v7207, %v7203
    %v7209 = vmul.f32 1.0, %v7208
    %v7210 = vrcp.pop %v7146
    %v7211 = vmul.f32 %v7146, %v7210
    %v7212 = vsub.f32 1.0, %v7211
    %v7213 = vmul.f32 %v7210, %v7212
    %v7214 = vadd.f32 %v7210, %v7213
    %vm7215 = vweird.f32 %v7146
    %vm7216 = vweird.f32 %v7210
    %vm7217 = vmor %vm7215, %vm7216
    %v7218 = vsel %vm7217, %v7210, %v7214
    %v7219 = vand.u32 2147483647, %v7146
    %vm7220 = vcmp.eq.f32.partialorder %v7219, 8.507059e+37
    %v7221 = vand.u32 %v7146, 2147483648
    %v7222 = vor.u32 1.1754944e-38, %v7221
    %v7223 = vsel %vm7220, %v7222, %v7218
    %v7224 = vmul.f32 1.0, %v7223
    %v7225 = vrcp.pop %v7147
    %v7226 = vmul.f32 %v7147, %v7225
    %v7227 = vsub.f32 1.0, %v7226
    %v7228 = vmul.f32 %v7225, %v7227
    %v7229 = vadd.f32 %v7225, %v7228
    %vm7230 = vweird.f32 %v7147
    %vm7231 = vweird.f32 %v7225
    %vm7232 = vmor %vm7230, %vm7231
    %v7233 = vsel %vm7232, %v7225, %v7229
    %v7234 = vand.u32 2147483647, %v7147
    %vm7235 = vcmp.eq.f32.partialorder %v7234, 8.507059e+37
    %v7236 = vand.u32 %v7147, 2147483648
    %v7237 = vor.u32 1.1754944e-38, %v7236
    %v7238 = vsel %vm7235, %v7237, %v7233
    %v7239 = vmul.f32 1.0, %v7238
    %v7240 = vrcp.pop %v7148
    %v7241 = vmul.f32 %v7148, %v7240
    %v7242 = vsub.f32 1.0, %v7241
    %v7243 = vmul.f32 %v7240, %v7242
    %v7244 = vadd.f32 %v7240, %v7243
    %vm7245 = vweird.f32 %v7148
    %vm7246 = vweird.f32 %v7240
    %vm7247 = vmor %vm7245, %vm7246
    %v7248 = vsel %vm7247, %v7240, %v7244
    %v7249 = vand.u32 2147483647, %v7148
    %vm7250 = vcmp.eq.f32.partialorder %v7249, 8.507059e+37
    %v7251 = vand.u32 %v7148, 2147483648
    %v7252 = vor.u32 1.1754944e-38, %v7251
    %v7253 = vsel %vm7250, %v7252, %v7248
    %v7254 = vmul.f32 1.0, %v7253
    %v7255 = vrcp.pop %v7149
    %v7256 = vmul.f32 %v7149, %v7255
    %v7257 = vsub.f32 1.0, %v7256
    %v7258 = vmul.f32 %v7255, %v7257
    %v7259 = vadd.f32 %v7255, %v7258
    %vm7260 = vweird.f32 %v7149
    %vm7261 = vweird.f32 %v7255
    %vm7262 = vmor %vm7260, %vm7261
    %v7263 = vsel %vm7262, %v7255, %v7259
    %v7264 = vand.u32 2147483647, %v7149
    %vm7265 = vcmp.eq.f32.partialorder %v7264, 8.507059e+37
    %v7266 = vand.u32 %v7149, 2147483648
    %v7267 = vor.u32 1.1754944e-38, %v7266
    %v7268 = vsel %vm7265, %v7267, %v7263
    %v7269 = vmul.f32 1.0, %v7268
    %v7270 = vadd.f32 %v7078, %v3684
    %v7271 = vadd.f32 %v7106, %v3685
    %v7272 = vadd.f32 %v7080, %v3684
    %v7273 = vadd.f32 %v7108, %v3685
    %v7274 = vmul.f32 %v7164, %v7270
    %v7275 = vmul.f32 %v7179, %v7271
    %v7276 = vmul.f32 %v7224, %v7272
    %v7277 = vmul.f32 %v7239, %v7273
    %v7278 = vadd.f32 %v6932, %v7274
    %v7279 = vadd.f32 %v6933, %v7275
    %v7280 = vadd.f32 %v6938, %v7276
    %v7281 = vadd.f32 %v6939, %v7277
    %v7282 = vtanh.pop %v7278
    %v7283 = vtanh.pop %v7279
    %v7284 = vtanh.pop %v7280
    %v7285 = vtanh.pop %v7281
    %v7286 = vsub.f32 %v6896, %v7282
    %v7287 = vsub.f32 %v6897, %v7283
    %v7288 = vsub.f32 %v6898, %v7284
    %v7289 = vsub.f32 %v6899, %v7285
    %v7290 = vmul.f32 %v7194, %v7286
    %v7291 = vmul.f32 %v7209, %v7287
    %v7292 = vmul.f32 %v7254, %v7288
    %v7293 = vmul.f32 %v7269, %v7289
    %v7294 = vadd.f32 %v7282, %v7290
    %v7295 = vadd.f32 %v7283, %v7291
    %v7296 = vadd.f32 %v7284, %v7292
    %v7297 = vadd.f32 %v7285, %v7293
    %7298 = vst [vmem:[#allocation3 + $0x120] sm:$0xff] %v7294
    %7299 = vst [vmem:[#allocation3 + $0x128] sm:$0xff] %v7295
    %7300 = vst [vmem:[#allocation3 + $0x130] sm:$0xff] %v7296
    %7301 = vst [vmem:[#allocation3 + $0x138] sm:$0xff] %v7297
    %v7302 = vld [vmem:[#allocation3] sm:$0xff]
    %v7303 = vld [vmem:[#allocation3 + $0x8] sm:$0xff]
    %v7304 = vld [vmem:[#allocation3 + $0x10] sm:$0xff]
    %v7305 = vld [vmem:[#allocation3 + $0x18] sm:$0xff]
    %v7306 = vld [vmem:[#allocation3 + $0x20] sm:$0xff]
    %v7307 = vld [vmem:[#allocation3 + $0x28] sm:$0xff]
    %v7308 = vld [vmem:[#allocation3 + $0x30] sm:$0xff]
    %v7309 = vld [vmem:[#allocation3 + $0x38] sm:$0xff]
    %v7310 = vld [vmem:[#allocation3 + $0x40] sm:$0xff]
    %v7311 = vld [vmem:[#allocation3 + $0x48] sm:$0xff]
    %v7312 = vld [vmem:[#allocation3 + $0x50] sm:$0xff]
    %v7313 = vld [vmem:[#allocation3 + $0x58] sm:$0xff]
    %v7314 = vld [vmem:[#allocation3 + $0x60] sm:$0xff]
    %v7315 = vld [vmem:[#allocation3 + $0x68] sm:$0xff]
    %v7316 = vld [vmem:[#allocation3 + $0x70] sm:$0xff]
    %v7317 = vld [vmem:[#allocation3 + $0x78] sm:$0xff]
    %v7318 = vld [vmem:[#allocation3 + $0x80] sm:$0xff]
    %v7319 = vld [vmem:[#allocation3 + $0x88] sm:$0xff]
    %v7320 = vld [vmem:[#allocation3 + $0x90] sm:$0xff]
    %v7321 = vld [vmem:[#allocation3 + $0x98] sm:$0xff]
    %v7322 = vld [vmem:[#allocation3 + $0xa0] sm:$0xff]
    %v7323 = vld [vmem:[#allocation3 + $0xa8] sm:$0xff]
    %v7324 = vld [vmem:[#allocation3 + $0xb0] sm:$0xff]
    %v7325 = vld [vmem:[#allocation3 + $0xb8] sm:$0xff]
    %v7326 = vld [vmem:[#allocation3 + $0xc0] sm:$0xff]
    %v7327 = vld [vmem:[#allocation3 + $0xc8] sm:$0xff]
    %v7328 = vld [vmem:[#allocation3 + $0xd0] sm:$0xff]
    %v7329 = vld [vmem:[#allocation3 + $0xd8] sm:$0xff]
    %v7330 = vld [vmem:[#allocation3 + $0xe0] sm:$0xff]
    %v7331 = vld [vmem:[#allocation3 + $0xe8] sm:$0xff]
    %v7332 = vld [vmem:[#allocation3 + $0xf0] sm:$0xff]
    %v7333 = vld [vmem:[#allocation3 + $0xf8] sm:$0xff]
    %v7334 = vld [vmem:[#allocation3 + $0x100] sm:$0xff]
    %v7335 = vld [vmem:[#allocation3 + $0x108] sm:$0xff]
    %v7336 = vld [vmem:[#allocation3 + $0x110] sm:$0xff]
    %v7337 = vld [vmem:[#allocation3 + $0x118] sm:$0xff]
    %v7338 = vld [vmem:[#allocation3 + $0x120] sm:$0xff]
    %v7339 = vld [vmem:[#allocation3 + $0x128] sm:$0xff]
    %v7340 = vld [vmem:[#allocation3 + $0x130] sm:$0xff]
    %v7341 = vld [vmem:[#allocation3 + $0x138] sm:$0xff]
    %v7342 = vpack.c.bf16 %v7304, %v7302
    %v7343 = vpack.c.bf16 %v7305, %v7303
    %v7344 = vpack.c.bf16 %v7308, %v7306
    %v7345 = vpack.c.bf16 %v7309, %v7307
    %v7346 = vpack.c.bf16 %v7312, %v7310
    %v7347 = vpack.c.bf16 %v7313, %v7311
    %v7348 = vpack.c.bf16 %v7316, %v7314
    %v7349 = vpack.c.bf16 %v7317, %v7315
    %v7350 = vpack.c.bf16 %v7320, %v7318
    %v7351 = vpack.c.bf16 %v7321, %v7319
    %v7352 = vpack.c.bf16 %v7324, %v7322
    %v7353 = vpack.c.bf16 %v7325, %v7323
    %v7354 = vpack.c.bf16 %v7328, %v7326
    %v7355 = vpack.c.bf16 %v7329, %v7327
    %v7356 = vpack.c.bf16 %v7332, %v7330
    %v7357 = vpack.c.bf16 %v7333, %v7331
    %v7358 = vpack.c.bf16 %v7336, %v7334
    %v7359 = vpack.c.bf16 %v7337, %v7335
    %v7360 = vpack.c.bf16 %v7340, %v7338
    %v7361 = vpack.c.bf16 %v7341, %v7339
    %v7362 = vld [vmem:[%s11] sm:$0xf]
    %v7363 = vld [vmem:[%s11 + $0x4] sm:$0xf]
    %v7364 = vld [vmem:[%s11 + $0x8] sm:$0xf]
    %v7365 = vld [vmem:[%s11 + $0xc] sm:$0xf]
    %v7366 = vld [vmem:[%s11 + $0x10] sm:$0xf]
    %v7367 = vld [vmem:[%s11 + $0x14] sm:$0xf]
    %v7368 = vld [vmem:[%s11 + $0x18] sm:$0xf]
    %v7369 = vld [vmem:[%s11 + $0x1c] sm:$0xf]
    %v7370 = vld [vmem:[%s11 + $0x20] sm:$0xf]
    %v7371 = vld [vmem:[%s11 + $0x24] sm:$0xf]
    %v7372 = vld [vmem:[%s11 + $0x28] sm:$0xf]
    %v7373 = vld [vmem:[%s11 + $0x2c] sm:$0xf]
    %v7374 = vld [vmem:[%s11 + $0x30] sm:$0xf]
    %v7375 = vld [vmem:[%s11 + $0x34] sm:$0xf]
    %v7376 = vld [vmem:[%s11 + $0x38] sm:$0xf]
    %v7377 = vld [vmem:[%s11 + $0x3c] sm:$0xf]
    %v7378 = vld [vmem:[%s11 + $0x40] sm:$0xf]
    %v7379 = vld [vmem:[%s11 + $0x44] sm:$0xf]
    %v7380 = vld [vmem:[%s11 + $0x48] sm:$0xf]
    %v7381 = vld [vmem:[%s11 + $0x4c] sm:$0xf]
    %v7382 = vld [vmem:[%s11 + $0x50] sm:$0xf]
    %v7383 = vld [vmem:[%s11 + $0x54] sm:$0xf]
    %v7384 = vld [vmem:[%s11 + $0x58] sm:$0xf]
    %v7385 = vld [vmem:[%s11 + $0x5c] sm:$0xf]
    %v7386 = vld [vmem:[%s11 + $0x60] sm:$0xf]
    %v7387 = vld [vmem:[%s11 + $0x64] sm:$0xf]
    %v7388 = vld [vmem:[%s11 + $0x68] sm:$0xf]
    %v7389 = vld [vmem:[%s11 + $0x6c] sm:$0xf]
    %v7390 = vld [vmem:[%s11 + $0x70] sm:$0xf]
    %v7391 = vld [vmem:[%s11 + $0x74] sm:$0xf]
    %v7392 = vld [vmem:[%s11 + $0x78] sm:$0xf]
    %v7393 = vld [vmem:[%s11 + $0x7c] sm:$0xf]
    %v7394 = vld [vmem:[%s12] sm:$0x1]
    %v7396 = vperm.slane %v7394, 0
    %v7430 = vunpack.c.l.b16 %v7362
    %v7431 = vunpack.c.l.b16 %v7363
    %v7432 = vunpack.c.l.b16 %v7364
    %v7433 = vunpack.c.l.b16 %v7365
    %v7434 = vunpack.c.l.b16 %v7366
    %v7435 = vunpack.c.l.b16 %v7367
    %v7436 = vunpack.c.l.b16 %v7368
    %v7437 = vunpack.c.l.b16 %v7369
    %v7438 = vunpack.c.l.b16 %v7370
    %v7439 = vunpack.c.l.b16 %v7371
    %v7440 = vunpack.c.l.b16 %v7372
    %v7441 = vunpack.c.l.b16 %v7373
    %v7442 = vunpack.c.l.b16 %v7374
    %v7443 = vunpack.c.l.b16 %v7375
    %v7444 = vunpack.c.l.b16 %v7376
    %v7445 = vunpack.c.l.b16 %v7377
    %v7446 = vunpack.c.l.b16 %v7378
    %v7447 = vunpack.c.l.b16 %v7379
    %v7448 = vunpack.c.l.b16 %v7380
    %v7449 = vunpack.c.l.b16 %v7381
    %v7450 = vunpack.c.l.b16 %v7382
    %v7451 = vunpack.c.l.b16 %v7383
    %v7452 = vunpack.c.l.b16 %v7384
    %v7453 = vunpack.c.l.b16 %v7385
    %v7454 = vunpack.c.l.b16 %v7386
    %v7455 = vunpack.c.l.b16 %v7387
    %v7456 = vunpack.c.l.b16 %v7388
    %v7457 = vunpack.c.l.b16 %v7389
    %v7458 = vunpack.c.l.b16 %v7390
    %v7459 = vunpack.c.l.b16 %v7391
    %v7460 = vunpack.c.l.b16 %v7392
    %v7461 = vunpack.c.l.b16 %v7393
    %v7462 = vpack.c.b16 %v7431, %v7430
    %v7463 = vpack.c.b16 %v7433, %v7432
    %v7464 = vpack.c.b16 %v7435, %v7434
    %v7465 = vpack.c.b16 %v7437, %v7436
    %v7466 = vpack.c.b16 %v7439, %v7438
    %v7467 = vpack.c.b16 %v7441, %v7440
    %v7468 = vpack.c.b16 %v7443, %v7442
    %v7469 = vpack.c.b16 %v7445, %v7444
    %v7470 = vpack.c.b16 %v7447, %v7446
    %v7471 = vpack.c.b16 %v7449, %v7448
    %v7472 = vpack.c.b16 %v7451, %v7450
    %v7473 = vpack.c.b16 %v7453, %v7452
    %v7474 = vpack.c.b16 %v7455, %v7454
    %v7475 = vpack.c.b16 %v7457, %v7456
    %v7476 = vpack.c.b16 %v7459, %v7458
    %v7477 = vpack.c.b16 %v7461, %v7460
    %7494 = vmatpush.bf16.msra.mxu0 %v7469
    %7495 = vmatpush.bf16.msra.mxu0 %v7468
    %7496 = vmatpush.bf16.msra.mxu0 %v7467
    %7497 = vmatpush.bf16.msra.mxu0 %v7466
    %7498 = vmatpush.bf16.msra.mxu0 %v7465
    %7499 = vmatpush.bf16.msra.mxu0 %v7464
    %7500 = vmatpush.bf16.msra.mxu0 %v7463
    %7501 = vmatpush.bf16.msra.mxu0 %v7462
    %7502 = vmatmul.bf16.gmra.mxu0 %v7342
    %v7503 = vpop.f32.mrf.mxu0
    %v7504 = vadd.f32 %v7396, %v7503
    %v7505 = vpop.f32.mrf.mxu0
    %v7506 = vadd.f32 %v7396, %v7505
    %7507 = vmatmul.bf16.gmra.mxu0 %v7344
    %v7508 = vpop.f32.mrf.mxu0
    %v7509 = vadd.f32 %v7396, %v7508
    %v7510 = vpop.f32.mrf.mxu0
    %v7511 = vadd.f32 %v7396, %v7510
    %7512 = vmatmul.bf16.gmra.mxu0 %v7346
    %v7513 = vpop.f32.mrf.mxu0
    %v7514 = vadd.f32 %v7396, %v7513
    %v7515 = vpop.f32.mrf.mxu0
    %v7516 = vadd.f32 %v7396, %v7515
    %7517 = vmatmul.bf16.gmra.mxu0 %v7348
    %v7518 = vpop.f32.mrf.mxu0
    %v7519 = vadd.f32 %v7396, %v7518
    %v7520 = vpop.f32.mrf.mxu0
    %v7521 = vadd.f32 %v7396, %v7520
    %7522 = vmatmul.bf16.gmra.mxu0 %v7350
    %v7523 = vpop.f32.mrf.mxu0
    %v7524 = vadd.f32 %v7396, %v7523
    %v7525 = vpop.f32.mrf.mxu0
    %v7526 = vadd.f32 %v7396, %v7525
    %7527 = vmatmul.bf16.gmra.mxu0 %v7352
    %v7528 = vpop.f32.mrf.mxu0
    %v7529 = vadd.f32 %v7396, %v7528
    %v7530 = vpop.f32.mrf.mxu0
    %v7531 = vadd.f32 %v7396, %v7530
    %7532 = vmatmul.bf16.gmra.mxu0 %v7354
    %v7533 = vpop.f32.mrf.mxu0
    %v7534 = vadd.f32 %v7396, %v7533
    %v7535 = vpop.f32.mrf.mxu0
    %v7536 = vadd.f32 %v7396, %v7535
    %7537 = vmatmul.bf16.gmra.mxu0 %v7356
    %v7538 = vpop.f32.mrf.mxu0
    %v7539 = vadd.f32 %v7396, %v7538
    %v7540 = vpop.f32.mrf.mxu0
    %v7541 = vadd.f32 %v7396, %v7540
    %7542 = vmatmul.bf16.gmra.mxu0 %v7358
    %v7543 = vpop.f32.mrf.mxu0
    %v7544 = vadd.f32 %v7396, %v7543
    %v7545 = vpop.f32.mrf.mxu0
    %v7546 = vadd.f32 %v7396, %v7545
    %7547 = vmatmul.bf16.gmra.mxu0 %v7360
    %v7548 = vpop.f32.mrf.mxu0
    %v7549 = vadd.f32 %v7396, %v7548
    %v7550 = vpop.f32.mrf.mxu0
    %v7551 = vadd.f32 %v7396, %v7550
    %7552 = vdwg.mxu0
    %7553 = vmatpush.bf16.msra.mxu0 %v7477
    %7554 = vmatpush.bf16.msra.mxu0 %v7476
    %7555 = vmatpush.bf16.msra.mxu0 %v7475
    %7556 = vmatpush.bf16.msra.mxu0 %v7474
    %7557 = vmatpush.bf16.msra.mxu0 %v7473
    %7558 = vmatpush.bf16.msra.mxu0 %v7472
    %7559 = vmatpush.bf16.msra.mxu0 %v7471
    %7560 = vmatpush.bf16.msra.mxu0 %v7470
    %7561 = vmatmul.bf16.gmra.mxu0 %v7343
    %v7562 = vpop.f32.mrf.mxu0
    %v7563 = vadd.f32 %v7504, %v7562
    %v7564 = vpop.f32.mrf.mxu0
    %v7565 = vadd.f32 %v7506, %v7564
    %7566 = vmatmul.bf16.gmra.mxu0 %v7345
    %v7567 = vpop.f32.mrf.mxu0
    %v7568 = vadd.f32 %v7509, %v7567
    %v7569 = vpop.f32.mrf.mxu0
    %v7570 = vadd.f32 %v7511, %v7569
    %7571 = vmatmul.bf16.gmra.mxu0 %v7347
    %v7572 = vpop.f32.mrf.mxu0
    %v7573 = vadd.f32 %v7514, %v7572
    %v7574 = vpop.f32.mrf.mxu0
    %v7575 = vadd.f32 %v7516, %v7574
    %7576 = vmatmul.bf16.gmra.mxu0 %v7349
    %v7577 = vpop.f32.mrf.mxu0
    %v7578 = vadd.f32 %v7519, %v7577
    %v7579 = vpop.f32.mrf.mxu0
    %v7580 = vadd.f32 %v7521, %v7579
    %7581 = vmatmul.bf16.gmra.mxu0 %v7351
    %v7582 = vpop.f32.mrf.mxu0
    %v7583 = vadd.f32 %v7524, %v7582
    %v7584 = vpop.f32.mrf.mxu0
    %v7585 = vadd.f32 %v7526, %v7584
    %7586 = vmatmul.bf16.gmra.mxu0 %v7353
    %v7587 = vpop.f32.mrf.mxu0
    %v7588 = vadd.f32 %v7529, %v7587
    %v7589 = vpop.f32.mrf.mxu0
    %v7590 = vadd.f32 %v7531, %v7589
    %7591 = vmatmul.bf16.gmra.mxu0 %v7355
    %v7592 = vpop.f32.mrf.mxu0
    %v7593 = vadd.f32 %v7534, %v7592
    %v7594 = vpop.f32.mrf.mxu0
    %v7595 = vadd.f32 %v7536, %v7594
    %7596 = vmatmul.bf16.gmra.mxu0 %v7357
    %v7597 = vpop.f32.mrf.mxu0
    %v7598 = vadd.f32 %v7539, %v7597
    %v7599 = vpop.f32.mrf.mxu0
    %v7600 = vadd.f32 %v7541, %v7599
    %7601 = vmatmul.bf16.gmra.mxu0 %v7359
    %v7602 = vpop.f32.mrf.mxu0
    %v7603 = vadd.f32 %v7544, %v7602
    %v7604 = vpop.f32.mrf.mxu0
    %v7605 = vadd.f32 %v7546, %v7604
    %7606 = vmatmul.bf16.gmra.mxu0 %v7361
    %v7607 = vpop.f32.mrf.mxu0
    %v7608 = vadd.f32 %v7549, %v7607
    %v7609 = vpop.f32.mrf.mxu0
    %v7610 = vadd.f32 %v7551, %v7609
    %7611 = vdwg.mxu0
    %7612 = vst [vmem:[#allocation9] sm:$0xff] %v7563
    %7613 = vst [vmem:[#allocation9 + $0x8] sm:$0xff] %v7565
    %7614 = vst [vmem:[#allocation9 + $0x10] sm:$0xff] %v7568
    %7615 = vst [vmem:[#allocation9 + $0x18] sm:$0xff] %v7570
    %7616 = vst [vmem:[#allocation9 + $0x20] sm:$0xff] %v7573
    %7617 = vst [vmem:[#allocation9 + $0x28] sm:$0xff] %v7575
    %7618 = vst [vmem:[#allocation9 + $0x30] sm:$0xff] %v7578
    %7619 = vst [vmem:[#allocation9 + $0x38] sm:$0xff] %v7580
    %7620 = vst [vmem:[#allocation9 + $0x40] sm:$0xff] %v7583
    %7621 = vst [vmem:[#allocation9 + $0x48] sm:$0xff] %v7585
    %7622 = vst [vmem:[#allocation9 + $0x50] sm:$0xff] %v7588
    %7623 = vst [vmem:[#allocation9 + $0x58] sm:$0xff] %v7590
    %7624 = vst [vmem:[#allocation9 + $0x60] sm:$0xff] %v7593
    %7625 = vst [vmem:[#allocation9 + $0x68] sm:$0xff] %v7595
    %7626 = vst [vmem:[#allocation9 + $0x70] sm:$0xff] %v7598
    %7627 = vst [vmem:[#allocation9 + $0x78] sm:$0xff] %v7600
    %7628 = vst [vmem:[#allocation9 + $0x80] sm:$0xff] %v7603
    %7629 = vst [vmem:[#allocation9 + $0x88] sm:$0xff] %v7605
    %7630 = vst [vmem:[#allocation9 + $0x90] sm:$0xff] %v7608
    %7631 = vst [vmem:[#allocation9 + $0x98] sm:$0xff] %v7610
    %7632 = vst [vmem:[#allocation9 + $0xa0] sm:$0xff] 1.0
    %7633 = vst [vmem:[#allocation9 + $0xa8] sm:$0xff] 1.0
    %7634 = vst [vmem:[#allocation9 + $0xb0] sm:$0xff] 1.0
    %7635 = vst [vmem:[#allocation9 + $0xb8] sm:$0xff] 1.0
    // Predicated region
    $region62: #{tpu_custom_call.1} parent=1 // pred_check
      _
    $region63: #{tpu_custom_call.1} parent=1 // pred_check_branch
      %7637 = sbr.rel (0) target = $region65
    $region64: #{tpu_custom_call.1} parent=1 // pred_region
      %7639 = vsyncadd [#allocation6], 0
      %s7640 = sshll.u32 [#allocation9], 4
      %s7641 = int_to_ptr.vmem [resolvable:$true] %s7640
      %s7642 = sshll.u32 %s13, 4
      %s7643 = int_to_ptr.hbm [resolvable:$true] %s7642
      %7648 = dma.vmem_to_hbm [thread:$0]  %s7641, 3072, %s7643, [#allocation6], 128, 128, 8
    $region65: #{tpu_custom_call.1} parent=1 // pred_fallthru
      _
    // Predicated region
    $region66: #{tpu_custom_call.1} parent=1 // pred_check
      _
    $region67: #{tpu_custom_call.1} parent=1 // pred_check_branch
      %7650 = sbr.rel (0) target = $region69
    $region68: #{tpu_custom_call.1} parent=1 // pred_region
      %7652 = dma.done [#allocation6], 3072
    $region69: #{tpu_custom_call.1} parent=1 // pred_fallthru
      _
    %7653 = vsyncpa [#allocation5], 1
    %7654 = vsyncpa [#allocation8], 1
    %7655 = vsyncpa [#allocation6], 1

</llo_original>
